<compile_context>
chip_gen: v7x
topology: tpu7x:2x2x1
jax: 0.10.0
libtpu: 0.0.40
codegen_flags: <defaults>
</compile_context>

<pallas_src>
import jax
import jax.numpy as jnp
from jax.experimental import pallas as pl
from jax.experimental.pallas import tpu as pltpu

EXPANSION = 4
BN_EPS = 1e-5
# Above default scoped VMEM on v5e (16 MiB) and v6e/v7x (32 MiB), below v7x 64 MiB physical.
VMEM_LIMIT_BYTES = 48 * 1024 * 1024


def _round_up(x, m):
    return (x + m - 1) // m * m


# --------------------------------------------------------------------------- kernels
def _bnrelu_matmul_kernel(x_ref, scale_ref, bias_ref, w_ref, o_ref):
    # x: (TM, Cin) f32, scale/bias: (1, Cin) f32, w: (Cin, Cout) bf16, o: (TM, Cout) f32
    y = jnp.maximum(x_ref[...] * scale_ref[...] + bias_ref[...], 0.0)
    o_ref[...] = jnp.dot(
        y.astype(jnp.bfloat16), w_ref[...], preferred_element_type=jnp.float32
    )


def _bnrelu_dual_matmul_kernel(x_ref, scale_ref, bias_ref, w1_ref, ws_ref, o1_ref, os_ref):
    # Shared BN+ReLU feeding two matmuls (conv1 and shortcut 1x1 conv).
    y = jnp.maximum(x_ref[...] * scale_ref[...] + bias_ref[...], 0.0).astype(jnp.bfloat16)
    o1_ref[...] = jnp.dot(y, w1_ref[...], preferred_element_type=jnp.float32)
    os_ref[...] = jnp.dot(y, ws_ref[...], preferred_element_type=jnp.float32)


def _bnrelu_matmul_add_kernel(x_ref, scale_ref, bias_ref, w_ref, r_ref, o_ref):
    # Same as _bnrelu_matmul_kernel plus residual add (r: (TM, Cout) f32).
    y = jnp.maximum(x_ref[...] * scale_ref[...] + bias_ref[...], 0.0)
    o_ref[...] = (
        jnp.dot(y.astype(jnp.bfloat16), w_ref[...], preferred_element_type=jnp.float32)
        + r_ref[...]
    )


def _make_conv3x3_bnrelu_kernel(stride, H, W, C, Co):
    """3x3 conv (pad=1, stride applied in-kernel) of relu(bn(x)); one image per grid step."""
    Ho = (H - 1) // stride + 1
    Wo = (W - 1) // stride + 1

    def kernel(x_ref, scale_ref, bias_ref, w_ref, o_ref, pad_ref, acc_ref):
        # x: (1, H, W, C) f32 | scale/bias: (1, C) f32 | w: (9, C, Co) bf16
        # o: (1, Ho, Wo, Co) f32
        # pad_ref: (H+2, W+2, C) f32 scratch | acc_ref: (Ho*Wo, Co) f32 scratch
        #
        # Zero only the halo (2 rows + 2 columns); the interior is fully overwritten below.
        pad_ref[pl.ds(0, 1), pl.ds(0, W + 2), :] = jnp.zeros((1, W + 2, C), jnp.float32)
        pad_ref[pl.ds(H + 1, 1), pl.ds(0, W + 2), :] = jnp.zeros((1, W + 2, C), jnp.float32)
        pad_ref[pl.ds(0, H + 2), pl.ds(0, 1), :] = jnp.zeros((H + 2, 1, C), jnp.float32)
        pad_ref[pl.ds(0, H + 2), pl.ds(W + 1, 1), :] = jnp.zeros((H + 2, 1, C), jnp.float32)

        # Fused BN + ReLU (f32 elementwise), written once into the pad-scratch interior.
        t = jnp.maximum(x_ref[0] * scale_ref[...] + bias_ref[...], 0.0)
        pad_ref[pl.ds(1, H), pl.ds(1, W), :] = t

        first = True
        for kh in range(3):
            if stride == 1:
                # One contiguous row-band load per kh; kw shift happens on the value.
                band = pad_ref[pl.ds(kh, Ho), pl.ds(0, W + 2), :].astype(jnp.bfloat16)
            for kw in range(3):
                if stride == 1:
                    patch = band[:, kw:kw + Wo, :]
                else:
                    # Strided output: read only the needed input pixels (strided VMEM
                    # reads; this branch is exercised only when stride > 1).
                    patch = pad_ref[
                        pl.ds(kh, Ho, stride=stride),
                        pl.ds(kw, Wo, stride=stride),
                        :,
                    ].astype(jnp.bfloat16)
                contrib = jnp.dot(
                    patch.reshape(Ho * Wo, C),
                    w_ref[kh * 3 + kw],
                    preferred_element_type=jnp.float32,
                )
                if first:
                    acc_ref[...] = contrib
                    first = False
                else:
                    acc_ref[...] += contrib
        o_ref[0] = acc_ref[...].reshape(Ho, Wo, Co)

    return kernel, Ho, Wo


# --------------------------------------------------------------------------- wrappers
def bnrelu_matmul(x2d, scale, bias, w_bf16, residual=None, tm=512):
    """relu(x2d * scale + bias) @ w  [+ residual], row-tiled over the flattened pixels.

    The last row tile may be ragged; rows are independent, so Pallas' dropped
    out-of-bounds writes keep the result exact without padding the input.
    """
    M, Cin = x2d.shape
    Cout = w_bf16.shape[1]
    tm_eff = min(tm, _round_up(M, 8))
    grid_m = pl.cdiv(M, tm_eff)

    scale2 = scale.reshape(1, Cin).astype(jnp.float32)
    bias2 = bias.reshape(1, Cin).astype(jnp.float32)

    # TODO(synk): for large Cin (late ResNet stages), add a K grid axis ("arbitrary") with
    # an f32 VMEM accumulator instead of loading the whole (Cin, Cout) weight in one block.
    in_specs = [
        pl.BlockSpec((tm_eff, Cin), lambda i: (i, 0)),
        pl.BlockSpec((1, Cin), lambda i: (0, 0)),
        pl.BlockSpec((1, Cin), lambda i: (0, 0)),
        pl.BlockSpec((Cin, Cout), lambda i: (0, 0)),
    ]
    args = [x2d, scale2, bias2, w_bf16]
    kernel = _bnrelu_matmul_kernel
    if residual is not None:
        in_specs.append(pl.BlockSpec((tm_eff, Cout), lambda i: (i, 0)))
        args.append(residual)
        kernel = _bnrelu_matmul_add_kernel

    return pl.pallas_call(
        kernel,
        out_shape=jax.ShapeDtypeStruct((M, Cout), jnp.float32),
        grid=(grid_m,),
        in_specs=in_specs,
        out_specs=pl.BlockSpec((tm_eff, Cout), lambda i: (i, 0)),
        compiler_params=pltpu.CompilerParams(
            dimension_semantics=("parallel",),
            vmem_limit_bytes=VMEM_LIMIT_BYTES,
        ),
    )(*args)


def bnrelu_dual_matmul(x2d, scale, bias, w1_bf16, ws_bf16, tm=512):
    """relu(x2d * scale + bias) @ {w1, ws}: BN+ReLU computed once, two matmul outputs."""
    M, Cin = x2d.shape
    C1 = w1_bf16.shape[1]
    Cs = ws_bf16.shape[1]
    tm_eff = min(tm, _round_up(M, 8))
    grid_m = pl.cdiv(M, tm_eff)

    scale2 = scale.reshape(1, Cin).astype(jnp.float32)
    bias2 = bias.reshape(1, Cin).astype(jnp.float32)

    return pl.pallas_call(
        _bnrelu_dual_matmul_kernel,
        out_shape=(
            jax.ShapeDtypeStruct((M, C1), jnp.float32),
            jax.ShapeDtypeStruct((M, Cs), jnp.float32),
        ),
        grid=(grid_m,),
        in_specs=[
            pl.BlockSpec((tm_eff, Cin), lambda i: (i, 0)),
            pl.BlockSpec((1, Cin), lambda i: (0, 0)),
            pl.BlockSpec((1, Cin), lambda i: (0, 0)),
            pl.BlockSpec((Cin, C1), lambda i: (0, 0)),
            pl.BlockSpec((Cin, Cs), lambda i: (0, 0)),
        ],
        out_specs=[
            pl.BlockSpec((tm_eff, C1), lambda i: (i, 0)),
            pl.BlockSpec((tm_eff, Cs), lambda i: (i, 0)),
        ],
        compiler_params=pltpu.CompilerParams(
            dimension_semantics=("parallel",),
            vmem_limit_bytes=VMEM_LIMIT_BYTES,
        ),
    )(x2d, scale2, bias2, w1_bf16, ws_bf16)


def conv3x3_bnrelu(a, scale, bias, w33_bf16, stride=1):
    """relu(bn(a)) -> 3x3 conv (pad=1, stride); a: (N, H, W, C), w33: (3, 3, C, Co) bf16."""
    N, H, W, C = a.shape
    Co = w33_bf16.shape[-1]
    kernel, Ho, Wo = _make_conv3x3_bnrelu_kernel(stride, H, W, C, Co)
    w9 = w33_bf16.reshape(9, C, Co)
    s2 = scale.reshape(1, C).astype(jnp.float32)
    b2 = bias.reshape(1, C).astype(jnp.float32)
    # TODO(synk): for large images, tile over output rows with a 1-row halo DMA so the
    # per-step working set does not scale with the full image.
    return pl.pallas_call(
        kernel,
        out_shape=jax.ShapeDtypeStruct((N, Ho, Wo, Co), jnp.float32),
        grid=(N,),
        in_specs=[
            pl.BlockSpec((1, H, W, C), lambda n: (n, 0, 0, 0)),
            pl.BlockSpec((1, C), lambda n: (0, 0)),
            pl.BlockSpec((1, C), lambda n: (0, 0)),
            pl.BlockSpec((9, C, Co), lambda n: (0, 0, 0)),
        ],
        out_specs=pl.BlockSpec((1, Ho, Wo, Co), lambda n: (n, 0, 0, 0)),
        scratch_shapes=[
            pltpu.VMEM((H + 2, W + 2, C), jnp.float32),
            pltpu.VMEM((Ho * Wo, Co), jnp.float32),
        ],
        compiler_params=pltpu.CompilerParams(
            dimension_semantics=("parallel",),
            vmem_limit_bytes=VMEM_LIMIT_BYTES,
        ),
    )(a, s2, b2, w9)


def _fold_bn(g, b, m, v):
    s = g / jnp.sqrt(v + BN_EPS)
    return s, b - m * s


def preact_bottleneck_forward(x_nchw, p, stride, in_planes, planes):
    """Forward matching PreActBottleneck (eval-mode BatchNorm); NCHW in / NCHW out."""
    x = jnp.transpose(x_nchw, (0, 2, 3, 1)).astype(jnp.float32)  # NHWC
    N, H, W, Cin = x.shape
    s1, b1 = _fold_bn(p["g1"], p["b1"], p["m1"], p["v1"])
    s2, b2 = _fold_bn(p["g2"], p["b2"], p["m2"], p["v2"])
    s3, b3 = _fold_bn(p["g3"], p["b3"], p["m3"], p["v3"])
    # bf16 weights: halve weight DMA and feed the MXU at its bf16 rate (f32 accumulation).
    w1 = p["w1"].astype(jnp.bfloat16)
    w2 = p["w2"].astype(jnp.bfloat16)
    w3 = p["w3"].astype(jnp.bfloat16)

    has_shortcut = (stride != 1) or (in_planes != EXPANSION * planes)
    x2d = x.reshape(-1, Cin)

    # conv1 (1x1) on relu(bn1(x)); when possible, fuse the shortcut 1x1 conv into the
    # same kernel so relu(bn1(x)) is computed and streamed only once.
    if has_shortcut and stride == 1:
        ws = p["ws"].astype(jnp.bfloat16)
        a2d, sc = bnrelu_dual_matmul(x2d, s1, b1, w1, ws)
        a = a2d.reshape(N, H, W, planes)
    else:
        a = bnrelu_matmul(x2d, s1, b1, w1).reshape(N, H, W, planes)
        if has_shortcut:
            ws = p["ws"].astype(jnp.bfloat16)
            # TODO(synk): fold the spatial stride into the shortcut BlockSpec instead of
            # materializing a strided slice in XLA.
            xs2d = x[:, ::stride, ::stride, :].reshape(-1, Cin)
            sc = bnrelu_matmul(xs2d, s1, b1, ws)
        else:
            sc = x2d

    # conv2 (3x3, pad=1) on relu(bn2(a)); spatial stride applied inside the kernel
    b = conv3x3_bnrelu(a, s2, b2, w2, stride=stride)
    Ho, Wo = b.shape[1], b.shape[2]

    # conv3 (1x1) on relu(bn3(b)) + residual add
    out = bnrelu_matmul(b.reshape(-1, planes), s3, b3, w3, residual=sc)
    out = out.reshape(N, Ho, Wo, EXPANSION * planes)
    return jnp.transpose(out, (0, 3, 1, 2))  # back to NCHW


# --------------------------------------------------------------------------- reference & init
def reference_forward(x_nhwc, p, stride, has_shortcut, bf16_operands=True):
    """Pure-JAX reference. With bf16_operands=True it mirrors the kernels' precision
    (bf16 matmul operands, f32 accumulation) so the correctness check can stay tight."""
    cast = (lambda t: t.astype(jnp.bfloat16)) if bf16_operands else (lambda t: t)

    def bn(x, g, b, m, v):
        return (x - m) * (g / jnp.sqrt(v + BN_EPS)) + b

    def conv(x, w, s, pad):
        return jax.lax.conv_general_dilated(
            cast(x), cast(w), (s, s), [(pad, pad), (pad, pad)],
            dimension_numbers=("NHWC", "HWIO", "NHWC"),
            preferred_element_type=jnp.float32,
            precision=jax.lax.Precision.HIGHEST,
        )

    y = jax.nn.relu(bn(x_nhwc, p["g1"], p["b1"], p["m1"], p["v1"]))
    sc = conv(y, p["ws"][None, None], stride, 0) if has_shortcut else x_nhwc
    o = conv(y, p["w1"][None, None], 1, 0)
    o = jax.nn.relu(bn(o, p["g2"], p["b2"], p["m2"], p["v2"]))
    o = conv(o, p["w2"], stride, 1)
    o = jax.nn.relu(bn(o, p["g3"], p["b3"], p["m3"], p["v3"]))
    o = conv(o, p["w3"][None, None], 1, 0)
    return o + sc


def init_params(key, in_planes, planes):
    ks = jax.random.split(key, 7)

    def bn_params(k, c):
        k1, k2, k3, k4 = jax.random.split(k, 4)
        g = jax.random.uniform(k1, (c,), jnp.float32, 0.5, 1.5)
        b = jax.random.normal(k2, (c,), jnp.float32) * 0.1
        m = jax.random.normal(k3, (c,), jnp.float32) * 0.1
        v = jax.random.uniform(k4, (c,), jnp.float32, 0.5, 1.5)
        return g, b, m, v

    p = {}
    p["g1"], p["b1"], p["m1"], p["v1"] = bn_params(ks[0], in_planes)
    p["g2"], p["b2"], p["m2"], p["v2"] = bn_params(ks[1], planes)
    p["g3"], p["b3"], p["m3"], p["v3"] = bn_params(ks[2], planes)
    p["w1"] = jax.random.normal(ks[3], (in_planes, planes), jnp.float32) / (in_planes ** 0.5)
    p["w2"] = jax.random.normal(ks[4], (3, 3, planes, planes), jnp.float32) / ((9 * planes) ** 0.5)
    p["w3"] = jax.random.normal(ks[5], (planes, EXPANSION * planes), jnp.float32) / (planes ** 0.5)
    p["ws"] = jax.random.normal(ks[6], (in_planes, EXPANSION * planes), jnp.float32) / (in_planes ** 0.5)
    return p


if __name__ == "__main__":
    key = jax.random.PRNGKey(0)
    in_planes, planes, stride = 4, 4, 1  # shortcut conv present (4 != 4*4)
    N, H, W = 2, 16, 16
    kx, kp = jax.random.split(key)
    x = jax.random.normal(kx, (N, in_planes, H, W), jnp.float32)  # NCHW like PyTorch
    params = init_params(kp, in_planes, planes)

    fwd = jax.jit(preact_bottleneck_forward, static_argnums=(2, 3, 4))
    out = jax.block_until_ready(fwd(x, params, stride, in_planes, planes))

    # Precision-matched pure-JAX reference (eval-mode BN, bf16 matmul operands, f32 accum).
    x_nhwc = jnp.transpose(x, (0, 2, 3, 1))
    ref = reference_forward(x_nhwc, params, stride, has_shortcut=True, bf16_operands=True)
    ref_nchw = jnp.transpose(ref, (0, 3, 1, 2))
    assert out.shape == ref_nchw.shape, (out.shape, ref_nchw.shape)
    err = float(jnp.max(jnp.abs(out - ref_nchw)))
    tol = 2e-2 * float(jnp.max(jnp.abs(ref_nchw))) + 1e-3
    if err <= tol:
        print("KERNEL_OK")
    else:
        raise SystemExit(f"mismatch: max abs err = {err} (tol {tol})")
</pallas_src>

<mosaic_0001>
module attributes {stable_mosaic.version = 11 : i64} {
  func.func @_bnrelu_dual_matmul_kernel(%arg0: i32, %arg1: memref<512x4xf32, #tpu.memory_space<vmem>>, %arg2: memref<1x4xf32, #tpu.memory_space<vmem>>, %arg3: memref<1x4xf32, #tpu.memory_space<vmem>>, %arg4: memref<4x4xbf16, #tpu.memory_space<vmem>>, %arg5: memref<4x16xbf16, #tpu.memory_space<vmem>>, %arg6: memref<512x4xf32, #tpu.memory_space<vmem>>, %arg7: memref<512x16xf32, #tpu.memory_space<vmem>>) attributes {dimension_semantics = [#tpu.dimension_semantics<parallel>], iteration_bounds = array<i64: 1>, scalar_prefetch = 0 : i64, scratch_operands = 0 : i64, tpu.core_type = #tpu.core_type<tc>, window_params = [{transform_indices = @transform_0, window_bounds = array<i64: 512, 4>}, {pipeline_mode = #tpu.pipeline_mode<synchronous>, transform_indices = @transform_1, window_bounds = array<i64: 1, 4>}, {pipeline_mode = #tpu.pipeline_mode<synchronous>, transform_indices = @transform_2, window_bounds = array<i64: 1, 4>}, {pipeline_mode = #tpu.pipeline_mode<synchronous>, transform_indices = @transform_3, window_bounds = array<i64: 4, 4>}, {pipeline_mode = #tpu.pipeline_mode<synchronous>, transform_indices = @transform_4, window_bounds = array<i64: 4, 16>}, {transform_indices = @transform_5, window_bounds = array<i64: 512, 4>}, {transform_indices = @transform_6, window_bounds = array<i64: 512, 16>}]} {
    %c0 = arith.constant 0 : index
    %c0_0 = arith.constant 0 : index
    %0 = vector.load %arg1[%c0, %c0_0] : memref<512x4xf32, #tpu.memory_space<vmem>>, vector<512x4xf32>
    %c0_1 = arith.constant 0 : index
    %c0_2 = arith.constant 0 : index
    %1 = vector.load %arg2[%c0_1, %c0_2] : memref<1x4xf32, #tpu.memory_space<vmem>>, vector<1x4xf32>
    %2 = vector.broadcast %1 : vector<1x4xf32> to vector<512x4xf32>
    %3 = arith.mulf %0, %2 : vector<512x4xf32>
    %c0_3 = arith.constant 0 : index
    %c0_4 = arith.constant 0 : index
    %4 = vector.load %arg3[%c0_3, %c0_4] : memref<1x4xf32, #tpu.memory_space<vmem>>, vector<1x4xf32>
    %5 = vector.broadcast %4 : vector<1x4xf32> to vector<512x4xf32>
    %6 = arith.addf %3, %5 : vector<512x4xf32>
    %cst = arith.constant 0.000000e+00 : f32
    %7 = vector.broadcast %cst : f32 to vector<512x4xf32>
    %8 = arith.maximumf %6, %7 : vector<512x4xf32>
    %9 = arith.truncf %8 : vector<512x4xf32> to vector<512x4xbf16>
    %c0_5 = arith.constant 0 : index
    %c0_6 = arith.constant 0 : index
    %10 = vector.load %arg4[%c0_5, %c0_6] : memref<4x4xbf16, #tpu.memory_space<vmem>>, vector<4x4xbf16>
    %cst_7 = arith.constant dense<0.000000e+00> : vector<512x4xf32>
    %11 = tpu.matmul %9, %10, %cst_7 {dimension_numbers = #tpu.dot_dimension_numbers<[1], [0], [0], [1], [0, 0, 1, 1], [], []>} : vector<512x4xbf16>, vector<4x4xbf16>, vector<512x4xf32> -> vector<512x4xf32>
    %c0_8 = arith.constant 0 : index
    %c0_9 = arith.constant 0 : index
    %12 = vector.load %arg6[%c0_8, %c0_9] : memref<512x4xf32, #tpu.memory_space<vmem>>, vector<512x4xf32>
    tpu.vector_store %arg6[%c0_8, %c0_9], %11 {strides = array<i32>} : memref<512x4xf32, #tpu.memory_space<vmem>>, vector<512x4xf32>,
    %c0_10 = arith.constant 0 : index
    %c0_11 = arith.constant 0 : index
    %13 = vector.load %arg5[%c0_10, %c0_11] : memref<4x16xbf16, #tpu.memory_space<vmem>>, vector<4x16xbf16>
    %cst_12 = arith.constant dense<0.000000e+00> : vector<512x16xf32>
    %14 = tpu.matmul %9, %13, %cst_12 {dimension_numbers = #tpu.dot_dimension_numbers<[1], [0], [0], [1], [0, 0, 1, 1], [], []>} : vector<512x4xbf16>, vector<4x16xbf16>, vector<512x16xf32> -> vector<512x16xf32>
    %c0_13 = arith.constant 0 : index
    %c0_14 = arith.constant 0 : index
    %15 = vector.load %arg7[%c0_13, %c0_14] : memref<512x16xf32, #tpu.memory_space<vmem>>, vector<512x16xf32>
    tpu.vector_store %arg7[%c0_13, %c0_14], %14 {strides = array<i32>} : memref<512x16xf32, #tpu.memory_space<vmem>>, vector<512x16xf32>,
    return
  }
  func.func @transform_0(%arg0: i32) -> (i32, i32) {
    %c0_i32 = arith.constant 0 : i32
    %c0_i32_0 = arith.constant 0 : i32
    return %arg0, %c0_i32 : i32, i32
  }
  func.func @transform_1(%arg0: i32) -> (i32, i32) {
    %c0_i32 = arith.constant 0 : i32
    %c0_i32_0 = arith.constant 0 : i32
    %c0_i32_1 = arith.constant 0 : i32
    return %c0_i32, %c0_i32_0 : i32, i32
  }
  func.func @transform_2(%arg0: i32) -> (i32, i32) {
    %c0_i32 = arith.constant 0 : i32
    %c0_i32_0 = arith.constant 0 : i32
    %c0_i32_1 = arith.constant 0 : i32
    return %c0_i32, %c0_i32_0 : i32, i32
  }
  func.func @transform_3(%arg0: i32) -> (i32, i32) {
    %c0_i32 = arith.constant 0 : i32
    %c0_i32_0 = arith.constant 0 : i32
    %c0_i32_1 = arith.constant 0 : i32
    return %c0_i32, %c0_i32_0 : i32, i32
  }
  func.func @transform_4(%arg0: i32) -> (i32, i32) {
    %c0_i32 = arith.constant 0 : i32
    %c0_i32_0 = arith.constant 0 : i32
    %c0_i32_1 = arith.constant 0 : i32
    return %c0_i32, %c0_i32_0 : i32, i32
  }
  func.func @transform_5(%arg0: i32) -> (i32, i32) {
    %c0_i32 = arith.constant 0 : i32
    %c0_i32_0 = arith.constant 0 : i32
    return %arg0, %c0_i32 : i32, i32
  }
  func.func @transform_6(%arg0: i32) -> (i32, i32) {
    %c0_i32 = arith.constant 0 : i32
    %c0_i32_0 = arith.constant 0 : i32
    return %arg0, %c0_i32 : i32, i32
  }
}

module attributes {stable_mosaic.version = 11 : i64} {
  func.func @kernel(%arg0: i32, %arg1: memref<1x16x16x4xf32, #tpu.memory_space<vmem>>, %arg2: memref<1x4xf32, #tpu.memory_space<vmem>>, %arg3: memref<1x4xf32, #tpu.memory_space<vmem>>, %arg4: memref<9x4x4xbf16, #tpu.memory_space<vmem>>, %arg5: memref<1x16x16x4xf32, #tpu.memory_space<vmem>>, %arg6: memref<18x18x4xf32, #tpu.memory_space<vmem>>, %arg7: memref<256x4xf32, #tpu.memory_space<vmem>>) attributes {dimension_semantics = [#tpu.dimension_semantics<parallel>], iteration_bounds = array<i64: 2>, scalar_prefetch = 0 : i64, scratch_operands = 2 : i64, tpu.core_type = #tpu.core_type<tc>, window_params = [{transform_indices = @transform_0, window_bounds = array<i64: 1, 16, 16, 4>}, {pipeline_mode = #tpu.pipeline_mode<synchronous>, transform_indices = @transform_1, window_bounds = array<i64: 1, 4>}, {pipeline_mode = #tpu.pipeline_mode<synchronous>, transform_indices = @transform_2, window_bounds = array<i64: 1, 4>}, {pipeline_mode = #tpu.pipeline_mode<synchronous>, transform_indices = @transform_3, window_bounds = array<i64: 9, 4, 4>}, {transform_indices = @transform_4, window_bounds = array<i64: 1, 16, 16, 4>}]} {
    %cst = arith.constant 0.000000e+00 : f32
    %0 = vector.broadcast %cst : f32 to vector<1x18x4xf32>
    %c0 = arith.constant 0 : index
    %c0_0 = arith.constant 0 : index
    %c0_1 = arith.constant 0 : index
    %1 = vector.load %arg6[%c0, %c0_0, %c0_1] : memref<18x18x4xf32, #tpu.memory_space<vmem>>, vector<1x18x4xf32>
    tpu.vector_store %arg6[%c0, %c0_0, %c0_1], %0 {strides = array<i32>} : memref<18x18x4xf32, #tpu.memory_space<vmem>>, vector<1x18x4xf32>,
    %cst_2 = arith.constant 0.000000e+00 : f32
    %2 = vector.broadcast %cst_2 : f32 to vector<1x18x4xf32>
    %c17 = arith.constant 17 : index
    %c0_3 = arith.constant 0 : index
    %c0_4 = arith.constant 0 : index
    %3 = vector.load %arg6[%c17, %c0_3, %c0_4] : memref<18x18x4xf32, #tpu.memory_space<vmem>>, vector<1x18x4xf32>
    tpu.vector_store %arg6[%c17, %c0_3, %c0_4], %2 {strides = array<i32>} : memref<18x18x4xf32, #tpu.memory_space<vmem>>, vector<1x18x4xf32>,
    %cst_5 = arith.constant 0.000000e+00 : f32
    %4 = vector.broadcast %cst_5 : f32 to vector<18x1x4xf32>
    %c0_6 = arith.constant 0 : index
    %c0_7 = arith.constant 0 : index
    %c0_8 = arith.constant 0 : index
    %5 = vector.load %arg6[%c0_6, %c0_7, %c0_8] : memref<18x18x4xf32, #tpu.memory_space<vmem>>, vector<18x1x4xf32>
    tpu.vector_store %arg6[%c0_6, %c0_7, %c0_8], %4 {strides = array<i32>} : memref<18x18x4xf32, #tpu.memory_space<vmem>>, vector<18x1x4xf32>,
    %cst_9 = arith.constant 0.000000e+00 : f32
    %6 = vector.broadcast %cst_9 : f32 to vector<18x1x4xf32>
    %c0_10 = arith.constant 0 : index
    %c17_11 = arith.constant 17 : index
    %c0_12 = arith.constant 0 : index
    %7 = vector.load %arg6[%c0_10, %c17_11, %c0_12] : memref<18x18x4xf32, #tpu.memory_space<vmem>>, vector<18x1x4xf32>
    tpu.vector_store %arg6[%c0_10, %c17_11, %c0_12], %6 {strides = array<i32>} : memref<18x18x4xf32, #tpu.memory_space<vmem>>, vector<18x1x4xf32>,
    %c0_13 = arith.constant 0 : index
    %c0_14 = arith.constant 0 : index
    %c0_15 = arith.constant 0 : index
    %c0_16 = arith.constant 0 : index
    %8 = vector.load %arg1[%c0_13, %c0_14, %c0_15, %c0_16] : memref<1x16x16x4xf32, #tpu.memory_space<vmem>>, vector<1x16x16x4xf32>
    %9 = vector.shape_cast %8 : vector<1x16x16x4xf32> to vector<16x16x4xf32>
    %c0_17 = arith.constant 0 : index
    %c0_18 = arith.constant 0 : index
    %10 = vector.load %arg2[%c0_17, %c0_18] : memref<1x4xf32, #tpu.memory_space<vmem>>, vector<1x4xf32>
    %11 = vector.shape_cast %10 : vector<1x4xf32> to vector<1x1x4xf32>
    %12 = vector.broadcast %11 : vector<1x1x4xf32> to vector<16x16x4xf32>
    %13 = arith.mulf %9, %12 : vector<16x16x4xf32>
    %c0_19 = arith.constant 0 : index
    %c0_20 = arith.constant 0 : index
    %14 = vector.load %arg3[%c0_19, %c0_20] : memref<1x4xf32, #tpu.memory_space<vmem>>, vector<1x4xf32>
    %15 = vector.shape_cast %14 : vector<1x4xf32> to vector<1x1x4xf32>
    %16 = vector.broadcast %15 : vector<1x1x4xf32> to vector<16x16x4xf32>
    %17 = arith.addf %13, %16 : vector<16x16x4xf32>
    %cst_21 = arith.constant 0.000000e+00 : f32
    %18 = vector.broadcast %cst_21 : f32 to vector<16x16x4xf32>
    %19 = arith.maximumf %17, %18 : vector<16x16x4xf32>
    %c1 = arith.constant 1 : index
    %c1_22 = arith.constant 1 : index
    %c0_23 = arith.constant 0 : index
    %20 = vector.load %arg6[%c1, %c1_22, %c0_23] : memref<18x18x4xf32, #tpu.memory_space<vmem>>, vector<16x16x4xf32>
    tpu.vector_store %arg6[%c1, %c1_22, %c0_23], %19 {strides = array<i32>} : memref<18x18x4xf32, #tpu.memory_space<vmem>>, vector<16x16x4xf32>,
    %c0_24 = arith.constant 0 : index
    %c0_25 = arith.constant 0 : index
    %c0_26 = arith.constant 0 : index
    %21 = vector.load %arg6[%c0_24, %c0_25, %c0_26] : memref<18x18x4xf32, #tpu.memory_space<vmem>>, vector<16x18x4xf32>
    %22 = arith.truncf %21 : vector<16x18x4xf32> to vector<16x18x4xbf16>
    %23 = vector.extract_strided_slice %22 {offsets = [0, 0, 0], sizes = [16, 16, 4], strides = [1, 1, 1]} : vector<16x18x4xbf16> to vector<16x16x4xbf16>
    %24 = vector.shape_cast %23 : vector<16x16x4xbf16> to vector<256x4xbf16>
    %c0_27 = arith.constant 0 : index
    %c0_28 = arith.constant 0 : index
    %c0_29 = arith.constant 0 : index
    %25 = vector.load %arg4[%c0_27, %c0_28, %c0_29] : memref<9x4x4xbf16, #tpu.memory_space<vmem>>, vector<1x4x4xbf16>
    %26 = vector.shape_cast %25 : vector<1x4x4xbf16> to vector<4x4xbf16>
    %cst_30 = arith.constant dense<0.000000e+00> : vector<256x4xf32>
    %27 = tpu.matmul %24, %26, %cst_30 {dimension_numbers = #tpu.dot_dimension_numbers<[1], [0], [0], [1], [0, 0, 1, 1], [], []>} : vector<256x4xbf16>, vector<4x4xbf16>, vector<256x4xf32> -> vector<256x4xf32>
    %c0_31 = arith.constant 0 : index
    %c0_32 = arith.constant 0 : index
    %28 = vector.load %arg7[%c0_31, %c0_32] : memref<256x4xf32, #tpu.memory_space<vmem>>, vector<256x4xf32>
    tpu.vector_store %arg7[%c0_31, %c0_32], %27 {strides = array<i32>} : memref<256x4xf32, #tpu.memory_space<vmem>>, vector<256x4xf32>,
    %29 = vector.extract_strided_slice %22 {offsets = [0, 1, 0], sizes = [16, 16, 4], strides = [1, 1, 1]} : vector<16x18x4xbf16> to vector<16x16x4xbf16>
    %30 = vector.shape_cast %29 : vector<16x16x4xbf16> to vector<256x4xbf16>
    %c1_33 = arith.constant 1 : index
    %c0_34 = arith.constant 0 : index
    %c0_35 = arith.constant 0 : index
    %31 = vector.load %arg4[%c1_33, %c0_34, %c0_35] : memref<9x4x4xbf16, #tpu.memory_space<vmem>>, vector<1x4x4xbf16>
    %32 = vector.shape_cast %31 : vector<1x4x4xbf16> to vector<4x4xbf16>
    %cst_36 = arith.constant dense<0.000000e+00> : vector<256x4xf32>
    %33 = tpu.matmul %30, %32, %cst_36 {dimension_numbers = #tpu.dot_dimension_numbers<[1], [0], [0], [1], [0, 0, 1, 1], [], []>} : vector<256x4xbf16>, vector<4x4xbf16>, vector<256x4xf32> -> vector<256x4xf32>
    %c0_37 = arith.constant 0 : index
    %c0_38 = arith.constant 0 : index
    %34 = vector.load %arg7[%c0_37, %c0_38] : memref<256x4xf32, #tpu.memory_space<vmem>>, vector<256x4xf32>
    %35 = arith.addf %34, %33 : vector<256x4xf32>
    %c0_39 = arith.constant 0 : index
    %c0_40 = arith.constant 0 : index
    %36 = vector.load %arg7[%c0_39, %c0_40] : memref<256x4xf32, #tpu.memory_space<vmem>>, vector<256x4xf32>
    tpu.vector_store %arg7[%c0_39, %c0_40], %35 {strides = array<i32>} : memref<256x4xf32, #tpu.memory_space<vmem>>, vector<256x4xf32>,
    %37 = vector.extract_strided_slice %22 {offsets = [0, 2, 0], sizes = [16, 16, 4], strides = [1, 1, 1]} : vector<16x18x4xbf16> to vector<16x16x4xbf16>
    %38 = vector.shape_cast %37 : vector<16x16x4xbf16> to vector<256x4xbf16>
    %c2 = arith.constant 2 : index
    %c0_41 = arith.constant 0 : index
    %c0_42 = arith.constant 0 : index
    %39 = vector.load %arg4[%c2, %c0_41, %c0_42] : memref<9x4x4xbf16, #tpu.memory_space<vmem>>, vector<1x4x4xbf16>
    %40 = vector.shape_cast %39 : vector<1x4x4xbf16> to vector<4x4xbf16>
    %cst_43 = arith.constant dense<0.000000e+00> : vector<256x4xf32>
    %41 = tpu.matmul %38, %40, %cst_43 {dimension_numbers = #tpu.dot_dimension_numbers<[1], [0], [0], [1], [0, 0, 1, 1], [], []>} : vector<256x4xbf16>, vector<4x4xbf16>, vector<256x4xf32> -> vector<256x4xf32>
    %c0_44 = arith.constant 0 : index
    %c0_45 = arith.constant 0 : index
    %42 = vector.load %arg7[%c0_44, %c0_45] : memref<256x4xf32, #tpu.memory_space<vmem>>, vector<256x4xf32>
    %43 = arith.addf %42, %41 : vector<256x4xf32>
    %c0_46 = arith.constant 0 : index
    %c0_47 = arith.constant 0 : index
    %44 = vector.load %arg7[%c0_46, %c0_47] : memref<256x4xf32, #tpu.memory_space<vmem>>, vector<256x4xf32>
    tpu.vector_store %arg7[%c0_46, %c0_47], %43 {strides = array<i32>} : memref<256x4xf32, #tpu.memory_space<vmem>>, vector<256x4xf32>,
    %c1_48 = arith.constant 1 : index
    %c0_49 = arith.constant 0 : index
    %c0_50 = arith.constant 0 : index
    %45 = vector.load %arg6[%c1_48, %c0_49, %c0_50] : memref<18x18x4xf32, #tpu.memory_space<vmem>>, vector<16x18x4xf32>
    %46 = arith.truncf %45 : vector<16x18x4xf32> to vector<16x18x4xbf16>
    %47 = vector.extract_strided_slice %46 {offsets = [0, 0, 0], sizes = [16, 16, 4], strides = [1, 1, 1]} : vector<16x18x4xbf16> to vector<16x16x4xbf16>
    %48 = vector.shape_cast %47 : vector<16x16x4xbf16> to vector<256x4xbf16>
    %c3 = arith.constant 3 : index
    %c0_51 = arith.constant 0 : index
    %c0_52 = arith.constant 0 : index
    %49 = vector.load %arg4[%c3, %c0_51, %c0_52] : memref<9x4x4xbf16, #tpu.memory_space<vmem>>, vector<1x4x4xbf16>
    %50 = vector.shape_cast %49 : vector<1x4x4xbf16> to vector<4x4xbf16>
    %cst_53 = arith.constant dense<0.000000e+00> : vector<256x4xf32>
    %51 = tpu.matmul %48, %50, %cst_53 {dimension_numbers = #tpu.dot_dimension_numbers<[1], [0], [0], [1], [0, 0, 1, 1], [], []>} : vector<256x4xbf16>, vector<4x4xbf16>, vector<256x4xf32> -> vector<256x4xf32>
    %c0_54 = arith.constant 0 : index
    %c0_55 = arith.constant 0 : index
    %52 = vector.load %arg7[%c0_54, %c0_55] : memref<256x4xf32, #tpu.memory_space<vmem>>, vector<256x4xf32>
    %53 = arith.addf %52, %51 : vector<256x4xf32>
    %c0_56 = arith.constant 0 : index
    %c0_57 = arith.constant 0 : index
    %54 = vector.load %arg7[%c0_56, %c0_57] : memref<256x4xf32, #tpu.memory_space<vmem>>, vector<256x4xf32>
    tpu.vector_store %arg7[%c0_56, %c0_57], %53 {strides = array<i32>} : memref<256x4xf32, #tpu.memory_space<vmem>>, vector<256x4xf32>,
    %55 = vector.extract_strided_slice %46 {offsets = [0, 1, 0], sizes = [16, 16, 4], strides = [1, 1, 1]} : vector<16x18x4xbf16> to vector<16x16x4xbf16>
    %56 = vector.shape_cast %55 : vector<16x16x4xbf16> to vector<256x4xbf16>
    %c4 = arith.constant 4 : index
    %c0_58 = arith.constant 0 : index
    %c0_59 = arith.constant 0 : index
    %57 = vector.load %arg4[%c4, %c0_58, %c0_59] : memref<9x4x4xbf16, #tpu.memory_space<vmem>>, vector<1x4x4xbf16>
    %58 = vector.shape_cast %57 : vector<1x4x4xbf16> to vector<4x4xbf16>
    %cst_60 = arith.constant dense<0.000000e+00> : vector<256x4xf32>
    %59 = tpu.matmul %56, %58, %cst_60 {dimension_numbers = #tpu.dot_dimension_numbers<[1], [0], [0], [1], [0, 0, 1, 1], [], []>} : vector<256x4xbf16>, vector<4x4xbf16>, vector<256x4xf32> -> vector<256x4xf32>
    %c0_61 = arith.constant 0 : index
    %c0_62 = arith.constant 0 : index
    %60 = vector.load %arg7[%c0_61, %c0_62] : memref<256x4xf32, #tpu.memory_space<vmem>>, vector<256x4xf32>
    %61 = arith.addf %60, %59 : vector<256x4xf32>
    %c0_63 = arith.constant 0 : index
    %c0_64 = arith.constant 0 : index
    %62 = vector.load %arg7[%c0_63, %c0_64] : memref<256x4xf32, #tpu.memory_space<vmem>>, vector<256x4xf32>
    tpu.vector_store %arg7[%c0_63, %c0_64], %61 {strides = array<i32>} : memref<256x4xf32, #tpu.memory_space<vmem>>, vector<256x4xf32>,
    %63 = vector.extract_strided_slice %46 {offsets = [0, 2, 0], sizes = [16, 16, 4], strides = [1, 1, 1]} : vector<16x18x4xbf16> to vector<16x16x4xbf16>
    %64 = vector.shape_cast %63 : vector<16x16x4xbf16> to vector<256x4xbf16>
    %c5 = arith.constant 5 : index
    %c0_65 = arith.constant 0 : index
    %c0_66 = arith.constant 0 : index
    %65 = vector.load %arg4[%c5, %c0_65, %c0_66] : memref<9x4x4xbf16, #tpu.memory_space<vmem>>, vector<1x4x4xbf16>
    %66 = vector.shape_cast %65 : vector<1x4x4xbf16> to vector<4x4xbf16>
    %cst_67 = arith.constant dense<0.000000e+00> : vector<256x4xf32>
    %67 = tpu.matmul %64, %66, %cst_67 {dimension_numbers = #tpu.dot_dimension_numbers<[1], [0], [0], [1], [0, 0, 1, 1], [], []>} : vector<256x4xbf16>, vector<4x4xbf16>, vector<256x4xf32> -> vector<256x4xf32>
    %c0_68 = arith.constant 0 : index
    %c0_69 = arith.constant 0 : index
    %68 = vector.load %arg7[%c0_68, %c0_69] : memref<256x4xf32, #tpu.memory_space<vmem>>, vector<256x4xf32>
    %69 = arith.addf %68, %67 : vector<256x4xf32>
    %c0_70 = arith.constant 0 : index
    %c0_71 = arith.constant 0 : index
    %70 = vector.load %arg7[%c0_70, %c0_71] : memref<256x4xf32, #tpu.memory_space<vmem>>, vector<256x4xf32>
    tpu.vector_store %arg7[%c0_70, %c0_71], %69 {strides = array<i32>} : memref<256x4xf32, #tpu.memory_space<vmem>>, vector<256x4xf32>,
    %c2_72 = arith.constant 2 : index
    %c0_73 = arith.constant 0 : index
    %c0_74 = arith.constant 0 : index
    %71 = vector.load %arg6[%c2_72, %c0_73, %c0_74] : memref<18x18x4xf32, #tpu.memory_space<vmem>>, vector<16x18x4xf32>
    %72 = arith.truncf %71 : vector<16x18x4xf32> to vector<16x18x4xbf16>
    %73 = vector.extract_strided_slice %72 {offsets = [0, 0, 0], sizes = [16, 16, 4], strides = [1, 1, 1]} : vector<16x18x4xbf16> to vector<16x16x4xbf16>
    %74 = vector.shape_cast %73 : vector<16x16x4xbf16> to vector<256x4xbf16>
    %c6 = arith.constant 6 : index
    %c0_75 = arith.constant 0 : index
    %c0_76 = arith.constant 0 : index
    %75 = vector.load %arg4[%c6, %c0_75, %c0_76] : memref<9x4x4xbf16, #tpu.memory_space<vmem>>, vector<1x4x4xbf16>
    %76 = vector.shape_cast %75 : vector<1x4x4xbf16> to vector<4x4xbf16>
    %cst_77 = arith.constant dense<0.000000e+00> : vector<256x4xf32>
    %77 = tpu.matmul %74, %76, %cst_77 {dimension_numbers = #tpu.dot_dimension_numbers<[1], [0], [0], [1], [0, 0, 1, 1], [], []>} : vector<256x4xbf16>, vector<4x4xbf16>, vector<256x4xf32> -> vector<256x4xf32>
    %c0_78 = arith.constant 0 : index
    %c0_79 = arith.constant 0 : index
    %78 = vector.load %arg7[%c0_78, %c0_79] : memref<256x4xf32, #tpu.memory_space<vmem>>, vector<256x4xf32>
    %79 = arith.addf %78, %77 : vector<256x4xf32>
    %c0_80 = arith.constant 0 : index
    %c0_81 = arith.constant 0 : index
    %80 = vector.load %arg7[%c0_80, %c0_81] : memref<256x4xf32, #tpu.memory_space<vmem>>, vector<256x4xf32>
    tpu.vector_store %arg7[%c0_80, %c0_81], %79 {strides = array<i32>} : memref<256x4xf32, #tpu.memory_space<vmem>>, vector<256x4xf32>,
    %81 = vector.extract_strided_slice %72 {offsets = [0, 1, 0], sizes = [16, 16, 4], strides = [1, 1, 1]} : vector<16x18x4xbf16> to vector<16x16x4xbf16>
    %82 = vector.shape_cast %81 : vector<16x16x4xbf16> to vector<256x4xbf16>
    %c7 = arith.constant 7 : index
    %c0_82 = arith.constant 0 : index
    %c0_83 = arith.constant 0 : index
    %83 = vector.load %arg4[%c7, %c0_82, %c0_83] : memref<9x4x4xbf16, #tpu.memory_space<vmem>>, vector<1x4x4xbf16>
    %84 = vector.shape_cast %83 : vector<1x4x4xbf16> to vector<4x4xbf16>
    %cst_84 = arith.constant dense<0.000000e+00> : vector<256x4xf32>
    %85 = tpu.matmul %82, %84, %cst_84 {dimension_numbers = #tpu.dot_dimension_numbers<[1], [0], [0], [1], [0, 0, 1, 1], [], []>} : vector<256x4xbf16>, vector<4x4xbf16>, vector<256x4xf32> -> vector<256x4xf32>
    %c0_85 = arith.constant 0 : index
    %c0_86 = arith.constant 0 : index
    %86 = vector.load %arg7[%c0_85, %c0_86] : memref<256x4xf32, #tpu.memory_space<vmem>>, vector<256x4xf32>
    %87 = arith.addf %86, %85 : vector<256x4xf32>
    %c0_87 = arith.constant 0 : index
    %c0_88 = arith.constant 0 : index
    %88 = vector.load %arg7[%c0_87, %c0_88] : memref<256x4xf32, #tpu.memory_space<vmem>>, vector<256x4xf32>
    tpu.vector_store %arg7[%c0_87, %c0_88], %87 {strides = array<i32>} : memref<256x4xf32, #tpu.memory_space<vmem>>, vector<256x4xf32>,
    %89 = vector.extract_strided_slice %72 {offsets = [0, 2, 0], sizes = [16, 16, 4], strides = [1, 1, 1]} : vector<16x18x4xbf16> to vector<16x16x4xbf16>
    %90 = vector.shape_cast %89 : vector<16x16x4xbf16> to vector<256x4xbf16>
    %c8 = arith.constant 8 : index
    %c0_89 = arith.constant 0 : index
    %c0_90 = arith.constant 0 : index
    %91 = vector.load %arg4[%c8, %c0_89, %c0_90] : memref<9x4x4xbf16, #tpu.memory_space<vmem>>, vector<1x4x4xbf16>
    %92 = vector.shape_cast %91 : vector<1x4x4xbf16> to vector<4x4xbf16>
    %cst_91 = arith.constant dense<0.000000e+00> : vector<256x4xf32>
    %93 = tpu.matmul %90, %92, %cst_91 {dimension_numbers = #tpu.dot_dimension_numbers<[1], [0], [0], [1], [0, 0, 1, 1], [], []>} : vector<256x4xbf16>, vector<4x4xbf16>, vector<256x4xf32> -> vector<256x4xf32>
    %c0_92 = arith.constant 0 : index
    %c0_93 = arith.constant 0 : index
    %94 = vector.load %arg7[%c0_92, %c0_93] : memref<256x4xf32, #tpu.memory_space<vmem>>, vector<256x4xf32>
    %95 = arith.addf %94, %93 : vector<256x4xf32>
    %c0_94 = arith.constant 0 : index
    %c0_95 = arith.constant 0 : index
    %96 = vector.load %arg7[%c0_94, %c0_95] : memref<256x4xf32, #tpu.memory_space<vmem>>, vector<256x4xf32>
    tpu.vector_store %arg7[%c0_94, %c0_95], %95 {strides = array<i32>} : memref<256x4xf32, #tpu.memory_space<vmem>>, vector<256x4xf32>,
    %c0_96 = arith.constant 0 : index
    %c0_97 = arith.constant 0 : index
    %97 = vector.load %arg7[%c0_96, %c0_97] : memref<256x4xf32, #tpu.memory_space<vmem>>, vector<256x4xf32>
    %98 = vector.shape_cast %97 : vector<256x4xf32> to vector<16x16x4xf32>
    %c0_98 = arith.constant 0 : index
    %c0_99 = arith.constant 0 : index
    %c0_100 = arith.constant 0 : index
    %c0_101 = arith.constant 0 : index
    %99 = vector.load %arg5[%c0_98, %c0_99, %c0_100, %c0_101] : memref<1x16x16x4xf32, #tpu.memory_space<vmem>>, vector<1x16x16x4xf32>
    %100 = vector.shape_cast %99 : vector<1x16x16x4xf32> to vector<16x16x4xf32>
    %101 = vector.shape_cast %98 : vector<16x16x4xf32> to vector<1x16x16x4xf32>
    tpu.vector_store %arg5[%c0_98, %c0_99, %c0_100, %c0_101], %101 {strides = array<i32>} : memref<1x16x16x4xf32, #tpu.memory_space<vmem>>, vector<1x16x16x4xf32>,
    return
  }
  func.func @transform_0(%arg0: i32) -> (i32, i32, i32, i32) {
    %c0_i32 = arith.constant 0 : i32
    %c0_i32_0 = arith.constant 0 : i32
    %c0_i32_1 = arith.constant 0 : i32
    %c0_i32_2 = arith.constant 0 : i32
    return %arg0, %c0_i32, %c0_i32_0, %c0_i32_1 : i32, i32, i32, i32
  }
  func.func @transform_1(%arg0: i32) -> (i32, i32) {
    %c0_i32 = arith.constant 0 : i32
    %c0_i32_0 = arith.constant 0 : i32
    %c0_i32_1 = arith.constant 0 : i32
    return %c0_i32, %c0_i32_0 : i32, i32
  }
  func.func @transform_2(%arg0: i32) -> (i32, i32) {
    %c0_i32 = arith.constant 0 : i32
    %c0_i32_0 = arith.constant 0 : i32
    %c0_i32_1 = arith.constant 0 : i32
    return %c0_i32, %c0_i32_0 : i32, i32
  }
  func.func @transform_3(%arg0: i32) -> (i32, i32, i32) {
    %c0_i32 = arith.constant 0 : i32
    %c0_i32_0 = arith.constant 0 : i32
    %c0_i32_1 = arith.constant 0 : i32
    %c0_i32_2 = arith.constant 0 : i32
    return %c0_i32, %c0_i32_0, %c0_i32_1 : i32, i32, i32
  }
  func.func @transform_4(%arg0: i32) -> (i32, i32, i32, i32) {
    %c0_i32 = arith.constant 0 : i32
    %c0_i32_0 = arith.constant 0 : i32
    %c0_i32_1 = arith.constant 0 : i32
    %c0_i32_2 = arith.constant 0 : i32
    return %arg0, %c0_i32, %c0_i32_0, %c0_i32_1 : i32, i32, i32, i32
  }
}

module attributes {stable_mosaic.version = 11 : i64} {
  func.func @_bnrelu_matmul_add_kernel(%arg0: i32, %arg1: memref<512x4xf32, #tpu.memory_space<vmem>>, %arg2: memref<1x4xf32, #tpu.memory_space<vmem>>, %arg3: memref<1x4xf32, #tpu.memory_space<vmem>>, %arg4: memref<4x16xbf16, #tpu.memory_space<vmem>>, %arg5: memref<512x16xf32, #tpu.memory_space<vmem>>, %arg6: memref<512x16xf32, #tpu.memory_space<vmem>>) attributes {dimension_semantics = [#tpu.dimension_semantics<parallel>], iteration_bounds = array<i64: 1>, scalar_prefetch = 0 : i64, scratch_operands = 0 : i64, tpu.core_type = #tpu.core_type<tc>, window_params = [{transform_indices = @transform_0, window_bounds = array<i64: 512, 4>}, {pipeline_mode = #tpu.pipeline_mode<synchronous>, transform_indices = @transform_1, window_bounds = array<i64: 1, 4>}, {pipeline_mode = #tpu.pipeline_mode<synchronous>, transform_indices = @transform_2, window_bounds = array<i64: 1, 4>}, {pipeline_mode = #tpu.pipeline_mode<synchronous>, transform_indices = @transform_3, window_bounds = array<i64: 4, 16>}, {transform_indices = @transform_4, window_bounds = array<i64: 512, 16>}, {transform_indices = @transform_5, window_bounds = array<i64: 512, 16>}]} {
    %c0 = arith.constant 0 : index
    %c0_0 = arith.constant 0 : index
    %0 = vector.load %arg1[%c0, %c0_0] : memref<512x4xf32, #tpu.memory_space<vmem>>, vector<512x4xf32>
    %c0_1 = arith.constant 0 : index
    %c0_2 = arith.constant 0 : index
    %1 = vector.load %arg2[%c0_1, %c0_2] : memref<1x4xf32, #tpu.memory_space<vmem>>, vector<1x4xf32>
    %2 = vector.broadcast %1 : vector<1x4xf32> to vector<512x4xf32>
    %3 = arith.mulf %0, %2 : vector<512x4xf32>
    %c0_3 = arith.constant 0 : index
    %c0_4 = arith.constant 0 : index
    %4 = vector.load %arg3[%c0_3, %c0_4] : memref<1x4xf32, #tpu.memory_space<vmem>>, vector<1x4xf32>
    %5 = vector.broadcast %4 : vector<1x4xf32> to vector<512x4xf32>
    %6 = arith.addf %3, %5 : vector<512x4xf32>
    %cst = arith.constant 0.000000e+00 : f32
    %7 = vector.broadcast %cst : f32 to vector<512x4xf32>
    %8 = arith.maximumf %6, %7 : vector<512x4xf32>
    %9 = arith.truncf %8 : vector<512x4xf32> to vector<512x4xbf16>
    %c0_5 = arith.constant 0 : index
    %c0_6 = arith.constant 0 : index
    %10 = vector.load %arg4[%c0_5, %c0_6] : memref<4x16xbf16, #tpu.memory_space<vmem>>, vector<4x16xbf16>
    %cst_7 = arith.constant dense<0.000000e+00> : vector<512x16xf32>
    %11 = tpu.matmul %9, %10, %cst_7 {dimension_numbers = #tpu.dot_dimension_numbers<[1], [0], [0], [1], [0, 0, 1, 1], [], []>} : vector<512x4xbf16>, vector<4x16xbf16>, vector<512x16xf32> -> vector<512x16xf32>
    %c0_8 = arith.constant 0 : index
    %c0_9 = arith.constant 0 : index
    %12 = vector.load %arg5[%c0_8, %c0_9] : memref<512x16xf32, #tpu.memory_space<vmem>>, vector<512x16xf32>
    %13 = arith.addf %11, %12 : vector<512x16xf32>
    %c0_10 = arith.constant 0 : index
    %c0_11 = arith.constant 0 : index
    %14 = vector.load %arg6[%c0_10, %c0_11] : memref<512x16xf32, #tpu.memory_space<vmem>>, vector<512x16xf32>
    tpu.vector_store %arg6[%c0_10, %c0_11], %13 {strides = array<i32>} : memref<512x16xf32, #tpu.memory_space<vmem>>, vector<512x16xf32>,
    return
  }
  func.func @transform_0(%arg0: i32) -> (i32, i32) {
    %c0_i32 = arith.constant 0 : i32
    %c0_i32_0 = arith.constant 0 : i32
    return %arg0, %c0_i32 : i32, i32
  }
  func.func @transform_1(%arg0: i32) -> (i32, i32) {
    %c0_i32 = arith.constant 0 : i32
    %c0_i32_0 = arith.constant 0 : i32
    %c0_i32_1 = arith.constant 0 : i32
    return %c0_i32, %c0_i32_0 : i32, i32
  }
  func.func @transform_2(%arg0: i32) -> (i32, i32) {
    %c0_i32 = arith.constant 0 : i32
    %c0_i32_0 = arith.constant 0 : i32
    %c0_i32_1 = arith.constant 0 : i32
    return %c0_i32, %c0_i32_0 : i32, i32
  }
  func.func @transform_3(%arg0: i32) -> (i32, i32) {
    %c0_i32 = arith.constant 0 : i32
    %c0_i32_0 = arith.constant 0 : i32
    %c0_i32_1 = arith.constant 0 : i32
    return %c0_i32, %c0_i32_0 : i32, i32
  }
  func.func @transform_4(%arg0: i32) -> (i32, i32) {
    %c0_i32 = arith.constant 0 : i32
    %c0_i32_0 = arith.constant 0 : i32
    return %arg0, %c0_i32 : i32, i32
  }
  func.func @transform_5(%arg0: i32) -> (i32, i32) {
    %c0_i32 = arith.constant 0 : i32
    %c0_i32_0 = arith.constant 0 : i32
    return %arg0, %c0_i32 : i32, i32
  }
}

</mosaic_0001>

<llo_original>
// kernel: preact_bottleneck_forward.5
$region0: #{preact_bottleneck_forward.5}
  #allocation0 [shape = 'u32[]', space=smem, size = 0x4, offset = 0x4, fixed_abs, tag = 'smem constant byte address 0x4 - core index']
  #allocation1 [shape = 'u32[144,128]{1,0:T(1,128)}', space=vmem, size = 0x12000, scoped, tag = 'internal scratch']
  %s0 = inlined_call_operand.vmem [shape: f32[512,4], index: 0, kind: input, shape index: {}]
  %s1 = inlined_call_operand.vmem [shape: f32[1,4], index: 1, kind: input, shape index: {}]
  %s2 = inlined_call_operand.vmem [shape: f32[1,4], index: 2, kind: input, shape index: {}]
  %s3 = inlined_call_operand.vmem [shape: bf16[4,16], index: 3, kind: input, shape index: {}]
  %s4 = inlined_call_operand.vmem [shape: f32[512,16], index: 4, kind: input, shape index: {}]
  %s5 = inlined_call_operand.vmem [shape: f32[512,16], index: 5, kind: output, shape index: {}]
  %s6 = sld [smem:[#allocation0]]
  $region30: #{preact_bottleneck_forward.5} parent=0
    _
  %s8 = ssub.s32 1, %s6
  %s9 = scalar_select 0, %s8, %s6
  // Predicated region
  $region2: #{preact_bottleneck_forward.5} parent=0 // pred_check
    _
  $region3: #{preact_bottleneck_forward.5} parent=0 // pred_check_branch
    %11 = sbr.rel (0) target = $region5
  $region4: #{preact_bottleneck_forward.5} parent=0 // pred_region
    _
  $region5: #{preact_bottleneck_forward.5} parent=0 // pred_fallthru
    _
  // Predicated region
  $region6: #{preact_bottleneck_forward.5} parent=0 // pred_check
    _
  $region7: #{preact_bottleneck_forward.5} parent=0 // pred_check_branch
    %13 = sbr.rel (0) target = $region9
  $region8: #{preact_bottleneck_forward.5} parent=0 // pred_region
    _
  $region9: #{preact_bottleneck_forward.5} parent=0 // pred_fallthru
    _
  // Predicated region
  $region10: #{preact_bottleneck_forward.5} parent=0 // pred_check
    _
  $region11: #{preact_bottleneck_forward.5} parent=0 // pred_check_branch
    %15 = sbr.rel (0) target = $region13
  $region12: #{preact_bottleneck_forward.5} parent=0 // pred_region
    _
  $region13: #{preact_bottleneck_forward.5} parent=0 // pred_fallthru
    _
  // Predicated region
  $region14: #{preact_bottleneck_forward.5} parent=0 // pred_check
    _
  $region15: #{preact_bottleneck_forward.5} parent=0 // pred_check_branch
    %17 = sbr.rel (0) target = $region17
  $region16: #{preact_bottleneck_forward.5} parent=0 // pred_region
    _
  $region17: #{preact_bottleneck_forward.5} parent=0 // pred_fallthru
    _
  // Predicated region
  $region18: #{preact_bottleneck_forward.5} parent=0 // pred_check
    _
  $region19: #{preact_bottleneck_forward.5} parent=0 // pred_check_branch
    %19 = sbr.rel (0) target = $region21
  $region20: #{preact_bottleneck_forward.5} parent=0 // pred_region
    _
  $region21: #{preact_bottleneck_forward.5} parent=0 // pred_fallthru
    _
  %v21 = vld [vmem:[%s0] sm:$0xff]
  %v22 = vld [vmem:[%s0 + $0x8] sm:$0xff]
  %v23 = vld [vmem:[%s0 + $0x10] sm:$0xff]
  %v24 = vld [vmem:[%s0 + $0x18] sm:$0xff]
  %v25 = vld [vmem:[%s0 + $0x20] sm:$0xff]
  %v26 = vld [vmem:[%s0 + $0x28] sm:$0xff]
  %v27 = vld [vmem:[%s0 + $0x30] sm:$0xff]
  %v28 = vld [vmem:[%s0 + $0x38] sm:$0xff]
  %v29 = vld [vmem:[%s0 + $0x40] sm:$0xff]
  %v30 = vld [vmem:[%s0 + $0x48] sm:$0xff]
  %v31 = vld [vmem:[%s0 + $0x50] sm:$0xff]
  %v32 = vld [vmem:[%s0 + $0x58] sm:$0xff]
  %v33 = vld [vmem:[%s0 + $0x60] sm:$0xff]
  %v34 = vld [vmem:[%s0 + $0x68] sm:$0xff]
  %v35 = vld [vmem:[%s0 + $0x70] sm:$0xff]
  %v36 = vld [vmem:[%s0 + $0x78] sm:$0xff]
  %v37 = vld [vmem:[%s0 + $0x80] sm:$0xff]
  %v38 = vld [vmem:[%s0 + $0x88] sm:$0xff]
  %v39 = vld [vmem:[%s0 + $0x90] sm:$0xff]
  %v40 = vld [vmem:[%s0 + $0x98] sm:$0xff]
  %v41 = vld [vmem:[%s0 + $0xa0] sm:$0xff]
  %v42 = vld [vmem:[%s0 + $0xa8] sm:$0xff]
  %v43 = vld [vmem:[%s0 + $0xb0] sm:$0xff]
  %v44 = vld [vmem:[%s0 + $0xb8] sm:$0xff]
  %v45 = vld [vmem:[%s0 + $0xc0] sm:$0xff]
  %v46 = vld [vmem:[%s0 + $0xc8] sm:$0xff]
  %v47 = vld [vmem:[%s0 + $0xd0] sm:$0xff]
  %v48 = vld [vmem:[%s0 + $0xd8] sm:$0xff]
  %v49 = vld [vmem:[%s0 + $0xe0] sm:$0xff]
  %v50 = vld [vmem:[%s0 + $0xe8] sm:$0xff]
  %v51 = vld [vmem:[%s0 + $0xf0] sm:$0xff]
  %v52 = vld [vmem:[%s0 + $0xf8] sm:$0xff]
  %v53 = vld [vmem:[%s0 + $0x100] sm:$0xff]
  %v54 = vld [vmem:[%s0 + $0x108] sm:$0xff]
  %v55 = vld [vmem:[%s0 + $0x110] sm:$0xff]
  %v56 = vld [vmem:[%s0 + $0x118] sm:$0xff]
  %v57 = vld [vmem:[%s0 + $0x120] sm:$0xff]
  %v58 = vld [vmem:[%s0 + $0x128] sm:$0xff]
  %v59 = vld [vmem:[%s0 + $0x130] sm:$0xff]
  %v60 = vld [vmem:[%s0 + $0x138] sm:$0xff]
  %v61 = vld [vmem:[%s0 + $0x140] sm:$0xff]
  %v62 = vld [vmem:[%s0 + $0x148] sm:$0xff]
  %v63 = vld [vmem:[%s0 + $0x150] sm:$0xff]
  %v64 = vld [vmem:[%s0 + $0x158] sm:$0xff]
  %v65 = vld [vmem:[%s0 + $0x160] sm:$0xff]
  %v66 = vld [vmem:[%s0 + $0x168] sm:$0xff]
  %v67 = vld [vmem:[%s0 + $0x170] sm:$0xff]
  %v68 = vld [vmem:[%s0 + $0x178] sm:$0xff]
  %v69 = vld [vmem:[%s0 + $0x180] sm:$0xff]
  %v70 = vld [vmem:[%s0 + $0x188] sm:$0xff]
  %v71 = vld [vmem:[%s0 + $0x190] sm:$0xff]
  %v72 = vld [vmem:[%s0 + $0x198] sm:$0xff]
  %v73 = vld [vmem:[%s0 + $0x1a0] sm:$0xff]
  %v74 = vld [vmem:[%s0 + $0x1a8] sm:$0xff]
  %v75 = vld [vmem:[%s0 + $0x1b0] sm:$0xff]
  %v76 = vld [vmem:[%s0 + $0x1b8] sm:$0xff]
  %v77 = vld [vmem:[%s0 + $0x1c0] sm:$0xff]
  %v78 = vld [vmem:[%s0 + $0x1c8] sm:$0xff]
  %v79 = vld [vmem:[%s0 + $0x1d0] sm:$0xff]
  %v80 = vld [vmem:[%s0 + $0x1d8] sm:$0xff]
  %v81 = vld [vmem:[%s0 + $0x1e0] sm:$0xff]
  %v82 = vld [vmem:[%s0 + $0x1e8] sm:$0xff]
  %v83 = vld [vmem:[%s0 + $0x1f0] sm:$0xff]
  %v84 = vld [vmem:[%s0 + $0x1f8] sm:$0xff]
  %v85 = vld [vmem:[%s1] sm:$0x1]
  %v87 = vlaneseq
  %v88 = vshrl.u32 %v87, 7
  %v89 = vsub.s32 0, %v88
  %v90 = vrot.slane %v85, %v89
  %v92 = vmul.f32 %v21, %v90
  %v93 = vmul.f32 %v22, %v90
  %v94 = vmul.f32 %v23, %v90
  %v95 = vmul.f32 %v24, %v90
  %v96 = vmul.f32 %v25, %v90
  %v97 = vmul.f32 %v26, %v90
  %v98 = vmul.f32 %v27, %v90
  %v99 = vmul.f32 %v28, %v90
  %v100 = vmul.f32 %v29, %v90
  %v101 = vmul.f32 %v30, %v90
  %v102 = vmul.f32 %v31, %v90
  %v103 = vmul.f32 %v32, %v90
  %v104 = vmul.f32 %v33, %v90
  %v105 = vmul.f32 %v34, %v90
  %v106 = vmul.f32 %v35, %v90
  %v107 = vmul.f32 %v36, %v90
  %v108 = vmul.f32 %v37, %v90
  %v109 = vmul.f32 %v38, %v90
  %v110 = vmul.f32 %v39, %v90
  %v111 = vmul.f32 %v40, %v90
  %v112 = vmul.f32 %v41, %v90
  %v113 = vmul.f32 %v42, %v90
  %v114 = vmul.f32 %v43, %v90
  %v115 = vmul.f32 %v44, %v90
  %v116 = vmul.f32 %v45, %v90
  %v117 = vmul.f32 %v46, %v90
  %v118 = vmul.f32 %v47, %v90
  %v119 = vmul.f32 %v48, %v90
  %v120 = vmul.f32 %v49, %v90
  %v121 = vmul.f32 %v50, %v90
  %v122 = vmul.f32 %v51, %v90
  %v123 = vmul.f32 %v52, %v90
  %v124 = vmul.f32 %v53, %v90
  %v125 = vmul.f32 %v54, %v90
  %v126 = vmul.f32 %v55, %v90
  %v127 = vmul.f32 %v56, %v90
  %v128 = vmul.f32 %v57, %v90
  %v129 = vmul.f32 %v58, %v90
  %v130 = vmul.f32 %v59, %v90
  %v131 = vmul.f32 %v60, %v90
  %v132 = vmul.f32 %v61, %v90
  %v133 = vmul.f32 %v62, %v90
  %v134 = vmul.f32 %v63, %v90
  %v135 = vmul.f32 %v64, %v90
  %v136 = vmul.f32 %v65, %v90
  %v137 = vmul.f32 %v66, %v90
  %v138 = vmul.f32 %v67, %v90
  %v139 = vmul.f32 %v68, %v90
  %v140 = vmul.f32 %v69, %v90
  %v141 = vmul.f32 %v70, %v90
  %v142 = vmul.f32 %v71, %v90
  %v143 = vmul.f32 %v72, %v90
  %v144 = vmul.f32 %v73, %v90
  %v145 = vmul.f32 %v74, %v90
  %v146 = vmul.f32 %v75, %v90
  %v147 = vmul.f32 %v76, %v90
  %v148 = vmul.f32 %v77, %v90
  %v149 = vmul.f32 %v78, %v90
  %v150 = vmul.f32 %v79, %v90
  %v151 = vmul.f32 %v80, %v90
  %v152 = vmul.f32 %v81, %v90
  %v153 = vmul.f32 %v82, %v90
  %v154 = vmul.f32 %v83, %v90
  %v155 = vmul.f32 %v84, %v90
  %v156 = vld [vmem:[%s2] sm:$0x1]
  %v158 = vlaneseq
  %v159 = vshrl.u32 %v158, 7
  %v160 = vsub.s32 0, %v159
  %v161 = vrot.slane %v156, %v160
  %v163 = vadd.f32 %v92, %v161
  %v164 = vadd.f32 %v93, %v161
  %v165 = vadd.f32 %v94, %v161
  %v166 = vadd.f32 %v95, %v161
  %v167 = vadd.f32 %v96, %v161
  %v168 = vadd.f32 %v97, %v161
  %v169 = vadd.f32 %v98, %v161
  %v170 = vadd.f32 %v99, %v161
  %v171 = vadd.f32 %v100, %v161
  %v172 = vadd.f32 %v101, %v161
  %v173 = vadd.f32 %v102, %v161
  %v174 = vadd.f32 %v103, %v161
  %v175 = vadd.f32 %v104, %v161
  %v176 = vadd.f32 %v105, %v161
  %v177 = vadd.f32 %v106, %v161
  %v178 = vadd.f32 %v107, %v161
  %v179 = vadd.f32 %v108, %v161
  %v180 = vadd.f32 %v109, %v161
  %v181 = vadd.f32 %v110, %v161
  %v182 = vadd.f32 %v111, %v161
  %v183 = vadd.f32 %v112, %v161
  %v184 = vadd.f32 %v113, %v161
  %v185 = vadd.f32 %v114, %v161
  %v186 = vadd.f32 %v115, %v161
  %v187 = vadd.f32 %v116, %v161
  %v188 = vadd.f32 %v117, %v161
  %v189 = vadd.f32 %v118, %v161
  %v190 = vadd.f32 %v119, %v161
  %v191 = vadd.f32 %v120, %v161
  %v192 = vadd.f32 %v121, %v161
  %v193 = vadd.f32 %v122, %v161
  %v194 = vadd.f32 %v123, %v161
  %v195 = vadd.f32 %v124, %v161
  %v196 = vadd.f32 %v125, %v161
  %v197 = vadd.f32 %v126, %v161
  %v198 = vadd.f32 %v127, %v161
  %v199 = vadd.f32 %v128, %v161
  %v200 = vadd.f32 %v129, %v161
  %v201 = vadd.f32 %v130, %v161
  %v202 = vadd.f32 %v131, %v161
  %v203 = vadd.f32 %v132, %v161
  %v204 = vadd.f32 %v133, %v161
  %v205 = vadd.f32 %v134, %v161
  %v206 = vadd.f32 %v135, %v161
  %v207 = vadd.f32 %v136, %v161
  %v208 = vadd.f32 %v137, %v161
  %v209 = vadd.f32 %v138, %v161
  %v210 = vadd.f32 %v139, %v161
  %v211 = vadd.f32 %v140, %v161
  %v212 = vadd.f32 %v141, %v161
  %v213 = vadd.f32 %v142, %v161
  %v214 = vadd.f32 %v143, %v161
  %v215 = vadd.f32 %v144, %v161
  %v216 = vadd.f32 %v145, %v161
  %v217 = vadd.f32 %v146, %v161
  %v218 = vadd.f32 %v147, %v161
  %v219 = vadd.f32 %v148, %v161
  %v220 = vadd.f32 %v149, %v161
  %v221 = vadd.f32 %v150, %v161
  %v222 = vadd.f32 %v151, %v161
  %v223 = vadd.f32 %v152, %v161
  %v224 = vadd.f32 %v153, %v161
  %v225 = vadd.f32 %v154, %v161
  %v226 = vadd.f32 %v155, %v161
  %v227 = vmax.f32 %v163, 0.0
  %v228 = vmax.f32 %v164, 0.0
  %v229 = vmax.f32 %v165, 0.0
  %v230 = vmax.f32 %v166, 0.0
  %v231 = vmax.f32 %v167, 0.0
  %v232 = vmax.f32 %v168, 0.0
  %v233 = vmax.f32 %v169, 0.0
  %v234 = vmax.f32 %v170, 0.0
  %v235 = vmax.f32 %v171, 0.0
  %v236 = vmax.f32 %v172, 0.0
  %v237 = vmax.f32 %v173, 0.0
  %v238 = vmax.f32 %v174, 0.0
  %v239 = vmax.f32 %v175, 0.0
  %v240 = vmax.f32 %v176, 0.0
  %v241 = vmax.f32 %v177, 0.0
  %v242 = vmax.f32 %v178, 0.0
  %v243 = vmax.f32 %v179, 0.0
  %v244 = vmax.f32 %v180, 0.0
  %v245 = vmax.f32 %v181, 0.0
  %v246 = vmax.f32 %v182, 0.0
  %v247 = vmax.f32 %v183, 0.0
  %v248 = vmax.f32 %v184, 0.0
  %v249 = vmax.f32 %v185, 0.0
  %v250 = vmax.f32 %v186, 0.0
  %v251 = vmax.f32 %v187, 0.0
  %v252 = vmax.f32 %v188, 0.0
  %v253 = vmax.f32 %v189, 0.0
  %v254 = vmax.f32 %v190, 0.0
  %v255 = vmax.f32 %v191, 0.0
  %v256 = vmax.f32 %v192, 0.0
  %v257 = vmax.f32 %v193, 0.0
  %v258 = vmax.f32 %v194, 0.0
  %v259 = vmax.f32 %v195, 0.0
  %v260 = vmax.f32 %v196, 0.0
  %v261 = vmax.f32 %v197, 0.0
  %v262 = vmax.f32 %v198, 0.0
  %v263 = vmax.f32 %v199, 0.0
  %v264 = vmax.f32 %v200, 0.0
  %v265 = vmax.f32 %v201, 0.0
  %v266 = vmax.f32 %v202, 0.0
  %v267 = vmax.f32 %v203, 0.0
  %v268 = vmax.f32 %v204, 0.0
  %v269 = vmax.f32 %v205, 0.0
  %v270 = vmax.f32 %v206, 0.0
  %v271 = vmax.f32 %v207, 0.0
  %v272 = vmax.f32 %v208, 0.0
  %v273 = vmax.f32 %v209, 0.0
  %v274 = vmax.f32 %v210, 0.0
  %v275 = vmax.f32 %v211, 0.0
  %v276 = vmax.f32 %v212, 0.0
  %v277 = vmax.f32 %v213, 0.0
  %v278 = vmax.f32 %v214, 0.0
  %v279 = vmax.f32 %v215, 0.0
  %v280 = vmax.f32 %v216, 0.0
  %v281 = vmax.f32 %v217, 0.0
  %v282 = vmax.f32 %v218, 0.0
  %v283 = vmax.f32 %v219, 0.0
  %v284 = vmax.f32 %v220, 0.0
  %v285 = vmax.f32 %v221, 0.0
  %v286 = vmax.f32 %v222, 0.0
  %v287 = vmax.f32 %v223, 0.0
  %v288 = vmax.f32 %v224, 0.0
  %v289 = vmax.f32 %v225, 0.0
  %v290 = vmax.f32 %v226, 0.0
  %v291 = vpack.c.bf16 %v228, %v227
  %v292 = vpack.c.bf16 %v230, %v229
  %v293 = vpack.c.bf16 %v232, %v231
  %v294 = vpack.c.bf16 %v234, %v233
  %v295 = vpack.c.bf16 %v236, %v235
  %v296 = vpack.c.bf16 %v238, %v237
  %v297 = vpack.c.bf16 %v240, %v239
  %v298 = vpack.c.bf16 %v242, %v241
  %v299 = vpack.c.bf16 %v244, %v243
  %v300 = vpack.c.bf16 %v246, %v245
  %v301 = vpack.c.bf16 %v248, %v247
  %v302 = vpack.c.bf16 %v250, %v249
  %v303 = vpack.c.bf16 %v252, %v251
  %v304 = vpack.c.bf16 %v254, %v253
  %v305 = vpack.c.bf16 %v256, %v255
  %v306 = vpack.c.bf16 %v258, %v257
  %v307 = vpack.c.bf16 %v260, %v259
  %v308 = vpack.c.bf16 %v262, %v261
  %v309 = vpack.c.bf16 %v264, %v263
  %v310 = vpack.c.bf16 %v266, %v265
  %v311 = vpack.c.bf16 %v268, %v267
  %v312 = vpack.c.bf16 %v270, %v269
  %v313 = vpack.c.bf16 %v272, %v271
  %v314 = vpack.c.bf16 %v274, %v273
  %v315 = vpack.c.bf16 %v276, %v275
  %v316 = vpack.c.bf16 %v278, %v277
  %v317 = vpack.c.bf16 %v280, %v279
  %v318 = vpack.c.bf16 %v282, %v281
  %v319 = vpack.c.bf16 %v284, %v283
  %v320 = vpack.c.bf16 %v286, %v285
  %v321 = vpack.c.bf16 %v288, %v287
  %v322 = vpack.c.bf16 %v290, %v289
  %v323 = vld [vmem:[%s3] sm:$0x3]
  %v324 = vld [vmem:[%s4] sm:$0xff]
  %v325 = vld [vmem:[%s4 + $0x8] sm:$0xff]
  %v326 = vld [vmem:[%s4 + $0x10] sm:$0xff]
  %v327 = vld [vmem:[%s4 + $0x18] sm:$0xff]
  %v328 = vld [vmem:[%s4 + $0x20] sm:$0xff]
  %v329 = vld [vmem:[%s4 + $0x28] sm:$0xff]
  %v330 = vld [vmem:[%s4 + $0x30] sm:$0xff]
  %v331 = vld [vmem:[%s4 + $0x38] sm:$0xff]
  %v332 = vld [vmem:[%s4 + $0x40] sm:$0xff]
  %v333 = vld [vmem:[%s4 + $0x48] sm:$0xff]
  %v334 = vld [vmem:[%s4 + $0x50] sm:$0xff]
  %v335 = vld [vmem:[%s4 + $0x58] sm:$0xff]
  %v336 = vld [vmem:[%s4 + $0x60] sm:$0xff]
  %v337 = vld [vmem:[%s4 + $0x68] sm:$0xff]
  %v338 = vld [vmem:[%s4 + $0x70] sm:$0xff]
  %v339 = vld [vmem:[%s4 + $0x78] sm:$0xff]
  %v340 = vld [vmem:[%s4 + $0x80] sm:$0xff]
  %v341 = vld [vmem:[%s4 + $0x88] sm:$0xff]
  %v342 = vld [vmem:[%s4 + $0x90] sm:$0xff]
  %v343 = vld [vmem:[%s4 + $0x98] sm:$0xff]
  %v344 = vld [vmem:[%s4 + $0xa0] sm:$0xff]
  %v345 = vld [vmem:[%s4 + $0xa8] sm:$0xff]
  %v346 = vld [vmem:[%s4 + $0xb0] sm:$0xff]
  %v347 = vld [vmem:[%s4 + $0xb8] sm:$0xff]
  %v348 = vld [vmem:[%s4 + $0xc0] sm:$0xff]
  %v349 = vld [vmem:[%s4 + $0xc8] sm:$0xff]
  %v350 = vld [vmem:[%s4 + $0xd0] sm:$0xff]
  %v351 = vld [vmem:[%s4 + $0xd8] sm:$0xff]
  %v352 = vld [vmem:[%s4 + $0xe0] sm:$0xff]
  %v353 = vld [vmem:[%s4 + $0xe8] sm:$0xff]
  %v354 = vld [vmem:[%s4 + $0xf0] sm:$0xff]
  %v355 = vld [vmem:[%s4 + $0xf8] sm:$0xff]
  %v356 = vld [vmem:[%s4 + $0x100] sm:$0xff]
  %v357 = vld [vmem:[%s4 + $0x108] sm:$0xff]
  %v358 = vld [vmem:[%s4 + $0x110] sm:$0xff]
  %v359 = vld [vmem:[%s4 + $0x118] sm:$0xff]
  %v360 = vld [vmem:[%s4 + $0x120] sm:$0xff]
  %v361 = vld [vmem:[%s4 + $0x128] sm:$0xff]
  %v362 = vld [vmem:[%s4 + $0x130] sm:$0xff]
  %v363 = vld [vmem:[%s4 + $0x138] sm:$0xff]
  %v364 = vld [vmem:[%s4 + $0x140] sm:$0xff]
  %v365 = vld [vmem:[%s4 + $0x148] sm:$0xff]
  %v366 = vld [vmem:[%s4 + $0x150] sm:$0xff]
  %v367 = vld [vmem:[%s4 + $0x158] sm:$0xff]
  %v368 = vld [vmem:[%s4 + $0x160] sm:$0xff]
  %v369 = vld [vmem:[%s4 + $0x168] sm:$0xff]
  %v370 = vld [vmem:[%s4 + $0x170] sm:$0xff]
  %v371 = vld [vmem:[%s4 + $0x178] sm:$0xff]
  %v372 = vld [vmem:[%s4 + $0x180] sm:$0xff]
  %v373 = vld [vmem:[%s4 + $0x188] sm:$0xff]
  %v374 = vld [vmem:[%s4 + $0x190] sm:$0xff]
  %v375 = vld [vmem:[%s4 + $0x198] sm:$0xff]
  %v376 = vld [vmem:[%s4 + $0x1a0] sm:$0xff]
  %v377 = vld [vmem:[%s4 + $0x1a8] sm:$0xff]
  %v378 = vld [vmem:[%s4 + $0x1b0] sm:$0xff]
  %v379 = vld [vmem:[%s4 + $0x1b8] sm:$0xff]
  %v380 = vld [vmem:[%s4 + $0x1c0] sm:$0xff]
  %v381 = vld [vmem:[%s4 + $0x1c8] sm:$0xff]
  %v382 = vld [vmem:[%s4 + $0x1d0] sm:$0xff]
  %v383 = vld [vmem:[%s4 + $0x1d8] sm:$0xff]
  %v384 = vld [vmem:[%s4 + $0x1e0] sm:$0xff]
  %v385 = vld [vmem:[%s4 + $0x1e8] sm:$0xff]
  %v386 = vld [vmem:[%s4 + $0x1f0] sm:$0xff]
  %v387 = vld [vmem:[%s4 + $0x1f8] sm:$0xff]
  %vm388 = vcmask 31744
  %v390 = vsel %vm388, %v291, 0
  %v393 = vsel %vm388, %v292, 0
  %v396 = vsel %vm388, %v293, 0
  %v399 = vsel %vm388, %v294, 0
  %v402 = vsel %vm388, %v295, 0
  %v405 = vsel %vm388, %v296, 0
  %v408 = vsel %vm388, %v297, 0
  %v411 = vsel %vm388, %v298, 0
  %v414 = vsel %vm388, %v299, 0
  %v417 = vsel %vm388, %v300, 0
  %v420 = vsel %vm388, %v301, 0
  %v423 = vsel %vm388, %v302, 0
  %v426 = vsel %vm388, %v303, 0
  %v429 = vsel %vm388, %v304, 0
  %v432 = vsel %vm388, %v305, 0
  %v435 = vsel %vm388, %v306, 0
  %v438 = vsel %vm388, %v307, 0
  %v441 = vsel %vm388, %v308, 0
  %v444 = vsel %vm388, %v309, 0
  %v447 = vsel %vm388, %v310, 0
  %v450 = vsel %vm388, %v311, 0
  %v453 = vsel %vm388, %v312, 0
  %v456 = vsel %vm388, %v313, 0
  %v459 = vsel %vm388, %v314, 0
  %v462 = vsel %vm388, %v315, 0
  %v465 = vsel %vm388, %v316, 0
  %v468 = vsel %vm388, %v317, 0
  %v471 = vsel %vm388, %v318, 0
  %v474 = vsel %vm388, %v319, 0
  %v477 = vsel %vm388, %v320, 0
  %v480 = vsel %vm388, %v321, 0
  %v483 = vsel %vm388, %v322, 0
  %vm485 = vcmask 1041408
  %v487 = vsel %vm485, %v323, 0
  %489 = vmatprep.subr.bf16.mxu0 0
  %490 = vmatpush1.bf16.msra.mxu0 %v487
  %491 = vmatprep.subr.bf16.mxu0 0
  %492 = vmatpush1.bf16.msra.mxu0 0
  %493 = vmatprep.subr.bf16.mxu0 0
  %494 = vmatpush1.bf16.msra.mxu0 0
  %495 = vmatprep.subr.bf16.mxu0 0
  %496 = vmatpush1.bf16.msra.mxu0 0
  %497 = vmatprep.subr.bf16.mxu0 0
  %498 = vmatpush1.bf16.msra.mxu0 0
  %499 = vmatprep.subr.bf16.mxu0 0
  %500 = vmatpush1.bf16.msra.mxu0 0
  %501 = vmatprep.subr.bf16.mxu0 0
  %502 = vmatpush1.bf16.msra.mxu0 0
  %503 = vmatprep.subr.bf16.mxu0 0
  %504 = vmatpush1.bf16.msra.mxu0 0
  %505 = vmatprep.subr.bf16.mxu0 0
  %506 = vmatpush1.bf16.msra.mxu0 0
  %507 = vmatprep.subr.bf16.mxu0 0
  %508 = vmatpush1.bf16.msra.mxu0 0
  %509 = vmatprep.subr.bf16.mxu0 0
  %510 = vmatpush1.bf16.msra.mxu0 0
  %511 = vmatprep.subr.bf16.mxu0 0
  %512 = vmatpush1.bf16.msra.mxu0 0
  %513 = vmatprep.subr.bf16.mxu0 0
  %514 = vmatpush1.bf16.msra.mxu0 0
  %515 = vmatprep.subr.bf16.mxu0 0
  %516 = vmatpush1.bf16.msra.mxu0 0
  %517 = vmatprep.subr.bf16.mxu0 0
  %518 = vmatpush1.bf16.msra.mxu0 0
  %519 = vmatprep.subr.bf16.mxu0 0
  %520 = vmatpush1.bf16.msra.mxu0 0
  %521 = vmatprep.mubr.bf16.mxu0 0
  %522 = vmatmul.mubr.bf16.gmra.mrb[0].mxu0 %v390
  %v523 = vpop.f32.mrb[0].mxu0
  %v524 = vadd.f32 %v324, %v523
  %v525 = vpop.f32.mrb[0].mxu0
  %v526 = vpop.f32.mrb[0].mxu0
  %v527 = vadd.f32 %v325, %v526
  %v528 = vpop.f32.mrb[0].mxu0
  %529 = vmatprep.mubr.bf16.mxu0 0
  %530 = vmatmul.mubr.bf16.gmra.mrb[0].mxu0 %v393
  %v531 = vpop.f32.mrb[0].mxu0
  %v532 = vadd.f32 %v326, %v531
  %v533 = vpop.f32.mrb[0].mxu0
  %v534 = vpop.f32.mrb[0].mxu0
  %v535 = vadd.f32 %v327, %v534
  %v536 = vpop.f32.mrb[0].mxu0
  %537 = vmatprep.mubr.bf16.mxu0 0
  %538 = vmatmul.mubr.bf16.gmra.mrb[0].mxu0 %v396
  %v539 = vpop.f32.mrb[0].mxu0
  %v540 = vadd.f32 %v328, %v539
  %v541 = vpop.f32.mrb[0].mxu0
  %v542 = vpop.f32.mrb[0].mxu0
  %v543 = vadd.f32 %v329, %v542
  %v544 = vpop.f32.mrb[0].mxu0
  %545 = vmatprep.mubr.bf16.mxu0 0
  %546 = vmatmul.mubr.bf16.gmra.mrb[0].mxu0 %v399
  %v547 = vpop.f32.mrb[0].mxu0
  %v548 = vadd.f32 %v330, %v547
  %v549 = vpop.f32.mrb[0].mxu0
  %v550 = vpop.f32.mrb[0].mxu0
  %v551 = vadd.f32 %v331, %v550
  %v552 = vpop.f32.mrb[0].mxu0
  %553 = vmatprep.mubr.bf16.mxu0 0
  %554 = vmatmul.mubr.bf16.gmra.mrb[0].mxu0 %v402
  %v555 = vpop.f32.mrb[0].mxu0
  %v556 = vadd.f32 %v332, %v555
  %v557 = vpop.f32.mrb[0].mxu0
  %v558 = vpop.f32.mrb[0].mxu0
  %v559 = vadd.f32 %v333, %v558
  %v560 = vpop.f32.mrb[0].mxu0
  %561 = vmatprep.mubr.bf16.mxu0 0
  %562 = vmatmul.mubr.bf16.gmra.mrb[0].mxu0 %v405
  %v563 = vpop.f32.mrb[0].mxu0
  %v564 = vadd.f32 %v334, %v563
  %v565 = vpop.f32.mrb[0].mxu0
  %v566 = vpop.f32.mrb[0].mxu0
  %v567 = vadd.f32 %v335, %v566
  %v568 = vpop.f32.mrb[0].mxu0
  %569 = vmatprep.mubr.bf16.mxu0 0
  %570 = vmatmul.mubr.bf16.gmra.mrb[0].mxu0 %v408
  %v571 = vpop.f32.mrb[0].mxu0
  %v572 = vadd.f32 %v336, %v571
  %v573 = vpop.f32.mrb[0].mxu0
  %v574 = vpop.f32.mrb[0].mxu0
  %v575 = vadd.f32 %v337, %v574
  %v576 = vpop.f32.mrb[0].mxu0
  %577 = vmatprep.mubr.bf16.mxu0 0
  %578 = vmatmul.mubr.bf16.gmra.mrb[0].mxu0 %v411
  %v579 = vpop.f32.mrb[0].mxu0
  %v580 = vadd.f32 %v338, %v579
  %v581 = vpop.f32.mrb[0].mxu0
  %v582 = vpop.f32.mrb[0].mxu0
  %v583 = vadd.f32 %v339, %v582
  %v584 = vpop.f32.mrb[0].mxu0
  %585 = vmatprep.mubr.bf16.mxu0 0
  %586 = vmatmul.mubr.bf16.gmra.mrb[0].mxu0 %v414
  %v587 = vpop.f32.mrb[0].mxu0
  %v588 = vadd.f32 %v340, %v587
  %v589 = vpop.f32.mrb[0].mxu0
  %v590 = vpop.f32.mrb[0].mxu0
  %v591 = vadd.f32 %v341, %v590
  %v592 = vpop.f32.mrb[0].mxu0
  %593 = vmatprep.mubr.bf16.mxu0 0
  %594 = vmatmul.mubr.bf16.gmra.mrb[0].mxu0 %v417
  %v595 = vpop.f32.mrb[0].mxu0
  %v596 = vadd.f32 %v342, %v595
  %v597 = vpop.f32.mrb[0].mxu0
  %v598 = vpop.f32.mrb[0].mxu0
  %v599 = vadd.f32 %v343, %v598
  %v600 = vpop.f32.mrb[0].mxu0
  %601 = vmatprep.mubr.bf16.mxu0 0
  %602 = vmatmul.mubr.bf16.gmra.mrb[0].mxu0 %v420
  %v603 = vpop.f32.mrb[0].mxu0
  %v604 = vadd.f32 %v344, %v603
  %v605 = vpop.f32.mrb[0].mxu0
  %v606 = vpop.f32.mrb[0].mxu0
  %v607 = vadd.f32 %v345, %v606
  %v608 = vpop.f32.mrb[0].mxu0
  %609 = vmatprep.mubr.bf16.mxu0 0
  %610 = vmatmul.mubr.bf16.gmra.mrb[0].mxu0 %v423
  %v611 = vpop.f32.mrb[0].mxu0
  %v612 = vadd.f32 %v346, %v611
  %v613 = vpop.f32.mrb[0].mxu0
  %v614 = vpop.f32.mrb[0].mxu0
  %v615 = vadd.f32 %v347, %v614
  %v616 = vpop.f32.mrb[0].mxu0
  %617 = vmatprep.mubr.bf16.mxu0 0
  %618 = vmatmul.mubr.bf16.gmra.mrb[0].mxu0 %v426
  %v619 = vpop.f32.mrb[0].mxu0
  %v620 = vadd.f32 %v348, %v619
  %v621 = vpop.f32.mrb[0].mxu0
  %v622 = vpop.f32.mrb[0].mxu0
  %v623 = vadd.f32 %v349, %v622
  %v624 = vpop.f32.mrb[0].mxu0
  %625 = vmatprep.mubr.bf16.mxu0 0
  %626 = vmatmul.mubr.bf16.gmra.mrb[0].mxu0 %v429
  %v627 = vpop.f32.mrb[0].mxu0
  %v628 = vadd.f32 %v350, %v627
  %v629 = vpop.f32.mrb[0].mxu0
  %v630 = vpop.f32.mrb[0].mxu0
  %v631 = vadd.f32 %v351, %v630
  %v632 = vpop.f32.mrb[0].mxu0
  %633 = vmatprep.mubr.bf16.mxu0 0
  %634 = vmatmul.mubr.bf16.gmra.mrb[0].mxu0 %v432
  %v635 = vpop.f32.mrb[0].mxu0
  %v636 = vadd.f32 %v352, %v635
  %v637 = vpop.f32.mrb[0].mxu0
  %v638 = vpop.f32.mrb[0].mxu0
  %v639 = vadd.f32 %v353, %v638
  %v640 = vpop.f32.mrb[0].mxu0
  %641 = vmatprep.mubr.bf16.mxu0 0
  %642 = vmatmul.mubr.bf16.gmra.mrb[0].mxu0 %v435
  %v643 = vpop.f32.mrb[0].mxu0
  %v644 = vadd.f32 %v354, %v643
  %v645 = vpop.f32.mrb[0].mxu0
  %v646 = vpop.f32.mrb[0].mxu0
  %v647 = vadd.f32 %v355, %v646
  %v648 = vpop.f32.mrb[0].mxu0
  %649 = vmatprep.mubr.bf16.mxu0 0
  %650 = vmatmul.mubr.bf16.gmra.mrb[0].mxu0 %v438
  %v651 = vpop.f32.mrb[0].mxu0
  %v652 = vadd.f32 %v356, %v651
  %v653 = vpop.f32.mrb[0].mxu0
  %v654 = vpop.f32.mrb[0].mxu0
  %v655 = vadd.f32 %v357, %v654
  %v656 = vpop.f32.mrb[0].mxu0
  %657 = vmatprep.mubr.bf16.mxu0 0
  %658 = vmatmul.mubr.bf16.gmra.mrb[0].mxu0 %v441
  %v659 = vpop.f32.mrb[0].mxu0
  %v660 = vadd.f32 %v358, %v659
  %v661 = vpop.f32.mrb[0].mxu0
  %v662 = vpop.f32.mrb[0].mxu0
  %v663 = vadd.f32 %v359, %v662
  %v664 = vpop.f32.mrb[0].mxu0
  %665 = vmatprep.mubr.bf16.mxu0 0
  %666 = vmatmul.mubr.bf16.gmra.mrb[0].mxu0 %v444
  %v667 = vpop.f32.mrb[0].mxu0
  %v668 = vadd.f32 %v360, %v667
  %v669 = vpop.f32.mrb[0].mxu0
  %v670 = vpop.f32.mrb[0].mxu0
  %v671 = vadd.f32 %v361, %v670
  %v672 = vpop.f32.mrb[0].mxu0
  %673 = vmatprep.mubr.bf16.mxu0 0
  %674 = vmatmul.mubr.bf16.gmra.mrb[0].mxu0 %v447
  %v675 = vpop.f32.mrb[0].mxu0
  %v676 = vadd.f32 %v362, %v675
  %v677 = vpop.f32.mrb[0].mxu0
  %v678 = vpop.f32.mrb[0].mxu0
  %v679 = vadd.f32 %v363, %v678
  %v680 = vpop.f32.mrb[0].mxu0
  %681 = vmatprep.mubr.bf16.mxu0 0
  %682 = vmatmul.mubr.bf16.gmra.mrb[0].mxu0 %v450
  %v683 = vpop.f32.mrb[0].mxu0
  %v684 = vadd.f32 %v364, %v683
  %v685 = vpop.f32.mrb[0].mxu0
  %v686 = vpop.f32.mrb[0].mxu0
  %v687 = vadd.f32 %v365, %v686
  %v688 = vpop.f32.mrb[0].mxu0
  %689 = vmatprep.mubr.bf16.mxu0 0
  %690 = vmatmul.mubr.bf16.gmra.mrb[0].mxu0 %v453
  %v691 = vpop.f32.mrb[0].mxu0
  %v692 = vadd.f32 %v366, %v691
  %v693 = vpop.f32.mrb[0].mxu0
  %v694 = vpop.f32.mrb[0].mxu0
  %v695 = vadd.f32 %v367, %v694
  %v696 = vpop.f32.mrb[0].mxu0
  %697 = vmatprep.mubr.bf16.mxu0 0
  %698 = vmatmul.mubr.bf16.gmra.mrb[0].mxu0 %v456
  %v699 = vpop.f32.mrb[0].mxu0
  %v700 = vadd.f32 %v368, %v699
  %v701 = vpop.f32.mrb[0].mxu0
  %v702 = vpop.f32.mrb[0].mxu0
  %v703 = vadd.f32 %v369, %v702
  %v704 = vpop.f32.mrb[0].mxu0
  %705 = vmatprep.mubr.bf16.mxu0 0
  %706 = vmatmul.mubr.bf16.gmra.mrb[0].mxu0 %v459
  %v707 = vpop.f32.mrb[0].mxu0
  %v708 = vadd.f32 %v370, %v707
  %v709 = vpop.f32.mrb[0].mxu0
  %v710 = vpop.f32.mrb[0].mxu0
  %v711 = vadd.f32 %v371, %v710
  %v712 = vpop.f32.mrb[0].mxu0
  %713 = vmatprep.mubr.bf16.mxu0 0
  %714 = vmatmul.mubr.bf16.gmra.mrb[0].mxu0 %v462
  %v715 = vpop.f32.mrb[0].mxu0
  %v716 = vadd.f32 %v372, %v715
  %v717 = vpop.f32.mrb[0].mxu0
  %v718 = vpop.f32.mrb[0].mxu0
  %v719 = vadd.f32 %v373, %v718
  %v720 = vpop.f32.mrb[0].mxu0
  %721 = vmatprep.mubr.bf16.mxu0 0
  %722 = vmatmul.mubr.bf16.gmra.mrb[0].mxu0 %v465
  %v723 = vpop.f32.mrb[0].mxu0
  %v724 = vadd.f32 %v374, %v723
  %v725 = vpop.f32.mrb[0].mxu0
  %v726 = vpop.f32.mrb[0].mxu0
  %v727 = vadd.f32 %v375, %v726
  %v728 = vpop.f32.mrb[0].mxu0
  %729 = vmatprep.mubr.bf16.mxu0 0
  %730 = vmatmul.mubr.bf16.gmra.mrb[0].mxu0 %v468
  %v731 = vpop.f32.mrb[0].mxu0
  %v732 = vadd.f32 %v376, %v731
  %v733 = vpop.f32.mrb[0].mxu0
  %v734 = vpop.f32.mrb[0].mxu0
  %v735 = vadd.f32 %v377, %v734
  %v736 = vpop.f32.mrb[0].mxu0
  %737 = vmatprep.mubr.bf16.mxu0 0
  %738 = vmatmul.mubr.bf16.gmra.mrb[0].mxu0 %v471
  %v739 = vpop.f32.mrb[0].mxu0
  %v740 = vadd.f32 %v378, %v739
  %v741 = vpop.f32.mrb[0].mxu0
  %v742 = vpop.f32.mrb[0].mxu0
  %v743 = vadd.f32 %v379, %v742
  %v744 = vpop.f32.mrb[0].mxu0
  %745 = vmatprep.mubr.bf16.mxu0 0
  %746 = vmatmul.mubr.bf16.gmra.mrb[0].mxu0 %v474
  %v747 = vpop.f32.mrb[0].mxu0
  %v748 = vadd.f32 %v380, %v747
  %v749 = vpop.f32.mrb[0].mxu0
  %v750 = vpop.f32.mrb[0].mxu0
  %v751 = vadd.f32 %v381, %v750
  %v752 = vpop.f32.mrb[0].mxu0
  %753 = vmatprep.mubr.bf16.mxu0 0
  %754 = vmatmul.mubr.bf16.gmra.mrb[0].mxu0 %v477
  %v755 = vpop.f32.mrb[0].mxu0
  %v756 = vadd.f32 %v382, %v755
  %v757 = vpop.f32.mrb[0].mxu0
  %v758 = vpop.f32.mrb[0].mxu0
  %v759 = vadd.f32 %v383, %v758
  %v760 = vpop.f32.mrb[0].mxu0
  %761 = vmatprep.mubr.bf16.mxu0 0
  %762 = vmatmul.mubr.bf16.gmra.mrb[0].mxu0 %v480
  %v763 = vpop.f32.mrb[0].mxu0
  %v764 = vadd.f32 %v384, %v763
  %v765 = vpop.f32.mrb[0].mxu0
  %v766 = vpop.f32.mrb[0].mxu0
  %v767 = vadd.f32 %v385, %v766
  %v768 = vpop.f32.mrb[0].mxu0
  %769 = vmatprep.mubr.bf16.mxu0 0
  %770 = vmatmul.mubr.bf16.gmra.mrb[0].mxu0 %v483
  %v771 = vpop.f32.mrb[0].mxu0
  %v772 = vadd.f32 %v386, %v771
  %v773 = vpop.f32.mrb[0].mxu0
  %v774 = vpop.f32.mrb[0].mxu0
  %v775 = vadd.f32 %v387, %v774
  %v776 = vpop.f32.mrb[0].mxu0
  %777 = vdwg.mxu0
  %vm778 = vcmask 130048
  %779 = vst.msk [vmem:[%s5] sm:$0xff] %vm778, %v524
  %780 = vst.msk [vmem:[%s5 + $0x8] sm:$0xff] %vm778, %v527
  %781 = vst.msk [vmem:[%s5 + $0x10] sm:$0xff] %vm778, %v532
  %782 = vst.msk [vmem:[%s5 + $0x18] sm:$0xff] %vm778, %v535
  %783 = vst.msk [vmem:[%s5 + $0x20] sm:$0xff] %vm778, %v540
  %784 = vst.msk [vmem:[%s5 + $0x28] sm:$0xff] %vm778, %v543
  %785 = vst.msk [vmem:[%s5 + $0x30] sm:$0xff] %vm778, %v548
  %786 = vst.msk [vmem:[%s5 + $0x38] sm:$0xff] %vm778, %v551
  %787 = vst.msk [vmem:[%s5 + $0x40] sm:$0xff] %vm778, %v556
  %788 = vst.msk [vmem:[%s5 + $0x48] sm:$0xff] %vm778, %v559
  %789 = vst.msk [vmem:[%s5 + $0x50] sm:$0xff] %vm778, %v564
  %790 = vst.msk [vmem:[%s5 + $0x58] sm:$0xff] %vm778, %v567
  %791 = vst.msk [vmem:[%s5 + $0x60] sm:$0xff] %vm778, %v572
  %792 = vst.msk [vmem:[%s5 + $0x68] sm:$0xff] %vm778, %v575
  %793 = vst.msk [vmem:[%s5 + $0x70] sm:$0xff] %vm778, %v580
  %794 = vst.msk [vmem:[%s5 + $0x78] sm:$0xff] %vm778, %v583
  %795 = vst.msk [vmem:[%s5 + $0x80] sm:$0xff] %vm778, %v588
  %796 = vst.msk [vmem:[%s5 + $0x88] sm:$0xff] %vm778, %v591
  %797 = vst.msk [vmem:[%s5 + $0x90] sm:$0xff] %vm778, %v596
  %798 = vst.msk [vmem:[%s5 + $0x98] sm:$0xff] %vm778, %v599
  %799 = vst.msk [vmem:[%s5 + $0xa0] sm:$0xff] %vm778, %v604
  %800 = vst.msk [vmem:[%s5 + $0xa8] sm:$0xff] %vm778, %v607
  %801 = vst.msk [vmem:[%s5 + $0xb0] sm:$0xff] %vm778, %v612
  %802 = vst.msk [vmem:[%s5 + $0xb8] sm:$0xff] %vm778, %v615
  %803 = vst.msk [vmem:[%s5 + $0xc0] sm:$0xff] %vm778, %v620
  %804 = vst.msk [vmem:[%s5 + $0xc8] sm:$0xff] %vm778, %v623
  %805 = vst.msk [vmem:[%s5 + $0xd0] sm:$0xff] %vm778, %v628
  %806 = vst.msk [vmem:[%s5 + $0xd8] sm:$0xff] %vm778, %v631
  %807 = vst.msk [vmem:[%s5 + $0xe0] sm:$0xff] %vm778, %v636
  %808 = vst.msk [vmem:[%s5 + $0xe8] sm:$0xff] %vm778, %v639
  %809 = vst.msk [vmem:[%s5 + $0xf0] sm:$0xff] %vm778, %v644
  %810 = vst.msk [vmem:[%s5 + $0xf8] sm:$0xff] %vm778, %v647
  %811 = vst.msk [vmem:[%s5 + $0x100] sm:$0xff] %vm778, %v652
  %812 = vst.msk [vmem:[%s5 + $0x108] sm:$0xff] %vm778, %v655
  %813 = vst.msk [vmem:[%s5 + $0x110] sm:$0xff] %vm778, %v660
  %814 = vst.msk [vmem:[%s5 + $0x118] sm:$0xff] %vm778, %v663
  %815 = vst.msk [vmem:[%s5 + $0x120] sm:$0xff] %vm778, %v668
  %816 = vst.msk [vmem:[%s5 + $0x128] sm:$0xff] %vm778, %v671
  %817 = vst.msk [vmem:[%s5 + $0x130] sm:$0xff] %vm778, %v676
  %818 = vst.msk [vmem:[%s5 + $0x138] sm:$0xff] %vm778, %v679
  %819 = vst.msk [vmem:[%s5 + $0x140] sm:$0xff] %vm778, %v684
  %820 = vst.msk [vmem:[%s5 + $0x148] sm:$0xff] %vm778, %v687
  %821 = vst.msk [vmem:[%s5 + $0x150] sm:$0xff] %vm778, %v692
  %822 = vst.msk [vmem:[%s5 + $0x158] sm:$0xff] %vm778, %v695
  %823 = vst.msk [vmem:[%s5 + $0x160] sm:$0xff] %vm778, %v700
  %824 = vst.msk [vmem:[%s5 + $0x168] sm:$0xff] %vm778, %v703
  %825 = vst.msk [vmem:[%s5 + $0x170] sm:$0xff] %vm778, %v708
  %826 = vst.msk [vmem:[%s5 + $0x178] sm:$0xff] %vm778, %v711
  %827 = vst.msk [vmem:[%s5 + $0x180] sm:$0xff] %vm778, %v716
  %828 = vst.msk [vmem:[%s5 + $0x188] sm:$0xff] %vm778, %v719
  %829 = vst.msk [vmem:[%s5 + $0x190] sm:$0xff] %vm778, %v724
  %830 = vst.msk [vmem:[%s5 + $0x198] sm:$0xff] %vm778, %v727
  %831 = vst.msk [vmem:[%s5 + $0x1a0] sm:$0xff] %vm778, %v732
  %832 = vst.msk [vmem:[%s5 + $0x1a8] sm:$0xff] %vm778, %v735
  %833 = vst.msk [vmem:[%s5 + $0x1b0] sm:$0xff] %vm778, %v740
  %834 = vst.msk [vmem:[%s5 + $0x1b8] sm:$0xff] %vm778, %v743
  %835 = vst.msk [vmem:[%s5 + $0x1c0] sm:$0xff] %vm778, %v748
  %836 = vst.msk [vmem:[%s5 + $0x1c8] sm:$0xff] %vm778, %v751
  %837 = vst.msk [vmem:[%s5 + $0x1d0] sm:$0xff] %vm778, %v756
  %838 = vst.msk [vmem:[%s5 + $0x1d8] sm:$0xff] %vm778, %v759
  %839 = vst.msk [vmem:[%s5 + $0x1e0] sm:$0xff] %vm778, %v764
  %840 = vst.msk [vmem:[%s5 + $0x1e8] sm:$0xff] %vm778, %v767
  %841 = vst.msk [vmem:[%s5 + $0x1f0] sm:$0xff] %vm778, %v772
  %842 = vst.msk [vmem:[%s5 + $0x1f8] sm:$0xff] %vm778, %v775
  // Predicated region
  $region22: #{preact_bottleneck_forward.5} parent=0 // pred_check
    _
  $region23: #{preact_bottleneck_forward.5} parent=0 // pred_check_branch
    %844 = sbr.rel (0) target = $region25
  $region24: #{preact_bottleneck_forward.5} parent=0 // pred_region
    _
  $region25: #{preact_bottleneck_forward.5} parent=0 // pred_fallthru
    _
  // Predicated region
  $region26: #{preact_bottleneck_forward.5} parent=0 // pred_check
    _
  $region27: #{preact_bottleneck_forward.5} parent=0 // pred_check_branch
    %846 = sbr.rel (0) target = $region29
  $region28: #{preact_bottleneck_forward.5} parent=0 // pred_region
    _
  $region29: #{preact_bottleneck_forward.5} parent=0 // pred_fallthru
    _

// kernel: preact_bottleneck_forward.3
$region0: #{preact_bottleneck_forward.3}
  #allocation0 [shape = 'u32[]', space=smem, size = 0x4, offset = 0x4, fixed_abs, tag = 'smem constant byte address 0x4 - core index']
  #allocation1 [shape = 'u32[144,128]{1,0:T(1,128)}', space=vmem, size = 0x12000, scoped, tag = 'internal scratch']
  %s0 = inlined_call_operand.vmem [shape: f32[512,4], index: 0, kind: input, shape index: {}]
  %s1 = inlined_call_operand.vmem [shape: f32[1,4], index: 1, kind: input, shape index: {}]
  %s2 = inlined_call_operand.vmem [shape: f32[1,4], index: 2, kind: input, shape index: {}]
  %s3 = inlined_call_operand.vmem [shape: bf16[4,4], index: 3, kind: input, shape index: {}]
  %s4 = inlined_call_operand.vmem [shape: bf16[4,16], index: 4, kind: input, shape index: {}]
  %s5 = inlined_call_operand.vmem [shape: f32[512,4], index: 5, kind: output, shape index: {0}]
  %s6 = inlined_call_operand.vmem [shape: f32[512,16], index: 6, kind: output, shape index: {1}]
  %7 = xla_tuple %s5, %s6
  %s8 = sld [smem:[#allocation0]]
  $region38: #{preact_bottleneck_forward.3} parent=0
    _
  %s10 = ssub.s32 1, %s8
  %s11 = scalar_select 0, %s10, %s8
  // Predicated region
  $region2: #{preact_bottleneck_forward.3} parent=0 // pred_check
    _
  $region3: #{preact_bottleneck_forward.3} parent=0 // pred_check_branch
    %13 = sbr.rel (0) target = $region5
  $region4: #{preact_bottleneck_forward.3} parent=0 // pred_region
    _
  $region5: #{preact_bottleneck_forward.3} parent=0 // pred_fallthru
    _
  // Predicated region
  $region6: #{preact_bottleneck_forward.3} parent=0 // pred_check
    _
  $region7: #{preact_bottleneck_forward.3} parent=0 // pred_check_branch
    %15 = sbr.rel (0) target = $region9
  $region8: #{preact_bottleneck_forward.3} parent=0 // pred_region
    _
  $region9: #{preact_bottleneck_forward.3} parent=0 // pred_fallthru
    _
  // Predicated region
  $region10: #{preact_bottleneck_forward.3} parent=0 // pred_check
    _
  $region11: #{preact_bottleneck_forward.3} parent=0 // pred_check_branch
    %17 = sbr.rel (0) target = $region13
  $region12: #{preact_bottleneck_forward.3} parent=0 // pred_region
    _
  $region13: #{preact_bottleneck_forward.3} parent=0 // pred_fallthru
    _
  // Predicated region
  $region14: #{preact_bottleneck_forward.3} parent=0 // pred_check
    _
  $region15: #{preact_bottleneck_forward.3} parent=0 // pred_check_branch
    %19 = sbr.rel (0) target = $region17
  $region16: #{preact_bottleneck_forward.3} parent=0 // pred_region
    _
  $region17: #{preact_bottleneck_forward.3} parent=0 // pred_fallthru
    _
  // Predicated region
  $region18: #{preact_bottleneck_forward.3} parent=0 // pred_check
    _
  $region19: #{preact_bottleneck_forward.3} parent=0 // pred_check_branch
    %21 = sbr.rel (0) target = $region21
  $region20: #{preact_bottleneck_forward.3} parent=0 // pred_region
    _
  $region21: #{preact_bottleneck_forward.3} parent=0 // pred_fallthru
    _
  %v23 = vld [vmem:[%s0] sm:$0xff]
  %v24 = vld [vmem:[%s0 + $0x8] sm:$0xff]
  %v25 = vld [vmem:[%s0 + $0x10] sm:$0xff]
  %v26 = vld [vmem:[%s0 + $0x18] sm:$0xff]
  %v27 = vld [vmem:[%s0 + $0x20] sm:$0xff]
  %v28 = vld [vmem:[%s0 + $0x28] sm:$0xff]
  %v29 = vld [vmem:[%s0 + $0x30] sm:$0xff]
  %v30 = vld [vmem:[%s0 + $0x38] sm:$0xff]
  %v31 = vld [vmem:[%s0 + $0x40] sm:$0xff]
  %v32 = vld [vmem:[%s0 + $0x48] sm:$0xff]
  %v33 = vld [vmem:[%s0 + $0x50] sm:$0xff]
  %v34 = vld [vmem:[%s0 + $0x58] sm:$0xff]
  %v35 = vld [vmem:[%s0 + $0x60] sm:$0xff]
  %v36 = vld [vmem:[%s0 + $0x68] sm:$0xff]
  %v37 = vld [vmem:[%s0 + $0x70] sm:$0xff]
  %v38 = vld [vmem:[%s0 + $0x78] sm:$0xff]
  %v39 = vld [vmem:[%s0 + $0x80] sm:$0xff]
  %v40 = vld [vmem:[%s0 + $0x88] sm:$0xff]
  %v41 = vld [vmem:[%s0 + $0x90] sm:$0xff]
  %v42 = vld [vmem:[%s0 + $0x98] sm:$0xff]
  %v43 = vld [vmem:[%s0 + $0xa0] sm:$0xff]
  %v44 = vld [vmem:[%s0 + $0xa8] sm:$0xff]
  %v45 = vld [vmem:[%s0 + $0xb0] sm:$0xff]
  %v46 = vld [vmem:[%s0 + $0xb8] sm:$0xff]
  %v47 = vld [vmem:[%s0 + $0xc0] sm:$0xff]
  %v48 = vld [vmem:[%s0 + $0xc8] sm:$0xff]
  %v49 = vld [vmem:[%s0 + $0xd0] sm:$0xff]
  %v50 = vld [vmem:[%s0 + $0xd8] sm:$0xff]
  %v51 = vld [vmem:[%s0 + $0xe0] sm:$0xff]
  %v52 = vld [vmem:[%s0 + $0xe8] sm:$0xff]
  %v53 = vld [vmem:[%s0 + $0xf0] sm:$0xff]
  %v54 = vld [vmem:[%s0 + $0xf8] sm:$0xff]
  %v55 = vld [vmem:[%s0 + $0x100] sm:$0xff]
  %v56 = vld [vmem:[%s0 + $0x108] sm:$0xff]
  %v57 = vld [vmem:[%s0 + $0x110] sm:$0xff]
  %v58 = vld [vmem:[%s0 + $0x118] sm:$0xff]
  %v59 = vld [vmem:[%s0 + $0x120] sm:$0xff]
  %v60 = vld [vmem:[%s0 + $0x128] sm:$0xff]
  %v61 = vld [vmem:[%s0 + $0x130] sm:$0xff]
  %v62 = vld [vmem:[%s0 + $0x138] sm:$0xff]
  %v63 = vld [vmem:[%s0 + $0x140] sm:$0xff]
  %v64 = vld [vmem:[%s0 + $0x148] sm:$0xff]
  %v65 = vld [vmem:[%s0 + $0x150] sm:$0xff]
  %v66 = vld [vmem:[%s0 + $0x158] sm:$0xff]
  %v67 = vld [vmem:[%s0 + $0x160] sm:$0xff]
  %v68 = vld [vmem:[%s0 + $0x168] sm:$0xff]
  %v69 = vld [vmem:[%s0 + $0x170] sm:$0xff]
  %v70 = vld [vmem:[%s0 + $0x178] sm:$0xff]
  %v71 = vld [vmem:[%s0 + $0x180] sm:$0xff]
  %v72 = vld [vmem:[%s0 + $0x188] sm:$0xff]
  %v73 = vld [vmem:[%s0 + $0x190] sm:$0xff]
  %v74 = vld [vmem:[%s0 + $0x198] sm:$0xff]
  %v75 = vld [vmem:[%s0 + $0x1a0] sm:$0xff]
  %v76 = vld [vmem:[%s0 + $0x1a8] sm:$0xff]
  %v77 = vld [vmem:[%s0 + $0x1b0] sm:$0xff]
  %v78 = vld [vmem:[%s0 + $0x1b8] sm:$0xff]
  %v79 = vld [vmem:[%s0 + $0x1c0] sm:$0xff]
  %v80 = vld [vmem:[%s0 + $0x1c8] sm:$0xff]
  %v81 = vld [vmem:[%s0 + $0x1d0] sm:$0xff]
  %v82 = vld [vmem:[%s0 + $0x1d8] sm:$0xff]
  %v83 = vld [vmem:[%s0 + $0x1e0] sm:$0xff]
  %v84 = vld [vmem:[%s0 + $0x1e8] sm:$0xff]
  %v85 = vld [vmem:[%s0 + $0x1f0] sm:$0xff]
  %v86 = vld [vmem:[%s0 + $0x1f8] sm:$0xff]
  %v87 = vld [vmem:[%s1] sm:$0x1]
  %v89 = vlaneseq
  %v90 = vshrl.u32 %v89, 7
  %v91 = vsub.s32 0, %v90
  %v92 = vrot.slane %v87, %v91
  %v94 = vmul.f32 %v23, %v92
  %v95 = vmul.f32 %v24, %v92
  %v96 = vmul.f32 %v25, %v92
  %v97 = vmul.f32 %v26, %v92
  %v98 = vmul.f32 %v27, %v92
  %v99 = vmul.f32 %v28, %v92
  %v100 = vmul.f32 %v29, %v92
  %v101 = vmul.f32 %v30, %v92
  %v102 = vmul.f32 %v31, %v92
  %v103 = vmul.f32 %v32, %v92
  %v104 = vmul.f32 %v33, %v92
  %v105 = vmul.f32 %v34, %v92
  %v106 = vmul.f32 %v35, %v92
  %v107 = vmul.f32 %v36, %v92
  %v108 = vmul.f32 %v37, %v92
  %v109 = vmul.f32 %v38, %v92
  %v110 = vmul.f32 %v39, %v92
  %v111 = vmul.f32 %v40, %v92
  %v112 = vmul.f32 %v41, %v92
  %v113 = vmul.f32 %v42, %v92
  %v114 = vmul.f32 %v43, %v92
  %v115 = vmul.f32 %v44, %v92
  %v116 = vmul.f32 %v45, %v92
  %v117 = vmul.f32 %v46, %v92
  %v118 = vmul.f32 %v47, %v92
  %v119 = vmul.f32 %v48, %v92
  %v120 = vmul.f32 %v49, %v92
  %v121 = vmul.f32 %v50, %v92
  %v122 = vmul.f32 %v51, %v92
  %v123 = vmul.f32 %v52, %v92
  %v124 = vmul.f32 %v53, %v92
  %v125 = vmul.f32 %v54, %v92
  %v126 = vmul.f32 %v55, %v92
  %v127 = vmul.f32 %v56, %v92
  %v128 = vmul.f32 %v57, %v92
  %v129 = vmul.f32 %v58, %v92
  %v130 = vmul.f32 %v59, %v92
  %v131 = vmul.f32 %v60, %v92
  %v132 = vmul.f32 %v61, %v92
  %v133 = vmul.f32 %v62, %v92
  %v134 = vmul.f32 %v63, %v92
  %v135 = vmul.f32 %v64, %v92
  %v136 = vmul.f32 %v65, %v92
  %v137 = vmul.f32 %v66, %v92
  %v138 = vmul.f32 %v67, %v92
  %v139 = vmul.f32 %v68, %v92
  %v140 = vmul.f32 %v69, %v92
  %v141 = vmul.f32 %v70, %v92
  %v142 = vmul.f32 %v71, %v92
  %v143 = vmul.f32 %v72, %v92
  %v144 = vmul.f32 %v73, %v92
  %v145 = vmul.f32 %v74, %v92
  %v146 = vmul.f32 %v75, %v92
  %v147 = vmul.f32 %v76, %v92
  %v148 = vmul.f32 %v77, %v92
  %v149 = vmul.f32 %v78, %v92
  %v150 = vmul.f32 %v79, %v92
  %v151 = vmul.f32 %v80, %v92
  %v152 = vmul.f32 %v81, %v92
  %v153 = vmul.f32 %v82, %v92
  %v154 = vmul.f32 %v83, %v92
  %v155 = vmul.f32 %v84, %v92
  %v156 = vmul.f32 %v85, %v92
  %v157 = vmul.f32 %v86, %v92
  %v158 = vld [vmem:[%s2] sm:$0x1]
  %v160 = vlaneseq
  %v161 = vshrl.u32 %v160, 7
  %v162 = vsub.s32 0, %v161
  %v163 = vrot.slane %v158, %v162
  %v165 = vadd.f32 %v94, %v163
  %v166 = vadd.f32 %v95, %v163
  %v167 = vadd.f32 %v96, %v163
  %v168 = vadd.f32 %v97, %v163
  %v169 = vadd.f32 %v98, %v163
  %v170 = vadd.f32 %v99, %v163
  %v171 = vadd.f32 %v100, %v163
  %v172 = vadd.f32 %v101, %v163
  %v173 = vadd.f32 %v102, %v163
  %v174 = vadd.f32 %v103, %v163
  %v175 = vadd.f32 %v104, %v163
  %v176 = vadd.f32 %v105, %v163
  %v177 = vadd.f32 %v106, %v163
  %v178 = vadd.f32 %v107, %v163
  %v179 = vadd.f32 %v108, %v163
  %v180 = vadd.f32 %v109, %v163
  %v181 = vadd.f32 %v110, %v163
  %v182 = vadd.f32 %v111, %v163
  %v183 = vadd.f32 %v112, %v163
  %v184 = vadd.f32 %v113, %v163
  %v185 = vadd.f32 %v114, %v163
  %v186 = vadd.f32 %v115, %v163
  %v187 = vadd.f32 %v116, %v163
  %v188 = vadd.f32 %v117, %v163
  %v189 = vadd.f32 %v118, %v163
  %v190 = vadd.f32 %v119, %v163
  %v191 = vadd.f32 %v120, %v163
  %v192 = vadd.f32 %v121, %v163
  %v193 = vadd.f32 %v122, %v163
  %v194 = vadd.f32 %v123, %v163
  %v195 = vadd.f32 %v124, %v163
  %v196 = vadd.f32 %v125, %v163
  %v197 = vadd.f32 %v126, %v163
  %v198 = vadd.f32 %v127, %v163
  %v199 = vadd.f32 %v128, %v163
  %v200 = vadd.f32 %v129, %v163
  %v201 = vadd.f32 %v130, %v163
  %v202 = vadd.f32 %v131, %v163
  %v203 = vadd.f32 %v132, %v163
  %v204 = vadd.f32 %v133, %v163
  %v205 = vadd.f32 %v134, %v163
  %v206 = vadd.f32 %v135, %v163
  %v207 = vadd.f32 %v136, %v163
  %v208 = vadd.f32 %v137, %v163
  %v209 = vadd.f32 %v138, %v163
  %v210 = vadd.f32 %v139, %v163
  %v211 = vadd.f32 %v140, %v163
  %v212 = vadd.f32 %v141, %v163
  %v213 = vadd.f32 %v142, %v163
  %v214 = vadd.f32 %v143, %v163
  %v215 = vadd.f32 %v144, %v163
  %v216 = vadd.f32 %v145, %v163
  %v217 = vadd.f32 %v146, %v163
  %v218 = vadd.f32 %v147, %v163
  %v219 = vadd.f32 %v148, %v163
  %v220 = vadd.f32 %v149, %v163
  %v221 = vadd.f32 %v150, %v163
  %v222 = vadd.f32 %v151, %v163
  %v223 = vadd.f32 %v152, %v163
  %v224 = vadd.f32 %v153, %v163
  %v225 = vadd.f32 %v154, %v163
  %v226 = vadd.f32 %v155, %v163
  %v227 = vadd.f32 %v156, %v163
  %v228 = vadd.f32 %v157, %v163
  %v229 = vmax.f32 %v165, 0.0
  %v230 = vmax.f32 %v166, 0.0
  %v231 = vmax.f32 %v167, 0.0
  %v232 = vmax.f32 %v168, 0.0
  %v233 = vmax.f32 %v169, 0.0
  %v234 = vmax.f32 %v170, 0.0
  %v235 = vmax.f32 %v171, 0.0
  %v236 = vmax.f32 %v172, 0.0
  %v237 = vmax.f32 %v173, 0.0
  %v238 = vmax.f32 %v174, 0.0
  %v239 = vmax.f32 %v175, 0.0
  %v240 = vmax.f32 %v176, 0.0
  %v241 = vmax.f32 %v177, 0.0
  %v242 = vmax.f32 %v178, 0.0
  %v243 = vmax.f32 %v179, 0.0
  %v244 = vmax.f32 %v180, 0.0
  %v245 = vmax.f32 %v181, 0.0
  %v246 = vmax.f32 %v182, 0.0
  %v247 = vmax.f32 %v183, 0.0
  %v248 = vmax.f32 %v184, 0.0
  %v249 = vmax.f32 %v185, 0.0
  %v250 = vmax.f32 %v186, 0.0
  %v251 = vmax.f32 %v187, 0.0
  %v252 = vmax.f32 %v188, 0.0
  %v253 = vmax.f32 %v189, 0.0
  %v254 = vmax.f32 %v190, 0.0
  %v255 = vmax.f32 %v191, 0.0
  %v256 = vmax.f32 %v192, 0.0
  %v257 = vmax.f32 %v193, 0.0
  %v258 = vmax.f32 %v194, 0.0
  %v259 = vmax.f32 %v195, 0.0
  %v260 = vmax.f32 %v196, 0.0
  %v261 = vmax.f32 %v197, 0.0
  %v262 = vmax.f32 %v198, 0.0
  %v263 = vmax.f32 %v199, 0.0
  %v264 = vmax.f32 %v200, 0.0
  %v265 = vmax.f32 %v201, 0.0
  %v266 = vmax.f32 %v202, 0.0
  %v267 = vmax.f32 %v203, 0.0
  %v268 = vmax.f32 %v204, 0.0
  %v269 = vmax.f32 %v205, 0.0
  %v270 = vmax.f32 %v206, 0.0
  %v271 = vmax.f32 %v207, 0.0
  %v272 = vmax.f32 %v208, 0.0
  %v273 = vmax.f32 %v209, 0.0
  %v274 = vmax.f32 %v210, 0.0
  %v275 = vmax.f32 %v211, 0.0
  %v276 = vmax.f32 %v212, 0.0
  %v277 = vmax.f32 %v213, 0.0
  %v278 = vmax.f32 %v214, 0.0
  %v279 = vmax.f32 %v215, 0.0
  %v280 = vmax.f32 %v216, 0.0
  %v281 = vmax.f32 %v217, 0.0
  %v282 = vmax.f32 %v218, 0.0
  %v283 = vmax.f32 %v219, 0.0
  %v284 = vmax.f32 %v220, 0.0
  %v285 = vmax.f32 %v221, 0.0
  %v286 = vmax.f32 %v222, 0.0
  %v287 = vmax.f32 %v223, 0.0
  %v288 = vmax.f32 %v224, 0.0
  %v289 = vmax.f32 %v225, 0.0
  %v290 = vmax.f32 %v226, 0.0
  %v291 = vmax.f32 %v227, 0.0
  %v292 = vmax.f32 %v228, 0.0
  %v293 = vpack.c.bf16 %v230, %v229
  %v294 = vpack.c.bf16 %v232, %v231
  %v295 = vpack.c.bf16 %v234, %v233
  %v296 = vpack.c.bf16 %v236, %v235
  %v297 = vpack.c.bf16 %v238, %v237
  %v298 = vpack.c.bf16 %v240, %v239
  %v299 = vpack.c.bf16 %v242, %v241
  %v300 = vpack.c.bf16 %v244, %v243
  %v301 = vpack.c.bf16 %v246, %v245
  %v302 = vpack.c.bf16 %v248, %v247
  %v303 = vpack.c.bf16 %v250, %v249
  %v304 = vpack.c.bf16 %v252, %v251
  %v305 = vpack.c.bf16 %v254, %v253
  %v306 = vpack.c.bf16 %v256, %v255
  %v307 = vpack.c.bf16 %v258, %v257
  %v308 = vpack.c.bf16 %v260, %v259
  %v309 = vpack.c.bf16 %v262, %v261
  %v310 = vpack.c.bf16 %v264, %v263
  %v311 = vpack.c.bf16 %v266, %v265
  %v312 = vpack.c.bf16 %v268, %v267
  %v313 = vpack.c.bf16 %v270, %v269
  %v314 = vpack.c.bf16 %v272, %v271
  %v315 = vpack.c.bf16 %v274, %v273
  %v316 = vpack.c.bf16 %v276, %v275
  %v317 = vpack.c.bf16 %v278, %v277
  %v318 = vpack.c.bf16 %v280, %v279
  %v319 = vpack.c.bf16 %v282, %v281
  %v320 = vpack.c.bf16 %v284, %v283
  %v321 = vpack.c.bf16 %v286, %v285
  %v322 = vpack.c.bf16 %v288, %v287
  %v323 = vpack.c.bf16 %v290, %v289
  %v324 = vpack.c.bf16 %v292, %v291
  %v325 = vld [vmem:[%s3] sm:$0x3]
  %vm326 = vcmask 31744
  %v328 = vsel %vm326, %v293, 0
  %v331 = vsel %vm326, %v294, 0
  %v334 = vsel %vm326, %v295, 0
  %v337 = vsel %vm326, %v296, 0
  %v340 = vsel %vm326, %v297, 0
  %v343 = vsel %vm326, %v298, 0
  %v346 = vsel %vm326, %v299, 0
  %v349 = vsel %vm326, %v300, 0
  %v352 = vsel %vm326, %v301, 0
  %v355 = vsel %vm326, %v302, 0
  %v358 = vsel %vm326, %v303, 0
  %v361 = vsel %vm326, %v304, 0
  %v364 = vsel %vm326, %v305, 0
  %v367 = vsel %vm326, %v306, 0
  %v370 = vsel %vm326, %v307, 0
  %v373 = vsel %vm326, %v308, 0
  %v376 = vsel %vm326, %v309, 0
  %v379 = vsel %vm326, %v310, 0
  %v382 = vsel %vm326, %v311, 0
  %v385 = vsel %vm326, %v312, 0
  %v388 = vsel %vm326, %v313, 0
  %v391 = vsel %vm326, %v314, 0
  %v394 = vsel %vm326, %v315, 0
  %v397 = vsel %vm326, %v316, 0
  %v400 = vsel %vm326, %v317, 0
  %v403 = vsel %vm326, %v318, 0
  %v406 = vsel %vm326, %v319, 0
  %v409 = vsel %vm326, %v320, 0
  %v412 = vsel %vm326, %v321, 0
  %v415 = vsel %vm326, %v322, 0
  %v418 = vsel %vm326, %v323, 0
  %v421 = vsel %vm326, %v324, 0
  %vm423 = vcmask 1041408
  %v425 = vsel %vm423, %v325, 0
  %427 = vmatprep.subr.bf16.mxu0 0
  %428 = vmatpush1.bf16.msra.mxu0 %v425
  %429 = vmatprep.subr.bf16.mxu0 0
  %430 = vmatpush1.bf16.msra.mxu0 0
  %431 = vmatprep.subr.bf16.mxu0 0
  %432 = vmatpush1.bf16.msra.mxu0 0
  %433 = vmatprep.subr.bf16.mxu0 0
  %434 = vmatpush1.bf16.msra.mxu0 0
  %435 = vmatprep.subr.bf16.mxu0 0
  %436 = vmatpush1.bf16.msra.mxu0 0
  %437 = vmatprep.subr.bf16.mxu0 0
  %438 = vmatpush1.bf16.msra.mxu0 0
  %439 = vmatprep.subr.bf16.mxu0 0
  %440 = vmatpush1.bf16.msra.mxu0 0
  %441 = vmatprep.subr.bf16.mxu0 0
  %442 = vmatpush1.bf16.msra.mxu0 0
  %443 = vmatprep.subr.bf16.mxu0 0
  %444 = vmatpush1.bf16.msra.mxu0 0
  %445 = vmatprep.subr.bf16.mxu0 0
  %446 = vmatpush1.bf16.msra.mxu0 0
  %447 = vmatprep.subr.bf16.mxu0 0
  %448 = vmatpush1.bf16.msra.mxu0 0
  %449 = vmatprep.subr.bf16.mxu0 0
  %450 = vmatpush1.bf16.msra.mxu0 0
  %451 = vmatprep.subr.bf16.mxu0 0
  %452 = vmatpush1.bf16.msra.mxu0 0
  %453 = vmatprep.subr.bf16.mxu0 0
  %454 = vmatpush1.bf16.msra.mxu0 0
  %455 = vmatprep.subr.bf16.mxu0 0
  %456 = vmatpush1.bf16.msra.mxu0 0
  %457 = vmatprep.subr.bf16.mxu0 0
  %458 = vmatpush1.bf16.msra.mxu0 0
  %459 = vmatprep.mubr.bf16.mxu0 0
  %460 = vmatmul.mubr.bf16.gmra.mrb[0].mxu0 %v328
  %v461 = vpop.f32.mrb[0].mxu0
  %v462 = vadd.f32 0.0, %v461
  %v463 = vpop.f32.mrb[0].mxu0
  %v464 = vpop.f32.mrb[0].mxu0
  %v465 = vadd.f32 0.0, %v464
  %v466 = vpop.f32.mrb[0].mxu0
  %467 = vmatprep.mubr.bf16.mxu0 0
  %468 = vmatmul.mubr.bf16.gmra.mrb[0].mxu0 %v331
  %v469 = vpop.f32.mrb[0].mxu0
  %v470 = vadd.f32 0.0, %v469
  %v471 = vpop.f32.mrb[0].mxu0
  %v472 = vpop.f32.mrb[0].mxu0
  %v473 = vadd.f32 0.0, %v472
  %v474 = vpop.f32.mrb[0].mxu0
  %475 = vmatprep.mubr.bf16.mxu0 0
  %476 = vmatmul.mubr.bf16.gmra.mrb[0].mxu0 %v334
  %v477 = vpop.f32.mrb[0].mxu0
  %v478 = vadd.f32 0.0, %v477
  %v479 = vpop.f32.mrb[0].mxu0
  %v480 = vpop.f32.mrb[0].mxu0
  %v481 = vadd.f32 0.0, %v480
  %v482 = vpop.f32.mrb[0].mxu0
  %483 = vmatprep.mubr.bf16.mxu0 0
  %484 = vmatmul.mubr.bf16.gmra.mrb[0].mxu0 %v337
  %v485 = vpop.f32.mrb[0].mxu0
  %v486 = vadd.f32 0.0, %v485
  %v487 = vpop.f32.mrb[0].mxu0
  %v488 = vpop.f32.mrb[0].mxu0
  %v489 = vadd.f32 0.0, %v488
  %v490 = vpop.f32.mrb[0].mxu0
  %491 = vmatprep.mubr.bf16.mxu0 0
  %492 = vmatmul.mubr.bf16.gmra.mrb[0].mxu0 %v340
  %v493 = vpop.f32.mrb[0].mxu0
  %v494 = vadd.f32 0.0, %v493
  %v495 = vpop.f32.mrb[0].mxu0
  %v496 = vpop.f32.mrb[0].mxu0
  %v497 = vadd.f32 0.0, %v496
  %v498 = vpop.f32.mrb[0].mxu0
  %499 = vmatprep.mubr.bf16.mxu0 0
  %500 = vmatmul.mubr.bf16.gmra.mrb[0].mxu0 %v343
  %v501 = vpop.f32.mrb[0].mxu0
  %v502 = vadd.f32 0.0, %v501
  %v503 = vpop.f32.mrb[0].mxu0
  %v504 = vpop.f32.mrb[0].mxu0
  %v505 = vadd.f32 0.0, %v504
  %v506 = vpop.f32.mrb[0].mxu0
  %507 = vmatprep.mubr.bf16.mxu0 0
  %508 = vmatmul.mubr.bf16.gmra.mrb[0].mxu0 %v346
  %v509 = vpop.f32.mrb[0].mxu0
  %v510 = vadd.f32 0.0, %v509
  %v511 = vpop.f32.mrb[0].mxu0
  %v512 = vpop.f32.mrb[0].mxu0
  %v513 = vadd.f32 0.0, %v512
  %v514 = vpop.f32.mrb[0].mxu0
  %515 = vmatprep.mubr.bf16.mxu0 0
  %516 = vmatmul.mubr.bf16.gmra.mrb[0].mxu0 %v349
  %v517 = vpop.f32.mrb[0].mxu0
  %v518 = vadd.f32 0.0, %v517
  %v519 = vpop.f32.mrb[0].mxu0
  %v520 = vpop.f32.mrb[0].mxu0
  %v521 = vadd.f32 0.0, %v520
  %v522 = vpop.f32.mrb[0].mxu0
  %523 = vmatprep.mubr.bf16.mxu0 0
  %524 = vmatmul.mubr.bf16.gmra.mrb[0].mxu0 %v352
  %v525 = vpop.f32.mrb[0].mxu0
  %v526 = vadd.f32 0.0, %v525
  %v527 = vpop.f32.mrb[0].mxu0
  %v528 = vpop.f32.mrb[0].mxu0
  %v529 = vadd.f32 0.0, %v528
  %v530 = vpop.f32.mrb[0].mxu0
  %531 = vmatprep.mubr.bf16.mxu0 0
  %532 = vmatmul.mubr.bf16.gmra.mrb[0].mxu0 %v355
  %v533 = vpop.f32.mrb[0].mxu0
  %v534 = vadd.f32 0.0, %v533
  %v535 = vpop.f32.mrb[0].mxu0
  %v536 = vpop.f32.mrb[0].mxu0
  %v537 = vadd.f32 0.0, %v536
  %v538 = vpop.f32.mrb[0].mxu0
  %539 = vmatprep.mubr.bf16.mxu0 0
  %540 = vmatmul.mubr.bf16.gmra.mrb[0].mxu0 %v358
  %v541 = vpop.f32.mrb[0].mxu0
  %v542 = vadd.f32 0.0, %v541
  %v543 = vpop.f32.mrb[0].mxu0
  %v544 = vpop.f32.mrb[0].mxu0
  %v545 = vadd.f32 0.0, %v544
  %v546 = vpop.f32.mrb[0].mxu0
  %547 = vmatprep.mubr.bf16.mxu0 0
  %548 = vmatmul.mubr.bf16.gmra.mrb[0].mxu0 %v361
  %v549 = vpop.f32.mrb[0].mxu0
  %v550 = vadd.f32 0.0, %v549
  %v551 = vpop.f32.mrb[0].mxu0
  %v552 = vpop.f32.mrb[0].mxu0
  %v553 = vadd.f32 0.0, %v552
  %v554 = vpop.f32.mrb[0].mxu0
  %555 = vmatprep.mubr.bf16.mxu0 0
  %556 = vmatmul.mubr.bf16.gmra.mrb[0].mxu0 %v364
  %v557 = vpop.f32.mrb[0].mxu0
  %v558 = vadd.f32 0.0, %v557
  %v559 = vpop.f32.mrb[0].mxu0
  %v560 = vpop.f32.mrb[0].mxu0
  %v561 = vadd.f32 0.0, %v560
  %v562 = vpop.f32.mrb[0].mxu0
  %563 = vmatprep.mubr.bf16.mxu0 0
  %564 = vmatmul.mubr.bf16.gmra.mrb[0].mxu0 %v367
  %v565 = vpop.f32.mrb[0].mxu0
  %v566 = vadd.f32 0.0, %v565
  %v567 = vpop.f32.mrb[0].mxu0
  %v568 = vpop.f32.mrb[0].mxu0
  %v569 = vadd.f32 0.0, %v568
  %v570 = vpop.f32.mrb[0].mxu0
  %571 = vmatprep.mubr.bf16.mxu0 0
  %572 = vmatmul.mubr.bf16.gmra.mrb[0].mxu0 %v370
  %v573 = vpop.f32.mrb[0].mxu0
  %v574 = vadd.f32 0.0, %v573
  %v575 = vpop.f32.mrb[0].mxu0
  %v576 = vpop.f32.mrb[0].mxu0
  %v577 = vadd.f32 0.0, %v576
  %v578 = vpop.f32.mrb[0].mxu0
  %579 = vmatprep.mubr.bf16.mxu0 0
  %580 = vmatmul.mubr.bf16.gmra.mrb[0].mxu0 %v373
  %v581 = vpop.f32.mrb[0].mxu0
  %v582 = vadd.f32 0.0, %v581
  %v583 = vpop.f32.mrb[0].mxu0
  %v584 = vpop.f32.mrb[0].mxu0
  %v585 = vadd.f32 0.0, %v584
  %v586 = vpop.f32.mrb[0].mxu0
  %587 = vmatprep.mubr.bf16.mxu0 0
  %588 = vmatmul.mubr.bf16.gmra.mrb[0].mxu0 %v376
  %v589 = vpop.f32.mrb[0].mxu0
  %v590 = vadd.f32 0.0, %v589
  %v591 = vpop.f32.mrb[0].mxu0
  %v592 = vpop.f32.mrb[0].mxu0
  %v593 = vadd.f32 0.0, %v592
  %v594 = vpop.f32.mrb[0].mxu0
  %595 = vmatprep.mubr.bf16.mxu0 0
  %596 = vmatmul.mubr.bf16.gmra.mrb[0].mxu0 %v379
  %v597 = vpop.f32.mrb[0].mxu0
  %v598 = vadd.f32 0.0, %v597
  %v599 = vpop.f32.mrb[0].mxu0
  %v600 = vpop.f32.mrb[0].mxu0
  %v601 = vadd.f32 0.0, %v600
  %v602 = vpop.f32.mrb[0].mxu0
  %603 = vmatprep.mubr.bf16.mxu0 0
  %604 = vmatmul.mubr.bf16.gmra.mrb[0].mxu0 %v382
  %v605 = vpop.f32.mrb[0].mxu0
  %v606 = vadd.f32 0.0, %v605
  %v607 = vpop.f32.mrb[0].mxu0
  %v608 = vpop.f32.mrb[0].mxu0
  %v609 = vadd.f32 0.0, %v608
  %v610 = vpop.f32.mrb[0].mxu0
  %611 = vmatprep.mubr.bf16.mxu0 0
  %612 = vmatmul.mubr.bf16.gmra.mrb[0].mxu0 %v385
  %v613 = vpop.f32.mrb[0].mxu0
  %v614 = vadd.f32 0.0, %v613
  %v615 = vpop.f32.mrb[0].mxu0
  %v616 = vpop.f32.mrb[0].mxu0
  %v617 = vadd.f32 0.0, %v616
  %v618 = vpop.f32.mrb[0].mxu0
  %619 = vmatprep.mubr.bf16.mxu0 0
  %620 = vmatmul.mubr.bf16.gmra.mrb[0].mxu0 %v388
  %v621 = vpop.f32.mrb[0].mxu0
  %v622 = vadd.f32 0.0, %v621
  %v623 = vpop.f32.mrb[0].mxu0
  %v624 = vpop.f32.mrb[0].mxu0
  %v625 = vadd.f32 0.0, %v624
  %v626 = vpop.f32.mrb[0].mxu0
  %627 = vmatprep.mubr.bf16.mxu0 0
  %628 = vmatmul.mubr.bf16.gmra.mrb[0].mxu0 %v391
  %v629 = vpop.f32.mrb[0].mxu0
  %v630 = vadd.f32 0.0, %v629
  %v631 = vpop.f32.mrb[0].mxu0
  %v632 = vpop.f32.mrb[0].mxu0
  %v633 = vadd.f32 0.0, %v632
  %v634 = vpop.f32.mrb[0].mxu0
  %635 = vmatprep.mubr.bf16.mxu0 0
  %636 = vmatmul.mubr.bf16.gmra.mrb[0].mxu0 %v394
  %v637 = vpop.f32.mrb[0].mxu0
  %v638 = vadd.f32 0.0, %v637
  %v639 = vpop.f32.mrb[0].mxu0
  %v640 = vpop.f32.mrb[0].mxu0
  %v641 = vadd.f32 0.0, %v640
  %v642 = vpop.f32.mrb[0].mxu0
  %643 = vmatprep.mubr.bf16.mxu0 0
  %644 = vmatmul.mubr.bf16.gmra.mrb[0].mxu0 %v397
  %v645 = vpop.f32.mrb[0].mxu0
  %v646 = vadd.f32 0.0, %v645
  %v647 = vpop.f32.mrb[0].mxu0
  %v648 = vpop.f32.mrb[0].mxu0
  %v649 = vadd.f32 0.0, %v648
  %v650 = vpop.f32.mrb[0].mxu0
  %651 = vmatprep.mubr.bf16.mxu0 0
  %652 = vmatmul.mubr.bf16.gmra.mrb[0].mxu0 %v400
  %v653 = vpop.f32.mrb[0].mxu0
  %v654 = vadd.f32 0.0, %v653
  %v655 = vpop.f32.mrb[0].mxu0
  %v656 = vpop.f32.mrb[0].mxu0
  %v657 = vadd.f32 0.0, %v656
  %v658 = vpop.f32.mrb[0].mxu0
  %659 = vmatprep.mubr.bf16.mxu0 0
  %660 = vmatmul.mubr.bf16.gmra.mrb[0].mxu0 %v403
  %v661 = vpop.f32.mrb[0].mxu0
  %v662 = vadd.f32 0.0, %v661
  %v663 = vpop.f32.mrb[0].mxu0
  %v664 = vpop.f32.mrb[0].mxu0
  %v665 = vadd.f32 0.0, %v664
  %v666 = vpop.f32.mrb[0].mxu0
  %667 = vmatprep.mubr.bf16.mxu0 0
  %668 = vmatmul.mubr.bf16.gmra.mrb[0].mxu0 %v406
  %v669 = vpop.f32.mrb[0].mxu0
  %v670 = vadd.f32 0.0, %v669
  %v671 = vpop.f32.mrb[0].mxu0
  %v672 = vpop.f32.mrb[0].mxu0
  %v673 = vadd.f32 0.0, %v672
  %v674 = vpop.f32.mrb[0].mxu0
  %675 = vmatprep.mubr.bf16.mxu0 0
  %676 = vmatmul.mubr.bf16.gmra.mrb[0].mxu0 %v409
  %v677 = vpop.f32.mrb[0].mxu0
  %v678 = vadd.f32 0.0, %v677
  %v679 = vpop.f32.mrb[0].mxu0
  %v680 = vpop.f32.mrb[0].mxu0
  %v681 = vadd.f32 0.0, %v680
  %v682 = vpop.f32.mrb[0].mxu0
  %683 = vmatprep.mubr.bf16.mxu0 0
  %684 = vmatmul.mubr.bf16.gmra.mrb[0].mxu0 %v412
  %v685 = vpop.f32.mrb[0].mxu0
  %v686 = vadd.f32 0.0, %v685
  %v687 = vpop.f32.mrb[0].mxu0
  %v688 = vpop.f32.mrb[0].mxu0
  %v689 = vadd.f32 0.0, %v688
  %v690 = vpop.f32.mrb[0].mxu0
  %691 = vmatprep.mubr.bf16.mxu0 0
  %692 = vmatmul.mubr.bf16.gmra.mrb[0].mxu0 %v415
  %v693 = vpop.f32.mrb[0].mxu0
  %v694 = vadd.f32 0.0, %v693
  %v695 = vpop.f32.mrb[0].mxu0
  %v696 = vpop.f32.mrb[0].mxu0
  %v697 = vadd.f32 0.0, %v696
  %v698 = vpop.f32.mrb[0].mxu0
  %699 = vmatprep.mubr.bf16.mxu0 0
  %700 = vmatmul.mubr.bf16.gmra.mrb[0].mxu0 %v418
  %v701 = vpop.f32.mrb[0].mxu0
  %v702 = vadd.f32 0.0, %v701
  %v703 = vpop.f32.mrb[0].mxu0
  %v704 = vpop.f32.mrb[0].mxu0
  %v705 = vadd.f32 0.0, %v704
  %v706 = vpop.f32.mrb[0].mxu0
  %707 = vmatprep.mubr.bf16.mxu0 0
  %708 = vmatmul.mubr.bf16.gmra.mrb[0].mxu0 %v421
  %v709 = vpop.f32.mrb[0].mxu0
  %v710 = vadd.f32 0.0, %v709
  %v711 = vpop.f32.mrb[0].mxu0
  %v712 = vpop.f32.mrb[0].mxu0
  %v713 = vadd.f32 0.0, %v712
  %v714 = vpop.f32.mrb[0].mxu0
  %715 = vdwg.mxu0
  %716 = vst.msk [vmem:[%s5] sm:$0xff] %vm326, %v462
  %717 = vst.msk [vmem:[%s5 + $0x8] sm:$0xff] %vm326, %v465
  %718 = vst.msk [vmem:[%s5 + $0x10] sm:$0xff] %vm326, %v470
  %719 = vst.msk [vmem:[%s5 + $0x18] sm:$0xff] %vm326, %v473
  %720 = vst.msk [vmem:[%s5 + $0x20] sm:$0xff] %vm326, %v478
  %721 = vst.msk [vmem:[%s5 + $0x28] sm:$0xff] %vm326, %v481
  %722 = vst.msk [vmem:[%s5 + $0x30] sm:$0xff] %vm326, %v486
  %723 = vst.msk [vmem:[%s5 + $0x38] sm:$0xff] %vm326, %v489
  %724 = vst.msk [vmem:[%s5 + $0x40] sm:$0xff] %vm326, %v494
  %725 = vst.msk [vmem:[%s5 + $0x48] sm:$0xff] %vm326, %v497
  %726 = vst.msk [vmem:[%s5 + $0x50] sm:$0xff] %vm326, %v502
  %727 = vst.msk [vmem:[%s5 + $0x58] sm:$0xff] %vm326, %v505
  %728 = vst.msk [vmem:[%s5 + $0x60] sm:$0xff] %vm326, %v510
  %729 = vst.msk [vmem:[%s5 + $0x68] sm:$0xff] %vm326, %v513
  %730 = vst.msk [vmem:[%s5 + $0x70] sm:$0xff] %vm326, %v518
  %731 = vst.msk [vmem:[%s5 + $0x78] sm:$0xff] %vm326, %v521
  %732 = vst.msk [vmem:[%s5 + $0x80] sm:$0xff] %vm326, %v526
  %733 = vst.msk [vmem:[%s5 + $0x88] sm:$0xff] %vm326, %v529
  %734 = vst.msk [vmem:[%s5 + $0x90] sm:$0xff] %vm326, %v534
  %735 = vst.msk [vmem:[%s5 + $0x98] sm:$0xff] %vm326, %v537
  %736 = vst.msk [vmem:[%s5 + $0xa0] sm:$0xff] %vm326, %v542
  %737 = vst.msk [vmem:[%s5 + $0xa8] sm:$0xff] %vm326, %v545
  %738 = vst.msk [vmem:[%s5 + $0xb0] sm:$0xff] %vm326, %v550
  %739 = vst.msk [vmem:[%s5 + $0xb8] sm:$0xff] %vm326, %v553
  %740 = vst.msk [vmem:[%s5 + $0xc0] sm:$0xff] %vm326, %v558
  %741 = vst.msk [vmem:[%s5 + $0xc8] sm:$0xff] %vm326, %v561
  %742 = vst.msk [vmem:[%s5 + $0xd0] sm:$0xff] %vm326, %v566
  %743 = vst.msk [vmem:[%s5 + $0xd8] sm:$0xff] %vm326, %v569
  %744 = vst.msk [vmem:[%s5 + $0xe0] sm:$0xff] %vm326, %v574
  %745 = vst.msk [vmem:[%s5 + $0xe8] sm:$0xff] %vm326, %v577
  %746 = vst.msk [vmem:[%s5 + $0xf0] sm:$0xff] %vm326, %v582
  %747 = vst.msk [vmem:[%s5 + $0xf8] sm:$0xff] %vm326, %v585
  %748 = vst.msk [vmem:[%s5 + $0x100] sm:$0xff] %vm326, %v590
  %749 = vst.msk [vmem:[%s5 + $0x108] sm:$0xff] %vm326, %v593
  %750 = vst.msk [vmem:[%s5 + $0x110] sm:$0xff] %vm326, %v598
  %751 = vst.msk [vmem:[%s5 + $0x118] sm:$0xff] %vm326, %v601
  %752 = vst.msk [vmem:[%s5 + $0x120] sm:$0xff] %vm326, %v606
  %753 = vst.msk [vmem:[%s5 + $0x128] sm:$0xff] %vm326, %v609
  %754 = vst.msk [vmem:[%s5 + $0x130] sm:$0xff] %vm326, %v614
  %755 = vst.msk [vmem:[%s5 + $0x138] sm:$0xff] %vm326, %v617
  %756 = vst.msk [vmem:[%s5 + $0x140] sm:$0xff] %vm326, %v622
  %757 = vst.msk [vmem:[%s5 + $0x148] sm:$0xff] %vm326, %v625
  %758 = vst.msk [vmem:[%s5 + $0x150] sm:$0xff] %vm326, %v630
  %759 = vst.msk [vmem:[%s5 + $0x158] sm:$0xff] %vm326, %v633
  %760 = vst.msk [vmem:[%s5 + $0x160] sm:$0xff] %vm326, %v638
  %761 = vst.msk [vmem:[%s5 + $0x168] sm:$0xff] %vm326, %v641
  %762 = vst.msk [vmem:[%s5 + $0x170] sm:$0xff] %vm326, %v646
  %763 = vst.msk [vmem:[%s5 + $0x178] sm:$0xff] %vm326, %v649
  %764 = vst.msk [vmem:[%s5 + $0x180] sm:$0xff] %vm326, %v654
  %765 = vst.msk [vmem:[%s5 + $0x188] sm:$0xff] %vm326, %v657
  %766 = vst.msk [vmem:[%s5 + $0x190] sm:$0xff] %vm326, %v662
  %767 = vst.msk [vmem:[%s5 + $0x198] sm:$0xff] %vm326, %v665
  %768 = vst.msk [vmem:[%s5 + $0x1a0] sm:$0xff] %vm326, %v670
  %769 = vst.msk [vmem:[%s5 + $0x1a8] sm:$0xff] %vm326, %v673
  %770 = vst.msk [vmem:[%s5 + $0x1b0] sm:$0xff] %vm326, %v678
  %771 = vst.msk [vmem:[%s5 + $0x1b8] sm:$0xff] %vm326, %v681
  %772 = vst.msk [vmem:[%s5 + $0x1c0] sm:$0xff] %vm326, %v686
  %773 = vst.msk [vmem:[%s5 + $0x1c8] sm:$0xff] %vm326, %v689
  %774 = vst.msk [vmem:[%s5 + $0x1d0] sm:$0xff] %vm326, %v694
  %775 = vst.msk [vmem:[%s5 + $0x1d8] sm:$0xff] %vm326, %v697
  %776 = vst.msk [vmem:[%s5 + $0x1e0] sm:$0xff] %vm326, %v702
  %777 = vst.msk [vmem:[%s5 + $0x1e8] sm:$0xff] %vm326, %v705
  %778 = vst.msk [vmem:[%s5 + $0x1f0] sm:$0xff] %vm326, %v710
  %779 = vst.msk [vmem:[%s5 + $0x1f8] sm:$0xff] %vm326, %v713
  %v780 = vld [vmem:[%s4] sm:$0x3]
  %v782 = vsel %vm423, %v780, 0
  %784 = vmatprep.subr.bf16.mxu0 0
  %785 = vmatpush1.bf16.msra.mxu0 %v782
  %786 = vmatprep.subr.bf16.mxu0 0
  %787 = vmatpush1.bf16.msra.mxu0 0
  %788 = vmatprep.subr.bf16.mxu0 0
  %789 = vmatpush1.bf16.msra.mxu0 0
  %790 = vmatprep.subr.bf16.mxu0 0
  %791 = vmatpush1.bf16.msra.mxu0 0
  %792 = vmatprep.subr.bf16.mxu0 0
  %793 = vmatpush1.bf16.msra.mxu0 0
  %794 = vmatprep.subr.bf16.mxu0 0
  %795 = vmatpush1.bf16.msra.mxu0 0
  %796 = vmatprep.subr.bf16.mxu0 0
  %797 = vmatpush1.bf16.msra.mxu0 0
  %798 = vmatprep.subr.bf16.mxu0 0
  %799 = vmatpush1.bf16.msra.mxu0 0
  %800 = vmatprep.subr.bf16.mxu0 0
  %801 = vmatpush1.bf16.msra.mxu0 0
  %802 = vmatprep.subr.bf16.mxu0 0
  %803 = vmatpush1.bf16.msra.mxu0 0
  %804 = vmatprep.subr.bf16.mxu0 0
  %805 = vmatpush1.bf16.msra.mxu0 0
  %806 = vmatprep.subr.bf16.mxu0 0
  %807 = vmatpush1.bf16.msra.mxu0 0
  %808 = vmatprep.subr.bf16.mxu0 0
  %809 = vmatpush1.bf16.msra.mxu0 0
  %810 = vmatprep.subr.bf16.mxu0 0
  %811 = vmatpush1.bf16.msra.mxu0 0
  %812 = vmatprep.subr.bf16.mxu0 0
  %813 = vmatpush1.bf16.msra.mxu0 0
  %814 = vmatprep.subr.bf16.mxu0 0
  %815 = vmatpush1.bf16.msra.mxu0 0
  %816 = vmatprep.mubr.bf16.mxu0 0
  %817 = vmatmul.mubr.bf16.gmra.mrb[0].mxu0 %v328
  %v818 = vpop.f32.mrb[0].mxu0
  %v819 = vadd.f32 0.0, %v818
  %v820 = vpop.f32.mrb[0].mxu0
  %v821 = vpop.f32.mrb[0].mxu0
  %v822 = vadd.f32 0.0, %v821
  %v823 = vpop.f32.mrb[0].mxu0
  %824 = vmatprep.mubr.bf16.mxu0 0
  %825 = vmatmul.mubr.bf16.gmra.mrb[0].mxu0 %v331
  %v826 = vpop.f32.mrb[0].mxu0
  %v827 = vadd.f32 0.0, %v826
  %v828 = vpop.f32.mrb[0].mxu0
  %v829 = vpop.f32.mrb[0].mxu0
  %v830 = vadd.f32 0.0, %v829
  %v831 = vpop.f32.mrb[0].mxu0
  %832 = vmatprep.mubr.bf16.mxu0 0
  %833 = vmatmul.mubr.bf16.gmra.mrb[0].mxu0 %v334
  %v834 = vpop.f32.mrb[0].mxu0
  %v835 = vadd.f32 0.0, %v834
  %v836 = vpop.f32.mrb[0].mxu0
  %v837 = vpop.f32.mrb[0].mxu0
  %v838 = vadd.f32 0.0, %v837
  %v839 = vpop.f32.mrb[0].mxu0
  %840 = vmatprep.mubr.bf16.mxu0 0
  %841 = vmatmul.mubr.bf16.gmra.mrb[0].mxu0 %v337
  %v842 = vpop.f32.mrb[0].mxu0
  %v843 = vadd.f32 0.0, %v842
  %v844 = vpop.f32.mrb[0].mxu0
  %v845 = vpop.f32.mrb[0].mxu0
  %v846 = vadd.f32 0.0, %v845
  %v847 = vpop.f32.mrb[0].mxu0
  %848 = vmatprep.mubr.bf16.mxu0 0
  %849 = vmatmul.mubr.bf16.gmra.mrb[0].mxu0 %v340
  %v850 = vpop.f32.mrb[0].mxu0
  %v851 = vadd.f32 0.0, %v850
  %v852 = vpop.f32.mrb[0].mxu0
  %v853 = vpop.f32.mrb[0].mxu0
  %v854 = vadd.f32 0.0, %v853
  %v855 = vpop.f32.mrb[0].mxu0
  %856 = vmatprep.mubr.bf16.mxu0 0
  %857 = vmatmul.mubr.bf16.gmra.mrb[0].mxu0 %v343
  %v858 = vpop.f32.mrb[0].mxu0
  %v859 = vadd.f32 0.0, %v858
  %v860 = vpop.f32.mrb[0].mxu0
  %v861 = vpop.f32.mrb[0].mxu0
  %v862 = vadd.f32 0.0, %v861
  %v863 = vpop.f32.mrb[0].mxu0
  %864 = vmatprep.mubr.bf16.mxu0 0
  %865 = vmatmul.mubr.bf16.gmra.mrb[0].mxu0 %v346
  %v866 = vpop.f32.mrb[0].mxu0
  %v867 = vadd.f32 0.0, %v866
  %v868 = vpop.f32.mrb[0].mxu0
  %v869 = vpop.f32.mrb[0].mxu0
  %v870 = vadd.f32 0.0, %v869
  %v871 = vpop.f32.mrb[0].mxu0
  %872 = vmatprep.mubr.bf16.mxu0 0
  %873 = vmatmul.mubr.bf16.gmra.mrb[0].mxu0 %v349
  %v874 = vpop.f32.mrb[0].mxu0
  %v875 = vadd.f32 0.0, %v874
  %v876 = vpop.f32.mrb[0].mxu0
  %v877 = vpop.f32.mrb[0].mxu0
  %v878 = vadd.f32 0.0, %v877
  %v879 = vpop.f32.mrb[0].mxu0
  %880 = vmatprep.mubr.bf16.mxu0 0
  %881 = vmatmul.mubr.bf16.gmra.mrb[0].mxu0 %v352
  %v882 = vpop.f32.mrb[0].mxu0
  %v883 = vadd.f32 0.0, %v882
  %v884 = vpop.f32.mrb[0].mxu0
  %v885 = vpop.f32.mrb[0].mxu0
  %v886 = vadd.f32 0.0, %v885
  %v887 = vpop.f32.mrb[0].mxu0
  %888 = vmatprep.mubr.bf16.mxu0 0
  %889 = vmatmul.mubr.bf16.gmra.mrb[0].mxu0 %v355
  %v890 = vpop.f32.mrb[0].mxu0
  %v891 = vadd.f32 0.0, %v890
  %v892 = vpop.f32.mrb[0].mxu0
  %v893 = vpop.f32.mrb[0].mxu0
  %v894 = vadd.f32 0.0, %v893
  %v895 = vpop.f32.mrb[0].mxu0
  %896 = vmatprep.mubr.bf16.mxu0 0
  %897 = vmatmul.mubr.bf16.gmra.mrb[0].mxu0 %v358
  %v898 = vpop.f32.mrb[0].mxu0
  %v899 = vadd.f32 0.0, %v898
  %v900 = vpop.f32.mrb[0].mxu0
  %v901 = vpop.f32.mrb[0].mxu0
  %v902 = vadd.f32 0.0, %v901
  %v903 = vpop.f32.mrb[0].mxu0
  %904 = vmatprep.mubr.bf16.mxu0 0
  %905 = vmatmul.mubr.bf16.gmra.mrb[0].mxu0 %v361
  %v906 = vpop.f32.mrb[0].mxu0
  %v907 = vadd.f32 0.0, %v906
  %v908 = vpop.f32.mrb[0].mxu0
  %v909 = vpop.f32.mrb[0].mxu0
  %v910 = vadd.f32 0.0, %v909
  %v911 = vpop.f32.mrb[0].mxu0
  %912 = vmatprep.mubr.bf16.mxu0 0
  %913 = vmatmul.mubr.bf16.gmra.mrb[0].mxu0 %v364
  %v914 = vpop.f32.mrb[0].mxu0
  %v915 = vadd.f32 0.0, %v914
  %v916 = vpop.f32.mrb[0].mxu0
  %v917 = vpop.f32.mrb[0].mxu0
  %v918 = vadd.f32 0.0, %v917
  %v919 = vpop.f32.mrb[0].mxu0
  %920 = vmatprep.mubr.bf16.mxu0 0
  %921 = vmatmul.mubr.bf16.gmra.mrb[0].mxu0 %v367
  %v922 = vpop.f32.mrb[0].mxu0
  %v923 = vadd.f32 0.0, %v922
  %v924 = vpop.f32.mrb[0].mxu0
  %v925 = vpop.f32.mrb[0].mxu0
  %v926 = vadd.f32 0.0, %v925
  %v927 = vpop.f32.mrb[0].mxu0
  %928 = vmatprep.mubr.bf16.mxu0 0
  %929 = vmatmul.mubr.bf16.gmra.mrb[0].mxu0 %v370
  %v930 = vpop.f32.mrb[0].mxu0
  %v931 = vadd.f32 0.0, %v930
  %v932 = vpop.f32.mrb[0].mxu0
  %v933 = vpop.f32.mrb[0].mxu0
  %v934 = vadd.f32 0.0, %v933
  %v935 = vpop.f32.mrb[0].mxu0
  %936 = vmatprep.mubr.bf16.mxu0 0
  %937 = vmatmul.mubr.bf16.gmra.mrb[0].mxu0 %v373
  %v938 = vpop.f32.mrb[0].mxu0
  %v939 = vadd.f32 0.0, %v938
  %v940 = vpop.f32.mrb[0].mxu0
  %v941 = vpop.f32.mrb[0].mxu0
  %v942 = vadd.f32 0.0, %v941
  %v943 = vpop.f32.mrb[0].mxu0
  %944 = vmatprep.mubr.bf16.mxu0 0
  %945 = vmatmul.mubr.bf16.gmra.mrb[0].mxu0 %v376
  %v946 = vpop.f32.mrb[0].mxu0
  %v947 = vadd.f32 0.0, %v946
  %v948 = vpop.f32.mrb[0].mxu0
  %v949 = vpop.f32.mrb[0].mxu0
  %v950 = vadd.f32 0.0, %v949
  %v951 = vpop.f32.mrb[0].mxu0
  %952 = vmatprep.mubr.bf16.mxu0 0
  %953 = vmatmul.mubr.bf16.gmra.mrb[0].mxu0 %v379
  %v954 = vpop.f32.mrb[0].mxu0
  %v955 = vadd.f32 0.0, %v954
  %v956 = vpop.f32.mrb[0].mxu0
  %v957 = vpop.f32.mrb[0].mxu0
  %v958 = vadd.f32 0.0, %v957
  %v959 = vpop.f32.mrb[0].mxu0
  %960 = vmatprep.mubr.bf16.mxu0 0
  %961 = vmatmul.mubr.bf16.gmra.mrb[0].mxu0 %v382
  %v962 = vpop.f32.mrb[0].mxu0
  %v963 = vadd.f32 0.0, %v962
  %v964 = vpop.f32.mrb[0].mxu0
  %v965 = vpop.f32.mrb[0].mxu0
  %v966 = vadd.f32 0.0, %v965
  %v967 = vpop.f32.mrb[0].mxu0
  %968 = vmatprep.mubr.bf16.mxu0 0
  %969 = vmatmul.mubr.bf16.gmra.mrb[0].mxu0 %v385
  %v970 = vpop.f32.mrb[0].mxu0
  %v971 = vadd.f32 0.0, %v970
  %v972 = vpop.f32.mrb[0].mxu0
  %v973 = vpop.f32.mrb[0].mxu0
  %v974 = vadd.f32 0.0, %v973
  %v975 = vpop.f32.mrb[0].mxu0
  %976 = vmatprep.mubr.bf16.mxu0 0
  %977 = vmatmul.mubr.bf16.gmra.mrb[0].mxu0 %v388
  %v978 = vpop.f32.mrb[0].mxu0
  %v979 = vadd.f32 0.0, %v978
  %v980 = vpop.f32.mrb[0].mxu0
  %v981 = vpop.f32.mrb[0].mxu0
  %v982 = vadd.f32 0.0, %v981
  %v983 = vpop.f32.mrb[0].mxu0
  %984 = vmatprep.mubr.bf16.mxu0 0
  %985 = vmatmul.mubr.bf16.gmra.mrb[0].mxu0 %v391
  %v986 = vpop.f32.mrb[0].mxu0
  %v987 = vadd.f32 0.0, %v986
  %v988 = vpop.f32.mrb[0].mxu0
  %v989 = vpop.f32.mrb[0].mxu0
  %v990 = vadd.f32 0.0, %v989
  %v991 = vpop.f32.mrb[0].mxu0
  %992 = vmatprep.mubr.bf16.mxu0 0
  %993 = vmatmul.mubr.bf16.gmra.mrb[0].mxu0 %v394
  %v994 = vpop.f32.mrb[0].mxu0
  %v995 = vadd.f32 0.0, %v994
  %v996 = vpop.f32.mrb[0].mxu0
  %v997 = vpop.f32.mrb[0].mxu0
  %v998 = vadd.f32 0.0, %v997
  %v999 = vpop.f32.mrb[0].mxu0
  %1000 = vmatprep.mubr.bf16.mxu0 0
  %1001 = vmatmul.mubr.bf16.gmra.mrb[0].mxu0 %v397
  %v1002 = vpop.f32.mrb[0].mxu0
  %v1003 = vadd.f32 0.0, %v1002
  %v1004 = vpop.f32.mrb[0].mxu0
  %v1005 = vpop.f32.mrb[0].mxu0
  %v1006 = vadd.f32 0.0, %v1005
  %v1007 = vpop.f32.mrb[0].mxu0
  %1008 = vmatprep.mubr.bf16.mxu0 0
  %1009 = vmatmul.mubr.bf16.gmra.mrb[0].mxu0 %v400
  %v1010 = vpop.f32.mrb[0].mxu0
  %v1011 = vadd.f32 0.0, %v1010
  %v1012 = vpop.f32.mrb[0].mxu0
  %v1013 = vpop.f32.mrb[0].mxu0
  %v1014 = vadd.f32 0.0, %v1013
  %v1015 = vpop.f32.mrb[0].mxu0
  %1016 = vmatprep.mubr.bf16.mxu0 0
  %1017 = vmatmul.mubr.bf16.gmra.mrb[0].mxu0 %v403
  %v1018 = vpop.f32.mrb[0].mxu0
  %v1019 = vadd.f32 0.0, %v1018
  %v1020 = vpop.f32.mrb[0].mxu0
  %v1021 = vpop.f32.mrb[0].mxu0
  %v1022 = vadd.f32 0.0, %v1021
  %v1023 = vpop.f32.mrb[0].mxu0
  %1024 = vmatprep.mubr.bf16.mxu0 0
  %1025 = vmatmul.mubr.bf16.gmra.mrb[0].mxu0 %v406
  %v1026 = vpop.f32.mrb[0].mxu0
  %v1027 = vadd.f32 0.0, %v1026
  %v1028 = vpop.f32.mrb[0].mxu0
  %v1029 = vpop.f32.mrb[0].mxu0
  %v1030 = vadd.f32 0.0, %v1029
  %v1031 = vpop.f32.mrb[0].mxu0
  %1032 = vmatprep.mubr.bf16.mxu0 0
  %1033 = vmatmul.mubr.bf16.gmra.mrb[0].mxu0 %v409
  %v1034 = vpop.f32.mrb[0].mxu0
  %v1035 = vadd.f32 0.0, %v1034
  %v1036 = vpop.f32.mrb[0].mxu0
  %v1037 = vpop.f32.mrb[0].mxu0
  %v1038 = vadd.f32 0.0, %v1037
  %v1039 = vpop.f32.mrb[0].mxu0
  %1040 = vmatprep.mubr.bf16.mxu0 0
  %1041 = vmatmul.mubr.bf16.gmra.mrb[0].mxu0 %v412
  %v1042 = vpop.f32.mrb[0].mxu0
  %v1043 = vadd.f32 0.0, %v1042
  %v1044 = vpop.f32.mrb[0].mxu0
  %v1045 = vpop.f32.mrb[0].mxu0
  %v1046 = vadd.f32 0.0, %v1045
  %v1047 = vpop.f32.mrb[0].mxu0
  %1048 = vmatprep.mubr.bf16.mxu0 0
  %1049 = vmatmul.mubr.bf16.gmra.mrb[0].mxu0 %v415
  %v1050 = vpop.f32.mrb[0].mxu0
  %v1051 = vadd.f32 0.0, %v1050
  %v1052 = vpop.f32.mrb[0].mxu0
  %v1053 = vpop.f32.mrb[0].mxu0
  %v1054 = vadd.f32 0.0, %v1053
  %v1055 = vpop.f32.mrb[0].mxu0
  %1056 = vmatprep.mubr.bf16.mxu0 0
  %1057 = vmatmul.mubr.bf16.gmra.mrb[0].mxu0 %v418
  %v1058 = vpop.f32.mrb[0].mxu0
  %v1059 = vadd.f32 0.0, %v1058
  %v1060 = vpop.f32.mrb[0].mxu0
  %v1061 = vpop.f32.mrb[0].mxu0
  %v1062 = vadd.f32 0.0, %v1061
  %v1063 = vpop.f32.mrb[0].mxu0
  %1064 = vmatprep.mubr.bf16.mxu0 0
  %1065 = vmatmul.mubr.bf16.gmra.mrb[0].mxu0 %v421
  %v1066 = vpop.f32.mrb[0].mxu0
  %v1067 = vadd.f32 0.0, %v1066
  %v1068 = vpop.f32.mrb[0].mxu0
  %v1069 = vpop.f32.mrb[0].mxu0
  %v1070 = vadd.f32 0.0, %v1069
  %v1071 = vpop.f32.mrb[0].mxu0
  %1072 = vdwg.mxu0
  %vm1073 = vcmask 130048
  %1074 = vst.msk [vmem:[%s6] sm:$0xff] %vm1073, %v819
  %1075 = vst.msk [vmem:[%s6 + $0x8] sm:$0xff] %vm1073, %v822
  %1076 = vst.msk [vmem:[%s6 + $0x10] sm:$0xff] %vm1073, %v827
  %1077 = vst.msk [vmem:[%s6 + $0x18] sm:$0xff] %vm1073, %v830
  %1078 = vst.msk [vmem:[%s6 + $0x20] sm:$0xff] %vm1073, %v835
  %1079 = vst.msk [vmem:[%s6 + $0x28] sm:$0xff] %vm1073, %v838
  %1080 = vst.msk [vmem:[%s6 + $0x30] sm:$0xff] %vm1073, %v843
  %1081 = vst.msk [vmem:[%s6 + $0x38] sm:$0xff] %vm1073, %v846
  %1082 = vst.msk [vmem:[%s6 + $0x40] sm:$0xff] %vm1073, %v851
  %1083 = vst.msk [vmem:[%s6 + $0x48] sm:$0xff] %vm1073, %v854
  %1084 = vst.msk [vmem:[%s6 + $0x50] sm:$0xff] %vm1073, %v859
  %1085 = vst.msk [vmem:[%s6 + $0x58] sm:$0xff] %vm1073, %v862
  %1086 = vst.msk [vmem:[%s6 + $0x60] sm:$0xff] %vm1073, %v867
  %1087 = vst.msk [vmem:[%s6 + $0x68] sm:$0xff] %vm1073, %v870
  %1088 = vst.msk [vmem:[%s6 + $0x70] sm:$0xff] %vm1073, %v875
  %1089 = vst.msk [vmem:[%s6 + $0x78] sm:$0xff] %vm1073, %v878
  %1090 = vst.msk [vmem:[%s6 + $0x80] sm:$0xff] %vm1073, %v883
  %1091 = vst.msk [vmem:[%s6 + $0x88] sm:$0xff] %vm1073, %v886
  %1092 = vst.msk [vmem:[%s6 + $0x90] sm:$0xff] %vm1073, %v891
  %1093 = vst.msk [vmem:[%s6 + $0x98] sm:$0xff] %vm1073, %v894
  %1094 = vst.msk [vmem:[%s6 + $0xa0] sm:$0xff] %vm1073, %v899
  %1095 = vst.msk [vmem:[%s6 + $0xa8] sm:$0xff] %vm1073, %v902
  %1096 = vst.msk [vmem:[%s6 + $0xb0] sm:$0xff] %vm1073, %v907
  %1097 = vst.msk [vmem:[%s6 + $0xb8] sm:$0xff] %vm1073, %v910
  %1098 = vst.msk [vmem:[%s6 + $0xc0] sm:$0xff] %vm1073, %v915
  %1099 = vst.msk [vmem:[%s6 + $0xc8] sm:$0xff] %vm1073, %v918
  %1100 = vst.msk [vmem:[%s6 + $0xd0] sm:$0xff] %vm1073, %v923
  %1101 = vst.msk [vmem:[%s6 + $0xd8] sm:$0xff] %vm1073, %v926
  %1102 = vst.msk [vmem:[%s6 + $0xe0] sm:$0xff] %vm1073, %v931
  %1103 = vst.msk [vmem:[%s6 + $0xe8] sm:$0xff] %vm1073, %v934
  %1104 = vst.msk [vmem:[%s6 + $0xf0] sm:$0xff] %vm1073, %v939
  %1105 = vst.msk [vmem:[%s6 + $0xf8] sm:$0xff] %vm1073, %v942
  %1106 = vst.msk [vmem:[%s6 + $0x100] sm:$0xff] %vm1073, %v947
  %1107 = vst.msk [vmem:[%s6 + $0x108] sm:$0xff] %vm1073, %v950
  %1108 = vst.msk [vmem:[%s6 + $0x110] sm:$0xff] %vm1073, %v955
  %1109 = vst.msk [vmem:[%s6 + $0x118] sm:$0xff] %vm1073, %v958
  %1110 = vst.msk [vmem:[%s6 + $0x120] sm:$0xff] %vm1073, %v963
  %1111 = vst.msk [vmem:[%s6 + $0x128] sm:$0xff] %vm1073, %v966
  %1112 = vst.msk [vmem:[%s6 + $0x130] sm:$0xff] %vm1073, %v971
  %1113 = vst.msk [vmem:[%s6 + $0x138] sm:$0xff] %vm1073, %v974
  %1114 = vst.msk [vmem:[%s6 + $0x140] sm:$0xff] %vm1073, %v979
  %1115 = vst.msk [vmem:[%s6 + $0x148] sm:$0xff] %vm1073, %v982
  %1116 = vst.msk [vmem:[%s6 + $0x150] sm:$0xff] %vm1073, %v987
  %1117 = vst.msk [vmem:[%s6 + $0x158] sm:$0xff] %vm1073, %v990
  %1118 = vst.msk [vmem:[%s6 + $0x160] sm:$0xff] %vm1073, %v995
  %1119 = vst.msk [vmem:[%s6 + $0x168] sm:$0xff] %vm1073, %v998
  %1120 = vst.msk [vmem:[%s6 + $0x170] sm:$0xff] %vm1073, %v1003
  %1121 = vst.msk [vmem:[%s6 + $0x178] sm:$0xff] %vm1073, %v1006
  %1122 = vst.msk [vmem:[%s6 + $0x180] sm:$0xff] %vm1073, %v1011
  %1123 = vst.msk [vmem:[%s6 + $0x188] sm:$0xff] %vm1073, %v1014
  %1124 = vst.msk [vmem:[%s6 + $0x190] sm:$0xff] %vm1073, %v1019
  %1125 = vst.msk [vmem:[%s6 + $0x198] sm:$0xff] %vm1073, %v1022
  %1126 = vst.msk [vmem:[%s6 + $0x1a0] sm:$0xff] %vm1073, %v1027
  %1127 = vst.msk [vmem:[%s6 + $0x1a8] sm:$0xff] %vm1073, %v1030
  %1128 = vst.msk [vmem:[%s6 + $0x1b0] sm:$0xff] %vm1073, %v1035
  %1129 = vst.msk [vmem:[%s6 + $0x1b8] sm:$0xff] %vm1073, %v1038
  %1130 = vst.msk [vmem:[%s6 + $0x1c0] sm:$0xff] %vm1073, %v1043
  %1131 = vst.msk [vmem:[%s6 + $0x1c8] sm:$0xff] %vm1073, %v1046
  %1132 = vst.msk [vmem:[%s6 + $0x1d0] sm:$0xff] %vm1073, %v1051
  %1133 = vst.msk [vmem:[%s6 + $0x1d8] sm:$0xff] %vm1073, %v1054
  %1134 = vst.msk [vmem:[%s6 + $0x1e0] sm:$0xff] %vm1073, %v1059
  %1135 = vst.msk [vmem:[%s6 + $0x1e8] sm:$0xff] %vm1073, %v1062
  %1136 = vst.msk [vmem:[%s6 + $0x1f0] sm:$0xff] %vm1073, %v1067
  %1137 = vst.msk [vmem:[%s6 + $0x1f8] sm:$0xff] %vm1073, %v1070
  // Predicated region
  $region22: #{preact_bottleneck_forward.3} parent=0 // pred_check
    _
  $region23: #{preact_bottleneck_forward.3} parent=0 // pred_check_branch
    %1139 = sbr.rel (0) target = $region25
  $region24: #{preact_bottleneck_forward.3} parent=0 // pred_region
    _
  $region25: #{preact_bottleneck_forward.3} parent=0 // pred_fallthru
    _
  // Predicated region
  $region26: #{preact_bottleneck_forward.3} parent=0 // pred_check
    _
  $region27: #{preact_bottleneck_forward.3} parent=0 // pred_check_branch
    %1141 = sbr.rel (0) target = $region29
  $region28: #{preact_bottleneck_forward.3} parent=0 // pred_region
    _
  $region29: #{preact_bottleneck_forward.3} parent=0 // pred_fallthru
    _
  // Predicated region
  $region30: #{preact_bottleneck_forward.3} parent=0 // pred_check
    _
  $region31: #{preact_bottleneck_forward.3} parent=0 // pred_check_branch
    %1143 = sbr.rel (0) target = $region33
  $region32: #{preact_bottleneck_forward.3} parent=0 // pred_region
    _
  $region33: #{preact_bottleneck_forward.3} parent=0 // pred_fallthru
    _
  // Predicated region
  $region34: #{preact_bottleneck_forward.3} parent=0 // pred_check
    _
  $region35: #{preact_bottleneck_forward.3} parent=0 // pred_check_branch
    %1145 = sbr.rel (0) target = $region37
  $region36: #{preact_bottleneck_forward.3} parent=0 // pred_region
    _
  $region37: #{preact_bottleneck_forward.3} parent=0 // pred_fallthru
    _

// kernel: preact_bottleneck_forward.4
$region0: #{preact_bottleneck_forward.4}
  #allocation0 [shape = 'u32[]', space=smem, size = 0x4, offset = 0x4, fixed_abs, tag = 'smem constant byte address 0x4 - core index']
  #allocation1 [shape = 'u32[144,128]{1,0:T(1,128)}', space=vmem, size = 0x12000, scoped, tag = 'internal scratch']
  #allocation2 [shape = 'f32[18,18,4]{2,1,0:T(8,128)}', space=vmem, size = 0x36000, scoped, tag = 'scratch operand']
  #allocation3 [shape = 'f32[256,4]{1,0:T(8,128)}', space=vmem, size = 0x20000, scoped, tag = 'scratch operand']
  %s0 = inlined_call_operand.vmem [shape: f32[2,16,16,4], index: 0, kind: input, shape index: {}]
  %s1 = inlined_call_operand.vmem [shape: f32[1,4], index: 1, kind: input, shape index: {}]
  %s2 = inlined_call_operand.vmem [shape: f32[1,4], index: 2, kind: input, shape index: {}]
  %s3 = inlined_call_operand.vmem [shape: bf16[9,4,4], index: 3, kind: input, shape index: {}]
  %s4 = inlined_call_operand.vmem [shape: f32[2,16,16,4], index: 4, kind: output, shape index: {}]
  %s5 = sld [smem:[#allocation0]]
  $region49: #{preact_bottleneck_forward.4} parent=0
    _
  %s7 = ssub.s32 1, %s5
  %s8 = scalar_select 0, %s7, %s5
  loop: start=0, step=1, limit=4
  $region2: #{preact_bottleneck_forward.4} parent=0 // loop_pre_header
    _
  $region3: #{preact_bottleneck_forward.4} parent=0 // loop_header
    %s10 = sphi 0, %s14
    %p11 = scmp.ge.s32.totalorder %s10, 4
    %s20 = sphi 0, %s22
    %s23 = sphi 0, %s20
    %s24 = sphi 0, %s23
    %s40 = sphi 0, %s24
    %s44 = sphi 0, %s44
    %s46 = sphi 0, %s44
    %s47 = sphi 0, %s46
    %s61 = sphi 0, %s47
    %s65 = sphi 0, %s65
    %s67 = sphi 0, %s65
    %s68 = sphi 0, %s67
    %s82 = sphi 0, %s68
    %s86 = sphi 0, %s86
    %s88 = sphi 0, %s86
    %s89 = sphi 0, %s88
    %s103 = sphi 0, %s89
    %s109 = sphi 0, %s111
    %s112 = sphi 0, %s109
    %s113 = sphi 0, %s112
    %s129 = sphi 0, %s113
  $region4: #{preact_bottleneck_forward.4} parent=0 // loop_header_branch
    %13 = sbr.rel (%p11) target = $region8
  $region5: #{preact_bottleneck_forward.4} parent=0 // loop_body
    %s15 = ssub.s32 %s10, 1
    %s16 = ssub.s32 %s10, 2
    %s17 = sadd.s32 %s10, 1
    %s18 = ssub.s32 %s10, %s17
    %p19 = scmp.eq.s32.totalorder %s18, 0
    %s21 = sadd.s32 %s20, 1
    %s22 = scalar_select %p19, %s20, %s21
    %p25 = pneg %p19
    %p26 = scmp.eq.s32.totalorder %s10, 1
    %p27 = por %p25, %p26
    %p28 = scmp.ne.s32.totalorder %s20, %s23
    %p29 = scmp.eq.s32.totalorder %s10, 0
    %p30 = por %p28, %p29
    %p31 = scmp.ne.s32.totalorder %s20, %s23
    %p32 = scmp.eq.s32.totalorder %s15, 1
    %p33 = por %p31, %p32
    %p34 = scmp.ne.s32.totalorder %s23, %s24
    %p35 = scmp.eq.s32.totalorder %s15, 0
    %p36 = por %p34, %p35
    %p37 = scmp.ne.s32.totalorder %s23, %s24
    %p38 = scmp.eq.s32.totalorder %s16, 1
    %p39 = por %p37, %p38
    %p41 = scmp.ne.s32.totalorder %s24, %s40
    %p42 = scmp.eq.s32.totalorder %s16, 0
    %p43 = por %p41, %p42
    %s45 = sadd.s32 %s44, 1
    %p48 = scmp.eq.s32.totalorder %s10, 1
    %p49 = scmp.ne.s32.totalorder %s44, %s46
    %p50 = scmp.eq.s32.totalorder %s10, 0
    %p51 = por %p49, %p50
    %p52 = scmp.ne.s32.totalorder %s44, %s46
    %p53 = scmp.eq.s32.totalorder %s15, 1
    %p54 = por %p52, %p53
    %p55 = scmp.ne.s32.totalorder %s46, %s47
    %p56 = scmp.eq.s32.totalorder %s15, 0
    %p57 = por %p55, %p56
    %p58 = scmp.ne.s32.totalorder %s46, %s47
    %p59 = scmp.eq.s32.totalorder %s16, 1
    %p60 = por %p58, %p59
    %p62 = scmp.ne.s32.totalorder %s47, %s61
    %p63 = scmp.eq.s32.totalorder %s16, 0
    %p64 = por %p62, %p63
    %s66 = sadd.s32 %s65, 1
    %p69 = scmp.eq.s32.totalorder %s10, 1
    %p70 = scmp.ne.s32.totalorder %s65, %s67
    %p71 = scmp.eq.s32.totalorder %s10, 0
    %p72 = por %p70, %p71
    %p73 = scmp.ne.s32.totalorder %s65, %s67
    %p74 = scmp.eq.s32.totalorder %s15, 1
    %p75 = por %p73, %p74
    %p76 = scmp.ne.s32.totalorder %s67, %s68
    %p77 = scmp.eq.s32.totalorder %s15, 0
    %p78 = por %p76, %p77
    %p79 = scmp.ne.s32.totalorder %s67, %s68
    %p80 = scmp.eq.s32.totalorder %s16, 1
    %p81 = por %p79, %p80
    %p83 = scmp.ne.s32.totalorder %s68, %s82
    %p84 = scmp.eq.s32.totalorder %s16, 0
    %p85 = por %p83, %p84
    %s87 = sadd.s32 %s86, 1
    %p90 = scmp.eq.s32.totalorder %s10, 1
    %p91 = scmp.ne.s32.totalorder %s86, %s88
    %p92 = scmp.eq.s32.totalorder %s10, 0
    %p93 = por %p91, %p92
    %p94 = scmp.ne.s32.totalorder %s86, %s88
    %p95 = scmp.eq.s32.totalorder %s15, 1
    %p96 = por %p94, %p95
    %p97 = scmp.ne.s32.totalorder %s88, %s89
    %p98 = scmp.eq.s32.totalorder %s15, 0
    %p99 = por %p97, %p98
    %p100 = scmp.ne.s32.totalorder %s88, %s89
    %p101 = scmp.eq.s32.totalorder %s16, 1
    %p102 = por %p100, %p101
    %p104 = scmp.ne.s32.totalorder %s89, %s103
    %p105 = scmp.eq.s32.totalorder %s16, 0
    %p106 = por %p104, %p105
    %s107 = ssub.s32 %s10, %s17
    %p108 = scmp.eq.s32.totalorder %s107, 0
    %s110 = sadd.s32 %s109, 1
    %s111 = scalar_select %p108, %s109, %s110
    %p114 = pneg %p108
    %p115 = scmp.eq.s32.totalorder %s10, 1
    %p116 = por %p114, %p115
    %p117 = scmp.ne.s32.totalorder %s109, %s112
    %p118 = scmp.eq.s32.totalorder %s10, 0
    %p119 = por %p117, %p118
    %p120 = scmp.ne.s32.totalorder %s109, %s112
    %p121 = scmp.eq.s32.totalorder %s15, 1
    %p122 = por %p120, %p121
    %p123 = scmp.ne.s32.totalorder %s112, %s113
    %p124 = scmp.eq.s32.totalorder %s15, 0
    %p125 = por %p123, %p124
    %p126 = scmp.ne.s32.totalorder %s112, %s113
    %p127 = scmp.eq.s32.totalorder %s16, 1
    %p128 = por %p126, %p127
    %p130 = scmp.ne.s32.totalorder %s113, %s129
    %p131 = scmp.eq.s32.totalorder %s16, 0
    %p132 = por %p130, %p131
    %p133 = scmp.le.s32.totalorder 1, %s10
    %p134 = scmp.lt.s32.totalorder %s10, 3
    %p135 = pnand %p133, %p134
    %p136 = pneg %p135
    // Predicated region
    $region9: #{preact_bottleneck_forward.4} parent=5 // pred_check
      _
    $region10: #{preact_bottleneck_forward.4} parent=5 // pred_check_branch
      %138 = sbr.rel (%p135) target = $region12
    $region11: #{preact_bottleneck_forward.4} parent=5 // pred_region
      %s139 = ssub.s32 %s10, 1
      // Predicated region
      $region13: #{preact_bottleneck_forward.4} parent=11 // pred_check
        %p140 = pneg %p57
      $region14: #{preact_bottleneck_forward.4} parent=11 // pred_check_branch
        %142 = sbr.rel (%p140) target = $region16
      $region15: #{preact_bottleneck_forward.4} parent=11 // pred_region
        _
      $region16: #{preact_bottleneck_forward.4} parent=11 // pred_fallthru
        _
      // Predicated region
      $region17: #{preact_bottleneck_forward.4} parent=11 // pred_check
        %p143 = pneg %p78
      $region18: #{preact_bottleneck_forward.4} parent=11 // pred_check_branch
        %145 = sbr.rel (%p143) target = $region20
      $region19: #{preact_bottleneck_forward.4} parent=11 // pred_region
        _
      $region20: #{preact_bottleneck_forward.4} parent=11 // pred_fallthru
        _
      // Predicated region
      $region21: #{preact_bottleneck_forward.4} parent=11 // pred_check
        %p146 = pneg %p99
      $region22: #{preact_bottleneck_forward.4} parent=11 // pred_check_branch
        %148 = sbr.rel (%p146) target = $region24
      $region23: #{preact_bottleneck_forward.4} parent=11 // pred_region
        _
      $region24: #{preact_bottleneck_forward.4} parent=11 // pred_fallthru
        _
    $region12: #{preact_bottleneck_forward.4} parent=5 // pred_fallthru
      _
    %p149 = scmp.lt.s32.totalorder %s10, 2
    // Predicated region
    $region25: #{preact_bottleneck_forward.4} parent=5 // pred_check
      %p150 = pneg %p149
    $region26: #{preact_bottleneck_forward.4} parent=5 // pred_check_branch
      %152 = sbr.rel (%p150) target = $region28
    $region27: #{preact_bottleneck_forward.4} parent=5 // pred_region
      // Predicated region
      $region29: #{preact_bottleneck_forward.4} parent=27 // pred_check
        %p153 = pneg %p30
      $region30: #{preact_bottleneck_forward.4} parent=27 // pred_check_branch
        %155 = sbr.rel (%p153) target = $region32
      $region31: #{preact_bottleneck_forward.4} parent=27 // pred_region
        %p156 = scmp.lt.s32.totalorder %s10, 1
        %s157 = scalar_select %p156, %s10, 1
        %s158 = smul.addr %s157, 32
        %s159 = smul.addr %s158, 8
        %s160 = scalar_lea.vmem %s0, %s159
      $region32: #{preact_bottleneck_forward.4} parent=27 // pred_fallthru
        _
    $region28: #{preact_bottleneck_forward.4} parent=5 // pred_fallthru
      _
    %p161 = scmp.le.s32.totalorder 1, %s10
    %p162 = scmp.lt.s32.totalorder %s10, 3
    %p163 = pnand %p161, %p162
    %p164 = pneg %p163
    // Predicated region
    $region33: #{preact_bottleneck_forward.4} parent=5 // pred_check
      _
    $region34: #{preact_bottleneck_forward.4} parent=5 // pred_check_branch
      %166 = sbr.rel (%p163) target = $region36
    $region35: #{preact_bottleneck_forward.4} parent=5 // pred_region
      %s167 = ssub.s32 %s10, 1
      %p168 = scmp.lt.s32.totalorder %s15, 1
      %s169 = scalar_select %p168, %s15, 1
      %s170 = smul.addr %s169, 32
      %s171 = smul.addr %s170, 8
      %s172 = scalar_lea.vmem %s0, %s171
      %p173 = pneg %p36
      %p174 = pneg %p33
      %p175 = pneg %p57
      %p176 = pneg %p54
      %p177 = pneg %p78
      %p178 = pneg %p75
      %p179 = pneg %p99
      %p180 = pneg %p96
      %p181 = pneg %p125
      %p182 = pneg %p122
      %p183 = scmp.lt.s32.totalorder %s15, 1
      %s184 = scalar_select %p183, %s15, 1
      %s185 = smul.addr %s184, 32
      %s186 = smul.addr %s185, 8
      %s187 = scalar_lea.vmem %s4, %s186
      %p188 = scmp.lt.s32.totalorder %s15, 1
      %s189 = scalar_select %p188, %s15, 1
      %s190 = smul.addr %s189, 32
      %s191 = smul.addr %s190, 8
      %s192 = scalar_lea.vmem %s0, %s191
      %p193 = scmp.lt.s32.totalorder %s15, 1
      %s194 = scalar_select %p193, %s15, 1
      %s195 = smul.addr %s194, 32
      %s196 = smul.addr %s195, 8
      %s197 = scalar_lea.vmem %s4, %s196
      %vm199 = vcmask 31744
      %200 = vst.msk [vmem:[#allocation2] sm:$0xff] %vm199, 0.0
      %201 = vst.msk [vmem:[#allocation2 + $0x8] sm:$0xff] %vm199, 0.0
      %vm202 = vcmask 25600
      %203 = vst.msk [vmem:[#allocation2 + $0x10] sm:$0x3] %vm202, 0.0
      %s204 = scalar_lea.vmem [#allocation2], 408
      %205 = vst.msk [vmem:[%s204] sm:$0xff] %vm199, 0.0
      %206 = vst.msk [vmem:[%s204 + $0x8] sm:$0xff] %vm199, 0.0
      %207 = vst.msk [vmem:[%s204 + $0x10] sm:$0x3] %vm202, 0.0
      %vm208 = vcmask 24576
      %209 = vst.msk [vmem:[#allocation2] sm:$0x1] %vm208, 0.0
      %210 = vst.msk [vmem:[#allocation2 + $0x18] sm:$0x1] %vm208, 0.0
      %211 = vst.msk [vmem:[#allocation2 + $0x30] sm:$0x1] %vm208, 0.0
      %212 = vst.msk [vmem:[#allocation2 + $0x48] sm:$0x1] %vm208, 0.0
      %213 = vst.msk [vmem:[#allocation2 + $0x60] sm:$0x1] %vm208, 0.0
      %214 = vst.msk [vmem:[#allocation2 + $0x78] sm:$0x1] %vm208, 0.0
      %215 = vst.msk [vmem:[#allocation2 + $0x90] sm:$0x1] %vm208, 0.0
      %216 = vst.msk [vmem:[#allocation2 + $0xa8] sm:$0x1] %vm208, 0.0
      %217 = vst.msk [vmem:[#allocation2 + $0xc0] sm:$0x1] %vm208, 0.0
      %218 = vst.msk [vmem:[#allocation2 + $0xd8] sm:$0x1] %vm208, 0.0
      %219 = vst.msk [vmem:[#allocation2 + $0xf0] sm:$0x1] %vm208, 0.0
      %220 = vst.msk [vmem:[#allocation2 + $0x108] sm:$0x1] %vm208, 0.0
      %221 = vst.msk [vmem:[#allocation2 + $0x120] sm:$0x1] %vm208, 0.0
      %222 = vst.msk [vmem:[#allocation2 + $0x138] sm:$0x1] %vm208, 0.0
      %223 = vst.msk [vmem:[#allocation2 + $0x150] sm:$0x1] %vm208, 0.0
      %224 = vst.msk [vmem:[#allocation2 + $0x168] sm:$0x1] %vm208, 0.0
      %225 = vst.msk [vmem:[#allocation2 + $0x180] sm:$0x1] %vm208, 0.0
      %226 = vst.msk [vmem:[#allocation2 + $0x198] sm:$0x1] %vm208, 0.0
      %227 = vst.msk [vmem:[#allocation2 + $0x11] sm:$0x1] %vm208, 0.0
      %228 = vst.msk [vmem:[#allocation2 + $0x29] sm:$0x1] %vm208, 0.0
      %229 = vst.msk [vmem:[#allocation2 + $0x41] sm:$0x1] %vm208, 0.0
      %230 = vst.msk [vmem:[#allocation2 + $0x59] sm:$0x1] %vm208, 0.0
      %231 = vst.msk [vmem:[#allocation2 + $0x71] sm:$0x1] %vm208, 0.0
      %232 = vst.msk [vmem:[#allocation2 + $0x89] sm:$0x1] %vm208, 0.0
      %233 = vst.msk [vmem:[#allocation2 + $0xa1] sm:$0x1] %vm208, 0.0
      %234 = vst.msk [vmem:[#allocation2 + $0xb9] sm:$0x1] %vm208, 0.0
      %235 = vst.msk [vmem:[#allocation2 + $0xd1] sm:$0x1] %vm208, 0.0
      %236 = vst.msk [vmem:[#allocation2 + $0xe9] sm:$0x1] %vm208, 0.0
      %237 = vst.msk [vmem:[#allocation2 + $0x101] sm:$0x1] %vm208, 0.0
      %238 = vst.msk [vmem:[#allocation2 + $0x119] sm:$0x1] %vm208, 0.0
      %239 = vst.msk [vmem:[#allocation2 + $0x131] sm:$0x1] %vm208, 0.0
      %240 = vst.msk [vmem:[#allocation2 + $0x149] sm:$0x1] %vm208, 0.0
      %241 = vst.msk [vmem:[#allocation2 + $0x161] sm:$0x1] %vm208, 0.0
      %242 = vst.msk [vmem:[#allocation2 + $0x179] sm:$0x1] %vm208, 0.0
      %243 = vst.msk [vmem:[#allocation2 + $0x191] sm:$0x1] %vm208, 0.0
      %244 = vst.msk [vmem:[#allocation2 + $0x1a9] sm:$0x1] %vm208, 0.0
      %v245 = vld [vmem:[%s192] sm:$0xff]
      %v246 = vld [vmem:[%s192 + $0x8] sm:$0xff]
      %v247 = vld [vmem:[%s192 + $0x10] sm:$0xff]
      %v248 = vld [vmem:[%s192 + $0x18] sm:$0xff]
      %v249 = vld [vmem:[%s192 + $0x20] sm:$0xff]
      %v250 = vld [vmem:[%s192 + $0x28] sm:$0xff]
      %v251 = vld [vmem:[%s192 + $0x30] sm:$0xff]
      %v252 = vld [vmem:[%s192 + $0x38] sm:$0xff]
      %v253 = vld [vmem:[%s192 + $0x40] sm:$0xff]
      %v254 = vld [vmem:[%s192 + $0x48] sm:$0xff]
      %v255 = vld [vmem:[%s192 + $0x50] sm:$0xff]
      %v256 = vld [vmem:[%s192 + $0x58] sm:$0xff]
      %v257 = vld [vmem:[%s192 + $0x60] sm:$0xff]
      %v258 = vld [vmem:[%s192 + $0x68] sm:$0xff]
      %v259 = vld [vmem:[%s192 + $0x70] sm:$0xff]
      %v260 = vld [vmem:[%s192 + $0x78] sm:$0xff]
      %v261 = vld [vmem:[%s192 + $0x80] sm:$0xff]
      %v262 = vld [vmem:[%s192 + $0x88] sm:$0xff]
      %v263 = vld [vmem:[%s192 + $0x90] sm:$0xff]
      %v264 = vld [vmem:[%s192 + $0x98] sm:$0xff]
      %v265 = vld [vmem:[%s192 + $0xa0] sm:$0xff]
      %v266 = vld [vmem:[%s192 + $0xa8] sm:$0xff]
      %v267 = vld [vmem:[%s192 + $0xb0] sm:$0xff]
      %v268 = vld [vmem:[%s192 + $0xb8] sm:$0xff]
      %v269 = vld [vmem:[%s192 + $0xc0] sm:$0xff]
      %v270 = vld [vmem:[%s192 + $0xc8] sm:$0xff]
      %v271 = vld [vmem:[%s192 + $0xd0] sm:$0xff]
      %v272 = vld [vmem:[%s192 + $0xd8] sm:$0xff]
      %v273 = vld [vmem:[%s192 + $0xe0] sm:$0xff]
      %v274 = vld [vmem:[%s192 + $0xe8] sm:$0xff]
      %v275 = vld [vmem:[%s192 + $0xf0] sm:$0xff]
      %v276 = vld [vmem:[%s192 + $0xf8] sm:$0xff]
      %v277 = vld [vmem:[%s1] sm:$0x1]
      %v279 = vlaneseq
      %v280 = vshrl.u32 %v279, 7
      %v281 = vsub.s32 0, %v280
      %v282 = vrot.slane %v277, %v281
      %v284 = vmul.f32 %v245, %v282
      %v285 = vmul.f32 %v246, %v282
      %v286 = vmul.f32 %v247, %v282
      %v287 = vmul.f32 %v248, %v282
      %v288 = vmul.f32 %v249, %v282
      %v289 = vmul.f32 %v250, %v282
      %v290 = vmul.f32 %v251, %v282
      %v291 = vmul.f32 %v252, %v282
      %v292 = vmul.f32 %v253, %v282
      %v293 = vmul.f32 %v254, %v282
      %v294 = vmul.f32 %v255, %v282
      %v295 = vmul.f32 %v256, %v282
      %v296 = vmul.f32 %v257, %v282
      %v297 = vmul.f32 %v258, %v282
      %v298 = vmul.f32 %v259, %v282
      %v299 = vmul.f32 %v260, %v282
      %v300 = vmul.f32 %v261, %v282
      %v301 = vmul.f32 %v262, %v282
      %v302 = vmul.f32 %v263, %v282
      %v303 = vmul.f32 %v264, %v282
      %v304 = vmul.f32 %v265, %v282
      %v305 = vmul.f32 %v266, %v282
      %v306 = vmul.f32 %v267, %v282
      %v307 = vmul.f32 %v268, %v282
      %v308 = vmul.f32 %v269, %v282
      %v309 = vmul.f32 %v270, %v282
      %v310 = vmul.f32 %v271, %v282
      %v311 = vmul.f32 %v272, %v282
      %v312 = vmul.f32 %v273, %v282
      %v313 = vmul.f32 %v274, %v282
      %v314 = vmul.f32 %v275, %v282
      %v315 = vmul.f32 %v276, %v282
      %v316 = vld [vmem:[%s2] sm:$0x1]
      %v318 = vlaneseq
      %v319 = vshrl.u32 %v318, 7
      %v320 = vsub.s32 0, %v319
      %v321 = vrot.slane %v316, %v320
      %v323 = vadd.f32 %v284, %v321
      %v324 = vadd.f32 %v285, %v321
      %v325 = vadd.f32 %v286, %v321
      %v326 = vadd.f32 %v287, %v321
      %v327 = vadd.f32 %v288, %v321
      %v328 = vadd.f32 %v289, %v321
      %v329 = vadd.f32 %v290, %v321
      %v330 = vadd.f32 %v291, %v321
      %v331 = vadd.f32 %v292, %v321
      %v332 = vadd.f32 %v293, %v321
      %v333 = vadd.f32 %v294, %v321
      %v334 = vadd.f32 %v295, %v321
      %v335 = vadd.f32 %v296, %v321
      %v336 = vadd.f32 %v297, %v321
      %v337 = vadd.f32 %v298, %v321
      %v338 = vadd.f32 %v299, %v321
      %v339 = vadd.f32 %v300, %v321
      %v340 = vadd.f32 %v301, %v321
      %v341 = vadd.f32 %v302, %v321
      %v342 = vadd.f32 %v303, %v321
      %v343 = vadd.f32 %v304, %v321
      %v344 = vadd.f32 %v305, %v321
      %v345 = vadd.f32 %v306, %v321
      %v346 = vadd.f32 %v307, %v321
      %v347 = vadd.f32 %v308, %v321
      %v348 = vadd.f32 %v309, %v321
      %v349 = vadd.f32 %v310, %v321
      %v350 = vadd.f32 %v311, %v321
      %v351 = vadd.f32 %v312, %v321
      %v352 = vadd.f32 %v313, %v321
      %v353 = vadd.f32 %v314, %v321
      %v354 = vadd.f32 %v315, %v321
      %v355 = vmax.f32 %v323, 0.0
      %v356 = vmax.f32 %v324, 0.0
      %v357 = vmax.f32 %v325, 0.0
      %v358 = vmax.f32 %v326, 0.0
      %v359 = vmax.f32 %v327, 0.0
      %v360 = vmax.f32 %v328, 0.0
      %v361 = vmax.f32 %v329, 0.0
      %v362 = vmax.f32 %v330, 0.0
      %v363 = vmax.f32 %v331, 0.0
      %v364 = vmax.f32 %v332, 0.0
      %v365 = vmax.f32 %v333, 0.0
      %v366 = vmax.f32 %v334, 0.0
      %v367 = vmax.f32 %v335, 0.0
      %v368 = vmax.f32 %v336, 0.0
      %v369 = vmax.f32 %v337, 0.0
      %v370 = vmax.f32 %v338, 0.0
      %v371 = vmax.f32 %v339, 0.0
      %v372 = vmax.f32 %v340, 0.0
      %v373 = vmax.f32 %v341, 0.0
      %v374 = vmax.f32 %v342, 0.0
      %v375 = vmax.f32 %v343, 0.0
      %v376 = vmax.f32 %v344, 0.0
      %v377 = vmax.f32 %v345, 0.0
      %v378 = vmax.f32 %v346, 0.0
      %v379 = vmax.f32 %v347, 0.0
      %v380 = vmax.f32 %v348, 0.0
      %v381 = vmax.f32 %v349, 0.0
      %v382 = vmax.f32 %v350, 0.0
      %v383 = vmax.f32 %v351, 0.0
      %v384 = vmax.f32 %v352, 0.0
      %v385 = vmax.f32 %v353, 0.0
      %v386 = vmax.f32 %v354, 0.0
      %s387 = scalar_lea.vmem [#allocation2], 24
      %388 = vst.msk [vmem:[%s387 + $0x1] sm:$0xff] %vm199, %v355
      %389 = vst.msk [vmem:[%s387 + $0x9] sm:$0xff] %vm199, %v356
      %390 = vst.msk [vmem:[%s387 + $0x19] sm:$0xff] %vm199, %v357
      %391 = vst.msk [vmem:[%s387 + $0x21] sm:$0xff] %vm199, %v358
      %392 = vst.msk [vmem:[%s387 + $0x31] sm:$0xff] %vm199, %v359
      %393 = vst.msk [vmem:[%s387 + $0x39] sm:$0xff] %vm199, %v360
      %394 = vst.msk [vmem:[%s387 + $0x49] sm:$0xff] %vm199, %v361
      %395 = vst.msk [vmem:[%s387 + $0x51] sm:$0xff] %vm199, %v362
      %396 = vst.msk [vmem:[%s387 + $0x61] sm:$0xff] %vm199, %v363
      %397 = vst.msk [vmem:[%s387 + $0x69] sm:$0xff] %vm199, %v364
      %398 = vst.msk [vmem:[%s387 + $0x79] sm:$0xff] %vm199, %v365
      %399 = vst.msk [vmem:[%s387 + $0x81] sm:$0xff] %vm199, %v366
      %400 = vst.msk [vmem:[%s387 + $0x91] sm:$0xff] %vm199, %v367
      %401 = vst.msk [vmem:[%s387 + $0x99] sm:$0xff] %vm199, %v368
      %402 = vst.msk [vmem:[%s387 + $0xa9] sm:$0xff] %vm199, %v369
      %403 = vst.msk [vmem:[%s387 + $0xb1] sm:$0xff] %vm199, %v370
      %404 = vst.msk [vmem:[%s387 + $0xc1] sm:$0xff] %vm199, %v371
      %405 = vst.msk [vmem:[%s387 + $0xc9] sm:$0xff] %vm199, %v372
      %406 = vst.msk [vmem:[%s387 + $0xd9] sm:$0xff] %vm199, %v373
      %407 = vst.msk [vmem:[%s387 + $0xe1] sm:$0xff] %vm199, %v374
      %408 = vst.msk [vmem:[%s387 + $0xf1] sm:$0xff] %vm199, %v375
      %409 = vst.msk [vmem:[%s387 + $0xf9] sm:$0xff] %vm199, %v376
      %410 = vst.msk [vmem:[%s387 + $0x109] sm:$0xff] %vm199, %v377
      %411 = vst.msk [vmem:[%s387 + $0x111] sm:$0xff] %vm199, %v378
      %412 = vst.msk [vmem:[%s387 + $0x121] sm:$0xff] %vm199, %v379
      %413 = vst.msk [vmem:[%s387 + $0x129] sm:$0xff] %vm199, %v380
      %414 = vst.msk [vmem:[%s387 + $0x139] sm:$0xff] %vm199, %v381
      %415 = vst.msk [vmem:[%s387 + $0x141] sm:$0xff] %vm199, %v382
      %416 = vst.msk [vmem:[%s387 + $0x151] sm:$0xff] %vm199, %v383
      %417 = vst.msk [vmem:[%s387 + $0x159] sm:$0xff] %vm199, %v384
      %418 = vst.msk [vmem:[%s387 + $0x169] sm:$0xff] %vm199, %v385
      %419 = vst.msk [vmem:[%s387 + $0x171] sm:$0xff] %vm199, %v386
      %v420 = vld [vmem:[#allocation2] sm:$0xff]
      %v421 = vld [vmem:[#allocation2 + $0x8] sm:$0xff]
      %v422 = vld [vmem:[#allocation2 + $0x10] sm:$0x3]
      %v423 = vld [vmem:[#allocation2 + $0x18] sm:$0xff]
      %v424 = vld [vmem:[#allocation2 + $0x20] sm:$0xff]
      %v425 = vld [vmem:[#allocation2 + $0x28] sm:$0x3]
      %v426 = vld [vmem:[#allocation2 + $0x30] sm:$0xff]
      %v427 = vld [vmem:[#allocation2 + $0x38] sm:$0xff]
      %v428 = vld [vmem:[#allocation2 + $0x40] sm:$0x3]
      %v429 = vld [vmem:[#allocation2 + $0x48] sm:$0xff]
      %v430 = vld [vmem:[#allocation2 + $0x50] sm:$0xff]
      %v431 = vld [vmem:[#allocation2 + $0x58] sm:$0x3]
      %v432 = vld [vmem:[#allocation2 + $0x60] sm:$0xff]
      %v433 = vld [vmem:[#allocation2 + $0x68] sm:$0xff]
      %v434 = vld [vmem:[#allocation2 + $0x70] sm:$0x3]
      %v435 = vld [vmem:[#allocation2 + $0x78] sm:$0xff]
      %v436 = vld [vmem:[#allocation2 + $0x80] sm:$0xff]
      %v437 = vld [vmem:[#allocation2 + $0x88] sm:$0x3]
      %v438 = vld [vmem:[#allocation2 + $0x90] sm:$0xff]
      %v439 = vld [vmem:[#allocation2 + $0x98] sm:$0xff]
      %v440 = vld [vmem:[#allocation2 + $0xa0] sm:$0x3]
      %v441 = vld [vmem:[#allocation2 + $0xa8] sm:$0xff]
      %v442 = vld [vmem:[#allocation2 + $0xb0] sm:$0xff]
      %v443 = vld [vmem:[#allocation2 + $0xb8] sm:$0x3]
      %v444 = vld [vmem:[#allocation2 + $0xc0] sm:$0xff]
      %v445 = vld [vmem:[#allocation2 + $0xc8] sm:$0xff]
      %v446 = vld [vmem:[#allocation2 + $0xd0] sm:$0x3]
      %v447 = vld [vmem:[#allocation2 + $0xd8] sm:$0xff]
      %v448 = vld [vmem:[#allocation2 + $0xe0] sm:$0xff]
      %v449 = vld [vmem:[#allocation2 + $0xe8] sm:$0x3]
      %v450 = vld [vmem:[#allocation2 + $0xf0] sm:$0xff]
      %v451 = vld [vmem:[#allocation2 + $0xf8] sm:$0xff]
      %v452 = vld [vmem:[#allocation2 + $0x100] sm:$0x3]
      %v453 = vld [vmem:[#allocation2 + $0x108] sm:$0xff]
      %v454 = vld [vmem:[#allocation2 + $0x110] sm:$0xff]
      %v455 = vld [vmem:[#allocation2 + $0x118] sm:$0x3]
      %v456 = vld [vmem:[#allocation2 + $0x120] sm:$0xff]
      %v457 = vld [vmem:[#allocation2 + $0x128] sm:$0xff]
      %v458 = vld [vmem:[#allocation2 + $0x130] sm:$0x3]
      %v459 = vld [vmem:[#allocation2 + $0x138] sm:$0xff]
      %v460 = vld [vmem:[#allocation2 + $0x140] sm:$0xff]
      %v461 = vld [vmem:[#allocation2 + $0x148] sm:$0x3]
      %v462 = vld [vmem:[#allocation2 + $0x150] sm:$0xff]
      %v463 = vld [vmem:[#allocation2 + $0x158] sm:$0xff]
      %v464 = vld [vmem:[#allocation2 + $0x160] sm:$0x3]
      %v465 = vld [vmem:[#allocation2 + $0x168] sm:$0xff]
      %v466 = vld [vmem:[#allocation2 + $0x170] sm:$0xff]
      %v467 = vld [vmem:[#allocation2 + $0x178] sm:$0x3]
      %v468 = vpack.c.bf16 %v421, %v420
      %v469 = vpack.c.bf16 %v422, %v422
      %v470 = vpack.c.bf16 %v424, %v423
      %v471 = vpack.c.bf16 %v425, %v425
      %v472 = vpack.c.bf16 %v427, %v426
      %v473 = vpack.c.bf16 %v428, %v428
      %v474 = vpack.c.bf16 %v430, %v429
      %v475 = vpack.c.bf16 %v431, %v431
      %v476 = vpack.c.bf16 %v433, %v432
      %v477 = vpack.c.bf16 %v434, %v434
      %v478 = vpack.c.bf16 %v436, %v435
      %v479 = vpack.c.bf16 %v437, %v437
      %v480 = vpack.c.bf16 %v439, %v438
      %v481 = vpack.c.bf16 %v440, %v440
      %v482 = vpack.c.bf16 %v442, %v441
      %v483 = vpack.c.bf16 %v443, %v443
      %v484 = vpack.c.bf16 %v445, %v444
      %v485 = vpack.c.bf16 %v446, %v446
      %v486 = vpack.c.bf16 %v448, %v447
      %v487 = vpack.c.bf16 %v449, %v449
      %v488 = vpack.c.bf16 %v451, %v450
      %v489 = vpack.c.bf16 %v452, %v452
      %v490 = vpack.c.bf16 %v454, %v453
      %v491 = vpack.c.bf16 %v455, %v455
      %v492 = vpack.c.bf16 %v457, %v456
      %v493 = vpack.c.bf16 %v458, %v458
      %v494 = vpack.c.bf16 %v460, %v459
      %v495 = vpack.c.bf16 %v461, %v461
      %v496 = vpack.c.bf16 %v463, %v462
      %v497 = vpack.c.bf16 %v464, %v464
      %v498 = vpack.c.bf16 %v466, %v465
      %v499 = vpack.c.bf16 %v467, %v467
      %v500 = vld [vmem:[%s3] sm:$0x3]
      %v502 = vsel %vm199, %v468, 0
      %v505 = vsel %vm199, %v470, 0
      %v508 = vsel %vm199, %v472, 0
      %v511 = vsel %vm199, %v474, 0
      %v514 = vsel %vm199, %v476, 0
      %v517 = vsel %vm199, %v478, 0
      %v520 = vsel %vm199, %v480, 0
      %v523 = vsel %vm199, %v482, 0
      %v526 = vsel %vm199, %v484, 0
      %v529 = vsel %vm199, %v486, 0
      %v532 = vsel %vm199, %v488, 0
      %v535 = vsel %vm199, %v490, 0
      %v538 = vsel %vm199, %v492, 0
      %v541 = vsel %vm199, %v494, 0
      %v544 = vsel %vm199, %v496, 0
      %v547 = vsel %vm199, %v498, 0
      %vm549 = vcmask 1041408
      %v551 = vsel %vm549, %v500, 0
      %553 = vmatprep.subr.bf16.mxu0 0
      %554 = vmatpush1.bf16.msra.mxu0 %v551
      %555 = vmatprep.subr.bf16.mxu0 0
      %556 = vmatpush1.bf16.msra.mxu0 0
      %557 = vmatprep.subr.bf16.mxu0 0
      %558 = vmatpush1.bf16.msra.mxu0 0
      %559 = vmatprep.subr.bf16.mxu0 0
      %560 = vmatpush1.bf16.msra.mxu0 0
      %561 = vmatprep.subr.bf16.mxu0 0
      %562 = vmatpush1.bf16.msra.mxu0 0
      %563 = vmatprep.subr.bf16.mxu0 0
      %564 = vmatpush1.bf16.msra.mxu0 0
      %565 = vmatprep.subr.bf16.mxu0 0
      %566 = vmatpush1.bf16.msra.mxu0 0
      %567 = vmatprep.subr.bf16.mxu0 0
      %568 = vmatpush1.bf16.msra.mxu0 0
      %569 = vmatprep.subr.bf16.mxu0 0
      %570 = vmatpush1.bf16.msra.mxu0 0
      %571 = vmatprep.subr.bf16.mxu0 0
      %572 = vmatpush1.bf16.msra.mxu0 0
      %573 = vmatprep.subr.bf16.mxu0 0
      %574 = vmatpush1.bf16.msra.mxu0 0
      %575 = vmatprep.subr.bf16.mxu0 0
      %576 = vmatpush1.bf16.msra.mxu0 0
      %577 = vmatprep.subr.bf16.mxu0 0
      %578 = vmatpush1.bf16.msra.mxu0 0
      %579 = vmatprep.subr.bf16.mxu0 0
      %580 = vmatpush1.bf16.msra.mxu0 0
      %581 = vmatprep.subr.bf16.mxu0 0
      %582 = vmatpush1.bf16.msra.mxu0 0
      %583 = vmatprep.subr.bf16.mxu0 0
      %584 = vmatpush1.bf16.msra.mxu0 0
      %585 = vmatprep.mubr.bf16.mxu0 0
      %586 = vmatmul.mubr.bf16.gmra.mrb[0].mxu0 %v502
      %v587 = vpop.f32.mrb[0].mxu0
      %v588 = vadd.f32 0.0, %v587
      %v589 = vpop.f32.mrb[0].mxu0
      %v590 = vpop.f32.mrb[0].mxu0
      %v591 = vadd.f32 0.0, %v590
      %v592 = vpop.f32.mrb[0].mxu0
      %593 = vmatprep.mubr.bf16.mxu0 0
      %594 = vmatmul.mubr.bf16.gmra.mrb[0].mxu0 %v505
      %v595 = vpop.f32.mrb[0].mxu0
      %v596 = vadd.f32 0.0, %v595
      %v597 = vpop.f32.mrb[0].mxu0
      %v598 = vpop.f32.mrb[0].mxu0
      %v599 = vadd.f32 0.0, %v598
      %v600 = vpop.f32.mrb[0].mxu0
      %601 = vmatprep.mubr.bf16.mxu0 0
      %602 = vmatmul.mubr.bf16.gmra.mrb[0].mxu0 %v508
      %v603 = vpop.f32.mrb[0].mxu0
      %v604 = vadd.f32 0.0, %v603
      %v605 = vpop.f32.mrb[0].mxu0
      %v606 = vpop.f32.mrb[0].mxu0
      %v607 = vadd.f32 0.0, %v606
      %v608 = vpop.f32.mrb[0].mxu0
      %609 = vmatprep.mubr.bf16.mxu0 0
      %610 = vmatmul.mubr.bf16.gmra.mrb[0].mxu0 %v511
      %v611 = vpop.f32.mrb[0].mxu0
      %v612 = vadd.f32 0.0, %v611
      %v613 = vpop.f32.mrb[0].mxu0
      %v614 = vpop.f32.mrb[0].mxu0
      %v615 = vadd.f32 0.0, %v614
      %v616 = vpop.f32.mrb[0].mxu0
      %617 = vmatprep.mubr.bf16.mxu0 0
      %618 = vmatmul.mubr.bf16.gmra.mrb[0].mxu0 %v514
      %v619 = vpop.f32.mrb[0].mxu0
      %v620 = vadd.f32 0.0, %v619
      %v621 = vpop.f32.mrb[0].mxu0
      %v622 = vpop.f32.mrb[0].mxu0
      %v623 = vadd.f32 0.0, %v622
      %v624 = vpop.f32.mrb[0].mxu0
      %625 = vmatprep.mubr.bf16.mxu0 0
      %626 = vmatmul.mubr.bf16.gmra.mrb[0].mxu0 %v517
      %v627 = vpop.f32.mrb[0].mxu0
      %v628 = vadd.f32 0.0, %v627
      %v629 = vpop.f32.mrb[0].mxu0
      %v630 = vpop.f32.mrb[0].mxu0
      %v631 = vadd.f32 0.0, %v630
      %v632 = vpop.f32.mrb[0].mxu0
      %633 = vmatprep.mubr.bf16.mxu0 0
      %634 = vmatmul.mubr.bf16.gmra.mrb[0].mxu0 %v520
      %v635 = vpop.f32.mrb[0].mxu0
      %v636 = vadd.f32 0.0, %v635
      %v637 = vpop.f32.mrb[0].mxu0
      %v638 = vpop.f32.mrb[0].mxu0
      %v639 = vadd.f32 0.0, %v638
      %v640 = vpop.f32.mrb[0].mxu0
      %641 = vmatprep.mubr.bf16.mxu0 0
      %642 = vmatmul.mubr.bf16.gmra.mrb[0].mxu0 %v523
      %v643 = vpop.f32.mrb[0].mxu0
      %v644 = vadd.f32 0.0, %v643
      %v645 = vpop.f32.mrb[0].mxu0
      %v646 = vpop.f32.mrb[0].mxu0
      %v647 = vadd.f32 0.0, %v646
      %v648 = vpop.f32.mrb[0].mxu0
      %649 = vmatprep.mubr.bf16.mxu0 0
      %650 = vmatmul.mubr.bf16.gmra.mrb[0].mxu0 %v526
      %v651 = vpop.f32.mrb[0].mxu0
      %v652 = vadd.f32 0.0, %v651
      %v653 = vpop.f32.mrb[0].mxu0
      %v654 = vpop.f32.mrb[0].mxu0
      %v655 = vadd.f32 0.0, %v654
      %v656 = vpop.f32.mrb[0].mxu0
      %657 = vmatprep.mubr.bf16.mxu0 0
      %658 = vmatmul.mubr.bf16.gmra.mrb[0].mxu0 %v529
      %v659 = vpop.f32.mrb[0].mxu0
      %v660 = vadd.f32 0.0, %v659
      %v661 = vpop.f32.mrb[0].mxu0
      %v662 = vpop.f32.mrb[0].mxu0
      %v663 = vadd.f32 0.0, %v662
      %v664 = vpop.f32.mrb[0].mxu0
      %665 = vmatprep.mubr.bf16.mxu0 0
      %666 = vmatmul.mubr.bf16.gmra.mrb[0].mxu0 %v532
      %v667 = vpop.f32.mrb[0].mxu0
      %v668 = vadd.f32 0.0, %v667
      %v669 = vpop.f32.mrb[0].mxu0
      %v670 = vpop.f32.mrb[0].mxu0
      %v671 = vadd.f32 0.0, %v670
      %v672 = vpop.f32.mrb[0].mxu0
      %673 = vmatprep.mubr.bf16.mxu0 0
      %674 = vmatmul.mubr.bf16.gmra.mrb[0].mxu0 %v535
      %v675 = vpop.f32.mrb[0].mxu0
      %v676 = vadd.f32 0.0, %v675
      %v677 = vpop.f32.mrb[0].mxu0
      %v678 = vpop.f32.mrb[0].mxu0
      %v679 = vadd.f32 0.0, %v678
      %v680 = vpop.f32.mrb[0].mxu0
      %681 = vmatprep.mubr.bf16.mxu0 0
      %682 = vmatmul.mubr.bf16.gmra.mrb[0].mxu0 %v538
      %v683 = vpop.f32.mrb[0].mxu0
      %v684 = vadd.f32 0.0, %v683
      %v685 = vpop.f32.mrb[0].mxu0
      %v686 = vpop.f32.mrb[0].mxu0
      %v687 = vadd.f32 0.0, %v686
      %v688 = vpop.f32.mrb[0].mxu0
      %689 = vmatprep.mubr.bf16.mxu0 0
      %690 = vmatmul.mubr.bf16.gmra.mrb[0].mxu0 %v541
      %v691 = vpop.f32.mrb[0].mxu0
      %v692 = vadd.f32 0.0, %v691
      %v693 = vpop.f32.mrb[0].mxu0
      %v694 = vpop.f32.mrb[0].mxu0
      %v695 = vadd.f32 0.0, %v694
      %v696 = vpop.f32.mrb[0].mxu0
      %697 = vmatprep.mubr.bf16.mxu0 0
      %698 = vmatmul.mubr.bf16.gmra.mrb[0].mxu0 %v544
      %v699 = vpop.f32.mrb[0].mxu0
      %v700 = vadd.f32 0.0, %v699
      %v701 = vpop.f32.mrb[0].mxu0
      %v702 = vpop.f32.mrb[0].mxu0
      %v703 = vadd.f32 0.0, %v702
      %v704 = vpop.f32.mrb[0].mxu0
      %705 = vmatprep.mubr.bf16.mxu0 0
      %706 = vmatmul.mubr.bf16.gmra.mrb[0].mxu0 %v547
      %v707 = vpop.f32.mrb[0].mxu0
      %v708 = vadd.f32 0.0, %v707
      %v709 = vpop.f32.mrb[0].mxu0
      %v710 = vpop.f32.mrb[0].mxu0
      %v711 = vadd.f32 0.0, %v710
      %v712 = vpop.f32.mrb[0].mxu0
      %713 = vdwg.mxu0
      %714 = vst.msk [vmem:[#allocation3] sm:$0xff] %vm199, %v588
      %715 = vst.msk [vmem:[#allocation3 + $0x8] sm:$0xff] %vm199, %v591
      %716 = vst.msk [vmem:[#allocation3 + $0x10] sm:$0xff] %vm199, %v596
      %717 = vst.msk [vmem:[#allocation3 + $0x18] sm:$0xff] %vm199, %v599
      %718 = vst.msk [vmem:[#allocation3 + $0x20] sm:$0xff] %vm199, %v604
      %719 = vst.msk [vmem:[#allocation3 + $0x28] sm:$0xff] %vm199, %v607
      %720 = vst.msk [vmem:[#allocation3 + $0x30] sm:$0xff] %vm199, %v612
      %721 = vst.msk [vmem:[#allocation3 + $0x38] sm:$0xff] %vm199, %v615
      %722 = vst.msk [vmem:[#allocation3 + $0x40] sm:$0xff] %vm199, %v620
      %723 = vst.msk [vmem:[#allocation3 + $0x48] sm:$0xff] %vm199, %v623
      %724 = vst.msk [vmem:[#allocation3 + $0x50] sm:$0xff] %vm199, %v628
      %725 = vst.msk [vmem:[#allocation3 + $0x58] sm:$0xff] %vm199, %v631
      %726 = vst.msk [vmem:[#allocation3 + $0x60] sm:$0xff] %vm199, %v636
      %727 = vst.msk [vmem:[#allocation3 + $0x68] sm:$0xff] %vm199, %v639
      %728 = vst.msk [vmem:[#allocation3 + $0x70] sm:$0xff] %vm199, %v644
      %729 = vst.msk [vmem:[#allocation3 + $0x78] sm:$0xff] %vm199, %v647
      %730 = vst.msk [vmem:[#allocation3 + $0x80] sm:$0xff] %vm199, %v652
      %731 = vst.msk [vmem:[#allocation3 + $0x88] sm:$0xff] %vm199, %v655
      %732 = vst.msk [vmem:[#allocation3 + $0x90] sm:$0xff] %vm199, %v660
      %733 = vst.msk [vmem:[#allocation3 + $0x98] sm:$0xff] %vm199, %v663
      %734 = vst.msk [vmem:[#allocation3 + $0xa0] sm:$0xff] %vm199, %v668
      %735 = vst.msk [vmem:[#allocation3 + $0xa8] sm:$0xff] %vm199, %v671
      %736 = vst.msk [vmem:[#allocation3 + $0xb0] sm:$0xff] %vm199, %v676
      %737 = vst.msk [vmem:[#allocation3 + $0xb8] sm:$0xff] %vm199, %v679
      %738 = vst.msk [vmem:[#allocation3 + $0xc0] sm:$0xff] %vm199, %v684
      %739 = vst.msk [vmem:[#allocation3 + $0xc8] sm:$0xff] %vm199, %v687
      %740 = vst.msk [vmem:[#allocation3 + $0xd0] sm:$0xff] %vm199, %v692
      %741 = vst.msk [vmem:[#allocation3 + $0xd8] sm:$0xff] %vm199, %v695
      %742 = vst.msk [vmem:[#allocation3 + $0xe0] sm:$0xff] %vm199, %v700
      %743 = vst.msk [vmem:[#allocation3 + $0xe8] sm:$0xff] %vm199, %v703
      %744 = vst.msk [vmem:[#allocation3 + $0xf0] sm:$0xff] %vm199, %v708
      %745 = vst.msk [vmem:[#allocation3 + $0xf8] sm:$0xff] %vm199, %v711
      %vm746 = vsmask.f32 7424
      %v747 = vshrl.u32 %v468, 16
      %v749 = vshll.u32 %v468, 16
      %v751 = vrot.slane %v749, 1
      %v752 = vor.u32 %v747, %v751
      %v754 = vshll.u32 %v469, 16
      %v756 = vrot.slane %v754, 1
      %v757 = vsel %vm746, %v752, %v756
      %v758 = vshrl.u32 %v470, 16
      %v760 = vshll.u32 %v470, 16
      %v762 = vrot.slane %v760, 1
      %v763 = vor.u32 %v758, %v762
      %v765 = vshll.u32 %v471, 16
      %v767 = vrot.slane %v765, 1
      %v768 = vsel %vm746, %v763, %v767
      %v769 = vshrl.u32 %v472, 16
      %v771 = vshll.u32 %v472, 16
      %v773 = vrot.slane %v771, 1
      %v774 = vor.u32 %v769, %v773
      %v776 = vshll.u32 %v473, 16
      %v778 = vrot.slane %v776, 1
      %v779 = vsel %vm746, %v774, %v778
      %v780 = vshrl.u32 %v474, 16
      %v782 = vshll.u32 %v474, 16
      %v784 = vrot.slane %v782, 1
      %v785 = vor.u32 %v780, %v784
      %v787 = vshll.u32 %v475, 16
      %v789 = vrot.slane %v787, 1
      %v790 = vsel %vm746, %v785, %v789
      %v791 = vshrl.u32 %v476, 16
      %v793 = vshll.u32 %v476, 16
      %v795 = vrot.slane %v793, 1
      %v796 = vor.u32 %v791, %v795
      %v798 = vshll.u32 %v477, 16
      %v800 = vrot.slane %v798, 1
      %v801 = vsel %vm746, %v796, %v800
      %v802 = vshrl.u32 %v478, 16
      %v804 = vshll.u32 %v478, 16
      %v806 = vrot.slane %v804, 1
      %v807 = vor.u32 %v802, %v806
      %v809 = vshll.u32 %v479, 16
      %v811 = vrot.slane %v809, 1
      %v812 = vsel %vm746, %v807, %v811
      %v813 = vshrl.u32 %v480, 16
      %v815 = vshll.u32 %v480, 16
      %v817 = vrot.slane %v815, 1
      %v818 = vor.u32 %v813, %v817
      %v820 = vshll.u32 %v481, 16
      %v822 = vrot.slane %v820, 1
      %v823 = vsel %vm746, %v818, %v822
      %v824 = vshrl.u32 %v482, 16
      %v826 = vshll.u32 %v482, 16
      %v828 = vrot.slane %v826, 1
      %v829 = vor.u32 %v824, %v828
      %v831 = vshll.u32 %v483, 16
      %v833 = vrot.slane %v831, 1
      %v834 = vsel %vm746, %v829, %v833
      %v835 = vshrl.u32 %v484, 16
      %v837 = vshll.u32 %v484, 16
      %v839 = vrot.slane %v837, 1
      %v840 = vor.u32 %v835, %v839
      %v842 = vshll.u32 %v485, 16
      %v844 = vrot.slane %v842, 1
      %v845 = vsel %vm746, %v840, %v844
      %v846 = vshrl.u32 %v486, 16
      %v848 = vshll.u32 %v486, 16
      %v850 = vrot.slane %v848, 1
      %v851 = vor.u32 %v846, %v850
      %v853 = vshll.u32 %v487, 16
      %v855 = vrot.slane %v853, 1
      %v856 = vsel %vm746, %v851, %v855
      %v857 = vshrl.u32 %v488, 16
      %v859 = vshll.u32 %v488, 16
      %v861 = vrot.slane %v859, 1
      %v862 = vor.u32 %v857, %v861
      %v864 = vshll.u32 %v489, 16
      %v866 = vrot.slane %v864, 1
      %v867 = vsel %vm746, %v862, %v866
      %v868 = vshrl.u32 %v490, 16
      %v870 = vshll.u32 %v490, 16
      %v872 = vrot.slane %v870, 1
      %v873 = vor.u32 %v868, %v872
      %v875 = vshll.u32 %v491, 16
      %v877 = vrot.slane %v875, 1
      %v878 = vsel %vm746, %v873, %v877
      %v879 = vshrl.u32 %v492, 16
      %v881 = vshll.u32 %v492, 16
      %v883 = vrot.slane %v881, 1
      %v884 = vor.u32 %v879, %v883
      %v886 = vshll.u32 %v493, 16
      %v888 = vrot.slane %v886, 1
      %v889 = vsel %vm746, %v884, %v888
      %v890 = vshrl.u32 %v494, 16
      %v892 = vshll.u32 %v494, 16
      %v894 = vrot.slane %v892, 1
      %v895 = vor.u32 %v890, %v894
      %v897 = vshll.u32 %v495, 16
      %v899 = vrot.slane %v897, 1
      %v900 = vsel %vm746, %v895, %v899
      %v901 = vshrl.u32 %v496, 16
      %v903 = vshll.u32 %v496, 16
      %v905 = vrot.slane %v903, 1
      %v906 = vor.u32 %v901, %v905
      %v908 = vshll.u32 %v497, 16
      %v910 = vrot.slane %v908, 1
      %v911 = vsel %vm746, %v906, %v910
      %v912 = vshrl.u32 %v498, 16
      %v914 = vshll.u32 %v498, 16
      %v916 = vrot.slane %v914, 1
      %v917 = vor.u32 %v912, %v916
      %v919 = vshll.u32 %v499, 16
      %v921 = vrot.slane %v919, 1
      %v922 = vsel %vm746, %v917, %v921
      %s923 = scalar_lea.vmem %s3, 2
      %v924 = vld [vmem:[%s923] sm:$0x3]
      %v926 = vsel %vm199, %v757, 0
      %v929 = vsel %vm199, %v768, 0
      %v932 = vsel %vm199, %v779, 0
      %v935 = vsel %vm199, %v790, 0
      %v938 = vsel %vm199, %v801, 0
      %v941 = vsel %vm199, %v812, 0
      %v944 = vsel %vm199, %v823, 0
      %v947 = vsel %vm199, %v834, 0
      %v950 = vsel %vm199, %v845, 0
      %v953 = vsel %vm199, %v856, 0
      %v956 = vsel %vm199, %v867, 0
      %v959 = vsel %vm199, %v878, 0
      %v962 = vsel %vm199, %v889, 0
      %v965 = vsel %vm199, %v900, 0
      %v968 = vsel %vm199, %v911, 0
      %v971 = vsel %vm199, %v922, 0
      %v974 = vsel %vm549, %v924, 0
      %976 = vmatprep.subr.bf16.mxu0 0
      %977 = vmatpush1.bf16.msra.mxu0 %v974
      %978 = vmatprep.subr.bf16.mxu0 0
      %979 = vmatpush1.bf16.msra.mxu0 0
      %980 = vmatprep.subr.bf16.mxu0 0
      %981 = vmatpush1.bf16.msra.mxu0 0
      %982 = vmatprep.subr.bf16.mxu0 0
      %983 = vmatpush1.bf16.msra.mxu0 0
      %984 = vmatprep.subr.bf16.mxu0 0
      %985 = vmatpush1.bf16.msra.mxu0 0
      %986 = vmatprep.subr.bf16.mxu0 0
      %987 = vmatpush1.bf16.msra.mxu0 0
      %988 = vmatprep.subr.bf16.mxu0 0
      %989 = vmatpush1.bf16.msra.mxu0 0
      %990 = vmatprep.subr.bf16.mxu0 0
      %991 = vmatpush1.bf16.msra.mxu0 0
      %992 = vmatprep.subr.bf16.mxu0 0
      %993 = vmatpush1.bf16.msra.mxu0 0
      %994 = vmatprep.subr.bf16.mxu0 0
      %995 = vmatpush1.bf16.msra.mxu0 0
      %996 = vmatprep.subr.bf16.mxu0 0
      %997 = vmatpush1.bf16.msra.mxu0 0
      %998 = vmatprep.subr.bf16.mxu0 0
      %999 = vmatpush1.bf16.msra.mxu0 0
      %1000 = vmatprep.subr.bf16.mxu0 0
      %1001 = vmatpush1.bf16.msra.mxu0 0
      %1002 = vmatprep.subr.bf16.mxu0 0
      %1003 = vmatpush1.bf16.msra.mxu0 0
      %1004 = vmatprep.subr.bf16.mxu0 0
      %1005 = vmatpush1.bf16.msra.mxu0 0
      %1006 = vmatprep.subr.bf16.mxu0 0
      %1007 = vmatpush1.bf16.msra.mxu0 0
      %1008 = vmatprep.mubr.bf16.mxu0 0
      %1009 = vmatmul.mubr.bf16.gmra.mrb[0].mxu0 %v926
      %v1010 = vpop.f32.mrb[0].mxu0
      %v1011 = vadd.f32 0.0, %v1010
      %v1012 = vpop.f32.mrb[0].mxu0
      %v1013 = vpop.f32.mrb[0].mxu0
      %v1014 = vadd.f32 0.0, %v1013
      %v1015 = vpop.f32.mrb[0].mxu0
      %1016 = vmatprep.mubr.bf16.mxu0 0
      %1017 = vmatmul.mubr.bf16.gmra.mrb[0].mxu0 %v929
      %v1018 = vpop.f32.mrb[0].mxu0
      %v1019 = vadd.f32 0.0, %v1018
      %v1020 = vpop.f32.mrb[0].mxu0
      %v1021 = vpop.f32.mrb[0].mxu0
      %v1022 = vadd.f32 0.0, %v1021
      %v1023 = vpop.f32.mrb[0].mxu0
      %1024 = vmatprep.mubr.bf16.mxu0 0
      %1025 = vmatmul.mubr.bf16.gmra.mrb[0].mxu0 %v932
      %v1026 = vpop.f32.mrb[0].mxu0
      %v1027 = vadd.f32 0.0, %v1026
      %v1028 = vpop.f32.mrb[0].mxu0
      %v1029 = vpop.f32.mrb[0].mxu0
      %v1030 = vadd.f32 0.0, %v1029
      %v1031 = vpop.f32.mrb[0].mxu0
      %1032 = vmatprep.mubr.bf16.mxu0 0
      %1033 = vmatmul.mubr.bf16.gmra.mrb[0].mxu0 %v935
      %v1034 = vpop.f32.mrb[0].mxu0
      %v1035 = vadd.f32 0.0, %v1034
      %v1036 = vpop.f32.mrb[0].mxu0
      %v1037 = vpop.f32.mrb[0].mxu0
      %v1038 = vadd.f32 0.0, %v1037
      %v1039 = vpop.f32.mrb[0].mxu0
      %1040 = vmatprep.mubr.bf16.mxu0 0
      %1041 = vmatmul.mubr.bf16.gmra.mrb[0].mxu0 %v938
      %v1042 = vpop.f32.mrb[0].mxu0
      %v1043 = vadd.f32 0.0, %v1042
      %v1044 = vpop.f32.mrb[0].mxu0
      %v1045 = vpop.f32.mrb[0].mxu0
      %v1046 = vadd.f32 0.0, %v1045
      %v1047 = vpop.f32.mrb[0].mxu0
      %1048 = vmatprep.mubr.bf16.mxu0 0
      %1049 = vmatmul.mubr.bf16.gmra.mrb[0].mxu0 %v941
      %v1050 = vpop.f32.mrb[0].mxu0
      %v1051 = vadd.f32 0.0, %v1050
      %v1052 = vpop.f32.mrb[0].mxu0
      %v1053 = vpop.f32.mrb[0].mxu0
      %v1054 = vadd.f32 0.0, %v1053
      %v1055 = vpop.f32.mrb[0].mxu0
      %1056 = vmatprep.mubr.bf16.mxu0 0
      %1057 = vmatmul.mubr.bf16.gmra.mrb[0].mxu0 %v944
      %v1058 = vpop.f32.mrb[0].mxu0
      %v1059 = vadd.f32 0.0, %v1058
      %v1060 = vpop.f32.mrb[0].mxu0
      %v1061 = vpop.f32.mrb[0].mxu0
      %v1062 = vadd.f32 0.0, %v1061
      %v1063 = vpop.f32.mrb[0].mxu0
      %1064 = vmatprep.mubr.bf16.mxu0 0
      %1065 = vmatmul.mubr.bf16.gmra.mrb[0].mxu0 %v947
      %v1066 = vpop.f32.mrb[0].mxu0
      %v1067 = vadd.f32 0.0, %v1066
      %v1068 = vpop.f32.mrb[0].mxu0
      %v1069 = vpop.f32.mrb[0].mxu0
      %v1070 = vadd.f32 0.0, %v1069
      %v1071 = vpop.f32.mrb[0].mxu0
      %1072 = vmatprep.mubr.bf16.mxu0 0
      %1073 = vmatmul.mubr.bf16.gmra.mrb[0].mxu0 %v950
      %v1074 = vpop.f32.mrb[0].mxu0
      %v1075 = vadd.f32 0.0, %v1074
      %v1076 = vpop.f32.mrb[0].mxu0
      %v1077 = vpop.f32.mrb[0].mxu0
      %v1078 = vadd.f32 0.0, %v1077
      %v1079 = vpop.f32.mrb[0].mxu0
      %1080 = vmatprep.mubr.bf16.mxu0 0
      %1081 = vmatmul.mubr.bf16.gmra.mrb[0].mxu0 %v953
      %v1082 = vpop.f32.mrb[0].mxu0
      %v1083 = vadd.f32 0.0, %v1082
      %v1084 = vpop.f32.mrb[0].mxu0
      %v1085 = vpop.f32.mrb[0].mxu0
      %v1086 = vadd.f32 0.0, %v1085
      %v1087 = vpop.f32.mrb[0].mxu0
      %1088 = vmatprep.mubr.bf16.mxu0 0
      %1089 = vmatmul.mubr.bf16.gmra.mrb[0].mxu0 %v956
      %v1090 = vpop.f32.mrb[0].mxu0
      %v1091 = vadd.f32 0.0, %v1090
      %v1092 = vpop.f32.mrb[0].mxu0
      %v1093 = vpop.f32.mrb[0].mxu0
      %v1094 = vadd.f32 0.0, %v1093
      %v1095 = vpop.f32.mrb[0].mxu0
      %1096 = vmatprep.mubr.bf16.mxu0 0
      %1097 = vmatmul.mubr.bf16.gmra.mrb[0].mxu0 %v959
      %v1098 = vpop.f32.mrb[0].mxu0
      %v1099 = vadd.f32 0.0, %v1098
      %v1100 = vpop.f32.mrb[0].mxu0
      %v1101 = vpop.f32.mrb[0].mxu0
      %v1102 = vadd.f32 0.0, %v1101
      %v1103 = vpop.f32.mrb[0].mxu0
      %1104 = vmatprep.mubr.bf16.mxu0 0
      %1105 = vmatmul.mubr.bf16.gmra.mrb[0].mxu0 %v962
      %v1106 = vpop.f32.mrb[0].mxu0
      %v1107 = vadd.f32 0.0, %v1106
      %v1108 = vpop.f32.mrb[0].mxu0
      %v1109 = vpop.f32.mrb[0].mxu0
      %v1110 = vadd.f32 0.0, %v1109
      %v1111 = vpop.f32.mrb[0].mxu0
      %1112 = vmatprep.mubr.bf16.mxu0 0
      %1113 = vmatmul.mubr.bf16.gmra.mrb[0].mxu0 %v965
      %v1114 = vpop.f32.mrb[0].mxu0
      %v1115 = vadd.f32 0.0, %v1114
      %v1116 = vpop.f32.mrb[0].mxu0
      %v1117 = vpop.f32.mrb[0].mxu0
      %v1118 = vadd.f32 0.0, %v1117
      %v1119 = vpop.f32.mrb[0].mxu0
      %1120 = vmatprep.mubr.bf16.mxu0 0
      %1121 = vmatmul.mubr.bf16.gmra.mrb[0].mxu0 %v968
      %v1122 = vpop.f32.mrb[0].mxu0
      %v1123 = vadd.f32 0.0, %v1122
      %v1124 = vpop.f32.mrb[0].mxu0
      %v1125 = vpop.f32.mrb[0].mxu0
      %v1126 = vadd.f32 0.0, %v1125
      %v1127 = vpop.f32.mrb[0].mxu0
      %1128 = vmatprep.mubr.bf16.mxu0 0
      %1129 = vmatmul.mubr.bf16.gmra.mrb[0].mxu0 %v971
      %v1130 = vpop.f32.mrb[0].mxu0
      %v1131 = vadd.f32 0.0, %v1130
      %v1132 = vpop.f32.mrb[0].mxu0
      %v1133 = vpop.f32.mrb[0].mxu0
      %v1134 = vadd.f32 0.0, %v1133
      %v1135 = vpop.f32.mrb[0].mxu0
      %1136 = vdwg.mxu0
      %v1137 = vld [vmem:[#allocation3] sm:$0xff]
      %v1138 = vld [vmem:[#allocation3 + $0x8] sm:$0xff]
      %v1139 = vld [vmem:[#allocation3 + $0x10] sm:$0xff]
      %v1140 = vld [vmem:[#allocation3 + $0x18] sm:$0xff]
      %v1141 = vld [vmem:[#allocation3 + $0x20] sm:$0xff]
      %v1142 = vld [vmem:[#allocation3 + $0x28] sm:$0xff]
      %v1143 = vld [vmem:[#allocation3 + $0x30] sm:$0xff]
      %v1144 = vld [vmem:[#allocation3 + $0x38] sm:$0xff]
      %v1145 = vld [vmem:[#allocation3 + $0x40] sm:$0xff]
      %v1146 = vld [vmem:[#allocation3 + $0x48] sm:$0xff]
      %v1147 = vld [vmem:[#allocation3 + $0x50] sm:$0xff]
      %v1148 = vld [vmem:[#allocation3 + $0x58] sm:$0xff]
      %v1149 = vld [vmem:[#allocation3 + $0x60] sm:$0xff]
      %v1150 = vld [vmem:[#allocation3 + $0x68] sm:$0xff]
      %v1151 = vld [vmem:[#allocation3 + $0x70] sm:$0xff]
      %v1152 = vld [vmem:[#allocation3 + $0x78] sm:$0xff]
      %v1153 = vld [vmem:[#allocation3 + $0x80] sm:$0xff]
      %v1154 = vld [vmem:[#allocation3 + $0x88] sm:$0xff]
      %v1155 = vld [vmem:[#allocation3 + $0x90] sm:$0xff]
      %v1156 = vld [vmem:[#allocation3 + $0x98] sm:$0xff]
      %v1157 = vld [vmem:[#allocation3 + $0xa0] sm:$0xff]
      %v1158 = vld [vmem:[#allocation3 + $0xa8] sm:$0xff]
      %v1159 = vld [vmem:[#allocation3 + $0xb0] sm:$0xff]
      %v1160 = vld [vmem:[#allocation3 + $0xb8] sm:$0xff]
      %v1161 = vld [vmem:[#allocation3 + $0xc0] sm:$0xff]
      %v1162 = vld [vmem:[#allocation3 + $0xc8] sm:$0xff]
      %v1163 = vld [vmem:[#allocation3 + $0xd0] sm:$0xff]
      %v1164 = vld [vmem:[#allocation3 + $0xd8] sm:$0xff]
      %v1165 = vld [vmem:[#allocation3 + $0xe0] sm:$0xff]
      %v1166 = vld [vmem:[#allocation3 + $0xe8] sm:$0xff]
      %v1167 = vld [vmem:[#allocation3 + $0xf0] sm:$0xff]
      %v1168 = vld [vmem:[#allocation3 + $0xf8] sm:$0xff]
      %v1169 = vadd.f32 %v1137, %v1011
      %v1170 = vadd.f32 %v1138, %v1014
      %v1171 = vadd.f32 %v1139, %v1019
      %v1172 = vadd.f32 %v1140, %v1022
      %v1173 = vadd.f32 %v1141, %v1027
      %v1174 = vadd.f32 %v1142, %v1030
      %v1175 = vadd.f32 %v1143, %v1035
      %v1176 = vadd.f32 %v1144, %v1038
      %v1177 = vadd.f32 %v1145, %v1043
      %v1178 = vadd.f32 %v1146, %v1046
      %v1179 = vadd.f32 %v1147, %v1051
      %v1180 = vadd.f32 %v1148, %v1054
      %v1181 = vadd.f32 %v1149, %v1059
      %v1182 = vadd.f32 %v1150, %v1062
      %v1183 = vadd.f32 %v1151, %v1067
      %v1184 = vadd.f32 %v1152, %v1070
      %v1185 = vadd.f32 %v1153, %v1075
      %v1186 = vadd.f32 %v1154, %v1078
      %v1187 = vadd.f32 %v1155, %v1083
      %v1188 = vadd.f32 %v1156, %v1086
      %v1189 = vadd.f32 %v1157, %v1091
      %v1190 = vadd.f32 %v1158, %v1094
      %v1191 = vadd.f32 %v1159, %v1099
      %v1192 = vadd.f32 %v1160, %v1102
      %v1193 = vadd.f32 %v1161, %v1107
      %v1194 = vadd.f32 %v1162, %v1110
      %v1195 = vadd.f32 %v1163, %v1115
      %v1196 = vadd.f32 %v1164, %v1118
      %v1197 = vadd.f32 %v1165, %v1123
      %v1198 = vadd.f32 %v1166, %v1126
      %v1199 = vadd.f32 %v1167, %v1131
      %v1200 = vadd.f32 %v1168, %v1134
      %1201 = vst.msk [vmem:[#allocation3] sm:$0xff] %vm199, %v1169
      %1202 = vst.msk [vmem:[#allocation3 + $0x8] sm:$0xff] %vm199, %v1170
      %1203 = vst.msk [vmem:[#allocation3 + $0x10] sm:$0xff] %vm199, %v1171
      %1204 = vst.msk [vmem:[#allocation3 + $0x18] sm:$0xff] %vm199, %v1172
      %1205 = vst.msk [vmem:[#allocation3 + $0x20] sm:$0xff] %vm199, %v1173
      %1206 = vst.msk [vmem:[#allocation3 + $0x28] sm:$0xff] %vm199, %v1174
      %1207 = vst.msk [vmem:[#allocation3 + $0x30] sm:$0xff] %vm199, %v1175
      %1208 = vst.msk [vmem:[#allocation3 + $0x38] sm:$0xff] %vm199, %v1176
      %1209 = vst.msk [vmem:[#allocation3 + $0x40] sm:$0xff] %vm199, %v1177
      %1210 = vst.msk [vmem:[#allocation3 + $0x48] sm:$0xff] %vm199, %v1178
      %1211 = vst.msk [vmem:[#allocation3 + $0x50] sm:$0xff] %vm199, %v1179
      %1212 = vst.msk [vmem:[#allocation3 + $0x58] sm:$0xff] %vm199, %v1180
      %1213 = vst.msk [vmem:[#allocation3 + $0x60] sm:$0xff] %vm199, %v1181
      %1214 = vst.msk [vmem:[#allocation3 + $0x68] sm:$0xff] %vm199, %v1182
      %1215 = vst.msk [vmem:[#allocation3 + $0x70] sm:$0xff] %vm199, %v1183
      %1216 = vst.msk [vmem:[#allocation3 + $0x78] sm:$0xff] %vm199, %v1184
      %1217 = vst.msk [vmem:[#allocation3 + $0x80] sm:$0xff] %vm199, %v1185
      %1218 = vst.msk [vmem:[#allocation3 + $0x88] sm:$0xff] %vm199, %v1186
      %1219 = vst.msk [vmem:[#allocation3 + $0x90] sm:$0xff] %vm199, %v1187
      %1220 = vst.msk [vmem:[#allocation3 + $0x98] sm:$0xff] %vm199, %v1188
      %1221 = vst.msk [vmem:[#allocation3 + $0xa0] sm:$0xff] %vm199, %v1189
      %1222 = vst.msk [vmem:[#allocation3 + $0xa8] sm:$0xff] %vm199, %v1190
      %1223 = vst.msk [vmem:[#allocation3 + $0xb0] sm:$0xff] %vm199, %v1191
      %1224 = vst.msk [vmem:[#allocation3 + $0xb8] sm:$0xff] %vm199, %v1192
      %1225 = vst.msk [vmem:[#allocation3 + $0xc0] sm:$0xff] %vm199, %v1193
      %1226 = vst.msk [vmem:[#allocation3 + $0xc8] sm:$0xff] %vm199, %v1194
      %1227 = vst.msk [vmem:[#allocation3 + $0xd0] sm:$0xff] %vm199, %v1195
      %1228 = vst.msk [vmem:[#allocation3 + $0xd8] sm:$0xff] %vm199, %v1196
      %1229 = vst.msk [vmem:[#allocation3 + $0xe0] sm:$0xff] %vm199, %v1197
      %1230 = vst.msk [vmem:[#allocation3 + $0xe8] sm:$0xff] %vm199, %v1198
      %1231 = vst.msk [vmem:[#allocation3 + $0xf0] sm:$0xff] %vm199, %v1199
      %1232 = vst.msk [vmem:[#allocation3 + $0xf8] sm:$0xff] %vm199, %v1200
      %vm1265 = vcmask 1046528
      %v1266 = vrot.slane %v468, 1
      %v1267 = vrot.slane %v469, 1
      %v1268 = vsel %vm1265, %v1266, %v1267
      %v1269 = vrot.slane %v470, 1
      %v1270 = vrot.slane %v471, 1
      %v1271 = vsel %vm1265, %v1269, %v1270
      %v1272 = vrot.slane %v472, 1
      %v1273 = vrot.slane %v473, 1
      %v1274 = vsel %vm1265, %v1272, %v1273
      %v1275 = vrot.slane %v474, 1
      %v1276 = vrot.slane %v475, 1
      %v1277 = vsel %vm1265, %v1275, %v1276
      %v1278 = vrot.slane %v476, 1
      %v1279 = vrot.slane %v477, 1
      %v1280 = vsel %vm1265, %v1278, %v1279
      %v1281 = vrot.slane %v478, 1
      %v1282 = vrot.slane %v479, 1
      %v1283 = vsel %vm1265, %v1281, %v1282
      %v1284 = vrot.slane %v480, 1
      %v1285 = vrot.slane %v481, 1
      %v1286 = vsel %vm1265, %v1284, %v1285
      %v1287 = vrot.slane %v482, 1
      %v1288 = vrot.slane %v483, 1
      %v1289 = vsel %vm1265, %v1287, %v1288
      %v1290 = vrot.slane %v484, 1
      %v1291 = vrot.slane %v485, 1
      %v1292 = vsel %vm1265, %v1290, %v1291
      %v1293 = vrot.slane %v486, 1
      %v1294 = vrot.slane %v487, 1
      %v1295 = vsel %vm1265, %v1293, %v1294
      %v1296 = vrot.slane %v488, 1
      %v1297 = vrot.slane %v489, 1
      %v1298 = vsel %vm1265, %v1296, %v1297
      %v1299 = vrot.slane %v490, 1
      %v1300 = vrot.slane %v491, 1
      %v1301 = vsel %vm1265, %v1299, %v1300
      %v1302 = vrot.slane %v492, 1
      %v1303 = vrot.slane %v493, 1
      %v1304 = vsel %vm1265, %v1302, %v1303
      %v1305 = vrot.slane %v494, 1
      %v1306 = vrot.slane %v495, 1
      %v1307 = vsel %vm1265, %v1305, %v1306
      %v1308 = vrot.slane %v496, 1
      %v1309 = vrot.slane %v497, 1
      %v1310 = vsel %vm1265, %v1308, %v1309
      %v1311 = vrot.slane %v498, 1
      %v1312 = vrot.slane %v499, 1
      %v1313 = vsel %vm1265, %v1311, %v1312
      %s1314 = scalar_lea.vmem %s3, 4
      %v1315 = vld [vmem:[%s1314] sm:$0x3]
      %v1317 = vsel %vm199, %v1268, 0
      %v1320 = vsel %vm199, %v1271, 0
      %v1323 = vsel %vm199, %v1274, 0
      %v1326 = vsel %vm199, %v1277, 0
      %v1329 = vsel %vm199, %v1280, 0
      %v1332 = vsel %vm199, %v1283, 0
      %v1335 = vsel %vm199, %v1286, 0
      %v1338 = vsel %vm199, %v1289, 0
      %v1341 = vsel %vm199, %v1292, 0
      %v1344 = vsel %vm199, %v1295, 0
      %v1347 = vsel %vm199, %v1298, 0
      %v1350 = vsel %vm199, %v1301, 0
      %v1353 = vsel %vm199, %v1304, 0
      %v1356 = vsel %vm199, %v1307, 0
      %v1359 = vsel %vm199, %v1310, 0
      %v1362 = vsel %vm199, %v1313, 0
      %v1365 = vsel %vm549, %v1315, 0
      %1367 = vmatprep.subr.bf16.mxu0 0
      %1368 = vmatpush1.bf16.msra.mxu0 %v1365
      %1369 = vmatprep.subr.bf16.mxu0 0
      %1370 = vmatpush1.bf16.msra.mxu0 0
      %1371 = vmatprep.subr.bf16.mxu0 0
      %1372 = vmatpush1.bf16.msra.mxu0 0
      %1373 = vmatprep.subr.bf16.mxu0 0
      %1374 = vmatpush1.bf16.msra.mxu0 0
      %1375 = vmatprep.subr.bf16.mxu0 0
      %1376 = vmatpush1.bf16.msra.mxu0 0
      %1377 = vmatprep.subr.bf16.mxu0 0
      %1378 = vmatpush1.bf16.msra.mxu0 0
      %1379 = vmatprep.subr.bf16.mxu0 0
      %1380 = vmatpush1.bf16.msra.mxu0 0
      %1381 = vmatprep.subr.bf16.mxu0 0
      %1382 = vmatpush1.bf16.msra.mxu0 0
      %1383 = vmatprep.subr.bf16.mxu0 0
      %1384 = vmatpush1.bf16.msra.mxu0 0
      %1385 = vmatprep.subr.bf16.mxu0 0
      %1386 = vmatpush1.bf16.msra.mxu0 0
      %1387 = vmatprep.subr.bf16.mxu0 0
      %1388 = vmatpush1.bf16.msra.mxu0 0
      %1389 = vmatprep.subr.bf16.mxu0 0
      %1390 = vmatpush1.bf16.msra.mxu0 0
      %1391 = vmatprep.subr.bf16.mxu0 0
      %1392 = vmatpush1.bf16.msra.mxu0 0
      %1393 = vmatprep.subr.bf16.mxu0 0
      %1394 = vmatpush1.bf16.msra.mxu0 0
      %1395 = vmatprep.subr.bf16.mxu0 0
      %1396 = vmatpush1.bf16.msra.mxu0 0
      %1397 = vmatprep.subr.bf16.mxu0 0
      %1398 = vmatpush1.bf16.msra.mxu0 0
      %1399 = vmatprep.mubr.bf16.mxu0 0
      %1400 = vmatmul.mubr.bf16.gmra.mrb[0].mxu0 %v1317
      %v1401 = vpop.f32.mrb[0].mxu0
      %v1402 = vadd.f32 0.0, %v1401
      %v1403 = vpop.f32.mrb[0].mxu0
      %v1404 = vpop.f32.mrb[0].mxu0
      %v1405 = vadd.f32 0.0, %v1404
      %v1406 = vpop.f32.mrb[0].mxu0
      %1407 = vmatprep.mubr.bf16.mxu0 0
      %1408 = vmatmul.mubr.bf16.gmra.mrb[0].mxu0 %v1320
      %v1409 = vpop.f32.mrb[0].mxu0
      %v1410 = vadd.f32 0.0, %v1409
      %v1411 = vpop.f32.mrb[0].mxu0
      %v1412 = vpop.f32.mrb[0].mxu0
      %v1413 = vadd.f32 0.0, %v1412
      %v1414 = vpop.f32.mrb[0].mxu0
      %1415 = vmatprep.mubr.bf16.mxu0 0
      %1416 = vmatmul.mubr.bf16.gmra.mrb[0].mxu0 %v1323
      %v1417 = vpop.f32.mrb[0].mxu0
      %v1418 = vadd.f32 0.0, %v1417
      %v1419 = vpop.f32.mrb[0].mxu0
      %v1420 = vpop.f32.mrb[0].mxu0
      %v1421 = vadd.f32 0.0, %v1420
      %v1422 = vpop.f32.mrb[0].mxu0
      %1423 = vmatprep.mubr.bf16.mxu0 0
      %1424 = vmatmul.mubr.bf16.gmra.mrb[0].mxu0 %v1326
      %v1425 = vpop.f32.mrb[0].mxu0
      %v1426 = vadd.f32 0.0, %v1425
      %v1427 = vpop.f32.mrb[0].mxu0
      %v1428 = vpop.f32.mrb[0].mxu0
      %v1429 = vadd.f32 0.0, %v1428
      %v1430 = vpop.f32.mrb[0].mxu0
      %1431 = vmatprep.mubr.bf16.mxu0 0
      %1432 = vmatmul.mubr.bf16.gmra.mrb[0].mxu0 %v1329
      %v1433 = vpop.f32.mrb[0].mxu0
      %v1434 = vadd.f32 0.0, %v1433
      %v1435 = vpop.f32.mrb[0].mxu0
      %v1436 = vpop.f32.mrb[0].mxu0
      %v1437 = vadd.f32 0.0, %v1436
      %v1438 = vpop.f32.mrb[0].mxu0
      %1439 = vmatprep.mubr.bf16.mxu0 0
      %1440 = vmatmul.mubr.bf16.gmra.mrb[0].mxu0 %v1332
      %v1441 = vpop.f32.mrb[0].mxu0
      %v1442 = vadd.f32 0.0, %v1441
      %v1443 = vpop.f32.mrb[0].mxu0
      %v1444 = vpop.f32.mrb[0].mxu0
      %v1445 = vadd.f32 0.0, %v1444
      %v1446 = vpop.f32.mrb[0].mxu0
      %1447 = vmatprep.mubr.bf16.mxu0 0
      %1448 = vmatmul.mubr.bf16.gmra.mrb[0].mxu0 %v1335
      %v1449 = vpop.f32.mrb[0].mxu0
      %v1450 = vadd.f32 0.0, %v1449
      %v1451 = vpop.f32.mrb[0].mxu0
      %v1452 = vpop.f32.mrb[0].mxu0
      %v1453 = vadd.f32 0.0, %v1452
      %v1454 = vpop.f32.mrb[0].mxu0
      %1455 = vmatprep.mubr.bf16.mxu0 0
      %1456 = vmatmul.mubr.bf16.gmra.mrb[0].mxu0 %v1338
      %v1457 = vpop.f32.mrb[0].mxu0
      %v1458 = vadd.f32 0.0, %v1457
      %v1459 = vpop.f32.mrb[0].mxu0
      %v1460 = vpop.f32.mrb[0].mxu0
      %v1461 = vadd.f32 0.0, %v1460
      %v1462 = vpop.f32.mrb[0].mxu0
      %1463 = vmatprep.mubr.bf16.mxu0 0
      %1464 = vmatmul.mubr.bf16.gmra.mrb[0].mxu0 %v1341
      %v1465 = vpop.f32.mrb[0].mxu0
      %v1466 = vadd.f32 0.0, %v1465
      %v1467 = vpop.f32.mrb[0].mxu0
      %v1468 = vpop.f32.mrb[0].mxu0
      %v1469 = vadd.f32 0.0, %v1468
      %v1470 = vpop.f32.mrb[0].mxu0
      %1471 = vmatprep.mubr.bf16.mxu0 0
      %1472 = vmatmul.mubr.bf16.gmra.mrb[0].mxu0 %v1344
      %v1473 = vpop.f32.mrb[0].mxu0
      %v1474 = vadd.f32 0.0, %v1473
      %v1475 = vpop.f32.mrb[0].mxu0
      %v1476 = vpop.f32.mrb[0].mxu0
      %v1477 = vadd.f32 0.0, %v1476
      %v1478 = vpop.f32.mrb[0].mxu0
      %1479 = vmatprep.mubr.bf16.mxu0 0
      %1480 = vmatmul.mubr.bf16.gmra.mrb[0].mxu0 %v1347
      %v1481 = vpop.f32.mrb[0].mxu0
      %v1482 = vadd.f32 0.0, %v1481
      %v1483 = vpop.f32.mrb[0].mxu0
      %v1484 = vpop.f32.mrb[0].mxu0
      %v1485 = vadd.f32 0.0, %v1484
      %v1486 = vpop.f32.mrb[0].mxu0
      %1487 = vmatprep.mubr.bf16.mxu0 0
      %1488 = vmatmul.mubr.bf16.gmra.mrb[0].mxu0 %v1350
      %v1489 = vpop.f32.mrb[0].mxu0
      %v1490 = vadd.f32 0.0, %v1489
      %v1491 = vpop.f32.mrb[0].mxu0
      %v1492 = vpop.f32.mrb[0].mxu0
      %v1493 = vadd.f32 0.0, %v1492
      %v1494 = vpop.f32.mrb[0].mxu0
      %1495 = vmatprep.mubr.bf16.mxu0 0
      %1496 = vmatmul.mubr.bf16.gmra.mrb[0].mxu0 %v1353
      %v1497 = vpop.f32.mrb[0].mxu0
      %v1498 = vadd.f32 0.0, %v1497
      %v1499 = vpop.f32.mrb[0].mxu0
      %v1500 = vpop.f32.mrb[0].mxu0
      %v1501 = vadd.f32 0.0, %v1500
      %v1502 = vpop.f32.mrb[0].mxu0
      %1503 = vmatprep.mubr.bf16.mxu0 0
      %1504 = vmatmul.mubr.bf16.gmra.mrb[0].mxu0 %v1356
      %v1505 = vpop.f32.mrb[0].mxu0
      %v1506 = vadd.f32 0.0, %v1505
      %v1507 = vpop.f32.mrb[0].mxu0
      %v1508 = vpop.f32.mrb[0].mxu0
      %v1509 = vadd.f32 0.0, %v1508
      %v1510 = vpop.f32.mrb[0].mxu0
      %1511 = vmatprep.mubr.bf16.mxu0 0
      %1512 = vmatmul.mubr.bf16.gmra.mrb[0].mxu0 %v1359
      %v1513 = vpop.f32.mrb[0].mxu0
      %v1514 = vadd.f32 0.0, %v1513
      %v1515 = vpop.f32.mrb[0].mxu0
      %v1516 = vpop.f32.mrb[0].mxu0
      %v1517 = vadd.f32 0.0, %v1516
      %v1518 = vpop.f32.mrb[0].mxu0
      %1519 = vmatprep.mubr.bf16.mxu0 0
      %1520 = vmatmul.mubr.bf16.gmra.mrb[0].mxu0 %v1362
      %v1521 = vpop.f32.mrb[0].mxu0
      %v1522 = vadd.f32 0.0, %v1521
      %v1523 = vpop.f32.mrb[0].mxu0
      %v1524 = vpop.f32.mrb[0].mxu0
      %v1525 = vadd.f32 0.0, %v1524
      %v1526 = vpop.f32.mrb[0].mxu0
      %1527 = vdwg.mxu0
      %v1528 = vld [vmem:[#allocation3] sm:$0xff]
      %v1529 = vld [vmem:[#allocation3 + $0x8] sm:$0xff]
      %v1530 = vld [vmem:[#allocation3 + $0x10] sm:$0xff]
      %v1531 = vld [vmem:[#allocation3 + $0x18] sm:$0xff]
      %v1532 = vld [vmem:[#allocation3 + $0x20] sm:$0xff]
      %v1533 = vld [vmem:[#allocation3 + $0x28] sm:$0xff]
      %v1534 = vld [vmem:[#allocation3 + $0x30] sm:$0xff]
      %v1535 = vld [vmem:[#allocation3 + $0x38] sm:$0xff]
      %v1536 = vld [vmem:[#allocation3 + $0x40] sm:$0xff]
      %v1537 = vld [vmem:[#allocation3 + $0x48] sm:$0xff]
      %v1538 = vld [vmem:[#allocation3 + $0x50] sm:$0xff]
      %v1539 = vld [vmem:[#allocation3 + $0x58] sm:$0xff]
      %v1540 = vld [vmem:[#allocation3 + $0x60] sm:$0xff]
      %v1541 = vld [vmem:[#allocation3 + $0x68] sm:$0xff]
      %v1542 = vld [vmem:[#allocation3 + $0x70] sm:$0xff]
      %v1543 = vld [vmem:[#allocation3 + $0x78] sm:$0xff]
      %v1544 = vld [vmem:[#allocation3 + $0x80] sm:$0xff]
      %v1545 = vld [vmem:[#allocation3 + $0x88] sm:$0xff]
      %v1546 = vld [vmem:[#allocation3 + $0x90] sm:$0xff]
      %v1547 = vld [vmem:[#allocation3 + $0x98] sm:$0xff]
      %v1548 = vld [vmem:[#allocation3 + $0xa0] sm:$0xff]
      %v1549 = vld [vmem:[#allocation3 + $0xa8] sm:$0xff]
      %v1550 = vld [vmem:[#allocation3 + $0xb0] sm:$0xff]
      %v1551 = vld [vmem:[#allocation3 + $0xb8] sm:$0xff]
      %v1552 = vld [vmem:[#allocation3 + $0xc0] sm:$0xff]
      %v1553 = vld [vmem:[#allocation3 + $0xc8] sm:$0xff]
      %v1554 = vld [vmem:[#allocation3 + $0xd0] sm:$0xff]
      %v1555 = vld [vmem:[#allocation3 + $0xd8] sm:$0xff]
      %v1556 = vld [vmem:[#allocation3 + $0xe0] sm:$0xff]
      %v1557 = vld [vmem:[#allocation3 + $0xe8] sm:$0xff]
      %v1558 = vld [vmem:[#allocation3 + $0xf0] sm:$0xff]
      %v1559 = vld [vmem:[#allocation3 + $0xf8] sm:$0xff]
      %v1560 = vadd.f32 %v1528, %v1402
      %v1561 = vadd.f32 %v1529, %v1405
      %v1562 = vadd.f32 %v1530, %v1410
      %v1563 = vadd.f32 %v1531, %v1413
      %v1564 = vadd.f32 %v1532, %v1418
      %v1565 = vadd.f32 %v1533, %v1421
      %v1566 = vadd.f32 %v1534, %v1426
      %v1567 = vadd.f32 %v1535, %v1429
      %v1568 = vadd.f32 %v1536, %v1434
      %v1569 = vadd.f32 %v1537, %v1437
      %v1570 = vadd.f32 %v1538, %v1442
      %v1571 = vadd.f32 %v1539, %v1445
      %v1572 = vadd.f32 %v1540, %v1450
      %v1573 = vadd.f32 %v1541, %v1453
      %v1574 = vadd.f32 %v1542, %v1458
      %v1575 = vadd.f32 %v1543, %v1461
      %v1576 = vadd.f32 %v1544, %v1466
      %v1577 = vadd.f32 %v1545, %v1469
      %v1578 = vadd.f32 %v1546, %v1474
      %v1579 = vadd.f32 %v1547, %v1477
      %v1580 = vadd.f32 %v1548, %v1482
      %v1581 = vadd.f32 %v1549, %v1485
      %v1582 = vadd.f32 %v1550, %v1490
      %v1583 = vadd.f32 %v1551, %v1493
      %v1584 = vadd.f32 %v1552, %v1498
      %v1585 = vadd.f32 %v1553, %v1501
      %v1586 = vadd.f32 %v1554, %v1506
      %v1587 = vadd.f32 %v1555, %v1509
      %v1588 = vadd.f32 %v1556, %v1514
      %v1589 = vadd.f32 %v1557, %v1517
      %v1590 = vadd.f32 %v1558, %v1522
      %v1591 = vadd.f32 %v1559, %v1525
      %1592 = vst.msk [vmem:[#allocation3] sm:$0xff] %vm199, %v1560
      %1593 = vst.msk [vmem:[#allocation3 + $0x8] sm:$0xff] %vm199, %v1561
      %1594 = vst.msk [vmem:[#allocation3 + $0x10] sm:$0xff] %vm199, %v1562
      %1595 = vst.msk [vmem:[#allocation3 + $0x18] sm:$0xff] %vm199, %v1563
      %1596 = vst.msk [vmem:[#allocation3 + $0x20] sm:$0xff] %vm199, %v1564
      %1597 = vst.msk [vmem:[#allocation3 + $0x28] sm:$0xff] %vm199, %v1565
      %1598 = vst.msk [vmem:[#allocation3 + $0x30] sm:$0xff] %vm199, %v1566
      %1599 = vst.msk [vmem:[#allocation3 + $0x38] sm:$0xff] %vm199, %v1567
      %1600 = vst.msk [vmem:[#allocation3 + $0x40] sm:$0xff] %vm199, %v1568
      %1601 = vst.msk [vmem:[#allocation3 + $0x48] sm:$0xff] %vm199, %v1569
      %1602 = vst.msk [vmem:[#allocation3 + $0x50] sm:$0xff] %vm199, %v1570
      %1603 = vst.msk [vmem:[#allocation3 + $0x58] sm:$0xff] %vm199, %v1571
      %1604 = vst.msk [vmem:[#allocation3 + $0x60] sm:$0xff] %vm199, %v1572
      %1605 = vst.msk [vmem:[#allocation3 + $0x68] sm:$0xff] %vm199, %v1573
      %1606 = vst.msk [vmem:[#allocation3 + $0x70] sm:$0xff] %vm199, %v1574
      %1607 = vst.msk [vmem:[#allocation3 + $0x78] sm:$0xff] %vm199, %v1575
      %1608 = vst.msk [vmem:[#allocation3 + $0x80] sm:$0xff] %vm199, %v1576
      %1609 = vst.msk [vmem:[#allocation3 + $0x88] sm:$0xff] %vm199, %v1577
      %1610 = vst.msk [vmem:[#allocation3 + $0x90] sm:$0xff] %vm199, %v1578
      %1611 = vst.msk [vmem:[#allocation3 + $0x98] sm:$0xff] %vm199, %v1579
      %1612 = vst.msk [vmem:[#allocation3 + $0xa0] sm:$0xff] %vm199, %v1580
      %1613 = vst.msk [vmem:[#allocation3 + $0xa8] sm:$0xff] %vm199, %v1581
      %1614 = vst.msk [vmem:[#allocation3 + $0xb0] sm:$0xff] %vm199, %v1582
      %1615 = vst.msk [vmem:[#allocation3 + $0xb8] sm:$0xff] %vm199, %v1583
      %1616 = vst.msk [vmem:[#allocation3 + $0xc0] sm:$0xff] %vm199, %v1584
      %1617 = vst.msk [vmem:[#allocation3 + $0xc8] sm:$0xff] %vm199, %v1585
      %1618 = vst.msk [vmem:[#allocation3 + $0xd0] sm:$0xff] %vm199, %v1586
      %1619 = vst.msk [vmem:[#allocation3 + $0xd8] sm:$0xff] %vm199, %v1587
      %1620 = vst.msk [vmem:[#allocation3 + $0xe0] sm:$0xff] %vm199, %v1588
      %1621 = vst.msk [vmem:[#allocation3 + $0xe8] sm:$0xff] %vm199, %v1589
      %1622 = vst.msk [vmem:[#allocation3 + $0xf0] sm:$0xff] %vm199, %v1590
      %1623 = vst.msk [vmem:[#allocation3 + $0xf8] sm:$0xff] %vm199, %v1591
      %v1624 = vld [vmem:[%s387] sm:$0xff]
      %v1625 = vld [vmem:[%s387 + $0x8] sm:$0xff]
      %v1626 = vld [vmem:[%s387 + $0x10] sm:$0x3]
      %v1627 = vld [vmem:[%s387 + $0x18] sm:$0xff]
      %v1628 = vld [vmem:[%s387 + $0x20] sm:$0xff]
      %v1629 = vld [vmem:[%s387 + $0x28] sm:$0x3]
      %v1630 = vld [vmem:[%s387 + $0x30] sm:$0xff]
      %v1631 = vld [vmem:[%s387 + $0x38] sm:$0xff]
      %v1632 = vld [vmem:[%s387 + $0x40] sm:$0x3]
      %v1633 = vld [vmem:[%s387 + $0x48] sm:$0xff]
      %v1634 = vld [vmem:[%s387 + $0x50] sm:$0xff]
      %v1635 = vld [vmem:[%s387 + $0x58] sm:$0x3]
      %v1636 = vld [vmem:[%s387 + $0x60] sm:$0xff]
      %v1637 = vld [vmem:[%s387 + $0x68] sm:$0xff]
      %v1638 = vld [vmem:[%s387 + $0x70] sm:$0x3]
      %v1639 = vld [vmem:[%s387 + $0x78] sm:$0xff]
      %v1640 = vld [vmem:[%s387 + $0x80] sm:$0xff]
      %v1641 = vld [vmem:[%s387 + $0x88] sm:$0x3]
      %v1642 = vld [vmem:[%s387 + $0x90] sm:$0xff]
      %v1643 = vld [vmem:[%s387 + $0x98] sm:$0xff]
      %v1644 = vld [vmem:[%s387 + $0xa0] sm:$0x3]
      %v1645 = vld [vmem:[%s387 + $0xa8] sm:$0xff]
      %v1646 = vld [vmem:[%s387 + $0xb0] sm:$0xff]
      %v1647 = vld [vmem:[%s387 + $0xb8] sm:$0x3]
      %v1648 = vld [vmem:[%s387 + $0xc0] sm:$0xff]
      %v1649 = vld [vmem:[%s387 + $0xc8] sm:$0xff]
      %v1650 = vld [vmem:[%s387 + $0xd0] sm:$0x3]
      %v1651 = vld [vmem:[%s387 + $0xd8] sm:$0xff]
      %v1652 = vld [vmem:[%s387 + $0xe0] sm:$0xff]
      %v1653 = vld [vmem:[%s387 + $0xe8] sm:$0x3]
      %v1654 = vld [vmem:[%s387 + $0xf0] sm:$0xff]
      %v1655 = vld [vmem:[%s387 + $0xf8] sm:$0xff]
      %v1656 = vld [vmem:[%s387 + $0x100] sm:$0x3]
      %v1657 = vld [vmem:[%s387 + $0x108] sm:$0xff]
      %v1658 = vld [vmem:[%s387 + $0x110] sm:$0xff]
      %v1659 = vld [vmem:[%s387 + $0x118] sm:$0x3]
      %v1660 = vld [vmem:[%s387 + $0x120] sm:$0xff]
      %v1661 = vld [vmem:[%s387 + $0x128] sm:$0xff]
      %v1662 = vld [vmem:[%s387 + $0x130] sm:$0x3]
      %v1663 = vld [vmem:[%s387 + $0x138] sm:$0xff]
      %v1664 = vld [vmem:[%s387 + $0x140] sm:$0xff]
      %v1665 = vld [vmem:[%s387 + $0x148] sm:$0x3]
      %v1666 = vld [vmem:[%s387 + $0x150] sm:$0xff]
      %v1667 = vld [vmem:[%s387 + $0x158] sm:$0xff]
      %v1668 = vld [vmem:[%s387 + $0x160] sm:$0x3]
      %v1669 = vld [vmem:[%s387 + $0x168] sm:$0xff]
      %v1670 = vld [vmem:[%s387 + $0x170] sm:$0xff]
      %v1671 = vld [vmem:[%s387 + $0x178] sm:$0x3]
      %v1672 = vpack.c.bf16 %v1625, %v1624
      %v1673 = vpack.c.bf16 %v1626, %v1626
      %v1674 = vpack.c.bf16 %v1628, %v1627
      %v1675 = vpack.c.bf16 %v1629, %v1629
      %v1676 = vpack.c.bf16 %v1631, %v1630
      %v1677 = vpack.c.bf16 %v1632, %v1632
      %v1678 = vpack.c.bf16 %v1634, %v1633
      %v1679 = vpack.c.bf16 %v1635, %v1635
      %v1680 = vpack.c.bf16 %v1637, %v1636
      %v1681 = vpack.c.bf16 %v1638, %v1638
      %v1682 = vpack.c.bf16 %v1640, %v1639
      %v1683 = vpack.c.bf16 %v1641, %v1641
      %v1684 = vpack.c.bf16 %v1643, %v1642
      %v1685 = vpack.c.bf16 %v1644, %v1644
      %v1686 = vpack.c.bf16 %v1646, %v1645
      %v1687 = vpack.c.bf16 %v1647, %v1647
      %v1688 = vpack.c.bf16 %v1649, %v1648
      %v1689 = vpack.c.bf16 %v1650, %v1650
      %v1690 = vpack.c.bf16 %v1652, %v1651
      %v1691 = vpack.c.bf16 %v1653, %v1653
      %v1692 = vpack.c.bf16 %v1655, %v1654
      %v1693 = vpack.c.bf16 %v1656, %v1656
      %v1694 = vpack.c.bf16 %v1658, %v1657
      %v1695 = vpack.c.bf16 %v1659, %v1659
      %v1696 = vpack.c.bf16 %v1661, %v1660
      %v1697 = vpack.c.bf16 %v1662, %v1662
      %v1698 = vpack.c.bf16 %v1664, %v1663
      %v1699 = vpack.c.bf16 %v1665, %v1665
      %v1700 = vpack.c.bf16 %v1667, %v1666
      %v1701 = vpack.c.bf16 %v1668, %v1668
      %v1702 = vpack.c.bf16 %v1670, %v1669
      %v1703 = vpack.c.bf16 %v1671, %v1671
      %s1704 = scalar_lea.vmem %s3, 6
      %v1705 = vld [vmem:[%s1704] sm:$0x3]
      %v1707 = vsel %vm199, %v1672, 0
      %v1710 = vsel %vm199, %v1674, 0
      %v1713 = vsel %vm199, %v1676, 0
      %v1716 = vsel %vm199, %v1678, 0
      %v1719 = vsel %vm199, %v1680, 0
      %v1722 = vsel %vm199, %v1682, 0
      %v1725 = vsel %vm199, %v1684, 0
      %v1728 = vsel %vm199, %v1686, 0
      %v1731 = vsel %vm199, %v1688, 0
      %v1734 = vsel %vm199, %v1690, 0
      %v1737 = vsel %vm199, %v1692, 0
      %v1740 = vsel %vm199, %v1694, 0
      %v1743 = vsel %vm199, %v1696, 0
      %v1746 = vsel %vm199, %v1698, 0
      %v1749 = vsel %vm199, %v1700, 0
      %v1752 = vsel %vm199, %v1702, 0
      %v1755 = vsel %vm549, %v1705, 0
      %1757 = vmatprep.subr.bf16.mxu0 0
      %1758 = vmatpush1.bf16.msra.mxu0 %v1755
      %1759 = vmatprep.subr.bf16.mxu0 0
      %1760 = vmatpush1.bf16.msra.mxu0 0
      %1761 = vmatprep.subr.bf16.mxu0 0
      %1762 = vmatpush1.bf16.msra.mxu0 0
      %1763 = vmatprep.subr.bf16.mxu0 0
      %1764 = vmatpush1.bf16.msra.mxu0 0
      %1765 = vmatprep.subr.bf16.mxu0 0
      %1766 = vmatpush1.bf16.msra.mxu0 0
      %1767 = vmatprep.subr.bf16.mxu0 0
      %1768 = vmatpush1.bf16.msra.mxu0 0
      %1769 = vmatprep.subr.bf16.mxu0 0
      %1770 = vmatpush1.bf16.msra.mxu0 0
      %1771 = vmatprep.subr.bf16.mxu0 0
      %1772 = vmatpush1.bf16.msra.mxu0 0
      %1773 = vmatprep.subr.bf16.mxu0 0
      %1774 = vmatpush1.bf16.msra.mxu0 0
      %1775 = vmatprep.subr.bf16.mxu0 0
      %1776 = vmatpush1.bf16.msra.mxu0 0
      %1777 = vmatprep.subr.bf16.mxu0 0
      %1778 = vmatpush1.bf16.msra.mxu0 0
      %1779 = vmatprep.subr.bf16.mxu0 0
      %1780 = vmatpush1.bf16.msra.mxu0 0
      %1781 = vmatprep.subr.bf16.mxu0 0
      %1782 = vmatpush1.bf16.msra.mxu0 0
      %1783 = vmatprep.subr.bf16.mxu0 0
      %1784 = vmatpush1.bf16.msra.mxu0 0
      %1785 = vmatprep.subr.bf16.mxu0 0
      %1786 = vmatpush1.bf16.msra.mxu0 0
      %1787 = vmatprep.subr.bf16.mxu0 0
      %1788 = vmatpush1.bf16.msra.mxu0 0
      %1789 = vmatprep.mubr.bf16.mxu0 0
      %1790 = vmatmul.mubr.bf16.gmra.mrb[0].mxu0 %v1707
      %v1791 = vpop.f32.mrb[0].mxu0
      %v1792 = vadd.f32 0.0, %v1791
      %v1793 = vpop.f32.mrb[0].mxu0
      %v1794 = vpop.f32.mrb[0].mxu0
      %v1795 = vadd.f32 0.0, %v1794
      %v1796 = vpop.f32.mrb[0].mxu0
      %1797 = vmatprep.mubr.bf16.mxu0 0
      %1798 = vmatmul.mubr.bf16.gmra.mrb[0].mxu0 %v1710
      %v1799 = vpop.f32.mrb[0].mxu0
      %v1800 = vadd.f32 0.0, %v1799
      %v1801 = vpop.f32.mrb[0].mxu0
      %v1802 = vpop.f32.mrb[0].mxu0
      %v1803 = vadd.f32 0.0, %v1802
      %v1804 = vpop.f32.mrb[0].mxu0
      %1805 = vmatprep.mubr.bf16.mxu0 0
      %1806 = vmatmul.mubr.bf16.gmra.mrb[0].mxu0 %v1713
      %v1807 = vpop.f32.mrb[0].mxu0
      %v1808 = vadd.f32 0.0, %v1807
      %v1809 = vpop.f32.mrb[0].mxu0
      %v1810 = vpop.f32.mrb[0].mxu0
      %v1811 = vadd.f32 0.0, %v1810
      %v1812 = vpop.f32.mrb[0].mxu0
      %1813 = vmatprep.mubr.bf16.mxu0 0
      %1814 = vmatmul.mubr.bf16.gmra.mrb[0].mxu0 %v1716
      %v1815 = vpop.f32.mrb[0].mxu0
      %v1816 = vadd.f32 0.0, %v1815
      %v1817 = vpop.f32.mrb[0].mxu0
      %v1818 = vpop.f32.mrb[0].mxu0
      %v1819 = vadd.f32 0.0, %v1818
      %v1820 = vpop.f32.mrb[0].mxu0
      %1821 = vmatprep.mubr.bf16.mxu0 0
      %1822 = vmatmul.mubr.bf16.gmra.mrb[0].mxu0 %v1719
      %v1823 = vpop.f32.mrb[0].mxu0
      %v1824 = vadd.f32 0.0, %v1823
      %v1825 = vpop.f32.mrb[0].mxu0
      %v1826 = vpop.f32.mrb[0].mxu0
      %v1827 = vadd.f32 0.0, %v1826
      %v1828 = vpop.f32.mrb[0].mxu0
      %1829 = vmatprep.mubr.bf16.mxu0 0
      %1830 = vmatmul.mubr.bf16.gmra.mrb[0].mxu0 %v1722
      %v1831 = vpop.f32.mrb[0].mxu0
      %v1832 = vadd.f32 0.0, %v1831
      %v1833 = vpop.f32.mrb[0].mxu0
      %v1834 = vpop.f32.mrb[0].mxu0
      %v1835 = vadd.f32 0.0, %v1834
      %v1836 = vpop.f32.mrb[0].mxu0
      %1837 = vmatprep.mubr.bf16.mxu0 0
      %1838 = vmatmul.mubr.bf16.gmra.mrb[0].mxu0 %v1725
      %v1839 = vpop.f32.mrb[0].mxu0
      %v1840 = vadd.f32 0.0, %v1839
      %v1841 = vpop.f32.mrb[0].mxu0
      %v1842 = vpop.f32.mrb[0].mxu0
      %v1843 = vadd.f32 0.0, %v1842
      %v1844 = vpop.f32.mrb[0].mxu0
      %1845 = vmatprep.mubr.bf16.mxu0 0
      %1846 = vmatmul.mubr.bf16.gmra.mrb[0].mxu0 %v1728
      %v1847 = vpop.f32.mrb[0].mxu0
      %v1848 = vadd.f32 0.0, %v1847
      %v1849 = vpop.f32.mrb[0].mxu0
      %v1850 = vpop.f32.mrb[0].mxu0
      %v1851 = vadd.f32 0.0, %v1850
      %v1852 = vpop.f32.mrb[0].mxu0
      %1853 = vmatprep.mubr.bf16.mxu0 0
      %1854 = vmatmul.mubr.bf16.gmra.mrb[0].mxu0 %v1731
      %v1855 = vpop.f32.mrb[0].mxu0
      %v1856 = vadd.f32 0.0, %v1855
      %v1857 = vpop.f32.mrb[0].mxu0
      %v1858 = vpop.f32.mrb[0].mxu0
      %v1859 = vadd.f32 0.0, %v1858
      %v1860 = vpop.f32.mrb[0].mxu0
      %1861 = vmatprep.mubr.bf16.mxu0 0
      %1862 = vmatmul.mubr.bf16.gmra.mrb[0].mxu0 %v1734
      %v1863 = vpop.f32.mrb[0].mxu0
      %v1864 = vadd.f32 0.0, %v1863
      %v1865 = vpop.f32.mrb[0].mxu0
      %v1866 = vpop.f32.mrb[0].mxu0
      %v1867 = vadd.f32 0.0, %v1866
      %v1868 = vpop.f32.mrb[0].mxu0
      %1869 = vmatprep.mubr.bf16.mxu0 0
      %1870 = vmatmul.mubr.bf16.gmra.mrb[0].mxu0 %v1737
      %v1871 = vpop.f32.mrb[0].mxu0
      %v1872 = vadd.f32 0.0, %v1871
      %v1873 = vpop.f32.mrb[0].mxu0
      %v1874 = vpop.f32.mrb[0].mxu0
      %v1875 = vadd.f32 0.0, %v1874
      %v1876 = vpop.f32.mrb[0].mxu0
      %1877 = vmatprep.mubr.bf16.mxu0 0
      %1878 = vmatmul.mubr.bf16.gmra.mrb[0].mxu0 %v1740
      %v1879 = vpop.f32.mrb[0].mxu0
      %v1880 = vadd.f32 0.0, %v1879
      %v1881 = vpop.f32.mrb[0].mxu0
      %v1882 = vpop.f32.mrb[0].mxu0
      %v1883 = vadd.f32 0.0, %v1882
      %v1884 = vpop.f32.mrb[0].mxu0
      %1885 = vmatprep.mubr.bf16.mxu0 0
      %1886 = vmatmul.mubr.bf16.gmra.mrb[0].mxu0 %v1743
      %v1887 = vpop.f32.mrb[0].mxu0
      %v1888 = vadd.f32 0.0, %v1887
      %v1889 = vpop.f32.mrb[0].mxu0
      %v1890 = vpop.f32.mrb[0].mxu0
      %v1891 = vadd.f32 0.0, %v1890
      %v1892 = vpop.f32.mrb[0].mxu0
      %1893 = vmatprep.mubr.bf16.mxu0 0
      %1894 = vmatmul.mubr.bf16.gmra.mrb[0].mxu0 %v1746
      %v1895 = vpop.f32.mrb[0].mxu0
      %v1896 = vadd.f32 0.0, %v1895
      %v1897 = vpop.f32.mrb[0].mxu0
      %v1898 = vpop.f32.mrb[0].mxu0
      %v1899 = vadd.f32 0.0, %v1898
      %v1900 = vpop.f32.mrb[0].mxu0
      %1901 = vmatprep.mubr.bf16.mxu0 0
      %1902 = vmatmul.mubr.bf16.gmra.mrb[0].mxu0 %v1749
      %v1903 = vpop.f32.mrb[0].mxu0
      %v1904 = vadd.f32 0.0, %v1903
      %v1905 = vpop.f32.mrb[0].mxu0
      %v1906 = vpop.f32.mrb[0].mxu0
      %v1907 = vadd.f32 0.0, %v1906
      %v1908 = vpop.f32.mrb[0].mxu0
      %1909 = vmatprep.mubr.bf16.mxu0 0
      %1910 = vmatmul.mubr.bf16.gmra.mrb[0].mxu0 %v1752
      %v1911 = vpop.f32.mrb[0].mxu0
      %v1912 = vadd.f32 0.0, %v1911
      %v1913 = vpop.f32.mrb[0].mxu0
      %v1914 = vpop.f32.mrb[0].mxu0
      %v1915 = vadd.f32 0.0, %v1914
      %v1916 = vpop.f32.mrb[0].mxu0
      %1917 = vdwg.mxu0
      %v1918 = vld [vmem:[#allocation3] sm:$0xff]
      %v1919 = vld [vmem:[#allocation3 + $0x8] sm:$0xff]
      %v1920 = vld [vmem:[#allocation3 + $0x10] sm:$0xff]
      %v1921 = vld [vmem:[#allocation3 + $0x18] sm:$0xff]
      %v1922 = vld [vmem:[#allocation3 + $0x20] sm:$0xff]
      %v1923 = vld [vmem:[#allocation3 + $0x28] sm:$0xff]
      %v1924 = vld [vmem:[#allocation3 + $0x30] sm:$0xff]
      %v1925 = vld [vmem:[#allocation3 + $0x38] sm:$0xff]
      %v1926 = vld [vmem:[#allocation3 + $0x40] sm:$0xff]
      %v1927 = vld [vmem:[#allocation3 + $0x48] sm:$0xff]
      %v1928 = vld [vmem:[#allocation3 + $0x50] sm:$0xff]
      %v1929 = vld [vmem:[#allocation3 + $0x58] sm:$0xff]
      %v1930 = vld [vmem:[#allocation3 + $0x60] sm:$0xff]
      %v1931 = vld [vmem:[#allocation3 + $0x68] sm:$0xff]
      %v1932 = vld [vmem:[#allocation3 + $0x70] sm:$0xff]
      %v1933 = vld [vmem:[#allocation3 + $0x78] sm:$0xff]
      %v1934 = vld [vmem:[#allocation3 + $0x80] sm:$0xff]
      %v1935 = vld [vmem:[#allocation3 + $0x88] sm:$0xff]
      %v1936 = vld [vmem:[#allocation3 + $0x90] sm:$0xff]
      %v1937 = vld [vmem:[#allocation3 + $0x98] sm:$0xff]
      %v1938 = vld [vmem:[#allocation3 + $0xa0] sm:$0xff]
      %v1939 = vld [vmem:[#allocation3 + $0xa8] sm:$0xff]
      %v1940 = vld [vmem:[#allocation3 + $0xb0] sm:$0xff]
      %v1941 = vld [vmem:[#allocation3 + $0xb8] sm:$0xff]
      %v1942 = vld [vmem:[#allocation3 + $0xc0] sm:$0xff]
      %v1943 = vld [vmem:[#allocation3 + $0xc8] sm:$0xff]
      %v1944 = vld [vmem:[#allocation3 + $0xd0] sm:$0xff]
      %v1945 = vld [vmem:[#allocation3 + $0xd8] sm:$0xff]
      %v1946 = vld [vmem:[#allocation3 + $0xe0] sm:$0xff]
      %v1947 = vld [vmem:[#allocation3 + $0xe8] sm:$0xff]
      %v1948 = vld [vmem:[#allocation3 + $0xf0] sm:$0xff]
      %v1949 = vld [vmem:[#allocation3 + $0xf8] sm:$0xff]
      %v1950 = vadd.f32 %v1918, %v1792
      %v1951 = vadd.f32 %v1919, %v1795
      %v1952 = vadd.f32 %v1920, %v1800
      %v1953 = vadd.f32 %v1921, %v1803
      %v1954 = vadd.f32 %v1922, %v1808
      %v1955 = vadd.f32 %v1923, %v1811
      %v1956 = vadd.f32 %v1924, %v1816
      %v1957 = vadd.f32 %v1925, %v1819
      %v1958 = vadd.f32 %v1926, %v1824
      %v1959 = vadd.f32 %v1927, %v1827
      %v1960 = vadd.f32 %v1928, %v1832
      %v1961 = vadd.f32 %v1929, %v1835
      %v1962 = vadd.f32 %v1930, %v1840
      %v1963 = vadd.f32 %v1931, %v1843
      %v1964 = vadd.f32 %v1932, %v1848
      %v1965 = vadd.f32 %v1933, %v1851
      %v1966 = vadd.f32 %v1934, %v1856
      %v1967 = vadd.f32 %v1935, %v1859
      %v1968 = vadd.f32 %v1936, %v1864
      %v1969 = vadd.f32 %v1937, %v1867
      %v1970 = vadd.f32 %v1938, %v1872
      %v1971 = vadd.f32 %v1939, %v1875
      %v1972 = vadd.f32 %v1940, %v1880
      %v1973 = vadd.f32 %v1941, %v1883
      %v1974 = vadd.f32 %v1942, %v1888
      %v1975 = vadd.f32 %v1943, %v1891
      %v1976 = vadd.f32 %v1944, %v1896
      %v1977 = vadd.f32 %v1945, %v1899
      %v1978 = vadd.f32 %v1946, %v1904
      %v1979 = vadd.f32 %v1947, %v1907
      %v1980 = vadd.f32 %v1948, %v1912
      %v1981 = vadd.f32 %v1949, %v1915
      %1982 = vst.msk [vmem:[#allocation3] sm:$0xff] %vm199, %v1950
      %1983 = vst.msk [vmem:[#allocation3 + $0x8] sm:$0xff] %vm199, %v1951
      %1984 = vst.msk [vmem:[#allocation3 + $0x10] sm:$0xff] %vm199, %v1952
      %1985 = vst.msk [vmem:[#allocation3 + $0x18] sm:$0xff] %vm199, %v1953
      %1986 = vst.msk [vmem:[#allocation3 + $0x20] sm:$0xff] %vm199, %v1954
      %1987 = vst.msk [vmem:[#allocation3 + $0x28] sm:$0xff] %vm199, %v1955
      %1988 = vst.msk [vmem:[#allocation3 + $0x30] sm:$0xff] %vm199, %v1956
      %1989 = vst.msk [vmem:[#allocation3 + $0x38] sm:$0xff] %vm199, %v1957
      %1990 = vst.msk [vmem:[#allocation3 + $0x40] sm:$0xff] %vm199, %v1958
      %1991 = vst.msk [vmem:[#allocation3 + $0x48] sm:$0xff] %vm199, %v1959
      %1992 = vst.msk [vmem:[#allocation3 + $0x50] sm:$0xff] %vm199, %v1960
      %1993 = vst.msk [vmem:[#allocation3 + $0x58] sm:$0xff] %vm199, %v1961
      %1994 = vst.msk [vmem:[#allocation3 + $0x60] sm:$0xff] %vm199, %v1962
      %1995 = vst.msk [vmem:[#allocation3 + $0x68] sm:$0xff] %vm199, %v1963
      %1996 = vst.msk [vmem:[#allocation3 + $0x70] sm:$0xff] %vm199, %v1964
      %1997 = vst.msk [vmem:[#allocation3 + $0x78] sm:$0xff] %vm199, %v1965
      %1998 = vst.msk [vmem:[#allocation3 + $0x80] sm:$0xff] %vm199, %v1966
      %1999 = vst.msk [vmem:[#allocation3 + $0x88] sm:$0xff] %vm199, %v1967
      %2000 = vst.msk [vmem:[#allocation3 + $0x90] sm:$0xff] %vm199, %v1968
      %2001 = vst.msk [vmem:[#allocation3 + $0x98] sm:$0xff] %vm199, %v1969
      %2002 = vst.msk [vmem:[#allocation3 + $0xa0] sm:$0xff] %vm199, %v1970
      %2003 = vst.msk [vmem:[#allocation3 + $0xa8] sm:$0xff] %vm199, %v1971
      %2004 = vst.msk [vmem:[#allocation3 + $0xb0] sm:$0xff] %vm199, %v1972
      %2005 = vst.msk [vmem:[#allocation3 + $0xb8] sm:$0xff] %vm199, %v1973
      %2006 = vst.msk [vmem:[#allocation3 + $0xc0] sm:$0xff] %vm199, %v1974
      %2007 = vst.msk [vmem:[#allocation3 + $0xc8] sm:$0xff] %vm199, %v1975
      %2008 = vst.msk [vmem:[#allocation3 + $0xd0] sm:$0xff] %vm199, %v1976
      %2009 = vst.msk [vmem:[#allocation3 + $0xd8] sm:$0xff] %vm199, %v1977
      %2010 = vst.msk [vmem:[#allocation3 + $0xe0] sm:$0xff] %vm199, %v1978
      %2011 = vst.msk [vmem:[#allocation3 + $0xe8] sm:$0xff] %vm199, %v1979
      %2012 = vst.msk [vmem:[#allocation3 + $0xf0] sm:$0xff] %vm199, %v1980
      %2013 = vst.msk [vmem:[#allocation3 + $0xf8] sm:$0xff] %vm199, %v1981
      %v2014 = vshrl.u32 %v1672, 16
      %v2016 = vshll.u32 %v1672, 16
      %v2018 = vrot.slane %v2016, 1
      %v2019 = vor.u32 %v2014, %v2018
      %v2021 = vshll.u32 %v1673, 16
      %v2023 = vrot.slane %v2021, 1
      %v2024 = vsel %vm746, %v2019, %v2023
      %v2025 = vshrl.u32 %v1674, 16
      %v2027 = vshll.u32 %v1674, 16
      %v2029 = vrot.slane %v2027, 1
      %v2030 = vor.u32 %v2025, %v2029
      %v2032 = vshll.u32 %v1675, 16
      %v2034 = vrot.slane %v2032, 1
      %v2035 = vsel %vm746, %v2030, %v2034
      %v2036 = vshrl.u32 %v1676, 16
      %v2038 = vshll.u32 %v1676, 16
      %v2040 = vrot.slane %v2038, 1
      %v2041 = vor.u32 %v2036, %v2040
      %v2043 = vshll.u32 %v1677, 16
      %v2045 = vrot.slane %v2043, 1
      %v2046 = vsel %vm746, %v2041, %v2045
      %v2047 = vshrl.u32 %v1678, 16
      %v2049 = vshll.u32 %v1678, 16
      %v2051 = vrot.slane %v2049, 1
      %v2052 = vor.u32 %v2047, %v2051
      %v2054 = vshll.u32 %v1679, 16
      %v2056 = vrot.slane %v2054, 1
      %v2057 = vsel %vm746, %v2052, %v2056
      %v2058 = vshrl.u32 %v1680, 16
      %v2060 = vshll.u32 %v1680, 16
      %v2062 = vrot.slane %v2060, 1
      %v2063 = vor.u32 %v2058, %v2062
      %v2065 = vshll.u32 %v1681, 16
      %v2067 = vrot.slane %v2065, 1
      %v2068 = vsel %vm746, %v2063, %v2067
      %v2069 = vshrl.u32 %v1682, 16
      %v2071 = vshll.u32 %v1682, 16
      %v2073 = vrot.slane %v2071, 1
      %v2074 = vor.u32 %v2069, %v2073
      %v2076 = vshll.u32 %v1683, 16
      %v2078 = vrot.slane %v2076, 1
      %v2079 = vsel %vm746, %v2074, %v2078
      %v2080 = vshrl.u32 %v1684, 16
      %v2082 = vshll.u32 %v1684, 16
      %v2084 = vrot.slane %v2082, 1
      %v2085 = vor.u32 %v2080, %v2084
      %v2087 = vshll.u32 %v1685, 16
      %v2089 = vrot.slane %v2087, 1
      %v2090 = vsel %vm746, %v2085, %v2089
      %v2091 = vshrl.u32 %v1686, 16
      %v2093 = vshll.u32 %v1686, 16
      %v2095 = vrot.slane %v2093, 1
      %v2096 = vor.u32 %v2091, %v2095
      %v2098 = vshll.u32 %v1687, 16
      %v2100 = vrot.slane %v2098, 1
      %v2101 = vsel %vm746, %v2096, %v2100
      %v2102 = vshrl.u32 %v1688, 16
      %v2104 = vshll.u32 %v1688, 16
      %v2106 = vrot.slane %v2104, 1
      %v2107 = vor.u32 %v2102, %v2106
      %v2109 = vshll.u32 %v1689, 16
      %v2111 = vrot.slane %v2109, 1
      %v2112 = vsel %vm746, %v2107, %v2111
      %v2113 = vshrl.u32 %v1690, 16
      %v2115 = vshll.u32 %v1690, 16
      %v2117 = vrot.slane %v2115, 1
      %v2118 = vor.u32 %v2113, %v2117
      %v2120 = vshll.u32 %v1691, 16
      %v2122 = vrot.slane %v2120, 1
      %v2123 = vsel %vm746, %v2118, %v2122
      %v2124 = vshrl.u32 %v1692, 16
      %v2126 = vshll.u32 %v1692, 16
      %v2128 = vrot.slane %v2126, 1
      %v2129 = vor.u32 %v2124, %v2128
      %v2131 = vshll.u32 %v1693, 16
      %v2133 = vrot.slane %v2131, 1
      %v2134 = vsel %vm746, %v2129, %v2133
      %v2135 = vshrl.u32 %v1694, 16
      %v2137 = vshll.u32 %v1694, 16
      %v2139 = vrot.slane %v2137, 1
      %v2140 = vor.u32 %v2135, %v2139
      %v2142 = vshll.u32 %v1695, 16
      %v2144 = vrot.slane %v2142, 1
      %v2145 = vsel %vm746, %v2140, %v2144
      %v2146 = vshrl.u32 %v1696, 16
      %v2148 = vshll.u32 %v1696, 16
      %v2150 = vrot.slane %v2148, 1
      %v2151 = vor.u32 %v2146, %v2150
      %v2153 = vshll.u32 %v1697, 16
      %v2155 = vrot.slane %v2153, 1
      %v2156 = vsel %vm746, %v2151, %v2155
      %v2157 = vshrl.u32 %v1698, 16
      %v2159 = vshll.u32 %v1698, 16
      %v2161 = vrot.slane %v2159, 1
      %v2162 = vor.u32 %v2157, %v2161
      %v2164 = vshll.u32 %v1699, 16
      %v2166 = vrot.slane %v2164, 1
      %v2167 = vsel %vm746, %v2162, %v2166
      %v2168 = vshrl.u32 %v1700, 16
      %v2170 = vshll.u32 %v1700, 16
      %v2172 = vrot.slane %v2170, 1
      %v2173 = vor.u32 %v2168, %v2172
      %v2175 = vshll.u32 %v1701, 16
      %v2177 = vrot.slane %v2175, 1
      %v2178 = vsel %vm746, %v2173, %v2177
      %v2179 = vshrl.u32 %v1702, 16
      %v2181 = vshll.u32 %v1702, 16
      %v2183 = vrot.slane %v2181, 1
      %v2184 = vor.u32 %v2179, %v2183
      %v2186 = vshll.u32 %v1703, 16
      %v2188 = vrot.slane %v2186, 1
      %v2189 = vsel %vm746, %v2184, %v2188
      %s2190 = scalar_lea.vmem %s3, 8
      %v2191 = vld [vmem:[%s2190] sm:$0x3]
      %v2193 = vsel %vm199, %v2024, 0
      %v2196 = vsel %vm199, %v2035, 0
      %v2199 = vsel %vm199, %v2046, 0
      %v2202 = vsel %vm199, %v2057, 0
      %v2205 = vsel %vm199, %v2068, 0
      %v2208 = vsel %vm199, %v2079, 0
      %v2211 = vsel %vm199, %v2090, 0
      %v2214 = vsel %vm199, %v2101, 0
      %v2217 = vsel %vm199, %v2112, 0
      %v2220 = vsel %vm199, %v2123, 0
      %v2223 = vsel %vm199, %v2134, 0
      %v2226 = vsel %vm199, %v2145, 0
      %v2229 = vsel %vm199, %v2156, 0
      %v2232 = vsel %vm199, %v2167, 0
      %v2235 = vsel %vm199, %v2178, 0
      %v2238 = vsel %vm199, %v2189, 0
      %v2241 = vsel %vm549, %v2191, 0
      %2243 = vmatprep.subr.bf16.mxu0 0
      %2244 = vmatpush1.bf16.msra.mxu0 %v2241
      %2245 = vmatprep.subr.bf16.mxu0 0
      %2246 = vmatpush1.bf16.msra.mxu0 0
      %2247 = vmatprep.subr.bf16.mxu0 0
      %2248 = vmatpush1.bf16.msra.mxu0 0
      %2249 = vmatprep.subr.bf16.mxu0 0
      %2250 = vmatpush1.bf16.msra.mxu0 0
      %2251 = vmatprep.subr.bf16.mxu0 0
      %2252 = vmatpush1.bf16.msra.mxu0 0
      %2253 = vmatprep.subr.bf16.mxu0 0
      %2254 = vmatpush1.bf16.msra.mxu0 0
      %2255 = vmatprep.subr.bf16.mxu0 0
      %2256 = vmatpush1.bf16.msra.mxu0 0
      %2257 = vmatprep.subr.bf16.mxu0 0
      %2258 = vmatpush1.bf16.msra.mxu0 0
      %2259 = vmatprep.subr.bf16.mxu0 0
      %2260 = vmatpush1.bf16.msra.mxu0 0
      %2261 = vmatprep.subr.bf16.mxu0 0
      %2262 = vmatpush1.bf16.msra.mxu0 0
      %2263 = vmatprep.subr.bf16.mxu0 0
      %2264 = vmatpush1.bf16.msra.mxu0 0
      %2265 = vmatprep.subr.bf16.mxu0 0
      %2266 = vmatpush1.bf16.msra.mxu0 0
      %2267 = vmatprep.subr.bf16.mxu0 0
      %2268 = vmatpush1.bf16.msra.mxu0 0
      %2269 = vmatprep.subr.bf16.mxu0 0
      %2270 = vmatpush1.bf16.msra.mxu0 0
      %2271 = vmatprep.subr.bf16.mxu0 0
      %2272 = vmatpush1.bf16.msra.mxu0 0
      %2273 = vmatprep.subr.bf16.mxu0 0
      %2274 = vmatpush1.bf16.msra.mxu0 0
      %2275 = vmatprep.mubr.bf16.mxu0 0
      %2276 = vmatmul.mubr.bf16.gmra.mrb[0].mxu0 %v2193
      %v2277 = vpop.f32.mrb[0].mxu0
      %v2278 = vadd.f32 0.0, %v2277
      %v2279 = vpop.f32.mrb[0].mxu0
      %v2280 = vpop.f32.mrb[0].mxu0
      %v2281 = vadd.f32 0.0, %v2280
      %v2282 = vpop.f32.mrb[0].mxu0
      %2283 = vmatprep.mubr.bf16.mxu0 0
      %2284 = vmatmul.mubr.bf16.gmra.mrb[0].mxu0 %v2196
      %v2285 = vpop.f32.mrb[0].mxu0
      %v2286 = vadd.f32 0.0, %v2285
      %v2287 = vpop.f32.mrb[0].mxu0
      %v2288 = vpop.f32.mrb[0].mxu0
      %v2289 = vadd.f32 0.0, %v2288
      %v2290 = vpop.f32.mrb[0].mxu0
      %2291 = vmatprep.mubr.bf16.mxu0 0
      %2292 = vmatmul.mubr.bf16.gmra.mrb[0].mxu0 %v2199
      %v2293 = vpop.f32.mrb[0].mxu0
      %v2294 = vadd.f32 0.0, %v2293
      %v2295 = vpop.f32.mrb[0].mxu0
      %v2296 = vpop.f32.mrb[0].mxu0
      %v2297 = vadd.f32 0.0, %v2296
      %v2298 = vpop.f32.mrb[0].mxu0
      %2299 = vmatprep.mubr.bf16.mxu0 0
      %2300 = vmatmul.mubr.bf16.gmra.mrb[0].mxu0 %v2202
      %v2301 = vpop.f32.mrb[0].mxu0
      %v2302 = vadd.f32 0.0, %v2301
      %v2303 = vpop.f32.mrb[0].mxu0
      %v2304 = vpop.f32.mrb[0].mxu0
      %v2305 = vadd.f32 0.0, %v2304
      %v2306 = vpop.f32.mrb[0].mxu0
      %2307 = vmatprep.mubr.bf16.mxu0 0
      %2308 = vmatmul.mubr.bf16.gmra.mrb[0].mxu0 %v2205
      %v2309 = vpop.f32.mrb[0].mxu0
      %v2310 = vadd.f32 0.0, %v2309
      %v2311 = vpop.f32.mrb[0].mxu0
      %v2312 = vpop.f32.mrb[0].mxu0
      %v2313 = vadd.f32 0.0, %v2312
      %v2314 = vpop.f32.mrb[0].mxu0
      %2315 = vmatprep.mubr.bf16.mxu0 0
      %2316 = vmatmul.mubr.bf16.gmra.mrb[0].mxu0 %v2208
      %v2317 = vpop.f32.mrb[0].mxu0
      %v2318 = vadd.f32 0.0, %v2317
      %v2319 = vpop.f32.mrb[0].mxu0
      %v2320 = vpop.f32.mrb[0].mxu0
      %v2321 = vadd.f32 0.0, %v2320
      %v2322 = vpop.f32.mrb[0].mxu0
      %2323 = vmatprep.mubr.bf16.mxu0 0
      %2324 = vmatmul.mubr.bf16.gmra.mrb[0].mxu0 %v2211
      %v2325 = vpop.f32.mrb[0].mxu0
      %v2326 = vadd.f32 0.0, %v2325
      %v2327 = vpop.f32.mrb[0].mxu0
      %v2328 = vpop.f32.mrb[0].mxu0
      %v2329 = vadd.f32 0.0, %v2328
      %v2330 = vpop.f32.mrb[0].mxu0
      %2331 = vmatprep.mubr.bf16.mxu0 0
      %2332 = vmatmul.mubr.bf16.gmra.mrb[0].mxu0 %v2214
      %v2333 = vpop.f32.mrb[0].mxu0
      %v2334 = vadd.f32 0.0, %v2333
      %v2335 = vpop.f32.mrb[0].mxu0
      %v2336 = vpop.f32.mrb[0].mxu0
      %v2337 = vadd.f32 0.0, %v2336
      %v2338 = vpop.f32.mrb[0].mxu0
      %2339 = vmatprep.mubr.bf16.mxu0 0
      %2340 = vmatmul.mubr.bf16.gmra.mrb[0].mxu0 %v2217
      %v2341 = vpop.f32.mrb[0].mxu0
      %v2342 = vadd.f32 0.0, %v2341
      %v2343 = vpop.f32.mrb[0].mxu0
      %v2344 = vpop.f32.mrb[0].mxu0
      %v2345 = vadd.f32 0.0, %v2344
      %v2346 = vpop.f32.mrb[0].mxu0
      %2347 = vmatprep.mubr.bf16.mxu0 0
      %2348 = vmatmul.mubr.bf16.gmra.mrb[0].mxu0 %v2220
      %v2349 = vpop.f32.mrb[0].mxu0
      %v2350 = vadd.f32 0.0, %v2349
      %v2351 = vpop.f32.mrb[0].mxu0
      %v2352 = vpop.f32.mrb[0].mxu0
      %v2353 = vadd.f32 0.0, %v2352
      %v2354 = vpop.f32.mrb[0].mxu0
      %2355 = vmatprep.mubr.bf16.mxu0 0
      %2356 = vmatmul.mubr.bf16.gmra.mrb[0].mxu0 %v2223
      %v2357 = vpop.f32.mrb[0].mxu0
      %v2358 = vadd.f32 0.0, %v2357
      %v2359 = vpop.f32.mrb[0].mxu0
      %v2360 = vpop.f32.mrb[0].mxu0
      %v2361 = vadd.f32 0.0, %v2360
      %v2362 = vpop.f32.mrb[0].mxu0
      %2363 = vmatprep.mubr.bf16.mxu0 0
      %2364 = vmatmul.mubr.bf16.gmra.mrb[0].mxu0 %v2226
      %v2365 = vpop.f32.mrb[0].mxu0
      %v2366 = vadd.f32 0.0, %v2365
      %v2367 = vpop.f32.mrb[0].mxu0
      %v2368 = vpop.f32.mrb[0].mxu0
      %v2369 = vadd.f32 0.0, %v2368
      %v2370 = vpop.f32.mrb[0].mxu0
      %2371 = vmatprep.mubr.bf16.mxu0 0
      %2372 = vmatmul.mubr.bf16.gmra.mrb[0].mxu0 %v2229
      %v2373 = vpop.f32.mrb[0].mxu0
      %v2374 = vadd.f32 0.0, %v2373
      %v2375 = vpop.f32.mrb[0].mxu0
      %v2376 = vpop.f32.mrb[0].mxu0
      %v2377 = vadd.f32 0.0, %v2376
      %v2378 = vpop.f32.mrb[0].mxu0
      %2379 = vmatprep.mubr.bf16.mxu0 0
      %2380 = vmatmul.mubr.bf16.gmra.mrb[0].mxu0 %v2232
      %v2381 = vpop.f32.mrb[0].mxu0
      %v2382 = vadd.f32 0.0, %v2381
      %v2383 = vpop.f32.mrb[0].mxu0
      %v2384 = vpop.f32.mrb[0].mxu0
      %v2385 = vadd.f32 0.0, %v2384
      %v2386 = vpop.f32.mrb[0].mxu0
      %2387 = vmatprep.mubr.bf16.mxu0 0
      %2388 = vmatmul.mubr.bf16.gmra.mrb[0].mxu0 %v2235
      %v2389 = vpop.f32.mrb[0].mxu0
      %v2390 = vadd.f32 0.0, %v2389
      %v2391 = vpop.f32.mrb[0].mxu0
      %v2392 = vpop.f32.mrb[0].mxu0
      %v2393 = vadd.f32 0.0, %v2392
      %v2394 = vpop.f32.mrb[0].mxu0
      %2395 = vmatprep.mubr.bf16.mxu0 0
      %2396 = vmatmul.mubr.bf16.gmra.mrb[0].mxu0 %v2238
      %v2397 = vpop.f32.mrb[0].mxu0
      %v2398 = vadd.f32 0.0, %v2397
      %v2399 = vpop.f32.mrb[0].mxu0
      %v2400 = vpop.f32.mrb[0].mxu0
      %v2401 = vadd.f32 0.0, %v2400
      %v2402 = vpop.f32.mrb[0].mxu0
      %2403 = vdwg.mxu0
      %v2404 = vld [vmem:[#allocation3] sm:$0xff]
      %v2405 = vld [vmem:[#allocation3 + $0x8] sm:$0xff]
      %v2406 = vld [vmem:[#allocation3 + $0x10] sm:$0xff]
      %v2407 = vld [vmem:[#allocation3 + $0x18] sm:$0xff]
      %v2408 = vld [vmem:[#allocation3 + $0x20] sm:$0xff]
      %v2409 = vld [vmem:[#allocation3 + $0x28] sm:$0xff]
      %v2410 = vld [vmem:[#allocation3 + $0x30] sm:$0xff]
      %v2411 = vld [vmem:[#allocation3 + $0x38] sm:$0xff]
      %v2412 = vld [vmem:[#allocation3 + $0x40] sm:$0xff]
      %v2413 = vld [vmem:[#allocation3 + $0x48] sm:$0xff]
      %v2414 = vld [vmem:[#allocation3 + $0x50] sm:$0xff]
      %v2415 = vld [vmem:[#allocation3 + $0x58] sm:$0xff]
      %v2416 = vld [vmem:[#allocation3 + $0x60] sm:$0xff]
      %v2417 = vld [vmem:[#allocation3 + $0x68] sm:$0xff]
      %v2418 = vld [vmem:[#allocation3 + $0x70] sm:$0xff]
      %v2419 = vld [vmem:[#allocation3 + $0x78] sm:$0xff]
      %v2420 = vld [vmem:[#allocation3 + $0x80] sm:$0xff]
      %v2421 = vld [vmem:[#allocation3 + $0x88] sm:$0xff]
      %v2422 = vld [vmem:[#allocation3 + $0x90] sm:$0xff]
      %v2423 = vld [vmem:[#allocation3 + $0x98] sm:$0xff]
      %v2424 = vld [vmem:[#allocation3 + $0xa0] sm:$0xff]
      %v2425 = vld [vmem:[#allocation3 + $0xa8] sm:$0xff]
      %v2426 = vld [vmem:[#allocation3 + $0xb0] sm:$0xff]
      %v2427 = vld [vmem:[#allocation3 + $0xb8] sm:$0xff]
      %v2428 = vld [vmem:[#allocation3 + $0xc0] sm:$0xff]
      %v2429 = vld [vmem:[#allocation3 + $0xc8] sm:$0xff]
      %v2430 = vld [vmem:[#allocation3 + $0xd0] sm:$0xff]
      %v2431 = vld [vmem:[#allocation3 + $0xd8] sm:$0xff]
      %v2432 = vld [vmem:[#allocation3 + $0xe0] sm:$0xff]
      %v2433 = vld [vmem:[#allocation3 + $0xe8] sm:$0xff]
      %v2434 = vld [vmem:[#allocation3 + $0xf0] sm:$0xff]
      %v2435 = vld [vmem:[#allocation3 + $0xf8] sm:$0xff]
      %v2436 = vadd.f32 %v2404, %v2278
      %v2437 = vadd.f32 %v2405, %v2281
      %v2438 = vadd.f32 %v2406, %v2286
      %v2439 = vadd.f32 %v2407, %v2289
      %v2440 = vadd.f32 %v2408, %v2294
      %v2441 = vadd.f32 %v2409, %v2297
      %v2442 = vadd.f32 %v2410, %v2302
      %v2443 = vadd.f32 %v2411, %v2305
      %v2444 = vadd.f32 %v2412, %v2310
      %v2445 = vadd.f32 %v2413, %v2313
      %v2446 = vadd.f32 %v2414, %v2318
      %v2447 = vadd.f32 %v2415, %v2321
      %v2448 = vadd.f32 %v2416, %v2326
      %v2449 = vadd.f32 %v2417, %v2329
      %v2450 = vadd.f32 %v2418, %v2334
      %v2451 = vadd.f32 %v2419, %v2337
      %v2452 = vadd.f32 %v2420, %v2342
      %v2453 = vadd.f32 %v2421, %v2345
      %v2454 = vadd.f32 %v2422, %v2350
      %v2455 = vadd.f32 %v2423, %v2353
      %v2456 = vadd.f32 %v2424, %v2358
      %v2457 = vadd.f32 %v2425, %v2361
      %v2458 = vadd.f32 %v2426, %v2366
      %v2459 = vadd.f32 %v2427, %v2369
      %v2460 = vadd.f32 %v2428, %v2374
      %v2461 = vadd.f32 %v2429, %v2377
      %v2462 = vadd.f32 %v2430, %v2382
      %v2463 = vadd.f32 %v2431, %v2385
      %v2464 = vadd.f32 %v2432, %v2390
      %v2465 = vadd.f32 %v2433, %v2393
      %v2466 = vadd.f32 %v2434, %v2398
      %v2467 = vadd.f32 %v2435, %v2401
      %2468 = vst.msk [vmem:[#allocation3] sm:$0xff] %vm199, %v2436
      %2469 = vst.msk [vmem:[#allocation3 + $0x8] sm:$0xff] %vm199, %v2437
      %2470 = vst.msk [vmem:[#allocation3 + $0x10] sm:$0xff] %vm199, %v2438
      %2471 = vst.msk [vmem:[#allocation3 + $0x18] sm:$0xff] %vm199, %v2439
      %2472 = vst.msk [vmem:[#allocation3 + $0x20] sm:$0xff] %vm199, %v2440
      %2473 = vst.msk [vmem:[#allocation3 + $0x28] sm:$0xff] %vm199, %v2441
      %2474 = vst.msk [vmem:[#allocation3 + $0x30] sm:$0xff] %vm199, %v2442
      %2475 = vst.msk [vmem:[#allocation3 + $0x38] sm:$0xff] %vm199, %v2443
      %2476 = vst.msk [vmem:[#allocation3 + $0x40] sm:$0xff] %vm199, %v2444
      %2477 = vst.msk [vmem:[#allocation3 + $0x48] sm:$0xff] %vm199, %v2445
      %2478 = vst.msk [vmem:[#allocation3 + $0x50] sm:$0xff] %vm199, %v2446
      %2479 = vst.msk [vmem:[#allocation3 + $0x58] sm:$0xff] %vm199, %v2447
      %2480 = vst.msk [vmem:[#allocation3 + $0x60] sm:$0xff] %vm199, %v2448
      %2481 = vst.msk [vmem:[#allocation3 + $0x68] sm:$0xff] %vm199, %v2449
      %2482 = vst.msk [vmem:[#allocation3 + $0x70] sm:$0xff] %vm199, %v2450
      %2483 = vst.msk [vmem:[#allocation3 + $0x78] sm:$0xff] %vm199, %v2451
      %2484 = vst.msk [vmem:[#allocation3 + $0x80] sm:$0xff] %vm199, %v2452
      %2485 = vst.msk [vmem:[#allocation3 + $0x88] sm:$0xff] %vm199, %v2453
      %2486 = vst.msk [vmem:[#allocation3 + $0x90] sm:$0xff] %vm199, %v2454
      %2487 = vst.msk [vmem:[#allocation3 + $0x98] sm:$0xff] %vm199, %v2455
      %2488 = vst.msk [vmem:[#allocation3 + $0xa0] sm:$0xff] %vm199, %v2456
      %2489 = vst.msk [vmem:[#allocation3 + $0xa8] sm:$0xff] %vm199, %v2457
      %2490 = vst.msk [vmem:[#allocation3 + $0xb0] sm:$0xff] %vm199, %v2458
      %2491 = vst.msk [vmem:[#allocation3 + $0xb8] sm:$0xff] %vm199, %v2459
      %2492 = vst.msk [vmem:[#allocation3 + $0xc0] sm:$0xff] %vm199, %v2460
      %2493 = vst.msk [vmem:[#allocation3 + $0xc8] sm:$0xff] %vm199, %v2461
      %2494 = vst.msk [vmem:[#allocation3 + $0xd0] sm:$0xff] %vm199, %v2462
      %2495 = vst.msk [vmem:[#allocation3 + $0xd8] sm:$0xff] %vm199, %v2463
      %2496 = vst.msk [vmem:[#allocation3 + $0xe0] sm:$0xff] %vm199, %v2464
      %2497 = vst.msk [vmem:[#allocation3 + $0xe8] sm:$0xff] %vm199, %v2465
      %2498 = vst.msk [vmem:[#allocation3 + $0xf0] sm:$0xff] %vm199, %v2466
      %2499 = vst.msk [vmem:[#allocation3 + $0xf8] sm:$0xff] %vm199, %v2467
      %v2532 = vrot.slane %v1672, 1
      %v2533 = vrot.slane %v1673, 1
      %v2534 = vsel %vm1265, %v2532, %v2533
      %v2535 = vrot.slane %v1674, 1
      %v2536 = vrot.slane %v1675, 1
      %v2537 = vsel %vm1265, %v2535, %v2536
      %v2538 = vrot.slane %v1676, 1
      %v2539 = vrot.slane %v1677, 1
      %v2540 = vsel %vm1265, %v2538, %v2539
      %v2541 = vrot.slane %v1678, 1
      %v2542 = vrot.slane %v1679, 1
      %v2543 = vsel %vm1265, %v2541, %v2542
      %v2544 = vrot.slane %v1680, 1
      %v2545 = vrot.slane %v1681, 1
      %v2546 = vsel %vm1265, %v2544, %v2545
      %v2547 = vrot.slane %v1682, 1
      %v2548 = vrot.slane %v1683, 1
      %v2549 = vsel %vm1265, %v2547, %v2548
      %v2550 = vrot.slane %v1684, 1
      %v2551 = vrot.slane %v1685, 1
      %v2552 = vsel %vm1265, %v2550, %v2551
      %v2553 = vrot.slane %v1686, 1
      %v2554 = vrot.slane %v1687, 1
      %v2555 = vsel %vm1265, %v2553, %v2554
      %v2556 = vrot.slane %v1688, 1
      %v2557 = vrot.slane %v1689, 1
      %v2558 = vsel %vm1265, %v2556, %v2557
      %v2559 = vrot.slane %v1690, 1
      %v2560 = vrot.slane %v1691, 1
      %v2561 = vsel %vm1265, %v2559, %v2560
      %v2562 = vrot.slane %v1692, 1
      %v2563 = vrot.slane %v1693, 1
      %v2564 = vsel %vm1265, %v2562, %v2563
      %v2565 = vrot.slane %v1694, 1
      %v2566 = vrot.slane %v1695, 1
      %v2567 = vsel %vm1265, %v2565, %v2566
      %v2568 = vrot.slane %v1696, 1
      %v2569 = vrot.slane %v1697, 1
      %v2570 = vsel %vm1265, %v2568, %v2569
      %v2571 = vrot.slane %v1698, 1
      %v2572 = vrot.slane %v1699, 1
      %v2573 = vsel %vm1265, %v2571, %v2572
      %v2574 = vrot.slane %v1700, 1
      %v2575 = vrot.slane %v1701, 1
      %v2576 = vsel %vm1265, %v2574, %v2575
      %v2577 = vrot.slane %v1702, 1
      %v2578 = vrot.slane %v1703, 1
      %v2579 = vsel %vm1265, %v2577, %v2578
      %s2580 = scalar_lea.vmem %s3, 10
      %v2581 = vld [vmem:[%s2580] sm:$0x3]
      %v2583 = vsel %vm199, %v2534, 0
      %v2586 = vsel %vm199, %v2537, 0
      %v2589 = vsel %vm199, %v2540, 0
      %v2592 = vsel %vm199, %v2543, 0
      %v2595 = vsel %vm199, %v2546, 0
      %v2598 = vsel %vm199, %v2549, 0
      %v2601 = vsel %vm199, %v2552, 0
      %v2604 = vsel %vm199, %v2555, 0
      %v2607 = vsel %vm199, %v2558, 0
      %v2610 = vsel %vm199, %v2561, 0
      %v2613 = vsel %vm199, %v2564, 0
      %v2616 = vsel %vm199, %v2567, 0
      %v2619 = vsel %vm199, %v2570, 0
      %v2622 = vsel %vm199, %v2573, 0
      %v2625 = vsel %vm199, %v2576, 0
      %v2628 = vsel %vm199, %v2579, 0
      %v2631 = vsel %vm549, %v2581, 0
      %2633 = vmatprep.subr.bf16.mxu0 0
      %2634 = vmatpush1.bf16.msra.mxu0 %v2631
      %2635 = vmatprep.subr.bf16.mxu0 0
      %2636 = vmatpush1.bf16.msra.mxu0 0
      %2637 = vmatprep.subr.bf16.mxu0 0
      %2638 = vmatpush1.bf16.msra.mxu0 0
      %2639 = vmatprep.subr.bf16.mxu0 0
      %2640 = vmatpush1.bf16.msra.mxu0 0
      %2641 = vmatprep.subr.bf16.mxu0 0
      %2642 = vmatpush1.bf16.msra.mxu0 0
      %2643 = vmatprep.subr.bf16.mxu0 0
      %2644 = vmatpush1.bf16.msra.mxu0 0
      %2645 = vmatprep.subr.bf16.mxu0 0
      %2646 = vmatpush1.bf16.msra.mxu0 0
      %2647 = vmatprep.subr.bf16.mxu0 0
      %2648 = vmatpush1.bf16.msra.mxu0 0
      %2649 = vmatprep.subr.bf16.mxu0 0
      %2650 = vmatpush1.bf16.msra.mxu0 0
      %2651 = vmatprep.subr.bf16.mxu0 0
      %2652 = vmatpush1.bf16.msra.mxu0 0
      %2653 = vmatprep.subr.bf16.mxu0 0
      %2654 = vmatpush1.bf16.msra.mxu0 0
      %2655 = vmatprep.subr.bf16.mxu0 0
      %2656 = vmatpush1.bf16.msra.mxu0 0
      %2657 = vmatprep.subr.bf16.mxu0 0
      %2658 = vmatpush1.bf16.msra.mxu0 0
      %2659 = vmatprep.subr.bf16.mxu0 0
      %2660 = vmatpush1.bf16.msra.mxu0 0
      %2661 = vmatprep.subr.bf16.mxu0 0
      %2662 = vmatpush1.bf16.msra.mxu0 0
      %2663 = vmatprep.subr.bf16.mxu0 0
      %2664 = vmatpush1.bf16.msra.mxu0 0
      %2665 = vmatprep.mubr.bf16.mxu0 0
      %2666 = vmatmul.mubr.bf16.gmra.mrb[0].mxu0 %v2583
      %v2667 = vpop.f32.mrb[0].mxu0
      %v2668 = vadd.f32 0.0, %v2667
      %v2669 = vpop.f32.mrb[0].mxu0
      %v2670 = vpop.f32.mrb[0].mxu0
      %v2671 = vadd.f32 0.0, %v2670
      %v2672 = vpop.f32.mrb[0].mxu0
      %2673 = vmatprep.mubr.bf16.mxu0 0
      %2674 = vmatmul.mubr.bf16.gmra.mrb[0].mxu0 %v2586
      %v2675 = vpop.f32.mrb[0].mxu0
      %v2676 = vadd.f32 0.0, %v2675
      %v2677 = vpop.f32.mrb[0].mxu0
      %v2678 = vpop.f32.mrb[0].mxu0
      %v2679 = vadd.f32 0.0, %v2678
      %v2680 = vpop.f32.mrb[0].mxu0
      %2681 = vmatprep.mubr.bf16.mxu0 0
      %2682 = vmatmul.mubr.bf16.gmra.mrb[0].mxu0 %v2589
      %v2683 = vpop.f32.mrb[0].mxu0
      %v2684 = vadd.f32 0.0, %v2683
      %v2685 = vpop.f32.mrb[0].mxu0
      %v2686 = vpop.f32.mrb[0].mxu0
      %v2687 = vadd.f32 0.0, %v2686
      %v2688 = vpop.f32.mrb[0].mxu0
      %2689 = vmatprep.mubr.bf16.mxu0 0
      %2690 = vmatmul.mubr.bf16.gmra.mrb[0].mxu0 %v2592
      %v2691 = vpop.f32.mrb[0].mxu0
      %v2692 = vadd.f32 0.0, %v2691
      %v2693 = vpop.f32.mrb[0].mxu0
      %v2694 = vpop.f32.mrb[0].mxu0
      %v2695 = vadd.f32 0.0, %v2694
      %v2696 = vpop.f32.mrb[0].mxu0
      %2697 = vmatprep.mubr.bf16.mxu0 0
      %2698 = vmatmul.mubr.bf16.gmra.mrb[0].mxu0 %v2595
      %v2699 = vpop.f32.mrb[0].mxu0
      %v2700 = vadd.f32 0.0, %v2699
      %v2701 = vpop.f32.mrb[0].mxu0
      %v2702 = vpop.f32.mrb[0].mxu0
      %v2703 = vadd.f32 0.0, %v2702
      %v2704 = vpop.f32.mrb[0].mxu0
      %2705 = vmatprep.mubr.bf16.mxu0 0
      %2706 = vmatmul.mubr.bf16.gmra.mrb[0].mxu0 %v2598
      %v2707 = vpop.f32.mrb[0].mxu0
      %v2708 = vadd.f32 0.0, %v2707
      %v2709 = vpop.f32.mrb[0].mxu0
      %v2710 = vpop.f32.mrb[0].mxu0
      %v2711 = vadd.f32 0.0, %v2710
      %v2712 = vpop.f32.mrb[0].mxu0
      %2713 = vmatprep.mubr.bf16.mxu0 0
      %2714 = vmatmul.mubr.bf16.gmra.mrb[0].mxu0 %v2601
      %v2715 = vpop.f32.mrb[0].mxu0
      %v2716 = vadd.f32 0.0, %v2715
      %v2717 = vpop.f32.mrb[0].mxu0
      %v2718 = vpop.f32.mrb[0].mxu0
      %v2719 = vadd.f32 0.0, %v2718
      %v2720 = vpop.f32.mrb[0].mxu0
      %2721 = vmatprep.mubr.bf16.mxu0 0
      %2722 = vmatmul.mubr.bf16.gmra.mrb[0].mxu0 %v2604
      %v2723 = vpop.f32.mrb[0].mxu0
      %v2724 = vadd.f32 0.0, %v2723
      %v2725 = vpop.f32.mrb[0].mxu0
      %v2726 = vpop.f32.mrb[0].mxu0
      %v2727 = vadd.f32 0.0, %v2726
      %v2728 = vpop.f32.mrb[0].mxu0
      %2729 = vmatprep.mubr.bf16.mxu0 0
      %2730 = vmatmul.mubr.bf16.gmra.mrb[0].mxu0 %v2607
      %v2731 = vpop.f32.mrb[0].mxu0
      %v2732 = vadd.f32 0.0, %v2731
      %v2733 = vpop.f32.mrb[0].mxu0
      %v2734 = vpop.f32.mrb[0].mxu0
      %v2735 = vadd.f32 0.0, %v2734
      %v2736 = vpop.f32.mrb[0].mxu0
      %2737 = vmatprep.mubr.bf16.mxu0 0
      %2738 = vmatmul.mubr.bf16.gmra.mrb[0].mxu0 %v2610
      %v2739 = vpop.f32.mrb[0].mxu0
      %v2740 = vadd.f32 0.0, %v2739
      %v2741 = vpop.f32.mrb[0].mxu0
      %v2742 = vpop.f32.mrb[0].mxu0
      %v2743 = vadd.f32 0.0, %v2742
      %v2744 = vpop.f32.mrb[0].mxu0
      %2745 = vmatprep.mubr.bf16.mxu0 0
      %2746 = vmatmul.mubr.bf16.gmra.mrb[0].mxu0 %v2613
      %v2747 = vpop.f32.mrb[0].mxu0
      %v2748 = vadd.f32 0.0, %v2747
      %v2749 = vpop.f32.mrb[0].mxu0
      %v2750 = vpop.f32.mrb[0].mxu0
      %v2751 = vadd.f32 0.0, %v2750
      %v2752 = vpop.f32.mrb[0].mxu0
      %2753 = vmatprep.mubr.bf16.mxu0 0
      %2754 = vmatmul.mubr.bf16.gmra.mrb[0].mxu0 %v2616
      %v2755 = vpop.f32.mrb[0].mxu0
      %v2756 = vadd.f32 0.0, %v2755
      %v2757 = vpop.f32.mrb[0].mxu0
      %v2758 = vpop.f32.mrb[0].mxu0
      %v2759 = vadd.f32 0.0, %v2758
      %v2760 = vpop.f32.mrb[0].mxu0
      %2761 = vmatprep.mubr.bf16.mxu0 0
      %2762 = vmatmul.mubr.bf16.gmra.mrb[0].mxu0 %v2619
      %v2763 = vpop.f32.mrb[0].mxu0
      %v2764 = vadd.f32 0.0, %v2763
      %v2765 = vpop.f32.mrb[0].mxu0
      %v2766 = vpop.f32.mrb[0].mxu0
      %v2767 = vadd.f32 0.0, %v2766
      %v2768 = vpop.f32.mrb[0].mxu0
      %2769 = vmatprep.mubr.bf16.mxu0 0
      %2770 = vmatmul.mubr.bf16.gmra.mrb[0].mxu0 %v2622
      %v2771 = vpop.f32.mrb[0].mxu0
      %v2772 = vadd.f32 0.0, %v2771
      %v2773 = vpop.f32.mrb[0].mxu0
      %v2774 = vpop.f32.mrb[0].mxu0
      %v2775 = vadd.f32 0.0, %v2774
      %v2776 = vpop.f32.mrb[0].mxu0
      %2777 = vmatprep.mubr.bf16.mxu0 0
      %2778 = vmatmul.mubr.bf16.gmra.mrb[0].mxu0 %v2625
      %v2779 = vpop.f32.mrb[0].mxu0
      %v2780 = vadd.f32 0.0, %v2779
      %v2781 = vpop.f32.mrb[0].mxu0
      %v2782 = vpop.f32.mrb[0].mxu0
      %v2783 = vadd.f32 0.0, %v2782
      %v2784 = vpop.f32.mrb[0].mxu0
      %2785 = vmatprep.mubr.bf16.mxu0 0
      %2786 = vmatmul.mubr.bf16.gmra.mrb[0].mxu0 %v2628
      %v2787 = vpop.f32.mrb[0].mxu0
      %v2788 = vadd.f32 0.0, %v2787
      %v2789 = vpop.f32.mrb[0].mxu0
      %v2790 = vpop.f32.mrb[0].mxu0
      %v2791 = vadd.f32 0.0, %v2790
      %v2792 = vpop.f32.mrb[0].mxu0
      %2793 = vdwg.mxu0
      %v2794 = vld [vmem:[#allocation3] sm:$0xff]
      %v2795 = vld [vmem:[#allocation3 + $0x8] sm:$0xff]
      %v2796 = vld [vmem:[#allocation3 + $0x10] sm:$0xff]
      %v2797 = vld [vmem:[#allocation3 + $0x18] sm:$0xff]
      %v2798 = vld [vmem:[#allocation3 + $0x20] sm:$0xff]
      %v2799 = vld [vmem:[#allocation3 + $0x28] sm:$0xff]
      %v2800 = vld [vmem:[#allocation3 + $0x30] sm:$0xff]
      %v2801 = vld [vmem:[#allocation3 + $0x38] sm:$0xff]
      %v2802 = vld [vmem:[#allocation3 + $0x40] sm:$0xff]
      %v2803 = vld [vmem:[#allocation3 + $0x48] sm:$0xff]
      %v2804 = vld [vmem:[#allocation3 + $0x50] sm:$0xff]
      %v2805 = vld [vmem:[#allocation3 + $0x58] sm:$0xff]
      %v2806 = vld [vmem:[#allocation3 + $0x60] sm:$0xff]
      %v2807 = vld [vmem:[#allocation3 + $0x68] sm:$0xff]
      %v2808 = vld [vmem:[#allocation3 + $0x70] sm:$0xff]
      %v2809 = vld [vmem:[#allocation3 + $0x78] sm:$0xff]
      %v2810 = vld [vmem:[#allocation3 + $0x80] sm:$0xff]
      %v2811 = vld [vmem:[#allocation3 + $0x88] sm:$0xff]
      %v2812 = vld [vmem:[#allocation3 + $0x90] sm:$0xff]
      %v2813 = vld [vmem:[#allocation3 + $0x98] sm:$0xff]
      %v2814 = vld [vmem:[#allocation3 + $0xa0] sm:$0xff]
      %v2815 = vld [vmem:[#allocation3 + $0xa8] sm:$0xff]
      %v2816 = vld [vmem:[#allocation3 + $0xb0] sm:$0xff]
      %v2817 = vld [vmem:[#allocation3 + $0xb8] sm:$0xff]
      %v2818 = vld [vmem:[#allocation3 + $0xc0] sm:$0xff]
      %v2819 = vld [vmem:[#allocation3 + $0xc8] sm:$0xff]
      %v2820 = vld [vmem:[#allocation3 + $0xd0] sm:$0xff]
      %v2821 = vld [vmem:[#allocation3 + $0xd8] sm:$0xff]
      %v2822 = vld [vmem:[#allocation3 + $0xe0] sm:$0xff]
      %v2823 = vld [vmem:[#allocation3 + $0xe8] sm:$0xff]
      %v2824 = vld [vmem:[#allocation3 + $0xf0] sm:$0xff]
      %v2825 = vld [vmem:[#allocation3 + $0xf8] sm:$0xff]
      %v2826 = vadd.f32 %v2794, %v2668
      %v2827 = vadd.f32 %v2795, %v2671
      %v2828 = vadd.f32 %v2796, %v2676
      %v2829 = vadd.f32 %v2797, %v2679
      %v2830 = vadd.f32 %v2798, %v2684
      %v2831 = vadd.f32 %v2799, %v2687
      %v2832 = vadd.f32 %v2800, %v2692
      %v2833 = vadd.f32 %v2801, %v2695
      %v2834 = vadd.f32 %v2802, %v2700
      %v2835 = vadd.f32 %v2803, %v2703
      %v2836 = vadd.f32 %v2804, %v2708
      %v2837 = vadd.f32 %v2805, %v2711
      %v2838 = vadd.f32 %v2806, %v2716
      %v2839 = vadd.f32 %v2807, %v2719
      %v2840 = vadd.f32 %v2808, %v2724
      %v2841 = vadd.f32 %v2809, %v2727
      %v2842 = vadd.f32 %v2810, %v2732
      %v2843 = vadd.f32 %v2811, %v2735
      %v2844 = vadd.f32 %v2812, %v2740
      %v2845 = vadd.f32 %v2813, %v2743
      %v2846 = vadd.f32 %v2814, %v2748
      %v2847 = vadd.f32 %v2815, %v2751
      %v2848 = vadd.f32 %v2816, %v2756
      %v2849 = vadd.f32 %v2817, %v2759
      %v2850 = vadd.f32 %v2818, %v2764
      %v2851 = vadd.f32 %v2819, %v2767
      %v2852 = vadd.f32 %v2820, %v2772
      %v2853 = vadd.f32 %v2821, %v2775
      %v2854 = vadd.f32 %v2822, %v2780
      %v2855 = vadd.f32 %v2823, %v2783
      %v2856 = vadd.f32 %v2824, %v2788
      %v2857 = vadd.f32 %v2825, %v2791
      %2858 = vst.msk [vmem:[#allocation3] sm:$0xff] %vm199, %v2826
      %2859 = vst.msk [vmem:[#allocation3 + $0x8] sm:$0xff] %vm199, %v2827
      %2860 = vst.msk [vmem:[#allocation3 + $0x10] sm:$0xff] %vm199, %v2828
      %2861 = vst.msk [vmem:[#allocation3 + $0x18] sm:$0xff] %vm199, %v2829
      %2862 = vst.msk [vmem:[#allocation3 + $0x20] sm:$0xff] %vm199, %v2830
      %2863 = vst.msk [vmem:[#allocation3 + $0x28] sm:$0xff] %vm199, %v2831
      %2864 = vst.msk [vmem:[#allocation3 + $0x30] sm:$0xff] %vm199, %v2832
      %2865 = vst.msk [vmem:[#allocation3 + $0x38] sm:$0xff] %vm199, %v2833
      %2866 = vst.msk [vmem:[#allocation3 + $0x40] sm:$0xff] %vm199, %v2834
      %2867 = vst.msk [vmem:[#allocation3 + $0x48] sm:$0xff] %vm199, %v2835
      %2868 = vst.msk [vmem:[#allocation3 + $0x50] sm:$0xff] %vm199, %v2836
      %2869 = vst.msk [vmem:[#allocation3 + $0x58] sm:$0xff] %vm199, %v2837
      %2870 = vst.msk [vmem:[#allocation3 + $0x60] sm:$0xff] %vm199, %v2838
      %2871 = vst.msk [vmem:[#allocation3 + $0x68] sm:$0xff] %vm199, %v2839
      %2872 = vst.msk [vmem:[#allocation3 + $0x70] sm:$0xff] %vm199, %v2840
      %2873 = vst.msk [vmem:[#allocation3 + $0x78] sm:$0xff] %vm199, %v2841
      %2874 = vst.msk [vmem:[#allocation3 + $0x80] sm:$0xff] %vm199, %v2842
      %2875 = vst.msk [vmem:[#allocation3 + $0x88] sm:$0xff] %vm199, %v2843
      %2876 = vst.msk [vmem:[#allocation3 + $0x90] sm:$0xff] %vm199, %v2844
      %2877 = vst.msk [vmem:[#allocation3 + $0x98] sm:$0xff] %vm199, %v2845
      %2878 = vst.msk [vmem:[#allocation3 + $0xa0] sm:$0xff] %vm199, %v2846
      %2879 = vst.msk [vmem:[#allocation3 + $0xa8] sm:$0xff] %vm199, %v2847
      %2880 = vst.msk [vmem:[#allocation3 + $0xb0] sm:$0xff] %vm199, %v2848
      %2881 = vst.msk [vmem:[#allocation3 + $0xb8] sm:$0xff] %vm199, %v2849
      %2882 = vst.msk [vmem:[#allocation3 + $0xc0] sm:$0xff] %vm199, %v2850
      %2883 = vst.msk [vmem:[#allocation3 + $0xc8] sm:$0xff] %vm199, %v2851
      %2884 = vst.msk [vmem:[#allocation3 + $0xd0] sm:$0xff] %vm199, %v2852
      %2885 = vst.msk [vmem:[#allocation3 + $0xd8] sm:$0xff] %vm199, %v2853
      %2886 = vst.msk [vmem:[#allocation3 + $0xe0] sm:$0xff] %vm199, %v2854
      %2887 = vst.msk [vmem:[#allocation3 + $0xe8] sm:$0xff] %vm199, %v2855
      %2888 = vst.msk [vmem:[#allocation3 + $0xf0] sm:$0xff] %vm199, %v2856
      %2889 = vst.msk [vmem:[#allocation3 + $0xf8] sm:$0xff] %vm199, %v2857
      %s2890 = scalar_lea.vmem [#allocation2], 48
      %v2891 = vld [vmem:[%s2890] sm:$0xff]
      %v2892 = vld [vmem:[%s2890 + $0x8] sm:$0xff]
      %v2893 = vld [vmem:[%s2890 + $0x10] sm:$0x3]
      %v2894 = vld [vmem:[%s2890 + $0x18] sm:$0xff]
      %v2895 = vld [vmem:[%s2890 + $0x20] sm:$0xff]
      %v2896 = vld [vmem:[%s2890 + $0x28] sm:$0x3]
      %v2897 = vld [vmem:[%s2890 + $0x30] sm:$0xff]
      %v2898 = vld [vmem:[%s2890 + $0x38] sm:$0xff]
      %v2899 = vld [vmem:[%s2890 + $0x40] sm:$0x3]
      %v2900 = vld [vmem:[%s2890 + $0x48] sm:$0xff]
      %v2901 = vld [vmem:[%s2890 + $0x50] sm:$0xff]
      %v2902 = vld [vmem:[%s2890 + $0x58] sm:$0x3]
      %v2903 = vld [vmem:[%s2890 + $0x60] sm:$0xff]
      %v2904 = vld [vmem:[%s2890 + $0x68] sm:$0xff]
      %v2905 = vld [vmem:[%s2890 + $0x70] sm:$0x3]
      %v2906 = vld [vmem:[%s2890 + $0x78] sm:$0xff]
      %v2907 = vld [vmem:[%s2890 + $0x80] sm:$0xff]
      %v2908 = vld [vmem:[%s2890 + $0x88] sm:$0x3]
      %v2909 = vld [vmem:[%s2890 + $0x90] sm:$0xff]
      %v2910 = vld [vmem:[%s2890 + $0x98] sm:$0xff]
      %v2911 = vld [vmem:[%s2890 + $0xa0] sm:$0x3]
      %v2912 = vld [vmem:[%s2890 + $0xa8] sm:$0xff]
      %v2913 = vld [vmem:[%s2890 + $0xb0] sm:$0xff]
      %v2914 = vld [vmem:[%s2890 + $0xb8] sm:$0x3]
      %v2915 = vld [vmem:[%s2890 + $0xc0] sm:$0xff]
      %v2916 = vld [vmem:[%s2890 + $0xc8] sm:$0xff]
      %v2917 = vld [vmem:[%s2890 + $0xd0] sm:$0x3]
      %v2918 = vld [vmem:[%s2890 + $0xd8] sm:$0xff]
      %v2919 = vld [vmem:[%s2890 + $0xe0] sm:$0xff]
      %v2920 = vld [vmem:[%s2890 + $0xe8] sm:$0x3]
      %v2921 = vld [vmem:[%s2890 + $0xf0] sm:$0xff]
      %v2922 = vld [vmem:[%s2890 + $0xf8] sm:$0xff]
      %v2923 = vld [vmem:[%s2890 + $0x100] sm:$0x3]
      %v2924 = vld [vmem:[%s2890 + $0x108] sm:$0xff]
      %v2925 = vld [vmem:[%s2890 + $0x110] sm:$0xff]
      %v2926 = vld [vmem:[%s2890 + $0x118] sm:$0x3]
      %v2927 = vld [vmem:[%s2890 + $0x120] sm:$0xff]
      %v2928 = vld [vmem:[%s2890 + $0x128] sm:$0xff]
      %v2929 = vld [vmem:[%s2890 + $0x130] sm:$0x3]
      %v2930 = vld [vmem:[%s2890 + $0x138] sm:$0xff]
      %v2931 = vld [vmem:[%s2890 + $0x140] sm:$0xff]
      %v2932 = vld [vmem:[%s2890 + $0x148] sm:$0x3]
      %v2933 = vld [vmem:[%s2890 + $0x150] sm:$0xff]
      %v2934 = vld [vmem:[%s2890 + $0x158] sm:$0xff]
      %v2935 = vld [vmem:[%s2890 + $0x160] sm:$0x3]
      %v2936 = vld [vmem:[%s2890 + $0x168] sm:$0xff]
      %v2937 = vld [vmem:[%s2890 + $0x170] sm:$0xff]
      %v2938 = vld [vmem:[%s2890 + $0x178] sm:$0x3]
      %v2939 = vpack.c.bf16 %v2892, %v2891
      %v2940 = vpack.c.bf16 %v2893, %v2893
      %v2941 = vpack.c.bf16 %v2895, %v2894
      %v2942 = vpack.c.bf16 %v2896, %v2896
      %v2943 = vpack.c.bf16 %v2898, %v2897
      %v2944 = vpack.c.bf16 %v2899, %v2899
      %v2945 = vpack.c.bf16 %v2901, %v2900
      %v2946 = vpack.c.bf16 %v2902, %v2902
      %v2947 = vpack.c.bf16 %v2904, %v2903
      %v2948 = vpack.c.bf16 %v2905, %v2905
      %v2949 = vpack.c.bf16 %v2907, %v2906
      %v2950 = vpack.c.bf16 %v2908, %v2908
      %v2951 = vpack.c.bf16 %v2910, %v2909
      %v2952 = vpack.c.bf16 %v2911, %v2911
      %v2953 = vpack.c.bf16 %v2913, %v2912
      %v2954 = vpack.c.bf16 %v2914, %v2914
      %v2955 = vpack.c.bf16 %v2916, %v2915
      %v2956 = vpack.c.bf16 %v2917, %v2917
      %v2957 = vpack.c.bf16 %v2919, %v2918
      %v2958 = vpack.c.bf16 %v2920, %v2920
      %v2959 = vpack.c.bf16 %v2922, %v2921
      %v2960 = vpack.c.bf16 %v2923, %v2923
      %v2961 = vpack.c.bf16 %v2925, %v2924
      %v2962 = vpack.c.bf16 %v2926, %v2926
      %v2963 = vpack.c.bf16 %v2928, %v2927
      %v2964 = vpack.c.bf16 %v2929, %v2929
      %v2965 = vpack.c.bf16 %v2931, %v2930
      %v2966 = vpack.c.bf16 %v2932, %v2932
      %v2967 = vpack.c.bf16 %v2934, %v2933
      %v2968 = vpack.c.bf16 %v2935, %v2935
      %v2969 = vpack.c.bf16 %v2937, %v2936
      %v2970 = vpack.c.bf16 %v2938, %v2938
      %s2971 = scalar_lea.vmem %s3, 12
      %v2972 = vld [vmem:[%s2971] sm:$0x3]
      %v2974 = vsel %vm199, %v2939, 0
      %v2977 = vsel %vm199, %v2941, 0
      %v2980 = vsel %vm199, %v2943, 0
      %v2983 = vsel %vm199, %v2945, 0
      %v2986 = vsel %vm199, %v2947, 0
      %v2989 = vsel %vm199, %v2949, 0
      %v2992 = vsel %vm199, %v2951, 0
      %v2995 = vsel %vm199, %v2953, 0
      %v2998 = vsel %vm199, %v2955, 0
      %v3001 = vsel %vm199, %v2957, 0
      %v3004 = vsel %vm199, %v2959, 0
      %v3007 = vsel %vm199, %v2961, 0
      %v3010 = vsel %vm199, %v2963, 0
      %v3013 = vsel %vm199, %v2965, 0
      %v3016 = vsel %vm199, %v2967, 0
      %v3019 = vsel %vm199, %v2969, 0
      %v3022 = vsel %vm549, %v2972, 0
      %3024 = vmatprep.subr.bf16.mxu0 0
      %3025 = vmatpush1.bf16.msra.mxu0 %v3022
      %3026 = vmatprep.subr.bf16.mxu0 0
      %3027 = vmatpush1.bf16.msra.mxu0 0
      %3028 = vmatprep.subr.bf16.mxu0 0
      %3029 = vmatpush1.bf16.msra.mxu0 0
      %3030 = vmatprep.subr.bf16.mxu0 0
      %3031 = vmatpush1.bf16.msra.mxu0 0
      %3032 = vmatprep.subr.bf16.mxu0 0
      %3033 = vmatpush1.bf16.msra.mxu0 0
      %3034 = vmatprep.subr.bf16.mxu0 0
      %3035 = vmatpush1.bf16.msra.mxu0 0
      %3036 = vmatprep.subr.bf16.mxu0 0
      %3037 = vmatpush1.bf16.msra.mxu0 0
      %3038 = vmatprep.subr.bf16.mxu0 0
      %3039 = vmatpush1.bf16.msra.mxu0 0
      %3040 = vmatprep.subr.bf16.mxu0 0
      %3041 = vmatpush1.bf16.msra.mxu0 0
      %3042 = vmatprep.subr.bf16.mxu0 0
      %3043 = vmatpush1.bf16.msra.mxu0 0
      %3044 = vmatprep.subr.bf16.mxu0 0
      %3045 = vmatpush1.bf16.msra.mxu0 0
      %3046 = vmatprep.subr.bf16.mxu0 0
      %3047 = vmatpush1.bf16.msra.mxu0 0
      %3048 = vmatprep.subr.bf16.mxu0 0
      %3049 = vmatpush1.bf16.msra.mxu0 0
      %3050 = vmatprep.subr.bf16.mxu0 0
      %3051 = vmatpush1.bf16.msra.mxu0 0
      %3052 = vmatprep.subr.bf16.mxu0 0
      %3053 = vmatpush1.bf16.msra.mxu0 0
      %3054 = vmatprep.subr.bf16.mxu0 0
      %3055 = vmatpush1.bf16.msra.mxu0 0
      %3056 = vmatprep.mubr.bf16.mxu0 0
      %3057 = vmatmul.mubr.bf16.gmra.mrb[0].mxu0 %v2974
      %v3058 = vpop.f32.mrb[0].mxu0
      %v3059 = vadd.f32 0.0, %v3058
      %v3060 = vpop.f32.mrb[0].mxu0
      %v3061 = vpop.f32.mrb[0].mxu0
      %v3062 = vadd.f32 0.0, %v3061
      %v3063 = vpop.f32.mrb[0].mxu0
      %3064 = vmatprep.mubr.bf16.mxu0 0
      %3065 = vmatmul.mubr.bf16.gmra.mrb[0].mxu0 %v2977
      %v3066 = vpop.f32.mrb[0].mxu0
      %v3067 = vadd.f32 0.0, %v3066
      %v3068 = vpop.f32.mrb[0].mxu0
      %v3069 = vpop.f32.mrb[0].mxu0
      %v3070 = vadd.f32 0.0, %v3069
      %v3071 = vpop.f32.mrb[0].mxu0
      %3072 = vmatprep.mubr.bf16.mxu0 0
      %3073 = vmatmul.mubr.bf16.gmra.mrb[0].mxu0 %v2980
      %v3074 = vpop.f32.mrb[0].mxu0
      %v3075 = vadd.f32 0.0, %v3074
      %v3076 = vpop.f32.mrb[0].mxu0
      %v3077 = vpop.f32.mrb[0].mxu0
      %v3078 = vadd.f32 0.0, %v3077
      %v3079 = vpop.f32.mrb[0].mxu0
      %3080 = vmatprep.mubr.bf16.mxu0 0
      %3081 = vmatmul.mubr.bf16.gmra.mrb[0].mxu0 %v2983
      %v3082 = vpop.f32.mrb[0].mxu0
      %v3083 = vadd.f32 0.0, %v3082
      %v3084 = vpop.f32.mrb[0].mxu0
      %v3085 = vpop.f32.mrb[0].mxu0
      %v3086 = vadd.f32 0.0, %v3085
      %v3087 = vpop.f32.mrb[0].mxu0
      %3088 = vmatprep.mubr.bf16.mxu0 0
      %3089 = vmatmul.mubr.bf16.gmra.mrb[0].mxu0 %v2986
      %v3090 = vpop.f32.mrb[0].mxu0
      %v3091 = vadd.f32 0.0, %v3090
      %v3092 = vpop.f32.mrb[0].mxu0
      %v3093 = vpop.f32.mrb[0].mxu0
      %v3094 = vadd.f32 0.0, %v3093
      %v3095 = vpop.f32.mrb[0].mxu0
      %3096 = vmatprep.mubr.bf16.mxu0 0
      %3097 = vmatmul.mubr.bf16.gmra.mrb[0].mxu0 %v2989
      %v3098 = vpop.f32.mrb[0].mxu0
      %v3099 = vadd.f32 0.0, %v3098
      %v3100 = vpop.f32.mrb[0].mxu0
      %v3101 = vpop.f32.mrb[0].mxu0
      %v3102 = vadd.f32 0.0, %v3101
      %v3103 = vpop.f32.mrb[0].mxu0
      %3104 = vmatprep.mubr.bf16.mxu0 0
      %3105 = vmatmul.mubr.bf16.gmra.mrb[0].mxu0 %v2992
      %v3106 = vpop.f32.mrb[0].mxu0
      %v3107 = vadd.f32 0.0, %v3106
      %v3108 = vpop.f32.mrb[0].mxu0
      %v3109 = vpop.f32.mrb[0].mxu0
      %v3110 = vadd.f32 0.0, %v3109
      %v3111 = vpop.f32.mrb[0].mxu0
      %3112 = vmatprep.mubr.bf16.mxu0 0
      %3113 = vmatmul.mubr.bf16.gmra.mrb[0].mxu0 %v2995
      %v3114 = vpop.f32.mrb[0].mxu0
      %v3115 = vadd.f32 0.0, %v3114
      %v3116 = vpop.f32.mrb[0].mxu0
      %v3117 = vpop.f32.mrb[0].mxu0
      %v3118 = vadd.f32 0.0, %v3117
      %v3119 = vpop.f32.mrb[0].mxu0
      %3120 = vmatprep.mubr.bf16.mxu0 0
      %3121 = vmatmul.mubr.bf16.gmra.mrb[0].mxu0 %v2998
      %v3122 = vpop.f32.mrb[0].mxu0
      %v3123 = vadd.f32 0.0, %v3122
      %v3124 = vpop.f32.mrb[0].mxu0
      %v3125 = vpop.f32.mrb[0].mxu0
      %v3126 = vadd.f32 0.0, %v3125
      %v3127 = vpop.f32.mrb[0].mxu0
      %3128 = vmatprep.mubr.bf16.mxu0 0
      %3129 = vmatmul.mubr.bf16.gmra.mrb[0].mxu0 %v3001
      %v3130 = vpop.f32.mrb[0].mxu0
      %v3131 = vadd.f32 0.0, %v3130
      %v3132 = vpop.f32.mrb[0].mxu0
      %v3133 = vpop.f32.mrb[0].mxu0
      %v3134 = vadd.f32 0.0, %v3133
      %v3135 = vpop.f32.mrb[0].mxu0
      %3136 = vmatprep.mubr.bf16.mxu0 0
      %3137 = vmatmul.mubr.bf16.gmra.mrb[0].mxu0 %v3004
      %v3138 = vpop.f32.mrb[0].mxu0
      %v3139 = vadd.f32 0.0, %v3138
      %v3140 = vpop.f32.mrb[0].mxu0
      %v3141 = vpop.f32.mrb[0].mxu0
      %v3142 = vadd.f32 0.0, %v3141
      %v3143 = vpop.f32.mrb[0].mxu0
      %3144 = vmatprep.mubr.bf16.mxu0 0
      %3145 = vmatmul.mubr.bf16.gmra.mrb[0].mxu0 %v3007
      %v3146 = vpop.f32.mrb[0].mxu0
      %v3147 = vadd.f32 0.0, %v3146
      %v3148 = vpop.f32.mrb[0].mxu0
      %v3149 = vpop.f32.mrb[0].mxu0
      %v3150 = vadd.f32 0.0, %v3149
      %v3151 = vpop.f32.mrb[0].mxu0
      %3152 = vmatprep.mubr.bf16.mxu0 0
      %3153 = vmatmul.mubr.bf16.gmra.mrb[0].mxu0 %v3010
      %v3154 = vpop.f32.mrb[0].mxu0
      %v3155 = vadd.f32 0.0, %v3154
      %v3156 = vpop.f32.mrb[0].mxu0
      %v3157 = vpop.f32.mrb[0].mxu0
      %v3158 = vadd.f32 0.0, %v3157
      %v3159 = vpop.f32.mrb[0].mxu0
      %3160 = vmatprep.mubr.bf16.mxu0 0
      %3161 = vmatmul.mubr.bf16.gmra.mrb[0].mxu0 %v3013
      %v3162 = vpop.f32.mrb[0].mxu0
      %v3163 = vadd.f32 0.0, %v3162
      %v3164 = vpop.f32.mrb[0].mxu0
      %v3165 = vpop.f32.mrb[0].mxu0
      %v3166 = vadd.f32 0.0, %v3165
      %v3167 = vpop.f32.mrb[0].mxu0
      %3168 = vmatprep.mubr.bf16.mxu0 0
      %3169 = vmatmul.mubr.bf16.gmra.mrb[0].mxu0 %v3016
      %v3170 = vpop.f32.mrb[0].mxu0
      %v3171 = vadd.f32 0.0, %v3170
      %v3172 = vpop.f32.mrb[0].mxu0
      %v3173 = vpop.f32.mrb[0].mxu0
      %v3174 = vadd.f32 0.0, %v3173
      %v3175 = vpop.f32.mrb[0].mxu0
      %3176 = vmatprep.mubr.bf16.mxu0 0
      %3177 = vmatmul.mubr.bf16.gmra.mrb[0].mxu0 %v3019
      %v3178 = vpop.f32.mrb[0].mxu0
      %v3179 = vadd.f32 0.0, %v3178
      %v3180 = vpop.f32.mrb[0].mxu0
      %v3181 = vpop.f32.mrb[0].mxu0
      %v3182 = vadd.f32 0.0, %v3181
      %v3183 = vpop.f32.mrb[0].mxu0
      %3184 = vdwg.mxu0
      %v3185 = vld [vmem:[#allocation3] sm:$0xff]
      %v3186 = vld [vmem:[#allocation3 + $0x8] sm:$0xff]
      %v3187 = vld [vmem:[#allocation3 + $0x10] sm:$0xff]
      %v3188 = vld [vmem:[#allocation3 + $0x18] sm:$0xff]
      %v3189 = vld [vmem:[#allocation3 + $0x20] sm:$0xff]
      %v3190 = vld [vmem:[#allocation3 + $0x28] sm:$0xff]
      %v3191 = vld [vmem:[#allocation3 + $0x30] sm:$0xff]
      %v3192 = vld [vmem:[#allocation3 + $0x38] sm:$0xff]
      %v3193 = vld [vmem:[#allocation3 + $0x40] sm:$0xff]
      %v3194 = vld [vmem:[#allocation3 + $0x48] sm:$0xff]
      %v3195 = vld [vmem:[#allocation3 + $0x50] sm:$0xff]
      %v3196 = vld [vmem:[#allocation3 + $0x58] sm:$0xff]
      %v3197 = vld [vmem:[#allocation3 + $0x60] sm:$0xff]
      %v3198 = vld [vmem:[#allocation3 + $0x68] sm:$0xff]
      %v3199 = vld [vmem:[#allocation3 + $0x70] sm:$0xff]
      %v3200 = vld [vmem:[#allocation3 + $0x78] sm:$0xff]
      %v3201 = vld [vmem:[#allocation3 + $0x80] sm:$0xff]
      %v3202 = vld [vmem:[#allocation3 + $0x88] sm:$0xff]
      %v3203 = vld [vmem:[#allocation3 + $0x90] sm:$0xff]
      %v3204 = vld [vmem:[#allocation3 + $0x98] sm:$0xff]
      %v3205 = vld [vmem:[#allocation3 + $0xa0] sm:$0xff]
      %v3206 = vld [vmem:[#allocation3 + $0xa8] sm:$0xff]
      %v3207 = vld [vmem:[#allocation3 + $0xb0] sm:$0xff]
      %v3208 = vld [vmem:[#allocation3 + $0xb8] sm:$0xff]
      %v3209 = vld [vmem:[#allocation3 + $0xc0] sm:$0xff]
      %v3210 = vld [vmem:[#allocation3 + $0xc8] sm:$0xff]
      %v3211 = vld [vmem:[#allocation3 + $0xd0] sm:$0xff]
      %v3212 = vld [vmem:[#allocation3 + $0xd8] sm:$0xff]
      %v3213 = vld [vmem:[#allocation3 + $0xe0] sm:$0xff]
      %v3214 = vld [vmem:[#allocation3 + $0xe8] sm:$0xff]
      %v3215 = vld [vmem:[#allocation3 + $0xf0] sm:$0xff]
      %v3216 = vld [vmem:[#allocation3 + $0xf8] sm:$0xff]
      %v3217 = vadd.f32 %v3185, %v3059
      %v3218 = vadd.f32 %v3186, %v3062
      %v3219 = vadd.f32 %v3187, %v3067
      %v3220 = vadd.f32 %v3188, %v3070
      %v3221 = vadd.f32 %v3189, %v3075
      %v3222 = vadd.f32 %v3190, %v3078
      %v3223 = vadd.f32 %v3191, %v3083
      %v3224 = vadd.f32 %v3192, %v3086
      %v3225 = vadd.f32 %v3193, %v3091
      %v3226 = vadd.f32 %v3194, %v3094
      %v3227 = vadd.f32 %v3195, %v3099
      %v3228 = vadd.f32 %v3196, %v3102
      %v3229 = vadd.f32 %v3197, %v3107
      %v3230 = vadd.f32 %v3198, %v3110
      %v3231 = vadd.f32 %v3199, %v3115
      %v3232 = vadd.f32 %v3200, %v3118
      %v3233 = vadd.f32 %v3201, %v3123
      %v3234 = vadd.f32 %v3202, %v3126
      %v3235 = vadd.f32 %v3203, %v3131
      %v3236 = vadd.f32 %v3204, %v3134
      %v3237 = vadd.f32 %v3205, %v3139
      %v3238 = vadd.f32 %v3206, %v3142
      %v3239 = vadd.f32 %v3207, %v3147
      %v3240 = vadd.f32 %v3208, %v3150
      %v3241 = vadd.f32 %v3209, %v3155
      %v3242 = vadd.f32 %v3210, %v3158
      %v3243 = vadd.f32 %v3211, %v3163
      %v3244 = vadd.f32 %v3212, %v3166
      %v3245 = vadd.f32 %v3213, %v3171
      %v3246 = vadd.f32 %v3214, %v3174
      %v3247 = vadd.f32 %v3215, %v3179
      %v3248 = vadd.f32 %v3216, %v3182
      %3249 = vst.msk [vmem:[#allocation3] sm:$0xff] %vm199, %v3217
      %3250 = vst.msk [vmem:[#allocation3 + $0x8] sm:$0xff] %vm199, %v3218
      %3251 = vst.msk [vmem:[#allocation3 + $0x10] sm:$0xff] %vm199, %v3219
      %3252 = vst.msk [vmem:[#allocation3 + $0x18] sm:$0xff] %vm199, %v3220
      %3253 = vst.msk [vmem:[#allocation3 + $0x20] sm:$0xff] %vm199, %v3221
      %3254 = vst.msk [vmem:[#allocation3 + $0x28] sm:$0xff] %vm199, %v3222
      %3255 = vst.msk [vmem:[#allocation3 + $0x30] sm:$0xff] %vm199, %v3223
      %3256 = vst.msk [vmem:[#allocation3 + $0x38] sm:$0xff] %vm199, %v3224
      %3257 = vst.msk [vmem:[#allocation3 + $0x40] sm:$0xff] %vm199, %v3225
      %3258 = vst.msk [vmem:[#allocation3 + $0x48] sm:$0xff] %vm199, %v3226
      %3259 = vst.msk [vmem:[#allocation3 + $0x50] sm:$0xff] %vm199, %v3227
      %3260 = vst.msk [vmem:[#allocation3 + $0x58] sm:$0xff] %vm199, %v3228
      %3261 = vst.msk [vmem:[#allocation3 + $0x60] sm:$0xff] %vm199, %v3229
      %3262 = vst.msk [vmem:[#allocation3 + $0x68] sm:$0xff] %vm199, %v3230
      %3263 = vst.msk [vmem:[#allocation3 + $0x70] sm:$0xff] %vm199, %v3231
      %3264 = vst.msk [vmem:[#allocation3 + $0x78] sm:$0xff] %vm199, %v3232
      %3265 = vst.msk [vmem:[#allocation3 + $0x80] sm:$0xff] %vm199, %v3233
      %3266 = vst.msk [vmem:[#allocation3 + $0x88] sm:$0xff] %vm199, %v3234
      %3267 = vst.msk [vmem:[#allocation3 + $0x90] sm:$0xff] %vm199, %v3235
      %3268 = vst.msk [vmem:[#allocation3 + $0x98] sm:$0xff] %vm199, %v3236
      %3269 = vst.msk [vmem:[#allocation3 + $0xa0] sm:$0xff] %vm199, %v3237
      %3270 = vst.msk [vmem:[#allocation3 + $0xa8] sm:$0xff] %vm199, %v3238
      %3271 = vst.msk [vmem:[#allocation3 + $0xb0] sm:$0xff] %vm199, %v3239
      %3272 = vst.msk [vmem:[#allocation3 + $0xb8] sm:$0xff] %vm199, %v3240
      %3273 = vst.msk [vmem:[#allocation3 + $0xc0] sm:$0xff] %vm199, %v3241
      %3274 = vst.msk [vmem:[#allocation3 + $0xc8] sm:$0xff] %vm199, %v3242
      %3275 = vst.msk [vmem:[#allocation3 + $0xd0] sm:$0xff] %vm199, %v3243
      %3276 = vst.msk [vmem:[#allocation3 + $0xd8] sm:$0xff] %vm199, %v3244
      %3277 = vst.msk [vmem:[#allocation3 + $0xe0] sm:$0xff] %vm199, %v3245
      %3278 = vst.msk [vmem:[#allocation3 + $0xe8] sm:$0xff] %vm199, %v3246
      %3279 = vst.msk [vmem:[#allocation3 + $0xf0] sm:$0xff] %vm199, %v3247
      %3280 = vst.msk [vmem:[#allocation3 + $0xf8] sm:$0xff] %vm199, %v3248
      %v3281 = vshrl.u32 %v2939, 16
      %v3283 = vshll.u32 %v2939, 16
      %v3285 = vrot.slane %v3283, 1
      %v3286 = vor.u32 %v3281, %v3285
      %v3288 = vshll.u32 %v2940, 16
      %v3290 = vrot.slane %v3288, 1
      %v3291 = vsel %vm746, %v3286, %v3290
      %v3292 = vshrl.u32 %v2941, 16
      %v3294 = vshll.u32 %v2941, 16
      %v3296 = vrot.slane %v3294, 1
      %v3297 = vor.u32 %v3292, %v3296
      %v3299 = vshll.u32 %v2942, 16
      %v3301 = vrot.slane %v3299, 1
      %v3302 = vsel %vm746, %v3297, %v3301
      %v3303 = vshrl.u32 %v2943, 16
      %v3305 = vshll.u32 %v2943, 16
      %v3307 = vrot.slane %v3305, 1
      %v3308 = vor.u32 %v3303, %v3307
      %v3310 = vshll.u32 %v2944, 16
      %v3312 = vrot.slane %v3310, 1
      %v3313 = vsel %vm746, %v3308, %v3312
      %v3314 = vshrl.u32 %v2945, 16
      %v3316 = vshll.u32 %v2945, 16
      %v3318 = vrot.slane %v3316, 1
      %v3319 = vor.u32 %v3314, %v3318
      %v3321 = vshll.u32 %v2946, 16
      %v3323 = vrot.slane %v3321, 1
      %v3324 = vsel %vm746, %v3319, %v3323
      %v3325 = vshrl.u32 %v2947, 16
      %v3327 = vshll.u32 %v2947, 16
      %v3329 = vrot.slane %v3327, 1
      %v3330 = vor.u32 %v3325, %v3329
      %v3332 = vshll.u32 %v2948, 16
      %v3334 = vrot.slane %v3332, 1
      %v3335 = vsel %vm746, %v3330, %v3334
      %v3336 = vshrl.u32 %v2949, 16
      %v3338 = vshll.u32 %v2949, 16
      %v3340 = vrot.slane %v3338, 1
      %v3341 = vor.u32 %v3336, %v3340
      %v3343 = vshll.u32 %v2950, 16
      %v3345 = vrot.slane %v3343, 1
      %v3346 = vsel %vm746, %v3341, %v3345
      %v3347 = vshrl.u32 %v2951, 16
      %v3349 = vshll.u32 %v2951, 16
      %v3351 = vrot.slane %v3349, 1
      %v3352 = vor.u32 %v3347, %v3351
      %v3354 = vshll.u32 %v2952, 16
      %v3356 = vrot.slane %v3354, 1
      %v3357 = vsel %vm746, %v3352, %v3356
      %v3358 = vshrl.u32 %v2953, 16
      %v3360 = vshll.u32 %v2953, 16
      %v3362 = vrot.slane %v3360, 1
      %v3363 = vor.u32 %v3358, %v3362
      %v3365 = vshll.u32 %v2954, 16
      %v3367 = vrot.slane %v3365, 1
      %v3368 = vsel %vm746, %v3363, %v3367
      %v3369 = vshrl.u32 %v2955, 16
      %v3371 = vshll.u32 %v2955, 16
      %v3373 = vrot.slane %v3371, 1
      %v3374 = vor.u32 %v3369, %v3373
      %v3376 = vshll.u32 %v2956, 16
      %v3378 = vrot.slane %v3376, 1
      %v3379 = vsel %vm746, %v3374, %v3378
      %v3380 = vshrl.u32 %v2957, 16
      %v3382 = vshll.u32 %v2957, 16
      %v3384 = vrot.slane %v3382, 1
      %v3385 = vor.u32 %v3380, %v3384
      %v3387 = vshll.u32 %v2958, 16
      %v3389 = vrot.slane %v3387, 1
      %v3390 = vsel %vm746, %v3385, %v3389
      %v3391 = vshrl.u32 %v2959, 16
      %v3393 = vshll.u32 %v2959, 16
      %v3395 = vrot.slane %v3393, 1
      %v3396 = vor.u32 %v3391, %v3395
      %v3398 = vshll.u32 %v2960, 16
      %v3400 = vrot.slane %v3398, 1
      %v3401 = vsel %vm746, %v3396, %v3400
      %v3402 = vshrl.u32 %v2961, 16
      %v3404 = vshll.u32 %v2961, 16
      %v3406 = vrot.slane %v3404, 1
      %v3407 = vor.u32 %v3402, %v3406
      %v3409 = vshll.u32 %v2962, 16
      %v3411 = vrot.slane %v3409, 1
      %v3412 = vsel %vm746, %v3407, %v3411
      %v3413 = vshrl.u32 %v2963, 16
      %v3415 = vshll.u32 %v2963, 16
      %v3417 = vrot.slane %v3415, 1
      %v3418 = vor.u32 %v3413, %v3417
      %v3420 = vshll.u32 %v2964, 16
      %v3422 = vrot.slane %v3420, 1
      %v3423 = vsel %vm746, %v3418, %v3422
      %v3424 = vshrl.u32 %v2965, 16
      %v3426 = vshll.u32 %v2965, 16
      %v3428 = vrot.slane %v3426, 1
      %v3429 = vor.u32 %v3424, %v3428
      %v3431 = vshll.u32 %v2966, 16
      %v3433 = vrot.slane %v3431, 1
      %v3434 = vsel %vm746, %v3429, %v3433
      %v3435 = vshrl.u32 %v2967, 16
      %v3437 = vshll.u32 %v2967, 16
      %v3439 = vrot.slane %v3437, 1
      %v3440 = vor.u32 %v3435, %v3439
      %v3442 = vshll.u32 %v2968, 16
      %v3444 = vrot.slane %v3442, 1
      %v3445 = vsel %vm746, %v3440, %v3444
      %v3446 = vshrl.u32 %v2969, 16
      %v3448 = vshll.u32 %v2969, 16
      %v3450 = vrot.slane %v3448, 1
      %v3451 = vor.u32 %v3446, %v3450
      %v3453 = vshll.u32 %v2970, 16
      %v3455 = vrot.slane %v3453, 1
      %v3456 = vsel %vm746, %v3451, %v3455
      %s3457 = scalar_lea.vmem %s3, 14
      %v3458 = vld [vmem:[%s3457] sm:$0x3]
      %v3460 = vsel %vm199, %v3291, 0
      %v3463 = vsel %vm199, %v3302, 0
      %v3466 = vsel %vm199, %v3313, 0
      %v3469 = vsel %vm199, %v3324, 0
      %v3472 = vsel %vm199, %v3335, 0
      %v3475 = vsel %vm199, %v3346, 0
      %v3478 = vsel %vm199, %v3357, 0
      %v3481 = vsel %vm199, %v3368, 0
      %v3484 = vsel %vm199, %v3379, 0
      %v3487 = vsel %vm199, %v3390, 0
      %v3490 = vsel %vm199, %v3401, 0
      %v3493 = vsel %vm199, %v3412, 0
      %v3496 = vsel %vm199, %v3423, 0
      %v3499 = vsel %vm199, %v3434, 0
      %v3502 = vsel %vm199, %v3445, 0
      %v3505 = vsel %vm199, %v3456, 0
      %v3508 = vsel %vm549, %v3458, 0
      %3510 = vmatprep.subr.bf16.mxu0 0
      %3511 = vmatpush1.bf16.msra.mxu0 %v3508
      %3512 = vmatprep.subr.bf16.mxu0 0
      %3513 = vmatpush1.bf16.msra.mxu0 0
      %3514 = vmatprep.subr.bf16.mxu0 0
      %3515 = vmatpush1.bf16.msra.mxu0 0
      %3516 = vmatprep.subr.bf16.mxu0 0
      %3517 = vmatpush1.bf16.msra.mxu0 0
      %3518 = vmatprep.subr.bf16.mxu0 0
      %3519 = vmatpush1.bf16.msra.mxu0 0
      %3520 = vmatprep.subr.bf16.mxu0 0
      %3521 = vmatpush1.bf16.msra.mxu0 0
      %3522 = vmatprep.subr.bf16.mxu0 0
      %3523 = vmatpush1.bf16.msra.mxu0 0
      %3524 = vmatprep.subr.bf16.mxu0 0
      %3525 = vmatpush1.bf16.msra.mxu0 0
      %3526 = vmatprep.subr.bf16.mxu0 0
      %3527 = vmatpush1.bf16.msra.mxu0 0
      %3528 = vmatprep.subr.bf16.mxu0 0
      %3529 = vmatpush1.bf16.msra.mxu0 0
      %3530 = vmatprep.subr.bf16.mxu0 0
      %3531 = vmatpush1.bf16.msra.mxu0 0
      %3532 = vmatprep.subr.bf16.mxu0 0
      %3533 = vmatpush1.bf16.msra.mxu0 0
      %3534 = vmatprep.subr.bf16.mxu0 0
      %3535 = vmatpush1.bf16.msra.mxu0 0
      %3536 = vmatprep.subr.bf16.mxu0 0
      %3537 = vmatpush1.bf16.msra.mxu0 0
      %3538 = vmatprep.subr.bf16.mxu0 0
      %3539 = vmatpush1.bf16.msra.mxu0 0
      %3540 = vmatprep.subr.bf16.mxu0 0
      %3541 = vmatpush1.bf16.msra.mxu0 0
      %3542 = vmatprep.mubr.bf16.mxu0 0
      %3543 = vmatmul.mubr.bf16.gmra.mrb[0].mxu0 %v3460
      %v3544 = vpop.f32.mrb[0].mxu0
      %v3545 = vadd.f32 0.0, %v3544
      %v3546 = vpop.f32.mrb[0].mxu0
      %v3547 = vpop.f32.mrb[0].mxu0
      %v3548 = vadd.f32 0.0, %v3547
      %v3549 = vpop.f32.mrb[0].mxu0
      %3550 = vmatprep.mubr.bf16.mxu0 0
      %3551 = vmatmul.mubr.bf16.gmra.mrb[0].mxu0 %v3463
      %v3552 = vpop.f32.mrb[0].mxu0
      %v3553 = vadd.f32 0.0, %v3552
      %v3554 = vpop.f32.mrb[0].mxu0
      %v3555 = vpop.f32.mrb[0].mxu0
      %v3556 = vadd.f32 0.0, %v3555
      %v3557 = vpop.f32.mrb[0].mxu0
      %3558 = vmatprep.mubr.bf16.mxu0 0
      %3559 = vmatmul.mubr.bf16.gmra.mrb[0].mxu0 %v3466
      %v3560 = vpop.f32.mrb[0].mxu0
      %v3561 = vadd.f32 0.0, %v3560
      %v3562 = vpop.f32.mrb[0].mxu0
      %v3563 = vpop.f32.mrb[0].mxu0
      %v3564 = vadd.f32 0.0, %v3563
      %v3565 = vpop.f32.mrb[0].mxu0
      %3566 = vmatprep.mubr.bf16.mxu0 0
      %3567 = vmatmul.mubr.bf16.gmra.mrb[0].mxu0 %v3469
      %v3568 = vpop.f32.mrb[0].mxu0
      %v3569 = vadd.f32 0.0, %v3568
      %v3570 = vpop.f32.mrb[0].mxu0
      %v3571 = vpop.f32.mrb[0].mxu0
      %v3572 = vadd.f32 0.0, %v3571
      %v3573 = vpop.f32.mrb[0].mxu0
      %3574 = vmatprep.mubr.bf16.mxu0 0
      %3575 = vmatmul.mubr.bf16.gmra.mrb[0].mxu0 %v3472
      %v3576 = vpop.f32.mrb[0].mxu0
      %v3577 = vadd.f32 0.0, %v3576
      %v3578 = vpop.f32.mrb[0].mxu0
      %v3579 = vpop.f32.mrb[0].mxu0
      %v3580 = vadd.f32 0.0, %v3579
      %v3581 = vpop.f32.mrb[0].mxu0
      %3582 = vmatprep.mubr.bf16.mxu0 0
      %3583 = vmatmul.mubr.bf16.gmra.mrb[0].mxu0 %v3475
      %v3584 = vpop.f32.mrb[0].mxu0
      %v3585 = vadd.f32 0.0, %v3584
      %v3586 = vpop.f32.mrb[0].mxu0
      %v3587 = vpop.f32.mrb[0].mxu0
      %v3588 = vadd.f32 0.0, %v3587
      %v3589 = vpop.f32.mrb[0].mxu0
      %3590 = vmatprep.mubr.bf16.mxu0 0
      %3591 = vmatmul.mubr.bf16.gmra.mrb[0].mxu0 %v3478
      %v3592 = vpop.f32.mrb[0].mxu0
      %v3593 = vadd.f32 0.0, %v3592
      %v3594 = vpop.f32.mrb[0].mxu0
      %v3595 = vpop.f32.mrb[0].mxu0
      %v3596 = vadd.f32 0.0, %v3595
      %v3597 = vpop.f32.mrb[0].mxu0
      %3598 = vmatprep.mubr.bf16.mxu0 0
      %3599 = vmatmul.mubr.bf16.gmra.mrb[0].mxu0 %v3481
      %v3600 = vpop.f32.mrb[0].mxu0
      %v3601 = vadd.f32 0.0, %v3600
      %v3602 = vpop.f32.mrb[0].mxu0
      %v3603 = vpop.f32.mrb[0].mxu0
      %v3604 = vadd.f32 0.0, %v3603
      %v3605 = vpop.f32.mrb[0].mxu0
      %3606 = vmatprep.mubr.bf16.mxu0 0
      %3607 = vmatmul.mubr.bf16.gmra.mrb[0].mxu0 %v3484
      %v3608 = vpop.f32.mrb[0].mxu0
      %v3609 = vadd.f32 0.0, %v3608
      %v3610 = vpop.f32.mrb[0].mxu0
      %v3611 = vpop.f32.mrb[0].mxu0
      %v3612 = vadd.f32 0.0, %v3611
      %v3613 = vpop.f32.mrb[0].mxu0
      %3614 = vmatprep.mubr.bf16.mxu0 0
      %3615 = vmatmul.mubr.bf16.gmra.mrb[0].mxu0 %v3487
      %v3616 = vpop.f32.mrb[0].mxu0
      %v3617 = vadd.f32 0.0, %v3616
      %v3618 = vpop.f32.mrb[0].mxu0
      %v3619 = vpop.f32.mrb[0].mxu0
      %v3620 = vadd.f32 0.0, %v3619
      %v3621 = vpop.f32.mrb[0].mxu0
      %3622 = vmatprep.mubr.bf16.mxu0 0
      %3623 = vmatmul.mubr.bf16.gmra.mrb[0].mxu0 %v3490
      %v3624 = vpop.f32.mrb[0].mxu0
      %v3625 = vadd.f32 0.0, %v3624
      %v3626 = vpop.f32.mrb[0].mxu0
      %v3627 = vpop.f32.mrb[0].mxu0
      %v3628 = vadd.f32 0.0, %v3627
      %v3629 = vpop.f32.mrb[0].mxu0
      %3630 = vmatprep.mubr.bf16.mxu0 0
      %3631 = vmatmul.mubr.bf16.gmra.mrb[0].mxu0 %v3493
      %v3632 = vpop.f32.mrb[0].mxu0
      %v3633 = vadd.f32 0.0, %v3632
      %v3634 = vpop.f32.mrb[0].mxu0
      %v3635 = vpop.f32.mrb[0].mxu0
      %v3636 = vadd.f32 0.0, %v3635
      %v3637 = vpop.f32.mrb[0].mxu0
      %3638 = vmatprep.mubr.bf16.mxu0 0
      %3639 = vmatmul.mubr.bf16.gmra.mrb[0].mxu0 %v3496
      %v3640 = vpop.f32.mrb[0].mxu0
      %v3641 = vadd.f32 0.0, %v3640
      %v3642 = vpop.f32.mrb[0].mxu0
      %v3643 = vpop.f32.mrb[0].mxu0
      %v3644 = vadd.f32 0.0, %v3643
      %v3645 = vpop.f32.mrb[0].mxu0
      %3646 = vmatprep.mubr.bf16.mxu0 0
      %3647 = vmatmul.mubr.bf16.gmra.mrb[0].mxu0 %v3499
      %v3648 = vpop.f32.mrb[0].mxu0
      %v3649 = vadd.f32 0.0, %v3648
      %v3650 = vpop.f32.mrb[0].mxu0
      %v3651 = vpop.f32.mrb[0].mxu0
      %v3652 = vadd.f32 0.0, %v3651
      %v3653 = vpop.f32.mrb[0].mxu0
      %3654 = vmatprep.mubr.bf16.mxu0 0
      %3655 = vmatmul.mubr.bf16.gmra.mrb[0].mxu0 %v3502
      %v3656 = vpop.f32.mrb[0].mxu0
      %v3657 = vadd.f32 0.0, %v3656
      %v3658 = vpop.f32.mrb[0].mxu0
      %v3659 = vpop.f32.mrb[0].mxu0
      %v3660 = vadd.f32 0.0, %v3659
      %v3661 = vpop.f32.mrb[0].mxu0
      %3662 = vmatprep.mubr.bf16.mxu0 0
      %3663 = vmatmul.mubr.bf16.gmra.mrb[0].mxu0 %v3505
      %v3664 = vpop.f32.mrb[0].mxu0
      %v3665 = vadd.f32 0.0, %v3664
      %v3666 = vpop.f32.mrb[0].mxu0
      %v3667 = vpop.f32.mrb[0].mxu0
      %v3668 = vadd.f32 0.0, %v3667
      %v3669 = vpop.f32.mrb[0].mxu0
      %3670 = vdwg.mxu0
      %v3671 = vld [vmem:[#allocation3] sm:$0xff]
      %v3672 = vld [vmem:[#allocation3 + $0x8] sm:$0xff]
      %v3673 = vld [vmem:[#allocation3 + $0x10] sm:$0xff]
      %v3674 = vld [vmem:[#allocation3 + $0x18] sm:$0xff]
      %v3675 = vld [vmem:[#allocation3 + $0x20] sm:$0xff]
      %v3676 = vld [vmem:[#allocation3 + $0x28] sm:$0xff]
      %v3677 = vld [vmem:[#allocation3 + $0x30] sm:$0xff]
      %v3678 = vld [vmem:[#allocation3 + $0x38] sm:$0xff]
      %v3679 = vld [vmem:[#allocation3 + $0x40] sm:$0xff]
      %v3680 = vld [vmem:[#allocation3 + $0x48] sm:$0xff]
      %v3681 = vld [vmem:[#allocation3 + $0x50] sm:$0xff]
      %v3682 = vld [vmem:[#allocation3 + $0x58] sm:$0xff]
      %v3683 = vld [vmem:[#allocation3 + $0x60] sm:$0xff]
      %v3684 = vld [vmem:[#allocation3 + $0x68] sm:$0xff]
      %v3685 = vld [vmem:[#allocation3 + $0x70] sm:$0xff]
      %v3686 = vld [vmem:[#allocation3 + $0x78] sm:$0xff]
      %v3687 = vld [vmem:[#allocation3 + $0x80] sm:$0xff]
      %v3688 = vld [vmem:[#allocation3 + $0x88] sm:$0xff]
      %v3689 = vld [vmem:[#allocation3 + $0x90] sm:$0xff]
      %v3690 = vld [vmem:[#allocation3 + $0x98] sm:$0xff]
      %v3691 = vld [vmem:[#allocation3 + $0xa0] sm:$0xff]
      %v3692 = vld [vmem:[#allocation3 + $0xa8] sm:$0xff]
      %v3693 = vld [vmem:[#allocation3 + $0xb0] sm:$0xff]
      %v3694 = vld [vmem:[#allocation3 + $0xb8] sm:$0xff]
      %v3695 = vld [vmem:[#allocation3 + $0xc0] sm:$0xff]
      %v3696 = vld [vmem:[#allocation3 + $0xc8] sm:$0xff]
      %v3697 = vld [vmem:[#allocation3 + $0xd0] sm:$0xff]
      %v3698 = vld [vmem:[#allocation3 + $0xd8] sm:$0xff]
      %v3699 = vld [vmem:[#allocation3 + $0xe0] sm:$0xff]
      %v3700 = vld [vmem:[#allocation3 + $0xe8] sm:$0xff]
      %v3701 = vld [vmem:[#allocation3 + $0xf0] sm:$0xff]
      %v3702 = vld [vmem:[#allocation3 + $0xf8] sm:$0xff]
      %v3703 = vadd.f32 %v3671, %v3545
      %v3704 = vadd.f32 %v3672, %v3548
      %v3705 = vadd.f32 %v3673, %v3553
      %v3706 = vadd.f32 %v3674, %v3556
      %v3707 = vadd.f32 %v3675, %v3561
      %v3708 = vadd.f32 %v3676, %v3564
      %v3709 = vadd.f32 %v3677, %v3569
      %v3710 = vadd.f32 %v3678, %v3572
      %v3711 = vadd.f32 %v3679, %v3577
      %v3712 = vadd.f32 %v3680, %v3580
      %v3713 = vadd.f32 %v3681, %v3585
      %v3714 = vadd.f32 %v3682, %v3588
      %v3715 = vadd.f32 %v3683, %v3593
      %v3716 = vadd.f32 %v3684, %v3596
      %v3717 = vadd.f32 %v3685, %v3601
      %v3718 = vadd.f32 %v3686, %v3604
      %v3719 = vadd.f32 %v3687, %v3609
      %v3720 = vadd.f32 %v3688, %v3612
      %v3721 = vadd.f32 %v3689, %v3617
      %v3722 = vadd.f32 %v3690, %v3620
      %v3723 = vadd.f32 %v3691, %v3625
      %v3724 = vadd.f32 %v3692, %v3628
      %v3725 = vadd.f32 %v3693, %v3633
      %v3726 = vadd.f32 %v3694, %v3636
      %v3727 = vadd.f32 %v3695, %v3641
      %v3728 = vadd.f32 %v3696, %v3644
      %v3729 = vadd.f32 %v3697, %v3649
      %v3730 = vadd.f32 %v3698, %v3652
      %v3731 = vadd.f32 %v3699, %v3657
      %v3732 = vadd.f32 %v3700, %v3660
      %v3733 = vadd.f32 %v3701, %v3665
      %v3734 = vadd.f32 %v3702, %v3668
      %3735 = vst.msk [vmem:[#allocation3] sm:$0xff] %vm199, %v3703
      %3736 = vst.msk [vmem:[#allocation3 + $0x8] sm:$0xff] %vm199, %v3704
      %3737 = vst.msk [vmem:[#allocation3 + $0x10] sm:$0xff] %vm199, %v3705
      %3738 = vst.msk [vmem:[#allocation3 + $0x18] sm:$0xff] %vm199, %v3706
      %3739 = vst.msk [vmem:[#allocation3 + $0x20] sm:$0xff] %vm199, %v3707
      %3740 = vst.msk [vmem:[#allocation3 + $0x28] sm:$0xff] %vm199, %v3708
      %3741 = vst.msk [vmem:[#allocation3 + $0x30] sm:$0xff] %vm199, %v3709
      %3742 = vst.msk [vmem:[#allocation3 + $0x38] sm:$0xff] %vm199, %v3710
      %3743 = vst.msk [vmem:[#allocation3 + $0x40] sm:$0xff] %vm199, %v3711
      %3744 = vst.msk [vmem:[#allocation3 + $0x48] sm:$0xff] %vm199, %v3712
      %3745 = vst.msk [vmem:[#allocation3 + $0x50] sm:$0xff] %vm199, %v3713
      %3746 = vst.msk [vmem:[#allocation3 + $0x58] sm:$0xff] %vm199, %v3714
      %3747 = vst.msk [vmem:[#allocation3 + $0x60] sm:$0xff] %vm199, %v3715
      %3748 = vst.msk [vmem:[#allocation3 + $0x68] sm:$0xff] %vm199, %v3716
      %3749 = vst.msk [vmem:[#allocation3 + $0x70] sm:$0xff] %vm199, %v3717
      %3750 = vst.msk [vmem:[#allocation3 + $0x78] sm:$0xff] %vm199, %v3718
      %3751 = vst.msk [vmem:[#allocation3 + $0x80] sm:$0xff] %vm199, %v3719
      %3752 = vst.msk [vmem:[#allocation3 + $0x88] sm:$0xff] %vm199, %v3720
      %3753 = vst.msk [vmem:[#allocation3 + $0x90] sm:$0xff] %vm199, %v3721
      %3754 = vst.msk [vmem:[#allocation3 + $0x98] sm:$0xff] %vm199, %v3722
      %3755 = vst.msk [vmem:[#allocation3 + $0xa0] sm:$0xff] %vm199, %v3723
      %3756 = vst.msk [vmem:[#allocation3 + $0xa8] sm:$0xff] %vm199, %v3724
      %3757 = vst.msk [vmem:[#allocation3 + $0xb0] sm:$0xff] %vm199, %v3725
      %3758 = vst.msk [vmem:[#allocation3 + $0xb8] sm:$0xff] %vm199, %v3726
      %3759 = vst.msk [vmem:[#allocation3 + $0xc0] sm:$0xff] %vm199, %v3727
      %3760 = vst.msk [vmem:[#allocation3 + $0xc8] sm:$0xff] %vm199, %v3728
      %3761 = vst.msk [vmem:[#allocation3 + $0xd0] sm:$0xff] %vm199, %v3729
      %3762 = vst.msk [vmem:[#allocation3 + $0xd8] sm:$0xff] %vm199, %v3730
      %3763 = vst.msk [vmem:[#allocation3 + $0xe0] sm:$0xff] %vm199, %v3731
      %3764 = vst.msk [vmem:[#allocation3 + $0xe8] sm:$0xff] %vm199, %v3732
      %3765 = vst.msk [vmem:[#allocation3 + $0xf0] sm:$0xff] %vm199, %v3733
      %3766 = vst.msk [vmem:[#allocation3 + $0xf8] sm:$0xff] %vm199, %v3734
      %v3799 = vrot.slane %v2939, 1
      %v3800 = vrot.slane %v2940, 1
      %v3801 = vsel %vm1265, %v3799, %v3800
      %v3802 = vrot.slane %v2941, 1
      %v3803 = vrot.slane %v2942, 1
      %v3804 = vsel %vm1265, %v3802, %v3803
      %v3805 = vrot.slane %v2943, 1
      %v3806 = vrot.slane %v2944, 1
      %v3807 = vsel %vm1265, %v3805, %v3806
      %v3808 = vrot.slane %v2945, 1
      %v3809 = vrot.slane %v2946, 1
      %v3810 = vsel %vm1265, %v3808, %v3809
      %v3811 = vrot.slane %v2947, 1
      %v3812 = vrot.slane %v2948, 1
      %v3813 = vsel %vm1265, %v3811, %v3812
      %v3814 = vrot.slane %v2949, 1
      %v3815 = vrot.slane %v2950, 1
      %v3816 = vsel %vm1265, %v3814, %v3815
      %v3817 = vrot.slane %v2951, 1
      %v3818 = vrot.slane %v2952, 1
      %v3819 = vsel %vm1265, %v3817, %v3818
      %v3820 = vrot.slane %v2953, 1
      %v3821 = vrot.slane %v2954, 1
      %v3822 = vsel %vm1265, %v3820, %v3821
      %v3823 = vrot.slane %v2955, 1
      %v3824 = vrot.slane %v2956, 1
      %v3825 = vsel %vm1265, %v3823, %v3824
      %v3826 = vrot.slane %v2957, 1
      %v3827 = vrot.slane %v2958, 1
      %v3828 = vsel %vm1265, %v3826, %v3827
      %v3829 = vrot.slane %v2959, 1
      %v3830 = vrot.slane %v2960, 1
      %v3831 = vsel %vm1265, %v3829, %v3830
      %v3832 = vrot.slane %v2961, 1
      %v3833 = vrot.slane %v2962, 1
      %v3834 = vsel %vm1265, %v3832, %v3833
      %v3835 = vrot.slane %v2963, 1
      %v3836 = vrot.slane %v2964, 1
      %v3837 = vsel %vm1265, %v3835, %v3836
      %v3838 = vrot.slane %v2965, 1
      %v3839 = vrot.slane %v2966, 1
      %v3840 = vsel %vm1265, %v3838, %v3839
      %v3841 = vrot.slane %v2967, 1
      %v3842 = vrot.slane %v2968, 1
      %v3843 = vsel %vm1265, %v3841, %v3842
      %v3844 = vrot.slane %v2969, 1
      %v3845 = vrot.slane %v2970, 1
      %v3846 = vsel %vm1265, %v3844, %v3845
      %s3847 = scalar_lea.vmem %s3, 16
      %v3848 = vld [vmem:[%s3847] sm:$0x3]
      %v3850 = vsel %vm199, %v3801, 0
      %v3853 = vsel %vm199, %v3804, 0
      %v3856 = vsel %vm199, %v3807, 0
      %v3859 = vsel %vm199, %v3810, 0
      %v3862 = vsel %vm199, %v3813, 0
      %v3865 = vsel %vm199, %v3816, 0
      %v3868 = vsel %vm199, %v3819, 0
      %v3871 = vsel %vm199, %v3822, 0
      %v3874 = vsel %vm199, %v3825, 0
      %v3877 = vsel %vm199, %v3828, 0
      %v3880 = vsel %vm199, %v3831, 0
      %v3883 = vsel %vm199, %v3834, 0
      %v3886 = vsel %vm199, %v3837, 0
      %v3889 = vsel %vm199, %v3840, 0
      %v3892 = vsel %vm199, %v3843, 0
      %v3895 = vsel %vm199, %v3846, 0
      %v3898 = vsel %vm549, %v3848, 0
      %3900 = vmatprep.subr.bf16.mxu0 0
      %3901 = vmatpush1.bf16.msra.mxu0 %v3898
      %3902 = vmatprep.subr.bf16.mxu0 0
      %3903 = vmatpush1.bf16.msra.mxu0 0
      %3904 = vmatprep.subr.bf16.mxu0 0
      %3905 = vmatpush1.bf16.msra.mxu0 0
      %3906 = vmatprep.subr.bf16.mxu0 0
      %3907 = vmatpush1.bf16.msra.mxu0 0
      %3908 = vmatprep.subr.bf16.mxu0 0
      %3909 = vmatpush1.bf16.msra.mxu0 0
      %3910 = vmatprep.subr.bf16.mxu0 0
      %3911 = vmatpush1.bf16.msra.mxu0 0
      %3912 = vmatprep.subr.bf16.mxu0 0
      %3913 = vmatpush1.bf16.msra.mxu0 0
      %3914 = vmatprep.subr.bf16.mxu0 0
      %3915 = vmatpush1.bf16.msra.mxu0 0
      %3916 = vmatprep.subr.bf16.mxu0 0
      %3917 = vmatpush1.bf16.msra.mxu0 0
      %3918 = vmatprep.subr.bf16.mxu0 0
      %3919 = vmatpush1.bf16.msra.mxu0 0
      %3920 = vmatprep.subr.bf16.mxu0 0
      %3921 = vmatpush1.bf16.msra.mxu0 0
      %3922 = vmatprep.subr.bf16.mxu0 0
      %3923 = vmatpush1.bf16.msra.mxu0 0
      %3924 = vmatprep.subr.bf16.mxu0 0
      %3925 = vmatpush1.bf16.msra.mxu0 0
      %3926 = vmatprep.subr.bf16.mxu0 0
      %3927 = vmatpush1.bf16.msra.mxu0 0
      %3928 = vmatprep.subr.bf16.mxu0 0
      %3929 = vmatpush1.bf16.msra.mxu0 0
      %3930 = vmatprep.subr.bf16.mxu0 0
      %3931 = vmatpush1.bf16.msra.mxu0 0
      %3932 = vmatprep.mubr.bf16.mxu0 0
      %3933 = vmatmul.mubr.bf16.gmra.mrb[0].mxu0 %v3850
      %v3934 = vpop.f32.mrb[0].mxu0
      %v3935 = vadd.f32 0.0, %v3934
      %v3936 = vpop.f32.mrb[0].mxu0
      %v3937 = vpop.f32.mrb[0].mxu0
      %v3938 = vadd.f32 0.0, %v3937
      %v3939 = vpop.f32.mrb[0].mxu0
      %3940 = vmatprep.mubr.bf16.mxu0 0
      %3941 = vmatmul.mubr.bf16.gmra.mrb[0].mxu0 %v3853
      %v3942 = vpop.f32.mrb[0].mxu0
      %v3943 = vadd.f32 0.0, %v3942
      %v3944 = vpop.f32.mrb[0].mxu0
      %v3945 = vpop.f32.mrb[0].mxu0
      %v3946 = vadd.f32 0.0, %v3945
      %v3947 = vpop.f32.mrb[0].mxu0
      %3948 = vmatprep.mubr.bf16.mxu0 0
      %3949 = vmatmul.mubr.bf16.gmra.mrb[0].mxu0 %v3856
      %v3950 = vpop.f32.mrb[0].mxu0
      %v3951 = vadd.f32 0.0, %v3950
      %v3952 = vpop.f32.mrb[0].mxu0
      %v3953 = vpop.f32.mrb[0].mxu0
      %v3954 = vadd.f32 0.0, %v3953
      %v3955 = vpop.f32.mrb[0].mxu0
      %3956 = vmatprep.mubr.bf16.mxu0 0
      %3957 = vmatmul.mubr.bf16.gmra.mrb[0].mxu0 %v3859
      %v3958 = vpop.f32.mrb[0].mxu0
      %v3959 = vadd.f32 0.0, %v3958
      %v3960 = vpop.f32.mrb[0].mxu0
      %v3961 = vpop.f32.mrb[0].mxu0
      %v3962 = vadd.f32 0.0, %v3961
      %v3963 = vpop.f32.mrb[0].mxu0
      %3964 = vmatprep.mubr.bf16.mxu0 0
      %3965 = vmatmul.mubr.bf16.gmra.mrb[0].mxu0 %v3862
      %v3966 = vpop.f32.mrb[0].mxu0
      %v3967 = vadd.f32 0.0, %v3966
      %v3968 = vpop.f32.mrb[0].mxu0
      %v3969 = vpop.f32.mrb[0].mxu0
      %v3970 = vadd.f32 0.0, %v3969
      %v3971 = vpop.f32.mrb[0].mxu0
      %3972 = vmatprep.mubr.bf16.mxu0 0
      %3973 = vmatmul.mubr.bf16.gmra.mrb[0].mxu0 %v3865
      %v3974 = vpop.f32.mrb[0].mxu0
      %v3975 = vadd.f32 0.0, %v3974
      %v3976 = vpop.f32.mrb[0].mxu0
      %v3977 = vpop.f32.mrb[0].mxu0
      %v3978 = vadd.f32 0.0, %v3977
      %v3979 = vpop.f32.mrb[0].mxu0
      %3980 = vmatprep.mubr.bf16.mxu0 0
      %3981 = vmatmul.mubr.bf16.gmra.mrb[0].mxu0 %v3868
      %v3982 = vpop.f32.mrb[0].mxu0
      %v3983 = vadd.f32 0.0, %v3982
      %v3984 = vpop.f32.mrb[0].mxu0
      %v3985 = vpop.f32.mrb[0].mxu0
      %v3986 = vadd.f32 0.0, %v3985
      %v3987 = vpop.f32.mrb[0].mxu0
      %3988 = vmatprep.mubr.bf16.mxu0 0
      %3989 = vmatmul.mubr.bf16.gmra.mrb[0].mxu0 %v3871
      %v3990 = vpop.f32.mrb[0].mxu0
      %v3991 = vadd.f32 0.0, %v3990
      %v3992 = vpop.f32.mrb[0].mxu0
      %v3993 = vpop.f32.mrb[0].mxu0
      %v3994 = vadd.f32 0.0, %v3993
      %v3995 = vpop.f32.mrb[0].mxu0
      %3996 = vmatprep.mubr.bf16.mxu0 0
      %3997 = vmatmul.mubr.bf16.gmra.mrb[0].mxu0 %v3874
      %v3998 = vpop.f32.mrb[0].mxu0
      %v3999 = vadd.f32 0.0, %v3998
      %v4000 = vpop.f32.mrb[0].mxu0
      %v4001 = vpop.f32.mrb[0].mxu0
      %v4002 = vadd.f32 0.0, %v4001
      %v4003 = vpop.f32.mrb[0].mxu0
      %4004 = vmatprep.mubr.bf16.mxu0 0
      %4005 = vmatmul.mubr.bf16.gmra.mrb[0].mxu0 %v3877
      %v4006 = vpop.f32.mrb[0].mxu0
      %v4007 = vadd.f32 0.0, %v4006
      %v4008 = vpop.f32.mrb[0].mxu0
      %v4009 = vpop.f32.mrb[0].mxu0
      %v4010 = vadd.f32 0.0, %v4009
      %v4011 = vpop.f32.mrb[0].mxu0
      %4012 = vmatprep.mubr.bf16.mxu0 0
      %4013 = vmatmul.mubr.bf16.gmra.mrb[0].mxu0 %v3880
      %v4014 = vpop.f32.mrb[0].mxu0
      %v4015 = vadd.f32 0.0, %v4014
      %v4016 = vpop.f32.mrb[0].mxu0
      %v4017 = vpop.f32.mrb[0].mxu0
      %v4018 = vadd.f32 0.0, %v4017
      %v4019 = vpop.f32.mrb[0].mxu0
      %4020 = vmatprep.mubr.bf16.mxu0 0
      %4021 = vmatmul.mubr.bf16.gmra.mrb[0].mxu0 %v3883
      %v4022 = vpop.f32.mrb[0].mxu0
      %v4023 = vadd.f32 0.0, %v4022
      %v4024 = vpop.f32.mrb[0].mxu0
      %v4025 = vpop.f32.mrb[0].mxu0
      %v4026 = vadd.f32 0.0, %v4025
      %v4027 = vpop.f32.mrb[0].mxu0
      %4028 = vmatprep.mubr.bf16.mxu0 0
      %4029 = vmatmul.mubr.bf16.gmra.mrb[0].mxu0 %v3886
      %v4030 = vpop.f32.mrb[0].mxu0
      %v4031 = vadd.f32 0.0, %v4030
      %v4032 = vpop.f32.mrb[0].mxu0
      %v4033 = vpop.f32.mrb[0].mxu0
      %v4034 = vadd.f32 0.0, %v4033
      %v4035 = vpop.f32.mrb[0].mxu0
      %4036 = vmatprep.mubr.bf16.mxu0 0
      %4037 = vmatmul.mubr.bf16.gmra.mrb[0].mxu0 %v3889
      %v4038 = vpop.f32.mrb[0].mxu0
      %v4039 = vadd.f32 0.0, %v4038
      %v4040 = vpop.f32.mrb[0].mxu0
      %v4041 = vpop.f32.mrb[0].mxu0
      %v4042 = vadd.f32 0.0, %v4041
      %v4043 = vpop.f32.mrb[0].mxu0
      %4044 = vmatprep.mubr.bf16.mxu0 0
      %4045 = vmatmul.mubr.bf16.gmra.mrb[0].mxu0 %v3892
      %v4046 = vpop.f32.mrb[0].mxu0
      %v4047 = vadd.f32 0.0, %v4046
      %v4048 = vpop.f32.mrb[0].mxu0
      %v4049 = vpop.f32.mrb[0].mxu0
      %v4050 = vadd.f32 0.0, %v4049
      %v4051 = vpop.f32.mrb[0].mxu0
      %4052 = vmatprep.mubr.bf16.mxu0 0
      %4053 = vmatmul.mubr.bf16.gmra.mrb[0].mxu0 %v3895
      %v4054 = vpop.f32.mrb[0].mxu0
      %v4055 = vadd.f32 0.0, %v4054
      %v4056 = vpop.f32.mrb[0].mxu0
      %v4057 = vpop.f32.mrb[0].mxu0
      %v4058 = vadd.f32 0.0, %v4057
      %v4059 = vpop.f32.mrb[0].mxu0
      %4060 = vdwg.mxu0
      %v4061 = vld [vmem:[#allocation3] sm:$0xff]
      %v4062 = vld [vmem:[#allocation3 + $0x8] sm:$0xff]
      %v4063 = vld [vmem:[#allocation3 + $0x10] sm:$0xff]
      %v4064 = vld [vmem:[#allocation3 + $0x18] sm:$0xff]
      %v4065 = vld [vmem:[#allocation3 + $0x20] sm:$0xff]
      %v4066 = vld [vmem:[#allocation3 + $0x28] sm:$0xff]
      %v4067 = vld [vmem:[#allocation3 + $0x30] sm:$0xff]
      %v4068 = vld [vmem:[#allocation3 + $0x38] sm:$0xff]
      %v4069 = vld [vmem:[#allocation3 + $0x40] sm:$0xff]
      %v4070 = vld [vmem:[#allocation3 + $0x48] sm:$0xff]
      %v4071 = vld [vmem:[#allocation3 + $0x50] sm:$0xff]
      %v4072 = vld [vmem:[#allocation3 + $0x58] sm:$0xff]
      %v4073 = vld [vmem:[#allocation3 + $0x60] sm:$0xff]
      %v4074 = vld [vmem:[#allocation3 + $0x68] sm:$0xff]
      %v4075 = vld [vmem:[#allocation3 + $0x70] sm:$0xff]
      %v4076 = vld [vmem:[#allocation3 + $0x78] sm:$0xff]
      %v4077 = vld [vmem:[#allocation3 + $0x80] sm:$0xff]
      %v4078 = vld [vmem:[#allocation3 + $0x88] sm:$0xff]
      %v4079 = vld [vmem:[#allocation3 + $0x90] sm:$0xff]
      %v4080 = vld [vmem:[#allocation3 + $0x98] sm:$0xff]
      %v4081 = vld [vmem:[#allocation3 + $0xa0] sm:$0xff]
      %v4082 = vld [vmem:[#allocation3 + $0xa8] sm:$0xff]
      %v4083 = vld [vmem:[#allocation3 + $0xb0] sm:$0xff]
      %v4084 = vld [vmem:[#allocation3 + $0xb8] sm:$0xff]
      %v4085 = vld [vmem:[#allocation3 + $0xc0] sm:$0xff]
      %v4086 = vld [vmem:[#allocation3 + $0xc8] sm:$0xff]
      %v4087 = vld [vmem:[#allocation3 + $0xd0] sm:$0xff]
      %v4088 = vld [vmem:[#allocation3 + $0xd8] sm:$0xff]
      %v4089 = vld [vmem:[#allocation3 + $0xe0] sm:$0xff]
      %v4090 = vld [vmem:[#allocation3 + $0xe8] sm:$0xff]
      %v4091 = vld [vmem:[#allocation3 + $0xf0] sm:$0xff]
      %v4092 = vld [vmem:[#allocation3 + $0xf8] sm:$0xff]
      %v4093 = vadd.f32 %v4061, %v3935
      %v4094 = vadd.f32 %v4062, %v3938
      %v4095 = vadd.f32 %v4063, %v3943
      %v4096 = vadd.f32 %v4064, %v3946
      %v4097 = vadd.f32 %v4065, %v3951
      %v4098 = vadd.f32 %v4066, %v3954
      %v4099 = vadd.f32 %v4067, %v3959
      %v4100 = vadd.f32 %v4068, %v3962
      %v4101 = vadd.f32 %v4069, %v3967
      %v4102 = vadd.f32 %v4070, %v3970
      %v4103 = vadd.f32 %v4071, %v3975
      %v4104 = vadd.f32 %v4072, %v3978
      %v4105 = vadd.f32 %v4073, %v3983
      %v4106 = vadd.f32 %v4074, %v3986
      %v4107 = vadd.f32 %v4075, %v3991
      %v4108 = vadd.f32 %v4076, %v3994
      %v4109 = vadd.f32 %v4077, %v3999
      %v4110 = vadd.f32 %v4078, %v4002
      %v4111 = vadd.f32 %v4079, %v4007
      %v4112 = vadd.f32 %v4080, %v4010
      %v4113 = vadd.f32 %v4081, %v4015
      %v4114 = vadd.f32 %v4082, %v4018
      %v4115 = vadd.f32 %v4083, %v4023
      %v4116 = vadd.f32 %v4084, %v4026
      %v4117 = vadd.f32 %v4085, %v4031
      %v4118 = vadd.f32 %v4086, %v4034
      %v4119 = vadd.f32 %v4087, %v4039
      %v4120 = vadd.f32 %v4088, %v4042
      %v4121 = vadd.f32 %v4089, %v4047
      %v4122 = vadd.f32 %v4090, %v4050
      %v4123 = vadd.f32 %v4091, %v4055
      %v4124 = vadd.f32 %v4092, %v4058
      %4125 = vst.msk [vmem:[#allocation3] sm:$0xff] %vm199, %v4093
      %4126 = vst.msk [vmem:[#allocation3 + $0x8] sm:$0xff] %vm199, %v4094
      %4127 = vst.msk [vmem:[#allocation3 + $0x10] sm:$0xff] %vm199, %v4095
      %4128 = vst.msk [vmem:[#allocation3 + $0x18] sm:$0xff] %vm199, %v4096
      %4129 = vst.msk [vmem:[#allocation3 + $0x20] sm:$0xff] %vm199, %v4097
      %4130 = vst.msk [vmem:[#allocation3 + $0x28] sm:$0xff] %vm199, %v4098
      %4131 = vst.msk [vmem:[#allocation3 + $0x30] sm:$0xff] %vm199, %v4099
      %4132 = vst.msk [vmem:[#allocation3 + $0x38] sm:$0xff] %vm199, %v4100
      %4133 = vst.msk [vmem:[#allocation3 + $0x40] sm:$0xff] %vm199, %v4101
      %4134 = vst.msk [vmem:[#allocation3 + $0x48] sm:$0xff] %vm199, %v4102
      %4135 = vst.msk [vmem:[#allocation3 + $0x50] sm:$0xff] %vm199, %v4103
      %4136 = vst.msk [vmem:[#allocation3 + $0x58] sm:$0xff] %vm199, %v4104
      %4137 = vst.msk [vmem:[#allocation3 + $0x60] sm:$0xff] %vm199, %v4105
      %4138 = vst.msk [vmem:[#allocation3 + $0x68] sm:$0xff] %vm199, %v4106
      %4139 = vst.msk [vmem:[#allocation3 + $0x70] sm:$0xff] %vm199, %v4107
      %4140 = vst.msk [vmem:[#allocation3 + $0x78] sm:$0xff] %vm199, %v4108
      %4141 = vst.msk [vmem:[#allocation3 + $0x80] sm:$0xff] %vm199, %v4109
      %4142 = vst.msk [vmem:[#allocation3 + $0x88] sm:$0xff] %vm199, %v4110
      %4143 = vst.msk [vmem:[#allocation3 + $0x90] sm:$0xff] %vm199, %v4111
      %4144 = vst.msk [vmem:[#allocation3 + $0x98] sm:$0xff] %vm199, %v4112
      %4145 = vst.msk [vmem:[#allocation3 + $0xa0] sm:$0xff] %vm199, %v4113
      %4146 = vst.msk [vmem:[#allocation3 + $0xa8] sm:$0xff] %vm199, %v4114
      %4147 = vst.msk [vmem:[#allocation3 + $0xb0] sm:$0xff] %vm199, %v4115
      %4148 = vst.msk [vmem:[#allocation3 + $0xb8] sm:$0xff] %vm199, %v4116
      %4149 = vst.msk [vmem:[#allocation3 + $0xc0] sm:$0xff] %vm199, %v4117
      %4150 = vst.msk [vmem:[#allocation3 + $0xc8] sm:$0xff] %vm199, %v4118
      %4151 = vst.msk [vmem:[#allocation3 + $0xd0] sm:$0xff] %vm199, %v4119
      %4152 = vst.msk [vmem:[#allocation3 + $0xd8] sm:$0xff] %vm199, %v4120
      %4153 = vst.msk [vmem:[#allocation3 + $0xe0] sm:$0xff] %vm199, %v4121
      %4154 = vst.msk [vmem:[#allocation3 + $0xe8] sm:$0xff] %vm199, %v4122
      %4155 = vst.msk [vmem:[#allocation3 + $0xf0] sm:$0xff] %vm199, %v4123
      %4156 = vst.msk [vmem:[#allocation3 + $0xf8] sm:$0xff] %vm199, %v4124
      %v4157 = vld [vmem:[#allocation3] sm:$0xff]
      %v4158 = vld [vmem:[#allocation3 + $0x8] sm:$0xff]
      %v4159 = vld [vmem:[#allocation3 + $0x10] sm:$0xff]
      %v4160 = vld [vmem:[#allocation3 + $0x18] sm:$0xff]
      %v4161 = vld [vmem:[#allocation3 + $0x20] sm:$0xff]
      %v4162 = vld [vmem:[#allocation3 + $0x28] sm:$0xff]
      %v4163 = vld [vmem:[#allocation3 + $0x30] sm:$0xff]
      %v4164 = vld [vmem:[#allocation3 + $0x38] sm:$0xff]
      %v4165 = vld [vmem:[#allocation3 + $0x40] sm:$0xff]
      %v4166 = vld [vmem:[#allocation3 + $0x48] sm:$0xff]
      %v4167 = vld [vmem:[#allocation3 + $0x50] sm:$0xff]
      %v4168 = vld [vmem:[#allocation3 + $0x58] sm:$0xff]
      %v4169 = vld [vmem:[#allocation3 + $0x60] sm:$0xff]
      %v4170 = vld [vmem:[#allocation3 + $0x68] sm:$0xff]
      %v4171 = vld [vmem:[#allocation3 + $0x70] sm:$0xff]
      %v4172 = vld [vmem:[#allocation3 + $0x78] sm:$0xff]
      %v4173 = vld [vmem:[#allocation3 + $0x80] sm:$0xff]
      %v4174 = vld [vmem:[#allocation3 + $0x88] sm:$0xff]
      %v4175 = vld [vmem:[#allocation3 + $0x90] sm:$0xff]
      %v4176 = vld [vmem:[#allocation3 + $0x98] sm:$0xff]
      %v4177 = vld [vmem:[#allocation3 + $0xa0] sm:$0xff]
      %v4178 = vld [vmem:[#allocation3 + $0xa8] sm:$0xff]
      %v4179 = vld [vmem:[#allocation3 + $0xb0] sm:$0xff]
      %v4180 = vld [vmem:[#allocation3 + $0xb8] sm:$0xff]
      %v4181 = vld [vmem:[#allocation3 + $0xc0] sm:$0xff]
      %v4182 = vld [vmem:[#allocation3 + $0xc8] sm:$0xff]
      %v4183 = vld [vmem:[#allocation3 + $0xd0] sm:$0xff]
      %v4184 = vld [vmem:[#allocation3 + $0xd8] sm:$0xff]
      %v4185 = vld [vmem:[#allocation3 + $0xe0] sm:$0xff]
      %v4186 = vld [vmem:[#allocation3 + $0xe8] sm:$0xff]
      %v4187 = vld [vmem:[#allocation3 + $0xf0] sm:$0xff]
      %v4188 = vld [vmem:[#allocation3 + $0xf8] sm:$0xff]
      %4189 = vst.msk [vmem:[%s197] sm:$0xff] %vm199, %v4157
      %4190 = vst.msk [vmem:[%s197 + $0x8] sm:$0xff] %vm199, %v4158
      %4191 = vst.msk [vmem:[%s197 + $0x10] sm:$0xff] %vm199, %v4159
      %4192 = vst.msk [vmem:[%s197 + $0x18] sm:$0xff] %vm199, %v4160
      %4193 = vst.msk [vmem:[%s197 + $0x20] sm:$0xff] %vm199, %v4161
      %4194 = vst.msk [vmem:[%s197 + $0x28] sm:$0xff] %vm199, %v4162
      %4195 = vst.msk [vmem:[%s197 + $0x30] sm:$0xff] %vm199, %v4163
      %4196 = vst.msk [vmem:[%s197 + $0x38] sm:$0xff] %vm199, %v4164
      %4197 = vst.msk [vmem:[%s197 + $0x40] sm:$0xff] %vm199, %v4165
      %4198 = vst.msk [vmem:[%s197 + $0x48] sm:$0xff] %vm199, %v4166
      %4199 = vst.msk [vmem:[%s197 + $0x50] sm:$0xff] %vm199, %v4167
      %4200 = vst.msk [vmem:[%s197 + $0x58] sm:$0xff] %vm199, %v4168
      %4201 = vst.msk [vmem:[%s197 + $0x60] sm:$0xff] %vm199, %v4169
      %4202 = vst.msk [vmem:[%s197 + $0x68] sm:$0xff] %vm199, %v4170
      %4203 = vst.msk [vmem:[%s197 + $0x70] sm:$0xff] %vm199, %v4171
      %4204 = vst.msk [vmem:[%s197 + $0x78] sm:$0xff] %vm199, %v4172
      %4205 = vst.msk [vmem:[%s197 + $0x80] sm:$0xff] %vm199, %v4173
      %4206 = vst.msk [vmem:[%s197 + $0x88] sm:$0xff] %vm199, %v4174
      %4207 = vst.msk [vmem:[%s197 + $0x90] sm:$0xff] %vm199, %v4175
      %4208 = vst.msk [vmem:[%s197 + $0x98] sm:$0xff] %vm199, %v4176
      %4209 = vst.msk [vmem:[%s197 + $0xa0] sm:$0xff] %vm199, %v4177
      %4210 = vst.msk [vmem:[%s197 + $0xa8] sm:$0xff] %vm199, %v4178
      %4211 = vst.msk [vmem:[%s197 + $0xb0] sm:$0xff] %vm199, %v4179
      %4212 = vst.msk [vmem:[%s197 + $0xb8] sm:$0xff] %vm199, %v4180
      %4213 = vst.msk [vmem:[%s197 + $0xc0] sm:$0xff] %vm199, %v4181
      %4214 = vst.msk [vmem:[%s197 + $0xc8] sm:$0xff] %vm199, %v4182
      %4215 = vst.msk [vmem:[%s197 + $0xd0] sm:$0xff] %vm199, %v4183
      %4216 = vst.msk [vmem:[%s197 + $0xd8] sm:$0xff] %vm199, %v4184
      %4217 = vst.msk [vmem:[%s197 + $0xe0] sm:$0xff] %vm199, %v4185
      %4218 = vst.msk [vmem:[%s197 + $0xe8] sm:$0xff] %vm199, %v4186
      %4219 = vst.msk [vmem:[%s197 + $0xf0] sm:$0xff] %vm199, %v4187
      %4220 = vst.msk [vmem:[%s197 + $0xf8] sm:$0xff] %vm199, %v4188
      %p4221 = scmp.lt.s32.totalorder %s15, 1
      %s4222 = scalar_select %p4221, %s15, 1
      %s4223 = smul.addr %s4222, 32
      %s4224 = smul.addr %s4223, 8
      %s4225 = scalar_lea.vmem %s4, %s4224
      // Predicated region
      $region37: #{preact_bottleneck_forward.4} parent=35 // pred_check
        %p4226 = pneg %p122
      $region38: #{preact_bottleneck_forward.4} parent=35 // pred_check_branch
        %4228 = sbr.rel (%p4226) target = $region40
      $region39: #{preact_bottleneck_forward.4} parent=35 // pred_region
        _
      $region40: #{preact_bottleneck_forward.4} parent=35 // pred_fallthru
        _
    $region36: #{preact_bottleneck_forward.4} parent=5 // pred_fallthru
      _
    %p4229 = scmp.le.s32.totalorder 2, %s10
    // Predicated region
    $region41: #{preact_bottleneck_forward.4} parent=5 // pred_check
      %p4230 = pneg %p4229
    $region42: #{preact_bottleneck_forward.4} parent=5 // pred_check_branch
      %4232 = sbr.rel (%p4230) target = $region44
    $region43: #{preact_bottleneck_forward.4} parent=5 // pred_region
      %s4233 = ssub.s32 %s10, 2
      // Predicated region
      $region45: #{preact_bottleneck_forward.4} parent=43 // pred_check
        %p4234 = pneg %p128
      $region46: #{preact_bottleneck_forward.4} parent=43 // pred_check_branch
        %4236 = sbr.rel (%p4234) target = $region48
      $region47: #{preact_bottleneck_forward.4} parent=43 // pred_region
        %p4237 = scmp.lt.s32.totalorder %s16, 1
        %s4238 = scalar_select %p4237, %s16, 1
        %s4239 = smul.addr %s4238, 32
        %s4240 = smul.addr %s4239, 8
        %s4241 = scalar_lea.vmem %s4, %s4240
      $region48: #{preact_bottleneck_forward.4} parent=43 // pred_fallthru
        _
    $region44: #{preact_bottleneck_forward.4} parent=5 // pred_fallthru
      _
  $region6: #{preact_bottleneck_forward.4} parent=0 // loop_footer
    %s14 = sadd.s32 1, %s10
  $region7: #{preact_bottleneck_forward.4} parent=0 // loop_footer_branch
    %9 = sbr.rel target = $region3
  $region8: #{preact_bottleneck_forward.4} parent=0 // loop_exit
    _

</llo_original>
